<compile_context>
chip_gen: v7x
topology: tpu7x:2x2x1
jax: 0.10.0
libtpu: 0.0.40
codegen_flags: <defaults>
</compile_context>

<pallas_src>
import functools
import math

import jax
import jax.numpy as jnp
import numpy as np
from jax.experimental import pallas as pl
from jax.experimental.pallas import tpu as pltpu

_LANE = 128
_VMEM_LIMIT_BYTES = 48 * 1024 * 1024  # headroom on v7x (64 MiB/TC); far below v5e/v6e 128 MiB


def _round_up(v, m):
    return ((v + m - 1) // m) * m


def _pad2(a, rows, cols):
    r, c = a.shape
    if r == rows and c == cols:
        return a
    return jnp.pad(a, ((0, rows - r), (0, cols - c)))


# --------------------------- pass 1: pool MLP (MXU) ---------------------------
def _pool_mlp_kernel(x_ref, wt_ref, b_ref, out_ref, acc_ref):
    k = pl.program_id(2)

    @pl.when(k == 0)
    def _init():
        acc_ref[...] = jnp.zeros_like(acc_ref)

    acc_ref[...] += jnp.dot(x_ref[...], wt_ref[...],
                            preferred_element_type=jnp.float32)

    @pl.when(k == pl.num_programs(2) - 1)
    def _finalize():
        out_ref[...] = jnp.maximum(acc_ref[...] + b_ref[...], 0.0)


def _pool_mlp(x_p, wt_p, b_p, *, tm=128, tn=128, tk=128):
    n_p, k_p = x_p.shape
    f_p = wt_p.shape[1]
    grid = (n_p // tm, f_p // tn, k_p // tk)
    return pl.pallas_call(
        _pool_mlp_kernel,
        out_shape=jax.ShapeDtypeStruct((n_p, f_p), jnp.float32),
        grid=grid,
        in_specs=[
            pl.BlockSpec((tm, tk), lambda i, j, k: (i, k)),
            pl.BlockSpec((tk, tn), lambda i, j, k: (k, j)),
            pl.BlockSpec((1, tn), lambda i, j, k: (0, j)),
        ],
        out_specs=pl.BlockSpec((tm, tn), lambda i, j, k: (i, j)),
        scratch_shapes=[pltpu.VMEM((tm, tn), jnp.float32)],
        compiler_params=pltpu.CompilerParams(
            dimension_semantics=("parallel", "parallel", "arbitrary"),
            vmem_limit_bytes=_VMEM_LIMIT_BYTES),
    )(x_p, wt_p, b_p)


# ----------------- pass 2: max-pool aggregation + output projection -----------------
# Since hp >= 0 (post-relu) and adj is a {0,1} mask, the masked max over in-neighbours
# equals max_j(adj[i,j] * hp[j]) and a zero-in-degree row comes out as 0 (DGL's zero
# fill) -- so the running-max accumulator starts at 0 and no -inf sentinel is needed.
def _sage_agg_kernel(adj_ref, hp_ref, x_ref, wst_ref, wnt_ref, b_ref,
                     out_ref, acc_ref):
    s = pl.program_id(1)

    @pl.when(s == 0)
    def _init():
        acc_ref[...] = jnp.zeros_like(acc_ref)

    m = adj_ref[...].astype(jnp.float32)                  # (Td, Ts), values {0, 1}
    hp = hp_ref[...]                                      # (Ts, F_in_p)
    contrib = m[:, :, None] * hp[None, :, :]              # (Td, Ts, F_in_p) block only
    acc_ref[...] = jnp.maximum(acc_ref[...], jnp.max(contrib, axis=1))

    @pl.when(s == pl.num_programs(1) - 1)
    def _finalize():
        h = (jnp.dot(x_ref[...], wst_ref[...], preferred_element_type=jnp.float32)
             + jnp.dot(acc_ref[...], wnt_ref[...], preferred_element_type=jnp.float32)
             + b_ref[...])
        # F.normalize(p=2, dim=1, eps=1e-12): 1/max(||h||, eps) == rsqrt(max(ssq, eps^2))
        ssq = jnp.sum(h * h, axis=1, keepdims=True)
        inv = jax.lax.rsqrt(jnp.maximum(ssq, jnp.float32(1e-24)))
        out_ref[...] = jnp.maximum(h * inv, 0.0)


def _sage_aggregate(adj_p, hp_p, x_p, wst_p, wnt_p, b_p, *, td, ts):
    n_p = adj_p.shape[0]
    fi_p = hp_p.shape[1]
    fo_p = wst_p.shape[1]
    grid = (n_p // td, n_p // ts)
    return pl.pallas_call(
        _sage_agg_kernel,
        out_shape=jax.ShapeDtypeStruct((n_p, fo_p), jnp.float32),
        grid=grid,
        in_specs=[
            pl.BlockSpec((td, ts), lambda d, s: (d, s)),       # adj block (int8)
            pl.BlockSpec((ts, fi_p), lambda d, s: (s, 0)),     # hp src tile
            pl.BlockSpec((td, fi_p), lambda d, s: (d, 0)),     # x dst tile (resident over s)
            pl.BlockSpec((fi_p, fo_p), lambda d, s: (0, 0)),   # W_self^T
            pl.BlockSpec((fi_p, fo_p), lambda d, s: (0, 0)),   # W_neigh^T
            pl.BlockSpec((1, fo_p), lambda d, s: (0, 0)),      # bias
        ],
        out_specs=pl.BlockSpec((td, fo_p), lambda d, s: (d, 0)),
        scratch_shapes=[pltpu.VMEM((td, fi_p), jnp.float32)],  # running max over src blocks
        compiler_params=pltpu.CompilerParams(
            dimension_semantics=("parallel", "arbitrary"),
            vmem_limit_bytes=_VMEM_LIMIT_BYTES),
    )(adj_p, hp_p, x_p, wst_p, wnt_p, b_p)


def _sage_pool_layer(adj_p, h_p, w_pool, b_pool, w_self, w_neigh, bias, *, td, ts):
    n_p = adj_p.shape[0]
    f_in = w_pool.shape[1]
    f_out = w_self.shape[0]
    fi_p = _round_up(f_in, _LANE)
    fo_p = _round_up(f_out, _LANE)

    # Lane-dense zero padding + one-time wrapper-side weight transposes (no in-kernel .T).
    h_p = _pad2(h_p, n_p, fi_p)
    wpt = _pad2(w_pool.T, fi_p, fi_p)
    bp = _pad2(b_pool.reshape(1, -1), 1, fi_p)
    wst = _pad2(w_self.T, fi_p, fo_p)
    wnt = _pad2(w_neigh.T, fi_p, fo_p)
    b = _pad2(bias.reshape(1, -1), 1, fo_p)

    hp = _pool_mlp(h_p, wpt, bp)
    return _sage_aggregate(adj_p, hp, h_p, wst, wnt, b, td=td, ts=ts)


@functools.partial(jax.jit, static_argnames=("td", "ts"))
def sage_forward(adj, x, params, *, td=64, ts=128):
    """Two-layer SAGE: conv1 -> l2-normalize -> relu -> conv2 -> l2-normalize -> relu."""
    n = x.shape[0]
    n_p = _round_up(n, math.lcm(td, ts, _LANE))
    # Dense {0,1} adjacency (dst, src) as int8: 4x less HBM/VMEM traffic than f32.
    adj_p = jnp.zeros((n_p, n_p), jnp.int8).at[:n, :n].set((adj != 0).astype(jnp.int8))
    h = x
    for layer_params in params:
        h = _sage_pool_layer(adj_p, h, *layer_params, td=td, ts=ts)
    f_out = params[-1][2].shape[0]
    return h[:n, :f_out]


# ---------------- pure-JAX reference (faithful DGL semantics, for checking) ----------------
def _ref_layer(adj, x, w_pool, b_pool, w_self, w_neigh, bias):
    hp = jnp.maximum(x @ w_pool.T + b_pool, 0.0)
    neg = jnp.float32(-1e30)
    masked = jnp.where(adj[:, :, None] != 0.0, hp[None, :, :], neg)
    neigh = jnp.max(masked, axis=1)
    deg = jnp.sum(adj, axis=1, keepdims=True)
    neigh = jnp.where(deg > 0.0, neigh, 0.0)
    h = x @ w_self.T + neigh @ w_neigh.T + bias
    h = h / jnp.maximum(jnp.sqrt(jnp.sum(h * h, axis=1, keepdims=True)), 1e-12)
    return jnp.maximum(h, 0.0)


def _ref_forward(adj, x, params):
    p1, p2 = params
    return _ref_layer(adj, _ref_layer(adj, x, *p1), *p2)


def init_layer_params(key, f_in, f_out):
    ks = jax.random.split(key, 5)
    s = 1.0 / np.sqrt(f_in)
    w_pool = jax.random.uniform(ks[0], (f_in, f_in), jnp.float32, -s, s)
    b_pool = jax.random.uniform(ks[1], (f_in,), jnp.float32, -s, s)
    w_self = jax.random.uniform(ks[2], (f_out, f_in), jnp.float32, -s, s)
    w_neigh = jax.random.uniform(ks[3], (f_out, f_in), jnp.float32, -s, s)
    bias = jax.random.uniform(ks[4], (f_out,), jnp.float32, -s, s)
    return (w_pool, b_pool, w_self, w_neigh, bias)


if __name__ == "__main__":
    key = jax.random.PRNGKey(0)
    k_adj, k_x, k_l1, k_l2 = jax.random.split(key, 4)

    N = 200          # nodes (padded internally to 256 -> multi-block grid is exercised)
    IN_FEATS = 48
    HID_FEATS = 96
    OUT_FEATS = 40

    # Dense adjacency (dst, src); ~5% edge density; one zero-in-degree node.
    adj = (jax.random.uniform(k_adj, (N, N)) < 0.05).astype(jnp.float32)
    adj = adj.at[0, :].set(0.0)

    x = jax.random.normal(k_x, (N, IN_FEATS), jnp.float32)

    params = (init_layer_params(k_l1, IN_FEATS, HID_FEATS),
              init_layer_params(k_l2, HID_FEATS, OUT_FEATS))

    out = jax.block_until_ready(sage_forward(adj, x, params))
    ref = jax.block_until_ready(_ref_forward(adj, x, params))

    np.testing.assert_allclose(np.asarray(out), np.asarray(ref),
                               rtol=1e-5, atol=1e-5)
    assert out.shape == (N, OUT_FEATS)
    print("KERNEL_OK")
</pallas_src>

<mosaic_0001>
module attributes {stable_mosaic.version = 11 : i64} {
  func.func @_pool_mlp_kernel(%arg0: i32, %arg1: i32, %arg2: i32, %arg3: memref<128x128xf32, #tpu.memory_space<vmem>>, %arg4: memref<128x128xf32, #tpu.memory_space<vmem>>, %arg5: memref<1x128xf32, #tpu.memory_space<vmem>>, %arg6: memref<128x128xf32, #tpu.memory_space<vmem>>, %arg7: memref<128x128xf32, #tpu.memory_space<vmem>>) attributes {dimension_semantics = [#tpu.dimension_semantics<parallel>, #tpu.dimension_semantics<parallel>, #tpu.dimension_semantics<arbitrary>], iteration_bounds = array<i64: 2, 1, 1>, scalar_prefetch = 0 : i64, scratch_operands = 1 : i64, tpu.core_type = #tpu.core_type<tc>, window_params = [{transform_indices = @transform_0, window_bounds = array<i64: 128, 128>}, {transform_indices = @transform_1, window_bounds = array<i64: 128, 128>}, {transform_indices = @transform_2, window_bounds = array<i64: 1, 128>}, {transform_indices = @transform_3, window_bounds = array<i64: 128, 128>}]} {
    %c0_i32 = arith.constant 0 : i32
    %0 = arith.cmpi eq, %arg2, %c0_i32 : i32
    %1 = arith.extui %0 : i1 to i32
    %c0_i32_0 = arith.constant 0 : i32
    %2 = arith.cmpi ne, %1, %c0_i32_0 : i32
    scf.if %2 {
      %cst_10 = arith.constant 0.000000e+00 : f32
      %12 = vector.broadcast %cst_10 : f32 to vector<128x128xf32>
      %c0_11 = arith.constant 0 : index
      %c0_12 = arith.constant 0 : index
      %13 = vector.load %arg7[%c0_11, %c0_12] : memref<128x128xf32, #tpu.memory_space<vmem>>, vector<128x128xf32>
      tpu.vector_store %arg7[%c0_11, %c0_12], %12 {strides = array<i32>} : memref<128x128xf32, #tpu.memory_space<vmem>>, vector<128x128xf32>,
    } else {
    }
    %c0 = arith.constant 0 : index
    %c0_1 = arith.constant 0 : index
    %3 = vector.load %arg7[%c0, %c0_1] : memref<128x128xf32, #tpu.memory_space<vmem>>, vector<128x128xf32>
    %c0_2 = arith.constant 0 : index
    %c0_3 = arith.constant 0 : index
    %4 = vector.load %arg3[%c0_2, %c0_3] : memref<128x128xf32, #tpu.memory_space<vmem>>, vector<128x128xf32>
    %c0_4 = arith.constant 0 : index
    %c0_5 = arith.constant 0 : index
    %5 = vector.load %arg4[%c0_4, %c0_5] : memref<128x128xf32, #tpu.memory_space<vmem>>, vector<128x128xf32>
    %cst = arith.constant dense<0.000000e+00> : vector<128x128xf32>
    %6 = tpu.matmul %4, %5, %cst {dimension_numbers = #tpu.dot_dimension_numbers<[1], [0], [0], [1], [0, 0, 1, 1], [], []>} : vector<128x128xf32>, vector<128x128xf32>, vector<128x128xf32> -> vector<128x128xf32>
    %7 = arith.addf %3, %6 : vector<128x128xf32>
    %c0_6 = arith.constant 0 : index
    %c0_7 = arith.constant 0 : index
    %8 = vector.load %arg7[%c0_6, %c0_7] : memref<128x128xf32, #tpu.memory_space<vmem>>, vector<128x128xf32>
    tpu.vector_store %arg7[%c0_6, %c0_7], %7 {strides = array<i32>} : memref<128x128xf32, #tpu.memory_space<vmem>>, vector<128x128xf32>,
    %c0_i32_8 = arith.constant 0 : i32
    %9 = arith.cmpi eq, %arg2, %c0_i32_8 : i32
    %10 = arith.extui %9 : i1 to i32
    %c0_i32_9 = arith.constant 0 : i32
    %11 = arith.cmpi ne, %10, %c0_i32_9 : i32
    scf.if %11 {
      %c0_10 = arith.constant 0 : index
      %c0_11 = arith.constant 0 : index
      %12 = vector.load %arg7[%c0_10, %c0_11] : memref<128x128xf32, #tpu.memory_space<vmem>>, vector<128x128xf32>
      %c0_12 = arith.constant 0 : index
      %c0_13 = arith.constant 0 : index
      %13 = vector.load %arg5[%c0_12, %c0_13] : memref<1x128xf32, #tpu.memory_space<vmem>>, vector<1x128xf32>
      %14 = vector.broadcast %13 : vector<1x128xf32> to vector<128x128xf32>
      %15 = arith.addf %12, %14 : vector<128x128xf32>
      %cst_14 = arith.constant 0.000000e+00 : f32
      %16 = vector.broadcast %cst_14 : f32 to vector<128x128xf32>
      %17 = arith.maximumf %15, %16 : vector<128x128xf32>
      %c0_15 = arith.constant 0 : index
      %c0_16 = arith.constant 0 : index
      %18 = vector.load %arg6[%c0_15, %c0_16] : memref<128x128xf32, #tpu.memory_space<vmem>>, vector<128x128xf32>
      tpu.vector_store %arg6[%c0_15, %c0_16], %17 {strides = array<i32>} : memref<128x128xf32, #tpu.memory_space<vmem>>, vector<128x128xf32>,
    } else {
    }
    return
  }
  func.func @transform_0(%arg0: i32, %arg1: i32, %arg2: i32) -> (i32, i32) {
    %c0_i32 = arith.constant 0 : i32
    return %arg0, %arg2 : i32, i32
  }
  func.func @transform_1(%arg0: i32, %arg1: i32, %arg2: i32) -> (i32, i32) {
    %c0_i32 = arith.constant 0 : i32
    return %arg2, %arg1 : i32, i32
  }
  func.func @transform_2(%arg0: i32, %arg1: i32, %arg2: i32) -> (i32, i32) {
    %c0_i32 = arith.constant 0 : i32
    %c0_i32_0 = arith.constant 0 : i32
    return %c0_i32, %arg1 : i32, i32
  }
  func.func @transform_3(%arg0: i32, %arg1: i32, %arg2: i32) -> (i32, i32) {
    %c0_i32 = arith.constant 0 : i32
    return %arg0, %arg1 : i32, i32
  }
}

module attributes {stable_mosaic.version = 11 : i64} {
  func.func @_sage_agg_kernel(%arg0: i32, %arg1: i32, %arg2: memref<64x128xi8, #tpu.memory_space<vmem>>, %arg3: memref<128x128xf32, #tpu.memory_space<vmem>>, %arg4: memref<64x128xf32, #tpu.memory_space<vmem>>, %arg5: memref<128x128xf32, #tpu.memory_space<vmem>>, %arg6: memref<128x128xf32, #tpu.memory_space<vmem>>, %arg7: memref<1x128xf32, #tpu.memory_space<vmem>>, %arg8: memref<64x128xf32, #tpu.memory_space<vmem>>, %arg9: memref<64x128xf32, #tpu.memory_space<vmem>>) attributes {dimension_semantics = [#tpu.dimension_semantics<parallel>, #tpu.dimension_semantics<arbitrary>], iteration_bounds = array<i64: 4, 2>, scalar_prefetch = 0 : i64, scratch_operands = 1 : i64, tpu.core_type = #tpu.core_type<tc>, window_params = [{transform_indices = @transform_0, window_bounds = array<i64: 64, 128>}, {transform_indices = @transform_1, window_bounds = array<i64: 128, 128>}, {transform_indices = @transform_2, window_bounds = array<i64: 64, 128>}, {pipeline_mode = #tpu.pipeline_mode<synchronous>, transform_indices = @transform_3, window_bounds = array<i64: 128, 128>}, {pipeline_mode = #tpu.pipeline_mode<synchronous>, transform_indices = @transform_4, window_bounds = array<i64: 128, 128>}, {pipeline_mode = #tpu.pipeline_mode<synchronous>, transform_indices = @transform_5, window_bounds = array<i64: 1, 128>}, {transform_indices = @transform_6, window_bounds = array<i64: 64, 128>}]} {
    %c0_i32 = arith.constant 0 : i32
    %0 = arith.cmpi eq, %arg1, %c0_i32 : i32
    %1 = arith.extui %0 : i1 to i32
    %c0_i32_0 = arith.constant 0 : i32
    %2 = arith.cmpi ne, %1, %c0_i32_0 : i32
    scf.if %2 {
      %cst_9 = arith.constant 0.000000e+00 : f32
      %18 = vector.broadcast %cst_9 : f32 to vector<64x128xf32>
      %c0_10 = arith.constant 0 : index
      %c0_11 = arith.constant 0 : index
      %19 = vector.load %arg9[%c0_10, %c0_11] : memref<64x128xf32, #tpu.memory_space<vmem>>, vector<64x128xf32>
      tpu.vector_store %arg9[%c0_10, %c0_11], %18 {strides = array<i32>} : memref<64x128xf32, #tpu.memory_space<vmem>>, vector<64x128xf32>,
    } else {
    }
    %c0 = arith.constant 0 : index
    %c0_1 = arith.constant 0 : index
    %3 = vector.load %arg2[%c0, %c0_1] : memref<64x128xi8, #tpu.memory_space<vmem>>, vector<64x128xi8>
    %4 = arith.sitofp %3 : vector<64x128xi8> to vector<64x128xf32>
    %c0_2 = arith.constant 0 : index
    %c0_3 = arith.constant 0 : index
    %5 = vector.load %arg3[%c0_2, %c0_3] : memref<128x128xf32, #tpu.memory_space<vmem>>, vector<128x128xf32>
    %6 = vector.shape_cast %4 : vector<64x128xf32> to vector<64x128x1xf32>
    %7 = vector.shape_cast %5 : vector<128x128xf32> to vector<1x128x128xf32>
    %8 = vector.broadcast %6 : vector<64x128x1xf32> to vector<64x128x128xf32>
    %9 = vector.broadcast %7 : vector<1x128x128xf32> to vector<64x128x128xf32>
    %10 = arith.mulf %8, %9 : vector<64x128x128xf32>
    %c0_4 = arith.constant 0 : index
    %c0_5 = arith.constant 0 : index
    %11 = vector.load %arg9[%c0_4, %c0_5] : memref<64x128xf32, #tpu.memory_space<vmem>>, vector<64x128xf32>
    %cst = arith.constant dense<0xFF800000> : vector<64x128xf32>
    %12 = vector.multi_reduction <maximumf>, %10, %cst [1] : vector<64x128x128xf32> to vector<64x128xf32>
    %13 = arith.maximumf %11, %12 : vector<64x128xf32>
    %c0_6 = arith.constant 0 : index
    %c0_7 = arith.constant 0 : index
    %14 = vector.load %arg9[%c0_6, %c0_7] : memref<64x128xf32, #tpu.memory_space<vmem>>, vector<64x128xf32>
    tpu.vector_store %arg9[%c0_6, %c0_7], %13 {strides = array<i32>} : memref<64x128xf32, #tpu.memory_space<vmem>>, vector<64x128xf32>,
    %c1_i32 = arith.constant 1 : i32
    %15 = arith.cmpi eq, %arg1, %c1_i32 : i32
    %16 = arith.extui %15 : i1 to i32
    %c0_i32_8 = arith.constant 0 : i32
    %17 = arith.cmpi ne, %16, %c0_i32_8 : i32
    scf.if %17 {
      %c0_9 = arith.constant 0 : index
      %c0_10 = arith.constant 0 : index
      %18 = vector.load %arg4[%c0_9, %c0_10] : memref<64x128xf32, #tpu.memory_space<vmem>>, vector<64x128xf32>
      %c0_11 = arith.constant 0 : index
      %c0_12 = arith.constant 0 : index
      %19 = vector.load %arg5[%c0_11, %c0_12] : memref<128x128xf32, #tpu.memory_space<vmem>>, vector<128x128xf32>
      %cst_13 = arith.constant dense<0.000000e+00> : vector<64x128xf32>
      %20 = tpu.matmul %18, %19, %cst_13 {dimension_numbers = #tpu.dot_dimension_numbers<[1], [0], [0], [1], [0, 0, 1, 1], [], []>} : vector<64x128xf32>, vector<128x128xf32>, vector<64x128xf32> -> vector<64x128xf32>
      %c0_14 = arith.constant 0 : index
      %c0_15 = arith.constant 0 : index
      %21 = vector.load %arg9[%c0_14, %c0_15] : memref<64x128xf32, #tpu.memory_space<vmem>>, vector<64x128xf32>
      %c0_16 = arith.constant 0 : index
      %c0_17 = arith.constant 0 : index
      %22 = vector.load %arg6[%c0_16, %c0_17] : memref<128x128xf32, #tpu.memory_space<vmem>>, vector<128x128xf32>
      %cst_18 = arith.constant dense<0.000000e+00> : vector<64x128xf32>
      %23 = tpu.matmul %21, %22, %cst_18 {dimension_numbers = #tpu.dot_dimension_numbers<[1], [0], [0], [1], [0, 0, 1, 1], [], []>} : vector<64x128xf32>, vector<128x128xf32>, vector<64x128xf32> -> vector<64x128xf32>
      %24 = arith.addf %20, %23 : vector<64x128xf32>
      %c0_19 = arith.constant 0 : index
      %c0_20 = arith.constant 0 : index
      %25 = vector.load %arg7[%c0_19, %c0_20] : memref<1x128xf32, #tpu.memory_space<vmem>>, vector<1x128xf32>
      %26 = vector.broadcast %25 : vector<1x128xf32> to vector<64x128xf32>
      %27 = arith.addf %24, %26 : vector<64x128xf32>
      %28 = arith.mulf %27, %27 : vector<64x128xf32>
      %cst_21 = arith.constant dense<0.000000e+00> : vector<64xf32>
      %29 = vector.multi_reduction <add>, %28, %cst_21 [1] : vector<64x128xf32> to vector<64xf32>
      %30 = vector.shape_cast %29 : vector<64xf32> to vector<64x1xf32>
      %cst_22 = arith.constant 1.000000e-24 : f32
      %31 = vector.broadcast %cst_22 : f32 to vector<64x1xf32>
      %32 = arith.maximumf %30, %31 : vector<64x1xf32>
      %33 = math.rsqrt %32 : vector<64x1xf32>
      %34 = vector.broadcast %33 : vector<64x1xf32> to vector<64x128xf32>
      %35 = arith.mulf %27, %34 : vector<64x128xf32>
      %cst_23 = arith.constant 0.000000e+00 : f32
      %36 = vector.broadcast %cst_23 : f32 to vector<64x128xf32>
      %37 = arith.maximumf %35, %36 : vector<64x128xf32>
      %c0_24 = arith.constant 0 : index
      %c0_25 = arith.constant 0 : index
      %38 = vector.load %arg8[%c0_24, %c0_25] : memref<64x128xf32, #tpu.memory_space<vmem>>, vector<64x128xf32>
      tpu.vector_store %arg8[%c0_24, %c0_25], %37 {strides = array<i32>} : memref<64x128xf32, #tpu.memory_space<vmem>>, vector<64x128xf32>,
    } else {
    }
    return
  }
  func.func @transform_0(%arg0: i32, %arg1: i32) -> (i32, i32) {
    %c0_i32 = arith.constant 0 : i32
    return %arg0, %arg1 : i32, i32
  }
  func.func @transform_1(%arg0: i32, %arg1: i32) -> (i32, i32) {
    %c0_i32 = arith.constant 0 : i32
    %c0_i32_0 = arith.constant 0 : i32
    return %arg1, %c0_i32 : i32, i32
  }
  func.func @transform_2(%arg0: i32, %arg1: i32) -> (i32, i32) {
    %c0_i32 = arith.constant 0 : i32
    %c0_i32_0 = arith.constant 0 : i32
    return %arg0, %c0_i32 : i32, i32
  }
  func.func @transform_3(%arg0: i32, %arg1: i32) -> (i32, i32) {
    %c0_i32 = arith.constant 0 : i32
    %c0_i32_0 = arith.constant 0 : i32
    %c0_i32_1 = arith.constant 0 : i32
    return %c0_i32, %c0_i32_0 : i32, i32
  }
  func.func @transform_4(%arg0: i32, %arg1: i32) -> (i32, i32) {
    %c0_i32 = arith.constant 0 : i32
    %c0_i32_0 = arith.constant 0 : i32
    %c0_i32_1 = arith.constant 0 : i32
    return %c0_i32, %c0_i32_0 : i32, i32
  }
  func.func @transform_5(%arg0: i32, %arg1: i32) -> (i32, i32) {
    %c0_i32 = arith.constant 0 : i32
    %c0_i32_0 = arith.constant 0 : i32
    %c0_i32_1 = arith.constant 0 : i32
    return %c0_i32, %c0_i32_0 : i32, i32
  }
  func.func @transform_6(%arg0: i32, %arg1: i32) -> (i32, i32) {
    %c0_i32 = arith.constant 0 : i32
    %c0_i32_0 = arith.constant 0 : i32
    return %arg0, %c0_i32 : i32, i32
  }
}

</mosaic_0001>

<llo_original>
// kernel: sage_forward.4
$region0: #{sage_forward.4}
  #allocation0 [shape = 'u32[]', space=smem, size = 0x4, offset = 0x4, fixed_abs, tag = 'smem constant byte address 0x4 - core index']
  #allocation1 [shape = 'u32[144,128]{1,0:T(1,128)}', space=vmem, size = 0x12000, scoped, tag = 'internal scratch']
  #allocation2 [shape = 'f32[128,128]{1,0:T(8,128)}', space=vmem, size = 0x10000, scoped, tag = 'scratch operand']
  %s0 = inlined_call_operand.vmem [shape: f32[256,128], index: 0, kind: input, shape index: {}]
  %s1 = inlined_call_operand.vmem [shape: f32[128,128], index: 1, kind: input, shape index: {}]
  %s2 = inlined_call_operand.vmem [shape: f32[1,128], index: 2, kind: input, shape index: {}]
  %s3 = inlined_call_operand.vmem [shape: f32[256,128], index: 3, kind: output, shape index: {}]
  %s4 = sld [smem:[#allocation0]]
  $region53: #{sage_forward.4} parent=0
    _
  %s6 = ssub.s32 1, %s4
  %s7 = scalar_select 0, %s6, %s4
  loop: start=0, step=1, limit=4
  $region2: #{sage_forward.4} parent=0 // loop_pre_header
    _
  $region3: #{sage_forward.4} parent=0 // loop_header
    %s9 = sphi 0, %s13
    %p10 = scmp.ge.s32.totalorder %s9, 4
    %s16 = sphi 0, %s35
    %s17 = sphi 0, %s31
    %s18 = sphi 0, %s27
    %s19 = sphi 0, %s16
    %s20 = sphi 0, %s17
    %s21 = sphi 0, %s18
    %s22 = sphi 0, %s19
    %s23 = sphi 0, %s20
    %s24 = sphi 0, %s21
    %s40 = sphi 0, %s42
    %s43 = sphi 0, %s40
    %s44 = sphi 0, %s43
    %s60 = sphi 0, %s44
    %s68 = sphi 0, %s70
    %s71 = sphi 0, %s68
    %s72 = sphi 0, %s71
    %s88 = sphi 0, %s72
    %s94 = sphi 0, %s96
    %s97 = sphi 0, %s94
    %s98 = sphi 0, %s97
    %s114 = sphi 0, %s98
    %s122 = sphi 0, %s124
    %s125 = sphi 0, %s122
    %s126 = sphi 0, %s125
    %s142 = sphi 0, %s126
  $region4: #{sage_forward.4} parent=0 // loop_header_branch
    %12 = sbr.rel (%p10) target = $region8
  $region5: #{sage_forward.4} parent=0 // loop_body
    %s14 = ssub.s32 %s9, 1
    %s15 = ssub.s32 %s9, 2
    %s25 = sadd.s32 1, %s18
    %p26 = scmp.ge.s32.totalorder %s25, 1
    %s27 = scalar_select %p26, 0, %s25
    %s28 = sadd.s32 1, %s17
    %s29 = scalar_select %p26, %s28, %s17
    %p30 = scmp.ge.s32.totalorder %s29, 1
    %s31 = scalar_select %p30, 0, %s29
    %s32 = sadd.s32 1, %s16
    %s33 = scalar_select %p30, %s32, %s16
    %p34 = scmp.ge.s32.totalorder %s33, 2
    %s35 = scalar_select %p34, 0, %s33
    %s36 = ssub.s32 %s16, %s35
    %s37 = ssub.s32 %s18, %s27
    %s38 = sor.u32 %s36, %s37
    %p39 = scmp.eq.s32.totalorder %s38, 0
    %s41 = sadd.s32 %s40, 1
    %s42 = scalar_select %p39, %s40, %s41
    %p45 = pneg %p39
    %p46 = scmp.eq.s32.totalorder %s9, 1
    %p47 = por %p45, %p46
    %p48 = scmp.ne.s32.totalorder %s40, %s43
    %p49 = scmp.eq.s32.totalorder %s9, 0
    %p50 = por %p48, %p49
    %p51 = scmp.ne.s32.totalorder %s40, %s43
    %p52 = scmp.eq.s32.totalorder %s14, 1
    %p53 = por %p51, %p52
    %p54 = scmp.ne.s32.totalorder %s43, %s44
    %p55 = scmp.eq.s32.totalorder %s14, 0
    %p56 = por %p54, %p55
    %p57 = scmp.ne.s32.totalorder %s43, %s44
    %p58 = scmp.eq.s32.totalorder %s15, 1
    %p59 = por %p57, %p58
    %p61 = scmp.ne.s32.totalorder %s44, %s60
    %p62 = scmp.eq.s32.totalorder %s15, 0
    %p63 = por %p61, %p62
    %s64 = ssub.s32 %s18, %s27
    %s65 = ssub.s32 %s17, %s31
    %s66 = sor.u32 %s64, %s65
    %p67 = scmp.eq.s32.totalorder %s66, 0
    %s69 = sadd.s32 %s68, 1
    %s70 = scalar_select %p67, %s68, %s69
    %p73 = pneg %p67
    %p74 = scmp.eq.s32.totalorder %s9, 1
    %p75 = por %p73, %p74
    %p76 = scmp.ne.s32.totalorder %s68, %s71
    %p77 = scmp.eq.s32.totalorder %s9, 0
    %p78 = por %p76, %p77
    %p79 = scmp.ne.s32.totalorder %s68, %s71
    %p80 = scmp.eq.s32.totalorder %s14, 1
    %p81 = por %p79, %p80
    %p82 = scmp.ne.s32.totalorder %s71, %s72
    %p83 = scmp.eq.s32.totalorder %s14, 0
    %p84 = por %p82, %p83
    %p85 = scmp.ne.s32.totalorder %s71, %s72
    %p86 = scmp.eq.s32.totalorder %s15, 1
    %p87 = por %p85, %p86
    %p89 = scmp.ne.s32.totalorder %s72, %s88
    %p90 = scmp.eq.s32.totalorder %s15, 0
    %p91 = por %p89, %p90
    %s92 = ssub.s32 %s17, %s31
    %p93 = scmp.eq.s32.totalorder %s92, 0
    %s95 = sadd.s32 %s94, 1
    %s96 = scalar_select %p93, %s94, %s95
    %p99 = pneg %p93
    %p100 = scmp.eq.s32.totalorder %s9, 1
    %p101 = por %p99, %p100
    %p102 = scmp.ne.s32.totalorder %s94, %s97
    %p103 = scmp.eq.s32.totalorder %s9, 0
    %p104 = por %p102, %p103
    %p105 = scmp.ne.s32.totalorder %s94, %s97
    %p106 = scmp.eq.s32.totalorder %s14, 1
    %p107 = por %p105, %p106
    %p108 = scmp.ne.s32.totalorder %s97, %s98
    %p109 = scmp.eq.s32.totalorder %s14, 0
    %p110 = por %p108, %p109
    %p111 = scmp.ne.s32.totalorder %s97, %s98
    %p112 = scmp.eq.s32.totalorder %s15, 1
    %p113 = por %p111, %p112
    %p115 = scmp.ne.s32.totalorder %s98, %s114
    %p116 = scmp.eq.s32.totalorder %s15, 0
    %p117 = por %p115, %p116
    %s118 = ssub.s32 %s16, %s35
    %s119 = ssub.s32 %s17, %s31
    %s120 = sor.u32 %s118, %s119
    %p121 = scmp.eq.s32.totalorder %s120, 0
    %s123 = sadd.s32 %s122, 1
    %s124 = scalar_select %p121, %s122, %s123
    %p127 = pneg %p121
    %p128 = scmp.eq.s32.totalorder %s9, 1
    %p129 = por %p127, %p128
    %p130 = scmp.ne.s32.totalorder %s122, %s125
    %p131 = scmp.eq.s32.totalorder %s9, 0
    %p132 = por %p130, %p131
    %p133 = scmp.ne.s32.totalorder %s122, %s125
    %p134 = scmp.eq.s32.totalorder %s14, 1
    %p135 = por %p133, %p134
    %p136 = scmp.ne.s32.totalorder %s125, %s126
    %p137 = scmp.eq.s32.totalorder %s14, 0
    %p138 = por %p136, %p137
    %p139 = scmp.ne.s32.totalorder %s125, %s126
    %p140 = scmp.eq.s32.totalorder %s15, 1
    %p141 = por %p139, %p140
    %p143 = scmp.ne.s32.totalorder %s126, %s142
    %p144 = scmp.eq.s32.totalorder %s15, 0
    %p145 = por %p143, %p144
    %p146 = scmp.le.s32.totalorder 1, %s9
    %p147 = scmp.lt.s32.totalorder %s9, 3
    %p148 = pnand %p146, %p147
    %p149 = pneg %p148
    // Predicated region
    $region9: #{sage_forward.4} parent=5 // pred_check
      _
    $region10: #{sage_forward.4} parent=5 // pred_check_branch
      %151 = sbr.rel (%p148) target = $region12
    $region11: #{sage_forward.4} parent=5 // pred_region
      %s152 = ssub.s32 %s9, 1
      // Predicated region
      $region13: #{sage_forward.4} parent=11 // pred_check
        %p153 = pneg %p84
      $region14: #{sage_forward.4} parent=11 // pred_check_branch
        %155 = sbr.rel (%p153) target = $region16
      $region15: #{sage_forward.4} parent=11 // pred_region
        %s156 = smul.u32 16, %s21
        %p157 = scmp.lt.s32.totalorder %s156, 15
        %s158 = scalar_select %p157, %s156, 15
        %p159 = scmp.lt.s32.totalorder %s20, 0
        %s160 = scalar_select %p159, %s20, 0
        %s161 = sadd.s32 %s160, %s158
        %s162 = smul.addr %s161, 8
        %s163 = scalar_lea.vmem %s1, %s162
        %s164 = smul.u32 16, %s21
      $region16: #{sage_forward.4} parent=11 // pred_fallthru
        _
      // Predicated region
      $region17: #{sage_forward.4} parent=11 // pred_check
        %p165 = pneg %p110
      $region18: #{sage_forward.4} parent=11 // pred_check_branch
        %167 = sbr.rel (%p165) target = $region20
      $region19: #{sage_forward.4} parent=11 // pred_region
        %p168 = scmp.lt.s32.totalorder %s20, 0
        %s169 = scalar_select %p168, %s20, 0
        %s170 = scalar_lea.vmem %s2, %s169
      $region20: #{sage_forward.4} parent=11 // pred_fallthru
        _
    $region12: #{sage_forward.4} parent=5 // pred_fallthru
      _
    %p171 = scmp.lt.s32.totalorder %s9, 2
    // Predicated region
    $region21: #{sage_forward.4} parent=5 // pred_check
      %p172 = pneg %p171
    $region22: #{sage_forward.4} parent=5 // pred_check_branch
      %174 = sbr.rel (%p172) target = $region24
    $region23: #{sage_forward.4} parent=5 // pred_region
      // Predicated region
      $region25: #{sage_forward.4} parent=23 // pred_check
        %p175 = pneg %p50
      $region26: #{sage_forward.4} parent=23 // pred_check_branch
        %177 = sbr.rel (%p175) target = $region28
      $region27: #{sage_forward.4} parent=23 // pred_region
        %s178 = smul.u32 16, %s16
        %p179 = scmp.lt.s32.totalorder %s178, 31
        %s180 = scalar_select %p179, %s178, 31
        %p181 = scmp.lt.s32.totalorder %s18, 0
        %s182 = scalar_select %p181, %s18, 0
        %s183 = sadd.s32 %s182, %s180
        %s184 = smul.addr %s183, 8
        %s185 = scalar_lea.vmem %s0, %s184
        %s186 = smul.u32 16, %s16
      $region28: #{sage_forward.4} parent=23 // pred_fallthru
        _
    $region24: #{sage_forward.4} parent=5 // pred_fallthru
      _
    %p187 = scmp.le.s32.totalorder 1, %s9
    %p188 = scmp.lt.s32.totalorder %s9, 3
    %p189 = pnand %p187, %p188
    %p190 = pneg %p189
    // Predicated region
    $region29: #{sage_forward.4} parent=5 // pred_check
      _
    $region30: #{sage_forward.4} parent=5 // pred_check_branch
      %192 = sbr.rel (%p189) target = $region32
    $region31: #{sage_forward.4} parent=5 // pred_region
      %s193 = ssub.s32 %s9, 1
      %s194 = smul.u32 16, %s19
      %p195 = scmp.lt.s32.totalorder %s194, 31
      %s196 = scalar_select %p195, %s194, 31
      %p197 = scmp.lt.s32.totalorder %s21, 0
      %s198 = scalar_select %p197, %s21, 0
      %s199 = sadd.s32 %s198, %s196
      %s200 = smul.addr %s199, 8
      %s201 = scalar_lea.vmem %s0, %s200
      %p202 = pneg %p56
      %p203 = pneg %p53
      %s204 = smul.u32 16, %s21
      %p205 = scmp.lt.s32.totalorder %s204, 15
      %s206 = scalar_select %p205, %s204, 15
      %p207 = scmp.lt.s32.totalorder %s20, 0
      %s208 = scalar_select %p207, %s20, 0
      %s209 = sadd.s32 %s208, %s206
      %s210 = smul.addr %s209, 8
      %s211 = scalar_lea.vmem %s1, %s210
      %p212 = pneg %p84
      %p213 = pneg %p81
      %p214 = scmp.lt.s32.totalorder %s20, 0
      %s215 = scalar_select %p214, %s20, 0
      %s216 = scalar_lea.vmem %s2, %s215
      %p217 = pneg %p110
      %p218 = pneg %p107
      %p219 = pneg %p138
      %p220 = pneg %p135
      %s221 = smul.u32 16, %s19
      %p222 = scmp.lt.s32.totalorder %s221, 31
      %s223 = scalar_select %p222, %s221, 31
      %p224 = scmp.lt.s32.totalorder %s20, 0
      %s225 = scalar_select %p224, %s20, 0
      %s226 = sadd.s32 %s225, %s223
      %s227 = smul.addr %s226, 8
      %s228 = scalar_lea.vmem %s3, %s227
      %s229 = smul.u32 16, %s19
      %p230 = scmp.lt.s32.totalorder %s229, 31
      %s231 = scalar_select %p230, %s229, 31
      %p232 = scmp.lt.s32.totalorder %s21, 0
      %s233 = scalar_select %p232, %s21, 0
      %s234 = sadd.s32 %s233, %s231
      %s235 = smul.addr %s234, 8
      %s236 = scalar_lea.vmem %s0, %s235
      %s237 = smul.u32 16, %s19
      %s238 = smul.u32 16, %s21
      %p239 = scmp.lt.s32.totalorder %s238, 15
      %s240 = scalar_select %p239, %s238, 15
      %p241 = scmp.lt.s32.totalorder %s20, 0
      %s242 = scalar_select %p241, %s20, 0
      %s243 = sadd.s32 %s242, %s240
      %s244 = smul.addr %s243, 8
      %s245 = scalar_lea.vmem %s1, %s244
      %s246 = smul.u32 16, %s21
      %p247 = scmp.lt.s32.totalorder %s20, 0
      %s248 = scalar_select %p247, %s20, 0
      %s249 = scalar_lea.vmem %s2, %s248
      %s250 = smul.u32 16, %s19
      %p251 = scmp.lt.s32.totalorder %s250, 31
      %s252 = scalar_select %p251, %s250, 31
      %p253 = scmp.lt.s32.totalorder %s20, 0
      %s254 = scalar_select %p253, %s20, 0
      %s255 = sadd.s32 %s254, %s252
      %s256 = smul.addr %s255, 8
      %s257 = scalar_lea.vmem %s3, %s256
      %s258 = smul.u32 16, %s19
      %p259 = scmp.eq.s32.totalorder %s21, 0
      // Predicated region
      $region33: #{sage_forward.4} parent=31 // pred_check
        %p260 = pneg %p259
      $region34: #{sage_forward.4} parent=31 // pred_check_branch
        %262 = sbr.rel (%p260) target = $region36
      $region35: #{sage_forward.4} parent=31 // pred_region
        %263 = vst [vmem:[#allocation2] sm:$0xff] 0.0
        %264 = vst [vmem:[#allocation2 + $0x8] sm:$0xff] 0.0
        %265 = vst [vmem:[#allocation2 + $0x10] sm:$0xff] 0.0
        %266 = vst [vmem:[#allocation2 + $0x18] sm:$0xff] 0.0
        %267 = vst [vmem:[#allocation2 + $0x20] sm:$0xff] 0.0
        %268 = vst [vmem:[#allocation2 + $0x28] sm:$0xff] 0.0
        %269 = vst [vmem:[#allocation2 + $0x30] sm:$0xff] 0.0
        %270 = vst [vmem:[#allocation2 + $0x38] sm:$0xff] 0.0
        %271 = vst [vmem:[#allocation2 + $0x40] sm:$0xff] 0.0
        %272 = vst [vmem:[#allocation2 + $0x48] sm:$0xff] 0.0
        %273 = vst [vmem:[#allocation2 + $0x50] sm:$0xff] 0.0
        %274 = vst [vmem:[#allocation2 + $0x58] sm:$0xff] 0.0
        %275 = vst [vmem:[#allocation2 + $0x60] sm:$0xff] 0.0
        %276 = vst [vmem:[#allocation2 + $0x68] sm:$0xff] 0.0
        %277 = vst [vmem:[#allocation2 + $0x70] sm:$0xff] 0.0
        %278 = vst [vmem:[#allocation2 + $0x78] sm:$0xff] 0.0
      $region36: #{sage_forward.4} parent=31 // pred_fallthru
        _
      %v279 = vld [vmem:[#allocation2] sm:$0xff]
      %v280 = vld [vmem:[#allocation2 + $0x8] sm:$0xff]
      %v281 = vld [vmem:[#allocation2 + $0x10] sm:$0xff]
      %v282 = vld [vmem:[#allocation2 + $0x18] sm:$0xff]
      %v283 = vld [vmem:[#allocation2 + $0x20] sm:$0xff]
      %v284 = vld [vmem:[#allocation2 + $0x28] sm:$0xff]
      %v285 = vld [vmem:[#allocation2 + $0x30] sm:$0xff]
      %v286 = vld [vmem:[#allocation2 + $0x38] sm:$0xff]
      %v287 = vld [vmem:[#allocation2 + $0x40] sm:$0xff]
      %v288 = vld [vmem:[#allocation2 + $0x48] sm:$0xff]
      %v289 = vld [vmem:[#allocation2 + $0x50] sm:$0xff]
      %v290 = vld [vmem:[#allocation2 + $0x58] sm:$0xff]
      %v291 = vld [vmem:[#allocation2 + $0x60] sm:$0xff]
      %v292 = vld [vmem:[#allocation2 + $0x68] sm:$0xff]
      %v293 = vld [vmem:[#allocation2 + $0x70] sm:$0xff]
      %v294 = vld [vmem:[#allocation2 + $0x78] sm:$0xff]
      %v295 = vld [vmem:[%s236] sm:$0xff]
      %v296 = vld [vmem:[%s236 + $0x8] sm:$0xff]
      %v297 = vld [vmem:[%s236 + $0x10] sm:$0xff]
      %v298 = vld [vmem:[%s236 + $0x18] sm:$0xff]
      %v299 = vld [vmem:[%s236 + $0x20] sm:$0xff]
      %v300 = vld [vmem:[%s236 + $0x28] sm:$0xff]
      %v301 = vld [vmem:[%s236 + $0x30] sm:$0xff]
      %v302 = vld [vmem:[%s236 + $0x38] sm:$0xff]
      %v303 = vld [vmem:[%s236 + $0x40] sm:$0xff]
      %v304 = vld [vmem:[%s236 + $0x48] sm:$0xff]
      %v305 = vld [vmem:[%s236 + $0x50] sm:$0xff]
      %v306 = vld [vmem:[%s236 + $0x58] sm:$0xff]
      %v307 = vld [vmem:[%s236 + $0x60] sm:$0xff]
      %v308 = vld [vmem:[%s236 + $0x68] sm:$0xff]
      %v309 = vld [vmem:[%s236 + $0x70] sm:$0xff]
      %v310 = vld [vmem:[%s236 + $0x78] sm:$0xff]
      %v311 = vld [vmem:[%s245] sm:$0xff]
      %v312 = vld [vmem:[%s245 + $0x8] sm:$0xff]
      %v313 = vld [vmem:[%s245 + $0x10] sm:$0xff]
      %v314 = vld [vmem:[%s245 + $0x18] sm:$0xff]
      %v315 = vld [vmem:[%s245 + $0x20] sm:$0xff]
      %v316 = vld [vmem:[%s245 + $0x28] sm:$0xff]
      %v317 = vld [vmem:[%s245 + $0x30] sm:$0xff]
      %v318 = vld [vmem:[%s245 + $0x38] sm:$0xff]
      %v319 = vld [vmem:[%s245 + $0x40] sm:$0xff]
      %v320 = vld [vmem:[%s245 + $0x48] sm:$0xff]
      %v321 = vld [vmem:[%s245 + $0x50] sm:$0xff]
      %v322 = vld [vmem:[%s245 + $0x58] sm:$0xff]
      %v323 = vld [vmem:[%s245 + $0x60] sm:$0xff]
      %v324 = vld [vmem:[%s245 + $0x68] sm:$0xff]
      %v325 = vld [vmem:[%s245 + $0x70] sm:$0xff]
      %v326 = vld [vmem:[%s245 + $0x78] sm:$0xff]
      %327 = vmatprep.subr.mxu0 0.0
      %328 = vmatpush1.msra.mxu0 %v311
      %329 = vmatprep.subr.mxu0 0.0
      %330 = vmatpush1.msra.mxu0 %v312
      %331 = vmatprep.subr.mxu0 0.0
      %332 = vmatpush1.msra.mxu0 %v313
      %333 = vmatprep.subr.mxu0 0.0
      %334 = vmatpush1.msra.mxu0 %v314
      %335 = vmatprep.subr.mxu0 0.0
      %336 = vmatpush1.msra.mxu0 %v315
      %337 = vmatprep.subr.mxu0 0.0
      %338 = vmatpush1.msra.mxu0 %v316
      %339 = vmatprep.subr.mxu0 0.0
      %340 = vmatpush1.msra.mxu0 %v317
      %341 = vmatprep.subr.mxu0 0.0
      %342 = vmatpush1.msra.mxu0 %v318
      %343 = vmatprep.subr.mxu0 0.0
      %344 = vmatpush1.msra.mxu0 %v319
      %345 = vmatprep.subr.mxu0 0.0
      %346 = vmatpush1.msra.mxu0 %v320
      %347 = vmatprep.subr.mxu0 0.0
      %348 = vmatpush1.msra.mxu0 %v321
      %349 = vmatprep.subr.mxu0 0.0
      %350 = vmatpush1.msra.mxu0 %v322
      %351 = vmatprep.subr.mxu0 0.0
      %352 = vmatpush1.msra.mxu0 %v323
      %353 = vmatprep.subr.mxu0 0.0
      %354 = vmatpush1.msra.mxu0 %v324
      %355 = vmatprep.subr.mxu0 0.0
      %356 = vmatpush1.msra.mxu0 %v325
      %357 = vmatprep.subr.mxu0 0.0
      %358 = vmatpush1.msra.mxu0 %v326
      %359 = vmatprep.subr.mxu0 0.0
      %360 = vmatpush1.msra.mxu0 0.0
      %361 = vmatprep.subr.mxu0 0.0
      %362 = vmatpush1.msra.mxu0 0.0
      %363 = vmatprep.subr.mxu0 0.0
      %364 = vmatpush1.msra.mxu0 0.0
      %365 = vmatprep.subr.mxu0 0.0
      %366 = vmatpush1.msra.mxu0 0.0
      %367 = vmatprep.subr.mxu0 0.0
      %368 = vmatpush1.msra.mxu0 0.0
      %369 = vmatprep.subr.mxu0 0.0
      %370 = vmatpush1.msra.mxu0 0.0
      %371 = vmatprep.subr.mxu0 0.0
      %372 = vmatpush1.msra.mxu0 0.0
      %373 = vmatprep.subr.mxu0 0.0
      %374 = vmatpush1.msra.mxu0 0.0
      %375 = vmatprep.subr.mxu0 0.0
      %376 = vmatpush1.msra.mxu0 0.0
      %377 = vmatprep.subr.mxu0 0.0
      %378 = vmatpush1.msra.mxu0 0.0
      %379 = vmatprep.subr.mxu0 0.0
      %380 = vmatpush1.msra.mxu0 0.0
      %381 = vmatprep.subr.mxu0 0.0
      %382 = vmatpush1.msra.mxu0 0.0
      %383 = vmatprep.subr.mxu0 0.0
      %384 = vmatpush1.msra.mxu0 0.0
      %385 = vmatprep.subr.mxu0 0.0
      %386 = vmatpush1.msra.mxu0 0.0
      %387 = vmatprep.subr.mxu0 0.0
      %388 = vmatpush1.msra.mxu0 0.0
      %389 = vmatprep.subr.mxu0 0.0
      %390 = vmatpush1.msra.mxu0 0.0
      %391 = vmatprep.mubr.f32.mxu0 0.0
      %392 = vmatmul.mubr.f32.gmra.mrb[0].mxu0 %v295
      %v393 = vpop.f32.mrb[0].mxu0
      %v394 = vadd.f32 0.0, %v393
      %v395 = vpop.f32.mrb[0].mxu0
      %396 = vmatprep.mubr.f32.mxu0 0.0
      %397 = vmatmul.mubr.f32.gmra.mrb[0].mxu0 %v296
      %v398 = vpop.f32.mrb[0].mxu0
      %v399 = vadd.f32 0.0, %v398
      %v400 = vpop.f32.mrb[0].mxu0
      %401 = vmatprep.mubr.f32.mxu0 0.0
      %402 = vmatmul.mubr.f32.gmra.mrb[0].mxu0 %v297
      %v403 = vpop.f32.mrb[0].mxu0
      %v404 = vadd.f32 0.0, %v403
      %v405 = vpop.f32.mrb[0].mxu0
      %406 = vmatprep.mubr.f32.mxu0 0.0
      %407 = vmatmul.mubr.f32.gmra.mrb[0].mxu0 %v298
      %v408 = vpop.f32.mrb[0].mxu0
      %v409 = vadd.f32 0.0, %v408
      %v410 = vpop.f32.mrb[0].mxu0
      %411 = vmatprep.mubr.f32.mxu0 0.0
      %412 = vmatmul.mubr.f32.gmra.mrb[0].mxu0 %v299
      %v413 = vpop.f32.mrb[0].mxu0
      %v414 = vadd.f32 0.0, %v413
      %v415 = vpop.f32.mrb[0].mxu0
      %416 = vmatprep.mubr.f32.mxu0 0.0
      %417 = vmatmul.mubr.f32.gmra.mrb[0].mxu0 %v300
      %v418 = vpop.f32.mrb[0].mxu0
      %v419 = vadd.f32 0.0, %v418
      %v420 = vpop.f32.mrb[0].mxu0
      %421 = vmatprep.mubr.f32.mxu0 0.0
      %422 = vmatmul.mubr.f32.gmra.mrb[0].mxu0 %v301
      %v423 = vpop.f32.mrb[0].mxu0
      %v424 = vadd.f32 0.0, %v423
      %v425 = vpop.f32.mrb[0].mxu0
      %426 = vmatprep.mubr.f32.mxu0 0.0
      %427 = vmatmul.mubr.f32.gmra.mrb[0].mxu0 %v302
      %v428 = vpop.f32.mrb[0].mxu0
      %v429 = vadd.f32 0.0, %v428
      %v430 = vpop.f32.mrb[0].mxu0
      %431 = vmatprep.mubr.f32.mxu0 0.0
      %432 = vmatmul.mubr.f32.gmra.mrb[0].mxu0 %v303
      %v433 = vpop.f32.mrb[0].mxu0
      %v434 = vadd.f32 0.0, %v433
      %v435 = vpop.f32.mrb[0].mxu0
      %436 = vmatprep.mubr.f32.mxu0 0.0
      %437 = vmatmul.mubr.f32.gmra.mrb[0].mxu0 %v304
      %v438 = vpop.f32.mrb[0].mxu0
      %v439 = vadd.f32 0.0, %v438
      %v440 = vpop.f32.mrb[0].mxu0
      %441 = vmatprep.mubr.f32.mxu0 0.0
      %442 = vmatmul.mubr.f32.gmra.mrb[0].mxu0 %v305
      %v443 = vpop.f32.mrb[0].mxu0
      %v444 = vadd.f32 0.0, %v443
      %v445 = vpop.f32.mrb[0].mxu0
      %446 = vmatprep.mubr.f32.mxu0 0.0
      %447 = vmatmul.mubr.f32.gmra.mrb[0].mxu0 %v306
      %v448 = vpop.f32.mrb[0].mxu0
      %v449 = vadd.f32 0.0, %v448
      %v450 = vpop.f32.mrb[0].mxu0
      %451 = vmatprep.mubr.f32.mxu0 0.0
      %452 = vmatmul.mubr.f32.gmra.mrb[0].mxu0 %v307
      %v453 = vpop.f32.mrb[0].mxu0
      %v454 = vadd.f32 0.0, %v453
      %v455 = vpop.f32.mrb[0].mxu0
      %456 = vmatprep.mubr.f32.mxu0 0.0
      %457 = vmatmul.mubr.f32.gmra.mrb[0].mxu0 %v308
      %v458 = vpop.f32.mrb[0].mxu0
      %v459 = vadd.f32 0.0, %v458
      %v460 = vpop.f32.mrb[0].mxu0
      %461 = vmatprep.mubr.f32.mxu0 0.0
      %462 = vmatmul.mubr.f32.gmra.mrb[0].mxu0 %v309
      %v463 = vpop.f32.mrb[0].mxu0
      %v464 = vadd.f32 0.0, %v463
      %v465 = vpop.f32.mrb[0].mxu0
      %466 = vmatprep.mubr.f32.mxu0 0.0
      %467 = vmatmul.mubr.f32.gmra.mrb[0].mxu0 %v310
      %v468 = vpop.f32.mrb[0].mxu0
      %v469 = vadd.f32 0.0, %v468
      %v470 = vpop.f32.mrb[0].mxu0
      %471 = vdwg.mxu0
      %v472 = vadd.f32 %v279, %v394
      %v473 = vadd.f32 %v280, %v399
      %v474 = vadd.f32 %v281, %v404
      %v475 = vadd.f32 %v282, %v409
      %v476 = vadd.f32 %v283, %v414
      %v477 = vadd.f32 %v284, %v419
      %v478 = vadd.f32 %v285, %v424
      %v479 = vadd.f32 %v286, %v429
      %v480 = vadd.f32 %v287, %v434
      %v481 = vadd.f32 %v288, %v439
      %v482 = vadd.f32 %v289, %v444
      %v483 = vadd.f32 %v290, %v449
      %v484 = vadd.f32 %v291, %v454
      %v485 = vadd.f32 %v292, %v459
      %v486 = vadd.f32 %v293, %v464
      %v487 = vadd.f32 %v294, %v469
      %488 = vst [vmem:[#allocation2] sm:$0xff] %v472
      %489 = vst [vmem:[#allocation2 + $0x8] sm:$0xff] %v473
      %490 = vst [vmem:[#allocation2 + $0x10] sm:$0xff] %v474
      %491 = vst [vmem:[#allocation2 + $0x18] sm:$0xff] %v475
      %492 = vst [vmem:[#allocation2 + $0x20] sm:$0xff] %v476
      %493 = vst [vmem:[#allocation2 + $0x28] sm:$0xff] %v477
      %494 = vst [vmem:[#allocation2 + $0x30] sm:$0xff] %v478
      %495 = vst [vmem:[#allocation2 + $0x38] sm:$0xff] %v479
      %496 = vst [vmem:[#allocation2 + $0x40] sm:$0xff] %v480
      %497 = vst [vmem:[#allocation2 + $0x48] sm:$0xff] %v481
      %498 = vst [vmem:[#allocation2 + $0x50] sm:$0xff] %v482
      %499 = vst [vmem:[#allocation2 + $0x58] sm:$0xff] %v483
      %500 = vst [vmem:[#allocation2 + $0x60] sm:$0xff] %v484
      %501 = vst [vmem:[#allocation2 + $0x68] sm:$0xff] %v485
      %502 = vst [vmem:[#allocation2 + $0x70] sm:$0xff] %v486
      %503 = vst [vmem:[#allocation2 + $0x78] sm:$0xff] %v487
      // Predicated region
      $region37: #{sage_forward.4} parent=31 // pred_check
        %p504 = pneg %p259
      $region38: #{sage_forward.4} parent=31 // pred_check_branch
        %506 = sbr.rel (%p504) target = $region40
      $region39: #{sage_forward.4} parent=31 // pred_region
        %v507 = vld [vmem:[#allocation2] sm:$0xff]
        %v508 = vld [vmem:[#allocation2 + $0x8] sm:$0xff]
        %v509 = vld [vmem:[#allocation2 + $0x10] sm:$0xff]
        %v510 = vld [vmem:[#allocation2 + $0x18] sm:$0xff]
        %v511 = vld [vmem:[#allocation2 + $0x20] sm:$0xff]
        %v512 = vld [vmem:[#allocation2 + $0x28] sm:$0xff]
        %v513 = vld [vmem:[#allocation2 + $0x30] sm:$0xff]
        %v514 = vld [vmem:[#allocation2 + $0x38] sm:$0xff]
        %v515 = vld [vmem:[#allocation2 + $0x40] sm:$0xff]
        %v516 = vld [vmem:[#allocation2 + $0x48] sm:$0xff]
        %v517 = vld [vmem:[#allocation2 + $0x50] sm:$0xff]
        %v518 = vld [vmem:[#allocation2 + $0x58] sm:$0xff]
        %v519 = vld [vmem:[#allocation2 + $0x60] sm:$0xff]
        %v520 = vld [vmem:[#allocation2 + $0x68] sm:$0xff]
        %v521 = vld [vmem:[#allocation2 + $0x70] sm:$0xff]
        %v522 = vld [vmem:[#allocation2 + $0x78] sm:$0xff]
        %v523 = vld [vmem:[%s249] sm:$0x1]
        %v525 = vlaneseq
        %v526 = vshrl.u32 %v525, 7
        %v527 = vsub.s32 0, %v526
        %v528 = vrot.slane %v523, %v527
        %v530 = vadd.f32 %v507, %v528
        %v531 = vadd.f32 %v508, %v528
        %v532 = vadd.f32 %v509, %v528
        %v533 = vadd.f32 %v510, %v528
        %v534 = vadd.f32 %v511, %v528
        %v535 = vadd.f32 %v512, %v528
        %v536 = vadd.f32 %v513, %v528
        %v537 = vadd.f32 %v514, %v528
        %v538 = vadd.f32 %v515, %v528
        %v539 = vadd.f32 %v516, %v528
        %v540 = vadd.f32 %v517, %v528
        %v541 = vadd.f32 %v518, %v528
        %v542 = vadd.f32 %v519, %v528
        %v543 = vadd.f32 %v520, %v528
        %v544 = vadd.f32 %v521, %v528
        %v545 = vadd.f32 %v522, %v528
        %v546 = vmax.f32 %v530, 0.0
        %v547 = vmax.f32 %v531, 0.0
        %v548 = vmax.f32 %v532, 0.0
        %v549 = vmax.f32 %v533, 0.0
        %v550 = vmax.f32 %v534, 0.0
        %v551 = vmax.f32 %v535, 0.0
        %v552 = vmax.f32 %v536, 0.0
        %v553 = vmax.f32 %v537, 0.0
        %v554 = vmax.f32 %v538, 0.0
        %v555 = vmax.f32 %v539, 0.0
        %v556 = vmax.f32 %v540, 0.0
        %v557 = vmax.f32 %v541, 0.0
        %v558 = vmax.f32 %v542, 0.0
        %v559 = vmax.f32 %v543, 0.0
        %v560 = vmax.f32 %v544, 0.0
        %v561 = vmax.f32 %v545, 0.0
        %562 = vst [vmem:[%s257] sm:$0xff] %v546
        %563 = vst [vmem:[%s257 + $0x8] sm:$0xff] %v547
        %564 = vst [vmem:[%s257 + $0x10] sm:$0xff] %v548
        %565 = vst [vmem:[%s257 + $0x18] sm:$0xff] %v549
        %566 = vst [vmem:[%s257 + $0x20] sm:$0xff] %v550
        %567 = vst [vmem:[%s257 + $0x28] sm:$0xff] %v551
        %568 = vst [vmem:[%s257 + $0x30] sm:$0xff] %v552
        %569 = vst [vmem:[%s257 + $0x38] sm:$0xff] %v553
        %570 = vst [vmem:[%s257 + $0x40] sm:$0xff] %v554
        %571 = vst [vmem:[%s257 + $0x48] sm:$0xff] %v555
        %572 = vst [vmem:[%s257 + $0x50] sm:$0xff] %v556
        %573 = vst [vmem:[%s257 + $0x58] sm:$0xff] %v557
        %574 = vst [vmem:[%s257 + $0x60] sm:$0xff] %v558
        %575 = vst [vmem:[%s257 + $0x68] sm:$0xff] %v559
        %576 = vst [vmem:[%s257 + $0x70] sm:$0xff] %v560
        %577 = vst [vmem:[%s257 + $0x78] sm:$0xff] %v561
      $region40: #{sage_forward.4} parent=31 // pred_fallthru
        _
      %s578 = smul.u32 16, %s19
      %p579 = scmp.lt.s32.totalorder %s578, 31
      %s580 = scalar_select %p579, %s578, 31
      %p581 = scmp.lt.s32.totalorder %s20, 0
      %s582 = scalar_select %p581, %s20, 0
      %s583 = sadd.s32 %s582, %s580
      %s584 = smul.addr %s583, 8
      %s585 = scalar_lea.vmem %s3, %s584
      // Predicated region
      $region41: #{sage_forward.4} parent=31 // pred_check
        %p586 = pneg %p135
      $region42: #{sage_forward.4} parent=31 // pred_check_branch
        %588 = sbr.rel (%p586) target = $region44
      $region43: #{sage_forward.4} parent=31 // pred_region
        %s589 = smul.u32 16, %s19
      $region44: #{sage_forward.4} parent=31 // pred_fallthru
        _
    $region32: #{sage_forward.4} parent=5 // pred_fallthru
      _
    %p590 = scmp.le.s32.totalorder 2, %s9
    // Predicated region
    $region45: #{sage_forward.4} parent=5 // pred_check
      %p591 = pneg %p590
    $region46: #{sage_forward.4} parent=5 // pred_check_branch
      %593 = sbr.rel (%p591) target = $region48
    $region47: #{sage_forward.4} parent=5 // pred_region
      %s594 = ssub.s32 %s9, 2
      // Predicated region
      $region49: #{sage_forward.4} parent=47 // pred_check
        %p595 = pneg %p141
      $region50: #{sage_forward.4} parent=47 // pred_check_branch
        %597 = sbr.rel (%p595) target = $region52
      $region51: #{sage_forward.4} parent=47 // pred_region
        %s598 = smul.u32 16, %s22
        %p599 = scmp.lt.s32.totalorder %s598, 31
        %s600 = scalar_select %p599, %s598, 31
        %p601 = scmp.lt.s32.totalorder %s23, 0
        %s602 = scalar_select %p601, %s23, 0
        %s603 = sadd.s32 %s602, %s600
        %s604 = smul.addr %s603, 8
        %s605 = scalar_lea.vmem %s3, %s604
      $region52: #{sage_forward.4} parent=47 // pred_fallthru
        _
    $region48: #{sage_forward.4} parent=5 // pred_fallthru
      _
  $region6: #{sage_forward.4} parent=0 // loop_footer
    %s13 = sadd.s32 1, %s9
  $region7: #{sage_forward.4} parent=0 // loop_footer_branch
    %8 = sbr.rel target = $region3
  $region8: #{sage_forward.4} parent=0 // loop_exit
    _

// kernel: sage_forward.5
$region0: #{sage_forward.5}
  #allocation0 [shape = 'u32[]', space=smem, size = 0x4, offset = 0x4, fixed_abs, tag = 'smem constant byte address 0x4 - core index']
  #allocation1 [shape = 'u32[144,128]{1,0:T(1,128)}', space=vmem, size = 0x12000, scoped, tag = 'internal scratch']
  #allocation2 [shape = 'f32[64,128]{1,0:T(8,128)}', space=vmem, size = 0x8000, scoped, tag = 'scratch operand']
  %s0 = inlined_call_operand.vmem [shape: s8[256,256], index: 0, kind: input, shape index: {}]
  %s1 = inlined_call_operand.vmem [shape: f32[256,128], index: 1, kind: input, shape index: {}]
  %s2 = inlined_call_operand.vmem [shape: f32[256,128], index: 2, kind: input, shape index: {}]
  %s3 = inlined_call_operand.vmem [shape: f32[128,128], index: 3, kind: input, shape index: {}]
  %s4 = inlined_call_operand.vmem [shape: f32[128,128], index: 4, kind: input, shape index: {}]
  %s5 = inlined_call_operand.vmem [shape: f32[1,128], index: 5, kind: input, shape index: {}]
  %s6 = inlined_call_operand.vmem [shape: f32[256,128], index: 6, kind: output, shape index: {}]
  %s7 = sld [smem:[#allocation0]]
  $region103: #{sage_forward.5} parent=0
    _
  %s9 = ssub.s32 1, %s7
  %s10 = scalar_select 0, %s9, %s7
  $region1: #{sage_forward.5} parent=0
    #allocation3 [shape = 'u8[16384]{0}', space=vmem, size = 0x4000, scoped, tag = 'input window, operand 0']
    loop: start=0, step=1, limit=10
    $region2: #{sage_forward.5} parent=1 // loop_pre_header
      _
    $region3: #{sage_forward.5} parent=1 // loop_header
      %s12 = sphi 0, %s16
      %p13 = scmp.ge.s32.totalorder %s12, 10
      %s19 = sphi 0, %s31
      %s20 = sphi 0, %s27
      %s21 = sphi 0, %s19
      %s22 = sphi 0, %s20
      %s23 = sphi 0, %s21
      %s24 = sphi 0, %s22
      %s36 = sphi 0, %s38
      %s39 = sphi 0, %s36
      %s40 = sphi 0, %s39
      %s56 = sphi 0, %s40
      %s62 = sphi 0, %s64
      %s65 = sphi 0, %s62
      %s66 = sphi 0, %s65
      %s82 = sphi 0, %s66
      %s88 = sphi 0, %s90
      %s91 = sphi 0, %s88
      %s92 = sphi 0, %s91
      %s108 = sphi 0, %s92
      %s112 = sphi 0, %s112
      %s114 = sphi 0, %s112
      %s115 = sphi 0, %s114
      %s129 = sphi 0, %s115
      %s133 = sphi 0, %s133
      %s135 = sphi 0, %s133
      %s136 = sphi 0, %s135
      %s150 = sphi 0, %s136
      %s154 = sphi 0, %s154
      %s156 = sphi 0, %s154
      %s157 = sphi 0, %s156
      %s171 = sphi 0, %s157
      %s177 = sphi 0, %s179
      %s180 = sphi 0, %s177
      %s181 = sphi 0, %s180
      %s197 = sphi 0, %s181
    $region4: #{sage_forward.5} parent=1 // loop_header_branch
      %15 = sbr.rel (%p13) target = $region8
    $region5: #{sage_forward.5} parent=1 // loop_body
      %s17 = ssub.s32 %s12, 1
      %s18 = ssub.s32 %s12, 2
      %s25 = sadd.s32 1, %s20
      %p26 = scmp.ge.s32.totalorder %s25, 2
      %s27 = scalar_select %p26, 0, %s25
      %s28 = sadd.s32 1, %s19
      %s29 = scalar_select %p26, %s28, %s19
      %p30 = scmp.ge.s32.totalorder %s29, 4
      %s31 = scalar_select %p30, 0, %s29
      %s32 = ssub.s32 %s19, %s31
      %s33 = ssub.s32 %s20, %s27
      %s34 = sor.u32 %s32, %s33
      %p35 = scmp.eq.s32.totalorder %s34, 0
      %s37 = sadd.s32 %s36, 1
      %s38 = scalar_select %p35, %s36, %s37
      %p41 = pneg %p35
      %p42 = scmp.eq.s32.totalorder %s12, 7
      %p43 = por %p41, %p42
      %p44 = scmp.ne.s32.totalorder %s36, %s39
      %p45 = scmp.eq.s32.totalorder %s12, 0
      %p46 = por %p44, %p45
      %p47 = scmp.ne.s32.totalorder %s36, %s39
      %p48 = scmp.eq.s32.totalorder %s17, 7
      %p49 = por %p47, %p48
      %p50 = scmp.ne.s32.totalorder %s39, %s40
      %p51 = scmp.eq.s32.totalorder %s17, 0
      %p52 = por %p50, %p51
      %p53 = scmp.ne.s32.totalorder %s39, %s40
      %p54 = scmp.eq.s32.totalorder %s18, 7
      %p55 = por %p53, %p54
      %p57 = scmp.ne.s32.totalorder %s40, %s56
      %p58 = scmp.eq.s32.totalorder %s18, 0
      %p59 = por %p57, %p58
      %s60 = ssub.s32 %s20, %s27
      %p61 = scmp.eq.s32.totalorder %s60, 0
      %s63 = sadd.s32 %s62, 1
      %s64 = scalar_select %p61, %s62, %s63
      %p67 = pneg %p61
      %p68 = scmp.eq.s32.totalorder %s12, 7
      %p69 = por %p67, %p68
      %p70 = scmp.ne.s32.totalorder %s62, %s65
      %p71 = scmp.eq.s32.totalorder %s12, 0
      %p72 = por %p70, %p71
      %p73 = scmp.ne.s32.totalorder %s62, %s65
      %p74 = scmp.eq.s32.totalorder %s17, 7
      %p75 = por %p73, %p74
      %p76 = scmp.ne.s32.totalorder %s65, %s66
      %p77 = scmp.eq.s32.totalorder %s17, 0
      %p78 = por %p76, %p77
      %p79 = scmp.ne.s32.totalorder %s65, %s66
      %p80 = scmp.eq.s32.totalorder %s18, 7
      %p81 = por %p79, %p80
      %p83 = scmp.ne.s32.totalorder %s66, %s82
      %p84 = scmp.eq.s32.totalorder %s18, 0
      %p85 = por %p83, %p84
      %s86 = ssub.s32 %s19, %s31
      %p87 = scmp.eq.s32.totalorder %s86, 0
      %s89 = sadd.s32 %s88, 1
      %s90 = scalar_select %p87, %s88, %s89
      %p93 = pneg %p87
      %p94 = scmp.eq.s32.totalorder %s12, 7
      %p95 = por %p93, %p94
      %p96 = scmp.ne.s32.totalorder %s88, %s91
      %p97 = scmp.eq.s32.totalorder %s12, 0
      %p98 = por %p96, %p97
      %p99 = scmp.ne.s32.totalorder %s88, %s91
      %p100 = scmp.eq.s32.totalorder %s17, 7
      %p101 = por %p99, %p100
      %p102 = scmp.ne.s32.totalorder %s91, %s92
      %p103 = scmp.eq.s32.totalorder %s17, 0
      %p104 = por %p102, %p103
      %p105 = scmp.ne.s32.totalorder %s91, %s92
      %p106 = scmp.eq.s32.totalorder %s18, 7
      %p107 = por %p105, %p106
      %p109 = scmp.ne.s32.totalorder %s92, %s108
      %p110 = scmp.eq.s32.totalorder %s18, 0
      %p111 = por %p109, %p110
      %s113 = sadd.s32 %s112, 1
      %p116 = scmp.eq.s32.totalorder %s12, 7
      %p117 = scmp.ne.s32.totalorder %s112, %s114
      %p118 = scmp.eq.s32.totalorder %s12, 0
      %p119 = por %p117, %p118
      %p120 = scmp.ne.s32.totalorder %s112, %s114
      %p121 = scmp.eq.s32.totalorder %s17, 7
      %p122 = por %p120, %p121
      %p123 = scmp.ne.s32.totalorder %s114, %s115
      %p124 = scmp.eq.s32.totalorder %s17, 0
      %p125 = por %p123, %p124
      %p126 = scmp.ne.s32.totalorder %s114, %s115
      %p127 = scmp.eq.s32.totalorder %s18, 7
      %p128 = por %p126, %p127
      %p130 = scmp.ne.s32.totalorder %s115, %s129
      %p131 = scmp.eq.s32.totalorder %s18, 0
      %p132 = por %p130, %p131
      %s134 = sadd.s32 %s133, 1
      %p137 = scmp.eq.s32.totalorder %s12, 7
      %p138 = scmp.ne.s32.totalorder %s133, %s135
      %p139 = scmp.eq.s32.totalorder %s12, 0
      %p140 = por %p138, %p139
      %p141 = scmp.ne.s32.totalorder %s133, %s135
      %p142 = scmp.eq.s32.totalorder %s17, 7
      %p143 = por %p141, %p142
      %p144 = scmp.ne.s32.totalorder %s135, %s136
      %p145 = scmp.eq.s32.totalorder %s17, 0
      %p146 = por %p144, %p145
      %p147 = scmp.ne.s32.totalorder %s135, %s136
      %p148 = scmp.eq.s32.totalorder %s18, 7
      %p149 = por %p147, %p148
      %p151 = scmp.ne.s32.totalorder %s136, %s150
      %p152 = scmp.eq.s32.totalorder %s18, 0
      %p153 = por %p151, %p152
      %s155 = sadd.s32 %s154, 1
      %p158 = scmp.eq.s32.totalorder %s12, 7
      %p159 = scmp.ne.s32.totalorder %s154, %s156
      %p160 = scmp.eq.s32.totalorder %s12, 0
      %p161 = por %p159, %p160
      %p162 = scmp.ne.s32.totalorder %s154, %s156
      %p163 = scmp.eq.s32.totalorder %s17, 7
      %p164 = por %p162, %p163
      %p165 = scmp.ne.s32.totalorder %s156, %s157
      %p166 = scmp.eq.s32.totalorder %s17, 0
      %p167 = por %p165, %p166
      %p168 = scmp.ne.s32.totalorder %s156, %s157
      %p169 = scmp.eq.s32.totalorder %s18, 7
      %p170 = por %p168, %p169
      %p172 = scmp.ne.s32.totalorder %s157, %s171
      %p173 = scmp.eq.s32.totalorder %s18, 0
      %p174 = por %p172, %p173
      %s175 = ssub.s32 %s19, %s31
      %p176 = scmp.eq.s32.totalorder %s175, 0
      %s178 = sadd.s32 %s177, 1
      %s179 = scalar_select %p176, %s177, %s178
      %p182 = pneg %p176
      %p183 = scmp.eq.s32.totalorder %s12, 7
      %p184 = por %p182, %p183
      %p185 = scmp.ne.s32.totalorder %s177, %s180
      %p186 = scmp.eq.s32.totalorder %s12, 0
      %p187 = por %p185, %p186
      %p188 = scmp.ne.s32.totalorder %s177, %s180
      %p189 = scmp.eq.s32.totalorder %s17, 7
      %p190 = por %p188, %p189
      %p191 = scmp.ne.s32.totalorder %s180, %s181
      %p192 = scmp.eq.s32.totalorder %s17, 0
      %p193 = por %p191, %p192
      %p194 = scmp.ne.s32.totalorder %s180, %s181
      %p195 = scmp.eq.s32.totalorder %s18, 7
      %p196 = por %p194, %p195
      %p198 = scmp.ne.s32.totalorder %s181, %s197
      %p199 = scmp.eq.s32.totalorder %s18, 0
      %p200 = por %p198, %p199
      %p201 = scmp.le.s32.totalorder 1, %s12
      %p202 = scmp.lt.s32.totalorder %s12, 9
      %p203 = pnand %p201, %p202
      %p204 = pneg %p203
      // Predicated region
      $region9: #{sage_forward.5} parent=5 // pred_check
        _
      $region10: #{sage_forward.5} parent=5 // pred_check_branch
        %206 = sbr.rel (%p203) target = $region12
      $region11: #{sage_forward.5} parent=5 // pred_region
        %s207 = ssub.s32 %s12, 1
        // Predicated region
        $region13: #{sage_forward.5} parent=11 // pred_check
          %p208 = pneg %p125
        $region14: #{sage_forward.5} parent=11 // pred_check_branch
          %210 = sbr.rel (%p208) target = $region16
        $region15: #{sage_forward.5} parent=11 // pred_region
          _
        $region16: #{sage_forward.5} parent=11 // pred_fallthru
          _
        // Predicated region
        $region17: #{sage_forward.5} parent=11 // pred_check
          %p211 = pneg %p146
        $region18: #{sage_forward.5} parent=11 // pred_check_branch
          %213 = sbr.rel (%p211) target = $region20
        $region19: #{sage_forward.5} parent=11 // pred_region
          _
        $region20: #{sage_forward.5} parent=11 // pred_fallthru
          _
        // Predicated region
        $region21: #{sage_forward.5} parent=11 // pred_check
          %p214 = pneg %p167
        $region22: #{sage_forward.5} parent=11 // pred_check_branch
          %216 = sbr.rel (%p214) target = $region24
        $region23: #{sage_forward.5} parent=11 // pred_region
          _
        $region24: #{sage_forward.5} parent=11 // pred_fallthru
          _
      $region12: #{sage_forward.5} parent=5 // pred_fallthru
        _
      %p217 = scmp.lt.s32.totalorder %s12, 8
      // Predicated region
      $region25: #{sage_forward.5} parent=5 // pred_check
        %p218 = pneg %p217
      $region26: #{sage_forward.5} parent=5 // pred_check_branch
        %220 = sbr.rel (%p218) target = $region28
      $region27: #{sage_forward.5} parent=5 // pred_region
        // Predicated region
        $region29: #{sage_forward.5} parent=27 // pred_check
          %p221 = pneg %p46
        $region30: #{sage_forward.5} parent=27 // pred_check_branch
          %223 = sbr.rel (%p221) target = $region32
        $region31: #{sage_forward.5} parent=27 // pred_region
          %s224 = sand.u32 %s36, 1
          %s225 = sand.u32 %s36, 1
          %s226 = smul.addr %s225, 16
          %s227 = scalar_lea.vmem [#allocation3], %s226
          %s228 = smul.u32 2, %s19
          %s229 = smul.addr %s228, 2
          %s230 = sadd.s32 %s20, %s229
          %s231 = smul.addr %s230, 8
          %s232 = scalar_lea.vmem %s0, %s231
          // Predicated region
          $region33: #{sage_forward.5} parent=31 // pred_check
            _
          $region34: #{sage_forward.5} parent=31 // pred_check_branch
            %234 = sbr.rel (0) target = $region36
          $region35: #{sage_forward.5} parent=31 // pred_region
            // Predicated region
            $region37: #{sage_forward.5} parent=35 // pred_check
              _
            $region38: #{sage_forward.5} parent=35 // pred_check_branch
              %236 = sbr.rel (0) target = $region40
            $region39: #{sage_forward.5} parent=35 // pred_region
              // Predicated region
              $region52: #{sage_forward.5} parent=39 // pred_check
                _
              $region53: #{sage_forward.5} parent=39 // pred_check_branch
                %253 = sbr.rel (0) target = $region55
              $region54: #{sage_forward.5} parent=39 // pred_region
                loop: start=0, step=1, limit=1
                $region56: #{sage_forward.5} parent=54 // loop_pre_header
                  _
                $region57: #{sage_forward.5} parent=54 // loop_header
                  %s255 = sphi 0, %s259
                  %p256 = scmp.ge.s32.totalorder %s255, 1
                  %s260 = sphi %s232, %s232
                  %s261 = sphi %s227, %s227
                $region58: #{sage_forward.5} parent=54 // loop_header_branch
                  %258 = sbr.rel (%p256) target = $region62
                $region59: #{sage_forward.5} parent=54 // loop_body
                  %v262 = vld [vmem:[%s260] sm:$0xff]
                  %263 = vst [vmem:[%s261] sm:$0xff] %v262
                  %v264 = vld [vmem:[%s260 + $0x10] sm:$0xff]
                  %265 = vst [vmem:[%s261 + $0x8] sm:$0xff] %v264
                $region60: #{sage_forward.5} parent=54 // loop_footer
                  %s259 = sadd.s32 1, %s255
                $region61: #{sage_forward.5} parent=54 // loop_footer_branch
                  %254 = sbr.rel target = $region57
                $region62: #{sage_forward.5} parent=54 // loop_exit
                  _
              $region55: #{sage_forward.5} parent=39 // pred_fallthru
                _
              // Predicated region
              $region63: #{sage_forward.5} parent=39 // pred_check
                _
              $region64: #{sage_forward.5} parent=39 // pred_check_branch
                %267 = sbr.rel target = $region66
              $region65: #{sage_forward.5} parent=39 // pred_region
                _
              $region66: #{sage_forward.5} parent=39 // pred_fallthru
                _
            $region40: #{sage_forward.5} parent=35 // pred_fallthru
              _
            // Predicated region
            $region41: #{sage_forward.5} parent=35 // pred_check
              _
            $region42: #{sage_forward.5} parent=35 // pred_check_branch
              %238 = sbr.rel target = $region44
            $region43: #{sage_forward.5} parent=35 // pred_region
              loop: start=0, step=1, limit=1
              $region45: #{sage_forward.5} parent=43 // loop_pre_header
                _
              $region46: #{sage_forward.5} parent=43 // loop_header
                %s241 = sphi 0, %s245
                %p242 = scmp.ge.s32.totalorder %s241, 1
                %s246 = sphi %s232, %s232
                %s247 = sphi %s227, %s227
              $region47: #{sage_forward.5} parent=43 // loop_header_branch
                %244 = sbr.rel (%p242) target = $region51
              $region48: #{sage_forward.5} parent=43 // loop_body
                %v248 = vld [vmem:[%s246] sm:$0xff]
                %249 = vst [vmem:[%s247] sm:$0xff] %v248
                %v250 = vld [vmem:[%s246 + $0x10] sm:$0xff]
                %251 = vst [vmem:[%s247 + $0x8] sm:$0xff] %v250
              $region49: #{sage_forward.5} parent=43 // loop_footer
                %s245 = sadd.s32 1, %s241
              $region50: #{sage_forward.5} parent=43 // loop_footer_branch
                %240 = sbr.rel target = $region46
              $region51: #{sage_forward.5} parent=43 // loop_exit
                _
            $region44: #{sage_forward.5} parent=35 // pred_fallthru
              _
          $region36: #{sage_forward.5} parent=31 // pred_fallthru
            _
          %268 = vnop
        $region32: #{sage_forward.5} parent=27 // pred_fallthru
          _
        // Predicated region
        $region67: #{sage_forward.5} parent=27 // pred_check
          %p269 = pneg %p72
        $region68: #{sage_forward.5} parent=27 // pred_check_branch
          %271 = sbr.rel (%p269) target = $region70
        $region69: #{sage_forward.5} parent=27 // pred_region
          %s272 = smul.u32 16, %s20
          %p273 = scmp.lt.s32.totalorder %s272, 31
          %s274 = scalar_select %p273, %s272, 31
          %s275 = smul.addr %s274, 8
          %s276 = scalar_lea.vmem %s1, %s275
          %s277 = smul.u32 16, %s20
        $region70: #{sage_forward.5} parent=27 // pred_fallthru
          _
        // Predicated region
        $region71: #{sage_forward.5} parent=27 // pred_check
          %p278 = pneg %p98
        $region72: #{sage_forward.5} parent=27 // pred_check_branch
          %280 = sbr.rel (%p278) target = $region74
        $region73: #{sage_forward.5} parent=27 // pred_region
          %s281 = smul.u32 8, %s19
          %p282 = scmp.lt.s32.totalorder %s281, 31
          %s283 = scalar_select %p282, %s281, 31
          %s284 = smul.addr %s283, 8
          %s285 = scalar_lea.vmem %s2, %s284
          %s286 = smul.u32 8, %s19
        $region74: #{sage_forward.5} parent=27 // pred_fallthru
          _
      $region28: #{sage_forward.5} parent=5 // pred_fallthru
        _
      %p287 = scmp.le.s32.totalorder 1, %s12
      %p288 = scmp.lt.s32.totalorder %s12, 9
      %p289 = pnand %p287, %p288
      %p290 = pneg %p289
      // Predicated region
      $region75: #{sage_forward.5} parent=5 // pred_check
        _
      $region76: #{sage_forward.5} parent=5 // pred_check_branch
        %292 = sbr.rel (%p289) target = $region78
      $region77: #{sage_forward.5} parent=5 // pred_region
        %s293 = ssub.s32 %s12, 1
        %s294 = sand.u32 %s39, 1
        %s295 = sand.u32 %s39, 1
        %s296 = smul.addr %s295, 16
        %s297 = scalar_lea.vmem [#allocation3], %s296
        // Predicated region
        $region79: #{sage_forward.5} parent=77 // pred_check
          %p298 = pneg %p52
        $region80: #{sage_forward.5} parent=77 // pred_check_branch
          %300 = sbr.rel (%p298) target = $region82
        $region81: #{sage_forward.5} parent=77 // pred_region
          _
        $region82: #{sage_forward.5} parent=77 // pred_fallthru
          _
        %s301 = sand.u32 %s39, 1
        %s302 = sand.u32 %s39, 1
        %s303 = smul.addr %s302, 16
        %s304 = scalar_lea.vmem [#allocation3], %s303
        %p305 = pneg %p52
        %p306 = pneg %p49
        %s307 = smul.u32 16, %s22
        %p308 = scmp.lt.s32.totalorder %s307, 31
        %s309 = scalar_select %p308, %s307, 31
        %s310 = smul.addr %s309, 8
        %s311 = scalar_lea.vmem %s1, %s310
        %p312 = pneg %p78
        %p313 = pneg %p75
        %s314 = smul.u32 8, %s21
        %p315 = scmp.lt.s32.totalorder %s314, 31
        %s316 = scalar_select %p315, %s314, 31
        %s317 = smul.addr %s316, 8
        %s318 = scalar_lea.vmem %s2, %s317
        %p319 = pneg %p104
        %p320 = pneg %p101
        %p321 = pneg %p125
        %p322 = pneg %p122
        %p323 = pneg %p146
        %p324 = pneg %p143
        %p325 = pneg %p167
        %p326 = pneg %p164
        %p327 = pneg %p193
        %p328 = pneg %p190
        %s329 = smul.u32 8, %s21
        %p330 = scmp.lt.s32.totalorder %s329, 31
        %s331 = scalar_select %p330, %s329, 31
        %s332 = smul.addr %s331, 8
        %s333 = scalar_lea.vmem %s6, %s332
        %s334 = smul.u32 2, %s21
        %s335 = smul.u32 16, %s22
        %p336 = scmp.lt.s32.totalorder %s335, 31
        %s337 = scalar_select %p336, %s335, 31
        %s338 = smul.addr %s337, 8
        %s339 = scalar_lea.vmem %s1, %s338
        %s340 = smul.u32 16, %s22
        %s341 = smul.u32 8, %s21
        %p342 = scmp.lt.s32.totalorder %s341, 31
        %s343 = scalar_select %p342, %s341, 31
        %s344 = smul.addr %s343, 8
        %s345 = scalar_lea.vmem %s2, %s344
        %s346 = smul.u32 8, %s21
        %s347 = smul.u32 8, %s21
        %p348 = scmp.lt.s32.totalorder %s347, 31
        %s349 = scalar_select %p348, %s347, 31
        %s350 = smul.addr %s349, 8
        %s351 = scalar_lea.vmem %s6, %s350
        %s352 = smul.u32 8, %s21
        %p353 = scmp.eq.s32.totalorder %s22, 0
        // Predicated region
        $region83: #{sage_forward.5} parent=77 // pred_check
          %p354 = pneg %p353
        $region84: #{sage_forward.5} parent=77 // pred_check_branch
          %356 = sbr.rel (%p354) target = $region86
        $region85: #{sage_forward.5} parent=77 // pred_region
          %357 = vst [vmem:[#allocation2] sm:$0xff] 0.0
          %358 = vst [vmem:[#allocation2 + $0x8] sm:$0xff] 0.0
          %359 = vst [vmem:[#allocation2 + $0x10] sm:$0xff] 0.0
          %360 = vst [vmem:[#allocation2 + $0x18] sm:$0xff] 0.0
          %361 = vst [vmem:[#allocation2 + $0x20] sm:$0xff] 0.0
          %362 = vst [vmem:[#allocation2 + $0x28] sm:$0xff] 0.0
          %363 = vst [vmem:[#allocation2 + $0x30] sm:$0xff] 0.0
          %364 = vst [vmem:[#allocation2 + $0x38] sm:$0xff] 0.0
        $region86: #{sage_forward.5} parent=77 // pred_fallthru
          _
        %v365 = vld [vmem:[%s297] sm:$0xff]
        %v366 = vld [vmem:[%s297 + $0x8] sm:$0xff]
        %v367 = vunpack.c.0.s8 %v365
        %v368 = vunpack.c.1.s8 %v365
        %v369 = vunpack.c.2.s8 %v365
        %v370 = vunpack.c.3.s8 %v365
        %v371 = vunpack.c.0.s8 %v366
        %v372 = vunpack.c.1.s8 %v366
        %v373 = vunpack.c.2.s8 %v366
        %v374 = vunpack.c.3.s8 %v366
        %v375 = vcvt.s32.f32 %v367
        %v376 = vcvt.s32.f32 %v368
        %v377 = vcvt.s32.f32 %v369
        %v378 = vcvt.s32.f32 %v370
        %v379 = vcvt.s32.f32 %v371
        %v380 = vcvt.s32.f32 %v372
        %v381 = vcvt.s32.f32 %v373
        %v382 = vcvt.s32.f32 %v374
        %v383 = vld [vmem:[%s339] sm:$0xff]
        %v384 = vld [vmem:[%s339 + $0x8] sm:$0xff]
        %v385 = vld [vmem:[%s339 + $0x10] sm:$0xff]
        %v386 = vld [vmem:[%s339 + $0x18] sm:$0xff]
        %v387 = vld [vmem:[%s339 + $0x20] sm:$0xff]
        %v388 = vld [vmem:[%s339 + $0x28] sm:$0xff]
        %v389 = vld [vmem:[%s339 + $0x30] sm:$0xff]
        %v390 = vld [vmem:[%s339 + $0x38] sm:$0xff]
        %v391 = vld [vmem:[%s339 + $0x40] sm:$0xff]
        %v392 = vld [vmem:[%s339 + $0x48] sm:$0xff]
        %v393 = vld [vmem:[%s339 + $0x50] sm:$0xff]
        %v394 = vld [vmem:[%s339 + $0x58] sm:$0xff]
        %v395 = vld [vmem:[%s339 + $0x60] sm:$0xff]
        %v396 = vld [vmem:[%s339 + $0x68] sm:$0xff]
        %v397 = vld [vmem:[%s339 + $0x70] sm:$0xff]
        %v398 = vld [vmem:[%s339 + $0x78] sm:$0xff]
        %v399 = vlaneseq
        %v400 = vshrl.u32 %v399, 7
        %v401 = vsub.s32 0, %v400
        %v402 = vrot.slane %v375, %v401
        %404 = vbcast.lane.b32.xlu0 %v402, 256
        %v405 = vpop.permute.xlu0 %404
        %s407 = sor.u32 256, 8
        %408 = vbcast.lane.b32.xlu0 %v402, %s407
        %v409 = vpop.permute.xlu0 %408
        %s411 = sor.u32 256, 16
        %412 = vbcast.lane.b32.xlu0 %v402, %s411
        %v413 = vpop.permute.xlu0 %412
        %s415 = sor.u32 256, 24
        %416 = vbcast.lane.b32.xlu0 %v402, %s415
        %v417 = vpop.permute.xlu0 %416
        %s419 = sor.u32 256, 32
        %420 = vbcast.lane.b32.xlu0 %v402, %s419
        %v421 = vpop.permute.xlu0 %420
        %s423 = sor.u32 256, 40
        %424 = vbcast.lane.b32.xlu0 %v402, %s423
        %v425 = vpop.permute.xlu0 %424
        %s427 = sor.u32 256, 48
        %428 = vbcast.lane.b32.xlu0 %v402, %s427
        %v429 = vpop.permute.xlu0 %428
        %s431 = sor.u32 256, 56
        %432 = vbcast.lane.b32.xlu0 %v402, %s431
        %v433 = vpop.permute.xlu0 %432
        %s435 = sor.u32 256, 64
        %436 = vbcast.lane.b32.xlu0 %v402, %s435
        %v437 = vpop.permute.xlu0 %436
        %s439 = sor.u32 256, 72
        %440 = vbcast.lane.b32.xlu0 %v402, %s439
        %v441 = vpop.permute.xlu0 %440
        %s443 = sor.u32 256, 80
        %444 = vbcast.lane.b32.xlu0 %v402, %s443
        %v445 = vpop.permute.xlu0 %444
        %s447 = sor.u32 256, 88
        %448 = vbcast.lane.b32.xlu0 %v402, %s447
        %v449 = vpop.permute.xlu0 %448
        %s451 = sor.u32 256, 96
        %452 = vbcast.lane.b32.xlu0 %v402, %s451
        %v453 = vpop.permute.xlu0 %452
        %s455 = sor.u32 256, 104
        %456 = vbcast.lane.b32.xlu0 %v402, %s455
        %v457 = vpop.permute.xlu0 %456
        %s459 = sor.u32 256, 112
        %460 = vbcast.lane.b32.xlu0 %v402, %s459
        %v461 = vpop.permute.xlu0 %460
        %s463 = sor.u32 256, 120
        %464 = vbcast.lane.b32.xlu0 %v402, %s463
        %v465 = vpop.permute.xlu0 %464
        %v466 = vlaneseq
        %v467 = vshrl.u32 %v466, 7
        %v468 = vsub.s32 1, %v467
        %v469 = vrot.slane %v375, %v468
        %471 = vbcast.lane.b32.xlu0 %v469, 256
        %v472 = vpop.permute.xlu0 %471
        %s474 = sor.u32 256, 8
        %475 = vbcast.lane.b32.xlu0 %v469, %s474
        %v476 = vpop.permute.xlu0 %475
        %s478 = sor.u32 256, 16
        %479 = vbcast.lane.b32.xlu0 %v469, %s478
        %v480 = vpop.permute.xlu0 %479
        %s482 = sor.u32 256, 24
        %483 = vbcast.lane.b32.xlu0 %v469, %s482
        %v484 = vpop.permute.xlu0 %483
        %s486 = sor.u32 256, 32
        %487 = vbcast.lane.b32.xlu0 %v469, %s486
        %v488 = vpop.permute.xlu0 %487
        %s490 = sor.u32 256, 40
        %491 = vbcast.lane.b32.xlu0 %v469, %s490
        %v492 = vpop.permute.xlu0 %491
        %s494 = sor.u32 256, 48
        %495 = vbcast.lane.b32.xlu0 %v469, %s494
        %v496 = vpop.permute.xlu0 %495
        %s498 = sor.u32 256, 56
        %499 = vbcast.lane.b32.xlu0 %v469, %s498
        %v500 = vpop.permute.xlu0 %499
        %s502 = sor.u32 256, 64
        %503 = vbcast.lane.b32.xlu0 %v469, %s502
        %v504 = vpop.permute.xlu0 %503
        %s506 = sor.u32 256, 72
        %507 = vbcast.lane.b32.xlu0 %v469, %s506
        %v508 = vpop.permute.xlu0 %507
        %s510 = sor.u32 256, 80
        %511 = vbcast.lane.b32.xlu0 %v469, %s510
        %v512 = vpop.permute.xlu0 %511
        %s514 = sor.u32 256, 88
        %515 = vbcast.lane.b32.xlu0 %v469, %s514
        %v516 = vpop.permute.xlu0 %515
        %s518 = sor.u32 256, 96
        %519 = vbcast.lane.b32.xlu0 %v469, %s518
        %v520 = vpop.permute.xlu0 %519
        %s522 = sor.u32 256, 104
        %523 = vbcast.lane.b32.xlu0 %v469, %s522
        %v524 = vpop.permute.xlu0 %523
        %s526 = sor.u32 256, 112
        %527 = vbcast.lane.b32.xlu0 %v469, %s526
        %v528 = vpop.permute.xlu0 %527
        %s530 = sor.u32 256, 120
        %531 = vbcast.lane.b32.xlu0 %v469, %s530
        %v532 = vpop.permute.xlu0 %531
        %v533 = vlaneseq
        %v534 = vshrl.u32 %v533, 7
        %v535 = vsub.s32 2, %v534
        %v536 = vrot.slane %v375, %v535
        %538 = vbcast.lane.b32.xlu0 %v536, 256
        %v539 = vpop.permute.xlu0 %538
        %s541 = sor.u32 256, 8
        %542 = vbcast.lane.b32.xlu0 %v536, %s541
        %v543 = vpop.permute.xlu0 %542
        %s545 = sor.u32 256, 16
        %546 = vbcast.lane.b32.xlu0 %v536, %s545
        %v547 = vpop.permute.xlu0 %546
        %s549 = sor.u32 256, 24
        %550 = vbcast.lane.b32.xlu0 %v536, %s549
        %v551 = vpop.permute.xlu0 %550
        %s553 = sor.u32 256, 32
        %554 = vbcast.lane.b32.xlu0 %v536, %s553
        %v555 = vpop.permute.xlu0 %554
        %s557 = sor.u32 256, 40
        %558 = vbcast.lane.b32.xlu0 %v536, %s557
        %v559 = vpop.permute.xlu0 %558
        %s561 = sor.u32 256, 48
        %562 = vbcast.lane.b32.xlu0 %v536, %s561
        %v563 = vpop.permute.xlu0 %562
        %s565 = sor.u32 256, 56
        %566 = vbcast.lane.b32.xlu0 %v536, %s565
        %v567 = vpop.permute.xlu0 %566
        %s569 = sor.u32 256, 64
        %570 = vbcast.lane.b32.xlu0 %v536, %s569
        %v571 = vpop.permute.xlu0 %570
        %s573 = sor.u32 256, 72
        %574 = vbcast.lane.b32.xlu0 %v536, %s573
        %v575 = vpop.permute.xlu0 %574
        %s577 = sor.u32 256, 80
        %578 = vbcast.lane.b32.xlu0 %v536, %s577
        %v579 = vpop.permute.xlu0 %578
        %s581 = sor.u32 256, 88
        %582 = vbcast.lane.b32.xlu0 %v536, %s581
        %v583 = vpop.permute.xlu0 %582
        %s585 = sor.u32 256, 96
        %586 = vbcast.lane.b32.xlu0 %v536, %s585
        %v587 = vpop.permute.xlu0 %586
        %s589 = sor.u32 256, 104
        %590 = vbcast.lane.b32.xlu0 %v536, %s589
        %v591 = vpop.permute.xlu0 %590
        %s593 = sor.u32 256, 112
        %594 = vbcast.lane.b32.xlu0 %v536, %s593
        %v595 = vpop.permute.xlu0 %594
        %s597 = sor.u32 256, 120
        %598 = vbcast.lane.b32.xlu0 %v536, %s597
        %v599 = vpop.permute.xlu0 %598
        %v600 = vlaneseq
        %v601 = vshrl.u32 %v600, 7
        %v602 = vsub.s32 3, %v601
        %v603 = vrot.slane %v375, %v602
        %605 = vbcast.lane.b32.xlu0 %v603, 256
        %v606 = vpop.permute.xlu0 %605
        %s608 = sor.u32 256, 8
        %609 = vbcast.lane.b32.xlu0 %v603, %s608
        %v610 = vpop.permute.xlu0 %609
        %s612 = sor.u32 256, 16
        %613 = vbcast.lane.b32.xlu0 %v603, %s612
        %v614 = vpop.permute.xlu0 %613
        %s616 = sor.u32 256, 24
        %617 = vbcast.lane.b32.xlu0 %v603, %s616
        %v618 = vpop.permute.xlu0 %617
        %s620 = sor.u32 256, 32
        %621 = vbcast.lane.b32.xlu0 %v603, %s620
        %v622 = vpop.permute.xlu0 %621
        %s624 = sor.u32 256, 40
        %625 = vbcast.lane.b32.xlu0 %v603, %s624
        %v626 = vpop.permute.xlu0 %625
        %s628 = sor.u32 256, 48
        %629 = vbcast.lane.b32.xlu0 %v603, %s628
        %v630 = vpop.permute.xlu0 %629
        %s632 = sor.u32 256, 56
        %633 = vbcast.lane.b32.xlu0 %v603, %s632
        %v634 = vpop.permute.xlu0 %633
        %s636 = sor.u32 256, 64
        %637 = vbcast.lane.b32.xlu0 %v603, %s636
        %v638 = vpop.permute.xlu0 %637
        %s640 = sor.u32 256, 72
        %641 = vbcast.lane.b32.xlu0 %v603, %s640
        %v642 = vpop.permute.xlu0 %641
        %s644 = sor.u32 256, 80
        %645 = vbcast.lane.b32.xlu0 %v603, %s644
        %v646 = vpop.permute.xlu0 %645
        %s648 = sor.u32 256, 88
        %649 = vbcast.lane.b32.xlu0 %v603, %s648
        %v650 = vpop.permute.xlu0 %649
        %s652 = sor.u32 256, 96
        %653 = vbcast.lane.b32.xlu0 %v603, %s652
        %v654 = vpop.permute.xlu0 %653
        %s656 = sor.u32 256, 104
        %657 = vbcast.lane.b32.xlu0 %v603, %s656
        %v658 = vpop.permute.xlu0 %657
        %s660 = sor.u32 256, 112
        %661 = vbcast.lane.b32.xlu0 %v603, %s660
        %v662 = vpop.permute.xlu0 %661
        %s664 = sor.u32 256, 120
        %665 = vbcast.lane.b32.xlu0 %v603, %s664
        %v666 = vpop.permute.xlu0 %665
        %v667 = vlaneseq
        %v668 = vshrl.u32 %v667, 7
        %v669 = vsub.s32 4, %v668
        %v670 = vrot.slane %v375, %v669
        %672 = vbcast.lane.b32.xlu0 %v670, 256
        %v673 = vpop.permute.xlu0 %672
        %s675 = sor.u32 256, 8
        %676 = vbcast.lane.b32.xlu0 %v670, %s675
        %v677 = vpop.permute.xlu0 %676
        %s679 = sor.u32 256, 16
        %680 = vbcast.lane.b32.xlu0 %v670, %s679
        %v681 = vpop.permute.xlu0 %680
        %s683 = sor.u32 256, 24
        %684 = vbcast.lane.b32.xlu0 %v670, %s683
        %v685 = vpop.permute.xlu0 %684
        %s687 = sor.u32 256, 32
        %688 = vbcast.lane.b32.xlu0 %v670, %s687
        %v689 = vpop.permute.xlu0 %688
        %s691 = sor.u32 256, 40
        %692 = vbcast.lane.b32.xlu0 %v670, %s691
        %v693 = vpop.permute.xlu0 %692
        %s695 = sor.u32 256, 48
        %696 = vbcast.lane.b32.xlu0 %v670, %s695
        %v697 = vpop.permute.xlu0 %696
        %s699 = sor.u32 256, 56
        %700 = vbcast.lane.b32.xlu0 %v670, %s699
        %v701 = vpop.permute.xlu0 %700
        %s703 = sor.u32 256, 64
        %704 = vbcast.lane.b32.xlu0 %v670, %s703
        %v705 = vpop.permute.xlu0 %704
        %s707 = sor.u32 256, 72
        %708 = vbcast.lane.b32.xlu0 %v670, %s707
        %v709 = vpop.permute.xlu0 %708
        %s711 = sor.u32 256, 80
        %712 = vbcast.lane.b32.xlu0 %v670, %s711
        %v713 = vpop.permute.xlu0 %712
        %s715 = sor.u32 256, 88
        %716 = vbcast.lane.b32.xlu0 %v670, %s715
        %v717 = vpop.permute.xlu0 %716
        %s719 = sor.u32 256, 96
        %720 = vbcast.lane.b32.xlu0 %v670, %s719
        %v721 = vpop.permute.xlu0 %720
        %s723 = sor.u32 256, 104
        %724 = vbcast.lane.b32.xlu0 %v670, %s723
        %v725 = vpop.permute.xlu0 %724
        %s727 = sor.u32 256, 112
        %728 = vbcast.lane.b32.xlu0 %v670, %s727
        %v729 = vpop.permute.xlu0 %728
        %s731 = sor.u32 256, 120
        %732 = vbcast.lane.b32.xlu0 %v670, %s731
        %v733 = vpop.permute.xlu0 %732
        %v734 = vlaneseq
        %v735 = vshrl.u32 %v734, 7
        %v736 = vsub.s32 5, %v735
        %v737 = vrot.slane %v375, %v736
        %739 = vbcast.lane.b32.xlu0 %v737, 256
        %v740 = vpop.permute.xlu0 %739
        %s742 = sor.u32 256, 8
        %743 = vbcast.lane.b32.xlu0 %v737, %s742
        %v744 = vpop.permute.xlu0 %743
        %s746 = sor.u32 256, 16
        %747 = vbcast.lane.b32.xlu0 %v737, %s746
        %v748 = vpop.permute.xlu0 %747
        %s750 = sor.u32 256, 24
        %751 = vbcast.lane.b32.xlu0 %v737, %s750
        %v752 = vpop.permute.xlu0 %751
        %s754 = sor.u32 256, 32
        %755 = vbcast.lane.b32.xlu0 %v737, %s754
        %v756 = vpop.permute.xlu0 %755
        %s758 = sor.u32 256, 40
        %759 = vbcast.lane.b32.xlu0 %v737, %s758
        %v760 = vpop.permute.xlu0 %759
        %s762 = sor.u32 256, 48
        %763 = vbcast.lane.b32.xlu0 %v737, %s762
        %v764 = vpop.permute.xlu0 %763
        %s766 = sor.u32 256, 56
        %767 = vbcast.lane.b32.xlu0 %v737, %s766
        %v768 = vpop.permute.xlu0 %767
        %s770 = sor.u32 256, 64
        %771 = vbcast.lane.b32.xlu0 %v737, %s770
        %v772 = vpop.permute.xlu0 %771
        %s774 = sor.u32 256, 72
        %775 = vbcast.lane.b32.xlu0 %v737, %s774
        %v776 = vpop.permute.xlu0 %775
        %s778 = sor.u32 256, 80
        %779 = vbcast.lane.b32.xlu0 %v737, %s778
        %v780 = vpop.permute.xlu0 %779
        %s782 = sor.u32 256, 88
        %783 = vbcast.lane.b32.xlu0 %v737, %s782
        %v784 = vpop.permute.xlu0 %783
        %s786 = sor.u32 256, 96
        %787 = vbcast.lane.b32.xlu0 %v737, %s786
        %v788 = vpop.permute.xlu0 %787
        %s790 = sor.u32 256, 104
        %791 = vbcast.lane.b32.xlu0 %v737, %s790
        %v792 = vpop.permute.xlu0 %791
        %s794 = sor.u32 256, 112
        %795 = vbcast.lane.b32.xlu0 %v737, %s794
        %v796 = vpop.permute.xlu0 %795
        %s798 = sor.u32 256, 120
        %799 = vbcast.lane.b32.xlu0 %v737, %s798
        %v800 = vpop.permute.xlu0 %799
        %v801 = vlaneseq
        %v802 = vshrl.u32 %v801, 7
        %v803 = vsub.s32 6, %v802
        %v804 = vrot.slane %v375, %v803
        %806 = vbcast.lane.b32.xlu0 %v804, 256
        %v807 = vpop.permute.xlu0 %806
        %s809 = sor.u32 256, 8
        %810 = vbcast.lane.b32.xlu0 %v804, %s809
        %v811 = vpop.permute.xlu0 %810
        %s813 = sor.u32 256, 16
        %814 = vbcast.lane.b32.xlu0 %v804, %s813
        %v815 = vpop.permute.xlu0 %814
        %s817 = sor.u32 256, 24
        %818 = vbcast.lane.b32.xlu0 %v804, %s817
        %v819 = vpop.permute.xlu0 %818
        %s821 = sor.u32 256, 32
        %822 = vbcast.lane.b32.xlu0 %v804, %s821
        %v823 = vpop.permute.xlu0 %822
        %s825 = sor.u32 256, 40
        %826 = vbcast.lane.b32.xlu0 %v804, %s825
        %v827 = vpop.permute.xlu0 %826
        %s829 = sor.u32 256, 48
        %830 = vbcast.lane.b32.xlu0 %v804, %s829
        %v831 = vpop.permute.xlu0 %830
        %s833 = sor.u32 256, 56
        %834 = vbcast.lane.b32.xlu0 %v804, %s833
        %v835 = vpop.permute.xlu0 %834
        %s837 = sor.u32 256, 64
        %838 = vbcast.lane.b32.xlu0 %v804, %s837
        %v839 = vpop.permute.xlu0 %838
        %s841 = sor.u32 256, 72
        %842 = vbcast.lane.b32.xlu0 %v804, %s841
        %v843 = vpop.permute.xlu0 %842
        %s845 = sor.u32 256, 80
        %846 = vbcast.lane.b32.xlu0 %v804, %s845
        %v847 = vpop.permute.xlu0 %846
        %s849 = sor.u32 256, 88
        %850 = vbcast.lane.b32.xlu0 %v804, %s849
        %v851 = vpop.permute.xlu0 %850
        %s853 = sor.u32 256, 96
        %854 = vbcast.lane.b32.xlu0 %v804, %s853
        %v855 = vpop.permute.xlu0 %854
        %s857 = sor.u32 256, 104
        %858 = vbcast.lane.b32.xlu0 %v804, %s857
        %v859 = vpop.permute.xlu0 %858
        %s861 = sor.u32 256, 112
        %862 = vbcast.lane.b32.xlu0 %v804, %s861
        %v863 = vpop.permute.xlu0 %862
        %s865 = sor.u32 256, 120
        %866 = vbcast.lane.b32.xlu0 %v804, %s865
        %v867 = vpop.permute.xlu0 %866
        %v868 = vlaneseq
        %v869 = vshrl.u32 %v868, 7
        %v870 = vsub.s32 7, %v869
        %v871 = vrot.slane %v375, %v870
        %873 = vbcast.lane.b32.xlu0 %v871, 256
        %v874 = vpop.permute.xlu0 %873
        %s876 = sor.u32 256, 8
        %877 = vbcast.lane.b32.xlu0 %v871, %s876
        %v878 = vpop.permute.xlu0 %877
        %s880 = sor.u32 256, 16
        %881 = vbcast.lane.b32.xlu0 %v871, %s880
        %v882 = vpop.permute.xlu0 %881
        %s884 = sor.u32 256, 24
        %885 = vbcast.lane.b32.xlu0 %v871, %s884
        %v886 = vpop.permute.xlu0 %885
        %s888 = sor.u32 256, 32
        %889 = vbcast.lane.b32.xlu0 %v871, %s888
        %v890 = vpop.permute.xlu0 %889
        %s892 = sor.u32 256, 40
        %893 = vbcast.lane.b32.xlu0 %v871, %s892
        %v894 = vpop.permute.xlu0 %893
        %s896 = sor.u32 256, 48
        %897 = vbcast.lane.b32.xlu0 %v871, %s896
        %v898 = vpop.permute.xlu0 %897
        %s900 = sor.u32 256, 56
        %901 = vbcast.lane.b32.xlu0 %v871, %s900
        %v902 = vpop.permute.xlu0 %901
        %s904 = sor.u32 256, 64
        %905 = vbcast.lane.b32.xlu0 %v871, %s904
        %v906 = vpop.permute.xlu0 %905
        %s908 = sor.u32 256, 72
        %909 = vbcast.lane.b32.xlu0 %v871, %s908
        %v910 = vpop.permute.xlu0 %909
        %s912 = sor.u32 256, 80
        %913 = vbcast.lane.b32.xlu0 %v871, %s912
        %v914 = vpop.permute.xlu0 %913
        %s916 = sor.u32 256, 88
        %917 = vbcast.lane.b32.xlu0 %v871, %s916
        %v918 = vpop.permute.xlu0 %917
        %s920 = sor.u32 256, 96
        %921 = vbcast.lane.b32.xlu0 %v871, %s920
        %v922 = vpop.permute.xlu0 %921
        %s924 = sor.u32 256, 104
        %925 = vbcast.lane.b32.xlu0 %v871, %s924
        %v926 = vpop.permute.xlu0 %925
        %s928 = sor.u32 256, 112
        %929 = vbcast.lane.b32.xlu0 %v871, %s928
        %v930 = vpop.permute.xlu0 %929
        %s932 = sor.u32 256, 120
        %933 = vbcast.lane.b32.xlu0 %v871, %s932
        %v934 = vpop.permute.xlu0 %933
        %v935 = vlaneseq
        %v936 = vshrl.u32 %v935, 7
        %v937 = vsub.s32 0, %v936
        %v938 = vrot.slane %v376, %v937
        %940 = vbcast.lane.b32.xlu0 %v938, 256
        %v941 = vpop.permute.xlu0 %940
        %s943 = sor.u32 256, 8
        %944 = vbcast.lane.b32.xlu0 %v938, %s943
        %v945 = vpop.permute.xlu0 %944
        %s947 = sor.u32 256, 16
        %948 = vbcast.lane.b32.xlu0 %v938, %s947
        %v949 = vpop.permute.xlu0 %948
        %s951 = sor.u32 256, 24
        %952 = vbcast.lane.b32.xlu0 %v938, %s951
        %v953 = vpop.permute.xlu0 %952
        %s955 = sor.u32 256, 32
        %956 = vbcast.lane.b32.xlu0 %v938, %s955
        %v957 = vpop.permute.xlu0 %956
        %s959 = sor.u32 256, 40
        %960 = vbcast.lane.b32.xlu0 %v938, %s959
        %v961 = vpop.permute.xlu0 %960
        %s963 = sor.u32 256, 48
        %964 = vbcast.lane.b32.xlu0 %v938, %s963
        %v965 = vpop.permute.xlu0 %964
        %s967 = sor.u32 256, 56
        %968 = vbcast.lane.b32.xlu0 %v938, %s967
        %v969 = vpop.permute.xlu0 %968
        %s971 = sor.u32 256, 64
        %972 = vbcast.lane.b32.xlu0 %v938, %s971
        %v973 = vpop.permute.xlu0 %972
        %s975 = sor.u32 256, 72
        %976 = vbcast.lane.b32.xlu0 %v938, %s975
        %v977 = vpop.permute.xlu0 %976
        %s979 = sor.u32 256, 80
        %980 = vbcast.lane.b32.xlu0 %v938, %s979
        %v981 = vpop.permute.xlu0 %980
        %s983 = sor.u32 256, 88
        %984 = vbcast.lane.b32.xlu0 %v938, %s983
        %v985 = vpop.permute.xlu0 %984
        %s987 = sor.u32 256, 96
        %988 = vbcast.lane.b32.xlu0 %v938, %s987
        %v989 = vpop.permute.xlu0 %988
        %s991 = sor.u32 256, 104
        %992 = vbcast.lane.b32.xlu0 %v938, %s991
        %v993 = vpop.permute.xlu0 %992
        %s995 = sor.u32 256, 112
        %996 = vbcast.lane.b32.xlu0 %v938, %s995
        %v997 = vpop.permute.xlu0 %996
        %s999 = sor.u32 256, 120
        %1000 = vbcast.lane.b32.xlu0 %v938, %s999
        %v1001 = vpop.permute.xlu0 %1000
        %v1002 = vlaneseq
        %v1003 = vshrl.u32 %v1002, 7
        %v1004 = vsub.s32 1, %v1003
        %v1005 = vrot.slane %v376, %v1004
        %1007 = vbcast.lane.b32.xlu0 %v1005, 256
        %v1008 = vpop.permute.xlu0 %1007
        %s1010 = sor.u32 256, 8
        %1011 = vbcast.lane.b32.xlu0 %v1005, %s1010
        %v1012 = vpop.permute.xlu0 %1011
        %s1014 = sor.u32 256, 16
        %1015 = vbcast.lane.b32.xlu0 %v1005, %s1014
        %v1016 = vpop.permute.xlu0 %1015
        %s1018 = sor.u32 256, 24
        %1019 = vbcast.lane.b32.xlu0 %v1005, %s1018
        %v1020 = vpop.permute.xlu0 %1019
        %s1022 = sor.u32 256, 32
        %1023 = vbcast.lane.b32.xlu0 %v1005, %s1022
        %v1024 = vpop.permute.xlu0 %1023
        %s1026 = sor.u32 256, 40
        %1027 = vbcast.lane.b32.xlu0 %v1005, %s1026
        %v1028 = vpop.permute.xlu0 %1027
        %s1030 = sor.u32 256, 48
        %1031 = vbcast.lane.b32.xlu0 %v1005, %s1030
        %v1032 = vpop.permute.xlu0 %1031
        %s1034 = sor.u32 256, 56
        %1035 = vbcast.lane.b32.xlu0 %v1005, %s1034
        %v1036 = vpop.permute.xlu0 %1035
        %s1038 = sor.u32 256, 64
        %1039 = vbcast.lane.b32.xlu0 %v1005, %s1038
        %v1040 = vpop.permute.xlu0 %1039
        %s1042 = sor.u32 256, 72
        %1043 = vbcast.lane.b32.xlu0 %v1005, %s1042
        %v1044 = vpop.permute.xlu0 %1043
        %s1046 = sor.u32 256, 80
        %1047 = vbcast.lane.b32.xlu0 %v1005, %s1046
        %v1048 = vpop.permute.xlu0 %1047
        %s1050 = sor.u32 256, 88
        %1051 = vbcast.lane.b32.xlu0 %v1005, %s1050
        %v1052 = vpop.permute.xlu0 %1051
        %s1054 = sor.u32 256, 96
        %1055 = vbcast.lane.b32.xlu0 %v1005, %s1054
        %v1056 = vpop.permute.xlu0 %1055
        %s1058 = sor.u32 256, 104
        %1059 = vbcast.lane.b32.xlu0 %v1005, %s1058
        %v1060 = vpop.permute.xlu0 %1059
        %s1062 = sor.u32 256, 112
        %1063 = vbcast.lane.b32.xlu0 %v1005, %s1062
        %v1064 = vpop.permute.xlu0 %1063
        %s1066 = sor.u32 256, 120
        %1067 = vbcast.lane.b32.xlu0 %v1005, %s1066
        %v1068 = vpop.permute.xlu0 %1067
        %v1069 = vlaneseq
        %v1070 = vshrl.u32 %v1069, 7
        %v1071 = vsub.s32 2, %v1070
        %v1072 = vrot.slane %v376, %v1071
        %1074 = vbcast.lane.b32.xlu0 %v1072, 256
        %v1075 = vpop.permute.xlu0 %1074
        %s1077 = sor.u32 256, 8
        %1078 = vbcast.lane.b32.xlu0 %v1072, %s1077
        %v1079 = vpop.permute.xlu0 %1078
        %s1081 = sor.u32 256, 16
        %1082 = vbcast.lane.b32.xlu0 %v1072, %s1081
        %v1083 = vpop.permute.xlu0 %1082
        %s1085 = sor.u32 256, 24
        %1086 = vbcast.lane.b32.xlu0 %v1072, %s1085
        %v1087 = vpop.permute.xlu0 %1086
        %s1089 = sor.u32 256, 32
        %1090 = vbcast.lane.b32.xlu0 %v1072, %s1089
        %v1091 = vpop.permute.xlu0 %1090
        %s1093 = sor.u32 256, 40
        %1094 = vbcast.lane.b32.xlu0 %v1072, %s1093
        %v1095 = vpop.permute.xlu0 %1094
        %s1097 = sor.u32 256, 48
        %1098 = vbcast.lane.b32.xlu0 %v1072, %s1097
        %v1099 = vpop.permute.xlu0 %1098
        %s1101 = sor.u32 256, 56
        %1102 = vbcast.lane.b32.xlu0 %v1072, %s1101
        %v1103 = vpop.permute.xlu0 %1102
        %s1105 = sor.u32 256, 64
        %1106 = vbcast.lane.b32.xlu0 %v1072, %s1105
        %v1107 = vpop.permute.xlu0 %1106
        %s1109 = sor.u32 256, 72
        %1110 = vbcast.lane.b32.xlu0 %v1072, %s1109
        %v1111 = vpop.permute.xlu0 %1110
        %s1113 = sor.u32 256, 80
        %1114 = vbcast.lane.b32.xlu0 %v1072, %s1113
        %v1115 = vpop.permute.xlu0 %1114
        %s1117 = sor.u32 256, 88
        %1118 = vbcast.lane.b32.xlu0 %v1072, %s1117
        %v1119 = vpop.permute.xlu0 %1118
        %s1121 = sor.u32 256, 96
        %1122 = vbcast.lane.b32.xlu0 %v1072, %s1121
        %v1123 = vpop.permute.xlu0 %1122
        %s1125 = sor.u32 256, 104
        %1126 = vbcast.lane.b32.xlu0 %v1072, %s1125
        %v1127 = vpop.permute.xlu0 %1126
        %s1129 = sor.u32 256, 112
        %1130 = vbcast.lane.b32.xlu0 %v1072, %s1129
        %v1131 = vpop.permute.xlu0 %1130
        %s1133 = sor.u32 256, 120
        %1134 = vbcast.lane.b32.xlu0 %v1072, %s1133
        %v1135 = vpop.permute.xlu0 %1134
        %v1136 = vlaneseq
        %v1137 = vshrl.u32 %v1136, 7
        %v1138 = vsub.s32 3, %v1137
        %v1139 = vrot.slane %v376, %v1138
        %1141 = vbcast.lane.b32.xlu0 %v1139, 256
        %v1142 = vpop.permute.xlu0 %1141
        %s1144 = sor.u32 256, 8
        %1145 = vbcast.lane.b32.xlu0 %v1139, %s1144
        %v1146 = vpop.permute.xlu0 %1145
        %s1148 = sor.u32 256, 16
        %1149 = vbcast.lane.b32.xlu0 %v1139, %s1148
        %v1150 = vpop.permute.xlu0 %1149
        %s1152 = sor.u32 256, 24
        %1153 = vbcast.lane.b32.xlu0 %v1139, %s1152
        %v1154 = vpop.permute.xlu0 %1153
        %s1156 = sor.u32 256, 32
        %1157 = vbcast.lane.b32.xlu0 %v1139, %s1156
        %v1158 = vpop.permute.xlu0 %1157
        %s1160 = sor.u32 256, 40
        %1161 = vbcast.lane.b32.xlu0 %v1139, %s1160
        %v1162 = vpop.permute.xlu0 %1161
        %s1164 = sor.u32 256, 48
        %1165 = vbcast.lane.b32.xlu0 %v1139, %s1164
        %v1166 = vpop.permute.xlu0 %1165
        %s1168 = sor.u32 256, 56
        %1169 = vbcast.lane.b32.xlu0 %v1139, %s1168
        %v1170 = vpop.permute.xlu0 %1169
        %s1172 = sor.u32 256, 64
        %1173 = vbcast.lane.b32.xlu0 %v1139, %s1172
        %v1174 = vpop.permute.xlu0 %1173
        %s1176 = sor.u32 256, 72
        %1177 = vbcast.lane.b32.xlu0 %v1139, %s1176
        %v1178 = vpop.permute.xlu0 %1177
        %s1180 = sor.u32 256, 80
        %1181 = vbcast.lane.b32.xlu0 %v1139, %s1180
        %v1182 = vpop.permute.xlu0 %1181
        %s1184 = sor.u32 256, 88
        %1185 = vbcast.lane.b32.xlu0 %v1139, %s1184
        %v1186 = vpop.permute.xlu0 %1185
        %s1188 = sor.u32 256, 96
        %1189 = vbcast.lane.b32.xlu0 %v1139, %s1188
        %v1190 = vpop.permute.xlu0 %1189
        %s1192 = sor.u32 256, 104
        %1193 = vbcast.lane.b32.xlu0 %v1139, %s1192
        %v1194 = vpop.permute.xlu0 %1193
        %s1196 = sor.u32 256, 112
        %1197 = vbcast.lane.b32.xlu0 %v1139, %s1196
        %v1198 = vpop.permute.xlu0 %1197
        %s1200 = sor.u32 256, 120
        %1201 = vbcast.lane.b32.xlu0 %v1139, %s1200
        %v1202 = vpop.permute.xlu0 %1201
        %v1203 = vlaneseq
        %v1204 = vshrl.u32 %v1203, 7
        %v1205 = vsub.s32 4, %v1204
        %v1206 = vrot.slane %v376, %v1205
        %1208 = vbcast.lane.b32.xlu0 %v1206, 256
        %v1209 = vpop.permute.xlu0 %1208
        %s1211 = sor.u32 256, 8
        %1212 = vbcast.lane.b32.xlu0 %v1206, %s1211
        %v1213 = vpop.permute.xlu0 %1212
        %s1215 = sor.u32 256, 16
        %1216 = vbcast.lane.b32.xlu0 %v1206, %s1215
        %v1217 = vpop.permute.xlu0 %1216
        %s1219 = sor.u32 256, 24
        %1220 = vbcast.lane.b32.xlu0 %v1206, %s1219
        %v1221 = vpop.permute.xlu0 %1220
        %s1223 = sor.u32 256, 32
        %1224 = vbcast.lane.b32.xlu0 %v1206, %s1223
        %v1225 = vpop.permute.xlu0 %1224
        %s1227 = sor.u32 256, 40
        %1228 = vbcast.lane.b32.xlu0 %v1206, %s1227
        %v1229 = vpop.permute.xlu0 %1228
        %s1231 = sor.u32 256, 48
        %1232 = vbcast.lane.b32.xlu0 %v1206, %s1231
        %v1233 = vpop.permute.xlu0 %1232
        %s1235 = sor.u32 256, 56
        %1236 = vbcast.lane.b32.xlu0 %v1206, %s1235
        %v1237 = vpop.permute.xlu0 %1236
        %s1239 = sor.u32 256, 64
        %1240 = vbcast.lane.b32.xlu0 %v1206, %s1239
        %v1241 = vpop.permute.xlu0 %1240
        %s1243 = sor.u32 256, 72
        %1244 = vbcast.lane.b32.xlu0 %v1206, %s1243
        %v1245 = vpop.permute.xlu0 %1244
        %s1247 = sor.u32 256, 80
        %1248 = vbcast.lane.b32.xlu0 %v1206, %s1247
        %v1249 = vpop.permute.xlu0 %1248
        %s1251 = sor.u32 256, 88
        %1252 = vbcast.lane.b32.xlu0 %v1206, %s1251
        %v1253 = vpop.permute.xlu0 %1252
        %s1255 = sor.u32 256, 96
        %1256 = vbcast.lane.b32.xlu0 %v1206, %s1255
        %v1257 = vpop.permute.xlu0 %1256
        %s1259 = sor.u32 256, 104
        %1260 = vbcast.lane.b32.xlu0 %v1206, %s1259
        %v1261 = vpop.permute.xlu0 %1260
        %s1263 = sor.u32 256, 112
        %1264 = vbcast.lane.b32.xlu0 %v1206, %s1263
        %v1265 = vpop.permute.xlu0 %1264
        %s1267 = sor.u32 256, 120
        %1268 = vbcast.lane.b32.xlu0 %v1206, %s1267
        %v1269 = vpop.permute.xlu0 %1268
        %v1270 = vlaneseq
        %v1271 = vshrl.u32 %v1270, 7
        %v1272 = vsub.s32 5, %v1271
        %v1273 = vrot.slane %v376, %v1272
        %1275 = vbcast.lane.b32.xlu0 %v1273, 256
        %v1276 = vpop.permute.xlu0 %1275
        %s1278 = sor.u32 256, 8
        %1279 = vbcast.lane.b32.xlu0 %v1273, %s1278
        %v1280 = vpop.permute.xlu0 %1279
        %s1282 = sor.u32 256, 16
        %1283 = vbcast.lane.b32.xlu0 %v1273, %s1282
        %v1284 = vpop.permute.xlu0 %1283
        %s1286 = sor.u32 256, 24
        %1287 = vbcast.lane.b32.xlu0 %v1273, %s1286
        %v1288 = vpop.permute.xlu0 %1287
        %s1290 = sor.u32 256, 32
        %1291 = vbcast.lane.b32.xlu0 %v1273, %s1290
        %v1292 = vpop.permute.xlu0 %1291
        %s1294 = sor.u32 256, 40
        %1295 = vbcast.lane.b32.xlu0 %v1273, %s1294
        %v1296 = vpop.permute.xlu0 %1295
        %s1298 = sor.u32 256, 48
        %1299 = vbcast.lane.b32.xlu0 %v1273, %s1298
        %v1300 = vpop.permute.xlu0 %1299
        %s1302 = sor.u32 256, 56
        %1303 = vbcast.lane.b32.xlu0 %v1273, %s1302
        %v1304 = vpop.permute.xlu0 %1303
        %s1306 = sor.u32 256, 64
        %1307 = vbcast.lane.b32.xlu0 %v1273, %s1306
        %v1308 = vpop.permute.xlu0 %1307
        %s1310 = sor.u32 256, 72
        %1311 = vbcast.lane.b32.xlu0 %v1273, %s1310
        %v1312 = vpop.permute.xlu0 %1311
        %s1314 = sor.u32 256, 80
        %1315 = vbcast.lane.b32.xlu0 %v1273, %s1314
        %v1316 = vpop.permute.xlu0 %1315
        %s1318 = sor.u32 256, 88
        %1319 = vbcast.lane.b32.xlu0 %v1273, %s1318
        %v1320 = vpop.permute.xlu0 %1319
        %s1322 = sor.u32 256, 96
        %1323 = vbcast.lane.b32.xlu0 %v1273, %s1322
        %v1324 = vpop.permute.xlu0 %1323
        %s1326 = sor.u32 256, 104
        %1327 = vbcast.lane.b32.xlu0 %v1273, %s1326
        %v1328 = vpop.permute.xlu0 %1327
        %s1330 = sor.u32 256, 112
        %1331 = vbcast.lane.b32.xlu0 %v1273, %s1330
        %v1332 = vpop.permute.xlu0 %1331
        %s1334 = sor.u32 256, 120
        %1335 = vbcast.lane.b32.xlu0 %v1273, %s1334
        %v1336 = vpop.permute.xlu0 %1335
        %v1337 = vlaneseq
        %v1338 = vshrl.u32 %v1337, 7
        %v1339 = vsub.s32 6, %v1338
        %v1340 = vrot.slane %v376, %v1339
        %1342 = vbcast.lane.b32.xlu0 %v1340, 256
        %v1343 = vpop.permute.xlu0 %1342
        %s1345 = sor.u32 256, 8
        %1346 = vbcast.lane.b32.xlu0 %v1340, %s1345
        %v1347 = vpop.permute.xlu0 %1346
        %s1349 = sor.u32 256, 16
        %1350 = vbcast.lane.b32.xlu0 %v1340, %s1349
        %v1351 = vpop.permute.xlu0 %1350
        %s1353 = sor.u32 256, 24
        %1354 = vbcast.lane.b32.xlu0 %v1340, %s1353
        %v1355 = vpop.permute.xlu0 %1354
        %s1357 = sor.u32 256, 32
        %1358 = vbcast.lane.b32.xlu0 %v1340, %s1357
        %v1359 = vpop.permute.xlu0 %1358
        %s1361 = sor.u32 256, 40
        %1362 = vbcast.lane.b32.xlu0 %v1340, %s1361
        %v1363 = vpop.permute.xlu0 %1362
        %s1365 = sor.u32 256, 48
        %1366 = vbcast.lane.b32.xlu0 %v1340, %s1365
        %v1367 = vpop.permute.xlu0 %1366
        %s1369 = sor.u32 256, 56
        %1370 = vbcast.lane.b32.xlu0 %v1340, %s1369
        %v1371 = vpop.permute.xlu0 %1370
        %s1373 = sor.u32 256, 64
        %1374 = vbcast.lane.b32.xlu0 %v1340, %s1373
        %v1375 = vpop.permute.xlu0 %1374
        %s1377 = sor.u32 256, 72
        %1378 = vbcast.lane.b32.xlu0 %v1340, %s1377
        %v1379 = vpop.permute.xlu0 %1378
        %s1381 = sor.u32 256, 80
        %1382 = vbcast.lane.b32.xlu0 %v1340, %s1381
        %v1383 = vpop.permute.xlu0 %1382
        %s1385 = sor.u32 256, 88
        %1386 = vbcast.lane.b32.xlu0 %v1340, %s1385
        %v1387 = vpop.permute.xlu0 %1386
        %s1389 = sor.u32 256, 96
        %1390 = vbcast.lane.b32.xlu0 %v1340, %s1389
        %v1391 = vpop.permute.xlu0 %1390
        %s1393 = sor.u32 256, 104
        %1394 = vbcast.lane.b32.xlu0 %v1340, %s1393
        %v1395 = vpop.permute.xlu0 %1394
        %s1397 = sor.u32 256, 112
        %1398 = vbcast.lane.b32.xlu0 %v1340, %s1397
        %v1399 = vpop.permute.xlu0 %1398
        %s1401 = sor.u32 256, 120
        %1402 = vbcast.lane.b32.xlu0 %v1340, %s1401
        %v1403 = vpop.permute.xlu0 %1402
        %v1404 = vlaneseq
        %v1405 = vshrl.u32 %v1404, 7
        %v1406 = vsub.s32 7, %v1405
        %v1407 = vrot.slane %v376, %v1406
        %1409 = vbcast.lane.b32.xlu0 %v1407, 256
        %v1410 = vpop.permute.xlu0 %1409
        %s1412 = sor.u32 256, 8
        %1413 = vbcast.lane.b32.xlu0 %v1407, %s1412
        %v1414 = vpop.permute.xlu0 %1413
        %s1416 = sor.u32 256, 16
        %1417 = vbcast.lane.b32.xlu0 %v1407, %s1416
        %v1418 = vpop.permute.xlu0 %1417
        %s1420 = sor.u32 256, 24
        %1421 = vbcast.lane.b32.xlu0 %v1407, %s1420
        %v1422 = vpop.permute.xlu0 %1421
        %s1424 = sor.u32 256, 32
        %1425 = vbcast.lane.b32.xlu0 %v1407, %s1424
        %v1426 = vpop.permute.xlu0 %1425
        %s1428 = sor.u32 256, 40
        %1429 = vbcast.lane.b32.xlu0 %v1407, %s1428
        %v1430 = vpop.permute.xlu0 %1429
        %s1432 = sor.u32 256, 48
        %1433 = vbcast.lane.b32.xlu0 %v1407, %s1432
        %v1434 = vpop.permute.xlu0 %1433
        %s1436 = sor.u32 256, 56
        %1437 = vbcast.lane.b32.xlu0 %v1407, %s1436
        %v1438 = vpop.permute.xlu0 %1437
        %s1440 = sor.u32 256, 64
        %1441 = vbcast.lane.b32.xlu0 %v1407, %s1440
        %v1442 = vpop.permute.xlu0 %1441
        %s1444 = sor.u32 256, 72
        %1445 = vbcast.lane.b32.xlu0 %v1407, %s1444
        %v1446 = vpop.permute.xlu0 %1445
        %s1448 = sor.u32 256, 80
        %1449 = vbcast.lane.b32.xlu0 %v1407, %s1448
        %v1450 = vpop.permute.xlu0 %1449
        %s1452 = sor.u32 256, 88
        %1453 = vbcast.lane.b32.xlu0 %v1407, %s1452
        %v1454 = vpop.permute.xlu0 %1453
        %s1456 = sor.u32 256, 96
        %1457 = vbcast.lane.b32.xlu0 %v1407, %s1456
        %v1458 = vpop.permute.xlu0 %1457
        %s1460 = sor.u32 256, 104
        %1461 = vbcast.lane.b32.xlu0 %v1407, %s1460
        %v1462 = vpop.permute.xlu0 %1461
        %s1464 = sor.u32 256, 112
        %1465 = vbcast.lane.b32.xlu0 %v1407, %s1464
        %v1466 = vpop.permute.xlu0 %1465
        %s1468 = sor.u32 256, 120
        %1469 = vbcast.lane.b32.xlu0 %v1407, %s1468
        %v1470 = vpop.permute.xlu0 %1469
        %v1471 = vlaneseq
        %v1472 = vshrl.u32 %v1471, 7
        %v1473 = vsub.s32 0, %v1472
        %v1474 = vrot.slane %v377, %v1473
        %1476 = vbcast.lane.b32.xlu0 %v1474, 256
        %v1477 = vpop.permute.xlu0 %1476
        %s1479 = sor.u32 256, 8
        %1480 = vbcast.lane.b32.xlu0 %v1474, %s1479
        %v1481 = vpop.permute.xlu0 %1480
        %s1483 = sor.u32 256, 16
        %1484 = vbcast.lane.b32.xlu0 %v1474, %s1483
        %v1485 = vpop.permute.xlu0 %1484
        %s1487 = sor.u32 256, 24
        %1488 = vbcast.lane.b32.xlu0 %v1474, %s1487
        %v1489 = vpop.permute.xlu0 %1488
        %s1491 = sor.u32 256, 32
        %1492 = vbcast.lane.b32.xlu0 %v1474, %s1491
        %v1493 = vpop.permute.xlu0 %1492
        %s1495 = sor.u32 256, 40
        %1496 = vbcast.lane.b32.xlu0 %v1474, %s1495
        %v1497 = vpop.permute.xlu0 %1496
        %s1499 = sor.u32 256, 48
        %1500 = vbcast.lane.b32.xlu0 %v1474, %s1499
        %v1501 = vpop.permute.xlu0 %1500
        %s1503 = sor.u32 256, 56
        %1504 = vbcast.lane.b32.xlu0 %v1474, %s1503
        %v1505 = vpop.permute.xlu0 %1504
        %s1507 = sor.u32 256, 64
        %1508 = vbcast.lane.b32.xlu0 %v1474, %s1507
        %v1509 = vpop.permute.xlu0 %1508
        %s1511 = sor.u32 256, 72
        %1512 = vbcast.lane.b32.xlu0 %v1474, %s1511
        %v1513 = vpop.permute.xlu0 %1512
        %s1515 = sor.u32 256, 80
        %1516 = vbcast.lane.b32.xlu0 %v1474, %s1515
        %v1517 = vpop.permute.xlu0 %1516
        %s1519 = sor.u32 256, 88
        %1520 = vbcast.lane.b32.xlu0 %v1474, %s1519
        %v1521 = vpop.permute.xlu0 %1520
        %s1523 = sor.u32 256, 96
        %1524 = vbcast.lane.b32.xlu0 %v1474, %s1523
        %v1525 = vpop.permute.xlu0 %1524
        %s1527 = sor.u32 256, 104
        %1528 = vbcast.lane.b32.xlu0 %v1474, %s1527
        %v1529 = vpop.permute.xlu0 %1528
        %s1531 = sor.u32 256, 112
        %1532 = vbcast.lane.b32.xlu0 %v1474, %s1531
        %v1533 = vpop.permute.xlu0 %1532
        %s1535 = sor.u32 256, 120
        %1536 = vbcast.lane.b32.xlu0 %v1474, %s1535
        %v1537 = vpop.permute.xlu0 %1536
        %v1538 = vlaneseq
        %v1539 = vshrl.u32 %v1538, 7
        %v1540 = vsub.s32 1, %v1539
        %v1541 = vrot.slane %v377, %v1540
        %1543 = vbcast.lane.b32.xlu0 %v1541, 256
        %v1544 = vpop.permute.xlu0 %1543
        %s1546 = sor.u32 256, 8
        %1547 = vbcast.lane.b32.xlu0 %v1541, %s1546
        %v1548 = vpop.permute.xlu0 %1547
        %s1550 = sor.u32 256, 16
        %1551 = vbcast.lane.b32.xlu0 %v1541, %s1550
        %v1552 = vpop.permute.xlu0 %1551
        %s1554 = sor.u32 256, 24
        %1555 = vbcast.lane.b32.xlu0 %v1541, %s1554
        %v1556 = vpop.permute.xlu0 %1555
        %s1558 = sor.u32 256, 32
        %1559 = vbcast.lane.b32.xlu0 %v1541, %s1558
        %v1560 = vpop.permute.xlu0 %1559
        %s1562 = sor.u32 256, 40
        %1563 = vbcast.lane.b32.xlu0 %v1541, %s1562
        %v1564 = vpop.permute.xlu0 %1563
        %s1566 = sor.u32 256, 48
        %1567 = vbcast.lane.b32.xlu0 %v1541, %s1566
        %v1568 = vpop.permute.xlu0 %1567
        %s1570 = sor.u32 256, 56
        %1571 = vbcast.lane.b32.xlu0 %v1541, %s1570
        %v1572 = vpop.permute.xlu0 %1571
        %s1574 = sor.u32 256, 64
        %1575 = vbcast.lane.b32.xlu0 %v1541, %s1574
        %v1576 = vpop.permute.xlu0 %1575
        %s1578 = sor.u32 256, 72
        %1579 = vbcast.lane.b32.xlu0 %v1541, %s1578
        %v1580 = vpop.permute.xlu0 %1579
        %s1582 = sor.u32 256, 80
        %1583 = vbcast.lane.b32.xlu0 %v1541, %s1582
        %v1584 = vpop.permute.xlu0 %1583
        %s1586 = sor.u32 256, 88
        %1587 = vbcast.lane.b32.xlu0 %v1541, %s1586
        %v1588 = vpop.permute.xlu0 %1587
        %s1590 = sor.u32 256, 96
        %1591 = vbcast.lane.b32.xlu0 %v1541, %s1590
        %v1592 = vpop.permute.xlu0 %1591
        %s1594 = sor.u32 256, 104
        %1595 = vbcast.lane.b32.xlu0 %v1541, %s1594
        %v1596 = vpop.permute.xlu0 %1595
        %s1598 = sor.u32 256, 112
        %1599 = vbcast.lane.b32.xlu0 %v1541, %s1598
        %v1600 = vpop.permute.xlu0 %1599
        %s1602 = sor.u32 256, 120
        %1603 = vbcast.lane.b32.xlu0 %v1541, %s1602
        %v1604 = vpop.permute.xlu0 %1603
        %v1605 = vlaneseq
        %v1606 = vshrl.u32 %v1605, 7
        %v1607 = vsub.s32 2, %v1606
        %v1608 = vrot.slane %v377, %v1607
        %1610 = vbcast.lane.b32.xlu0 %v1608, 256
        %v1611 = vpop.permute.xlu0 %1610
        %s1613 = sor.u32 256, 8
        %1614 = vbcast.lane.b32.xlu0 %v1608, %s1613
        %v1615 = vpop.permute.xlu0 %1614
        %s1617 = sor.u32 256, 16
        %1618 = vbcast.lane.b32.xlu0 %v1608, %s1617
        %v1619 = vpop.permute.xlu0 %1618
        %s1621 = sor.u32 256, 24
        %1622 = vbcast.lane.b32.xlu0 %v1608, %s1621
        %v1623 = vpop.permute.xlu0 %1622
        %s1625 = sor.u32 256, 32
        %1626 = vbcast.lane.b32.xlu0 %v1608, %s1625
        %v1627 = vpop.permute.xlu0 %1626
        %s1629 = sor.u32 256, 40
        %1630 = vbcast.lane.b32.xlu0 %v1608, %s1629
        %v1631 = vpop.permute.xlu0 %1630
        %s1633 = sor.u32 256, 48
        %1634 = vbcast.lane.b32.xlu0 %v1608, %s1633
        %v1635 = vpop.permute.xlu0 %1634
        %s1637 = sor.u32 256, 56
        %1638 = vbcast.lane.b32.xlu0 %v1608, %s1637
        %v1639 = vpop.permute.xlu0 %1638
        %s1641 = sor.u32 256, 64
        %1642 = vbcast.lane.b32.xlu0 %v1608, %s1641
        %v1643 = vpop.permute.xlu0 %1642
        %s1645 = sor.u32 256, 72
        %1646 = vbcast.lane.b32.xlu0 %v1608, %s1645
        %v1647 = vpop.permute.xlu0 %1646
        %s1649 = sor.u32 256, 80
        %1650 = vbcast.lane.b32.xlu0 %v1608, %s1649
        %v1651 = vpop.permute.xlu0 %1650
        %s1653 = sor.u32 256, 88
        %1654 = vbcast.lane.b32.xlu0 %v1608, %s1653
        %v1655 = vpop.permute.xlu0 %1654
        %s1657 = sor.u32 256, 96
        %1658 = vbcast.lane.b32.xlu0 %v1608, %s1657
        %v1659 = vpop.permute.xlu0 %1658
        %s1661 = sor.u32 256, 104
        %1662 = vbcast.lane.b32.xlu0 %v1608, %s1661
        %v1663 = vpop.permute.xlu0 %1662
        %s1665 = sor.u32 256, 112
        %1666 = vbcast.lane.b32.xlu0 %v1608, %s1665
        %v1667 = vpop.permute.xlu0 %1666
        %s1669 = sor.u32 256, 120
        %1670 = vbcast.lane.b32.xlu0 %v1608, %s1669
        %v1671 = vpop.permute.xlu0 %1670
        %v1672 = vlaneseq
        %v1673 = vshrl.u32 %v1672, 7
        %v1674 = vsub.s32 3, %v1673
        %v1675 = vrot.slane %v377, %v1674
        %1677 = vbcast.lane.b32.xlu0 %v1675, 256
        %v1678 = vpop.permute.xlu0 %1677
        %s1680 = sor.u32 256, 8
        %1681 = vbcast.lane.b32.xlu0 %v1675, %s1680
        %v1682 = vpop.permute.xlu0 %1681
        %s1684 = sor.u32 256, 16
        %1685 = vbcast.lane.b32.xlu0 %v1675, %s1684
        %v1686 = vpop.permute.xlu0 %1685
        %s1688 = sor.u32 256, 24
        %1689 = vbcast.lane.b32.xlu0 %v1675, %s1688
        %v1690 = vpop.permute.xlu0 %1689
        %s1692 = sor.u32 256, 32
        %1693 = vbcast.lane.b32.xlu0 %v1675, %s1692
        %v1694 = vpop.permute.xlu0 %1693
        %s1696 = sor.u32 256, 40
        %1697 = vbcast.lane.b32.xlu0 %v1675, %s1696
        %v1698 = vpop.permute.xlu0 %1697
        %s1700 = sor.u32 256, 48
        %1701 = vbcast.lane.b32.xlu0 %v1675, %s1700
        %v1702 = vpop.permute.xlu0 %1701
        %s1704 = sor.u32 256, 56
        %1705 = vbcast.lane.b32.xlu0 %v1675, %s1704
        %v1706 = vpop.permute.xlu0 %1705
        %s1708 = sor.u32 256, 64
        %1709 = vbcast.lane.b32.xlu0 %v1675, %s1708
        %v1710 = vpop.permute.xlu0 %1709
        %s1712 = sor.u32 256, 72
        %1713 = vbcast.lane.b32.xlu0 %v1675, %s1712
        %v1714 = vpop.permute.xlu0 %1713
        %s1716 = sor.u32 256, 80
        %1717 = vbcast.lane.b32.xlu0 %v1675, %s1716
        %v1718 = vpop.permute.xlu0 %1717
        %s1720 = sor.u32 256, 88
        %1721 = vbcast.lane.b32.xlu0 %v1675, %s1720
        %v1722 = vpop.permute.xlu0 %1721
        %s1724 = sor.u32 256, 96
        %1725 = vbcast.lane.b32.xlu0 %v1675, %s1724
        %v1726 = vpop.permute.xlu0 %1725
        %s1728 = sor.u32 256, 104
        %1729 = vbcast.lane.b32.xlu0 %v1675, %s1728
        %v1730 = vpop.permute.xlu0 %1729
        %s1732 = sor.u32 256, 112
        %1733 = vbcast.lane.b32.xlu0 %v1675, %s1732
        %v1734 = vpop.permute.xlu0 %1733
        %s1736 = sor.u32 256, 120
        %1737 = vbcast.lane.b32.xlu0 %v1675, %s1736
        %v1738 = vpop.permute.xlu0 %1737
        %v1739 = vlaneseq
        %v1740 = vshrl.u32 %v1739, 7
        %v1741 = vsub.s32 4, %v1740
        %v1742 = vrot.slane %v377, %v1741
        %1744 = vbcast.lane.b32.xlu0 %v1742, 256
        %v1745 = vpop.permute.xlu0 %1744
        %s1747 = sor.u32 256, 8
        %1748 = vbcast.lane.b32.xlu0 %v1742, %s1747
        %v1749 = vpop.permute.xlu0 %1748
        %s1751 = sor.u32 256, 16
        %1752 = vbcast.lane.b32.xlu0 %v1742, %s1751
        %v1753 = vpop.permute.xlu0 %1752
        %s1755 = sor.u32 256, 24
        %1756 = vbcast.lane.b32.xlu0 %v1742, %s1755
        %v1757 = vpop.permute.xlu0 %1756
        %s1759 = sor.u32 256, 32
        %1760 = vbcast.lane.b32.xlu0 %v1742, %s1759
        %v1761 = vpop.permute.xlu0 %1760
        %s1763 = sor.u32 256, 40
        %1764 = vbcast.lane.b32.xlu0 %v1742, %s1763
        %v1765 = vpop.permute.xlu0 %1764
        %s1767 = sor.u32 256, 48
        %1768 = vbcast.lane.b32.xlu0 %v1742, %s1767
        %v1769 = vpop.permute.xlu0 %1768
        %s1771 = sor.u32 256, 56
        %1772 = vbcast.lane.b32.xlu0 %v1742, %s1771
        %v1773 = vpop.permute.xlu0 %1772
        %s1775 = sor.u32 256, 64
        %1776 = vbcast.lane.b32.xlu0 %v1742, %s1775
        %v1777 = vpop.permute.xlu0 %1776
        %s1779 = sor.u32 256, 72
        %1780 = vbcast.lane.b32.xlu0 %v1742, %s1779
        %v1781 = vpop.permute.xlu0 %1780
        %s1783 = sor.u32 256, 80
        %1784 = vbcast.lane.b32.xlu0 %v1742, %s1783
        %v1785 = vpop.permute.xlu0 %1784
        %s1787 = sor.u32 256, 88
        %1788 = vbcast.lane.b32.xlu0 %v1742, %s1787
        %v1789 = vpop.permute.xlu0 %1788
        %s1791 = sor.u32 256, 96
        %1792 = vbcast.lane.b32.xlu0 %v1742, %s1791
        %v1793 = vpop.permute.xlu0 %1792
        %s1795 = sor.u32 256, 104
        %1796 = vbcast.lane.b32.xlu0 %v1742, %s1795
        %v1797 = vpop.permute.xlu0 %1796
        %s1799 = sor.u32 256, 112
        %1800 = vbcast.lane.b32.xlu0 %v1742, %s1799
        %v1801 = vpop.permute.xlu0 %1800
        %s1803 = sor.u32 256, 120
        %1804 = vbcast.lane.b32.xlu0 %v1742, %s1803
        %v1805 = vpop.permute.xlu0 %1804
        %v1806 = vlaneseq
        %v1807 = vshrl.u32 %v1806, 7
        %v1808 = vsub.s32 5, %v1807
        %v1809 = vrot.slane %v377, %v1808
        %1811 = vbcast.lane.b32.xlu0 %v1809, 256
        %v1812 = vpop.permute.xlu0 %1811
        %s1814 = sor.u32 256, 8
        %1815 = vbcast.lane.b32.xlu0 %v1809, %s1814
        %v1816 = vpop.permute.xlu0 %1815
        %s1818 = sor.u32 256, 16
        %1819 = vbcast.lane.b32.xlu0 %v1809, %s1818
        %v1820 = vpop.permute.xlu0 %1819
        %s1822 = sor.u32 256, 24
        %1823 = vbcast.lane.b32.xlu0 %v1809, %s1822
        %v1824 = vpop.permute.xlu0 %1823
        %s1826 = sor.u32 256, 32
        %1827 = vbcast.lane.b32.xlu0 %v1809, %s1826
        %v1828 = vpop.permute.xlu0 %1827
        %s1830 = sor.u32 256, 40
        %1831 = vbcast.lane.b32.xlu0 %v1809, %s1830
        %v1832 = vpop.permute.xlu0 %1831
        %s1834 = sor.u32 256, 48
        %1835 = vbcast.lane.b32.xlu0 %v1809, %s1834
        %v1836 = vpop.permute.xlu0 %1835
        %s1838 = sor.u32 256, 56
        %1839 = vbcast.lane.b32.xlu0 %v1809, %s1838
        %v1840 = vpop.permute.xlu0 %1839
        %s1842 = sor.u32 256, 64
        %1843 = vbcast.lane.b32.xlu0 %v1809, %s1842
        %v1844 = vpop.permute.xlu0 %1843
        %s1846 = sor.u32 256, 72
        %1847 = vbcast.lane.b32.xlu0 %v1809, %s1846
        %v1848 = vpop.permute.xlu0 %1847
        %s1850 = sor.u32 256, 80
        %1851 = vbcast.lane.b32.xlu0 %v1809, %s1850
        %v1852 = vpop.permute.xlu0 %1851
        %s1854 = sor.u32 256, 88
        %1855 = vbcast.lane.b32.xlu0 %v1809, %s1854
        %v1856 = vpop.permute.xlu0 %1855
        %s1858 = sor.u32 256, 96
        %1859 = vbcast.lane.b32.xlu0 %v1809, %s1858
        %v1860 = vpop.permute.xlu0 %1859
        %s1862 = sor.u32 256, 104
        %1863 = vbcast.lane.b32.xlu0 %v1809, %s1862
        %v1864 = vpop.permute.xlu0 %1863
        %s1866 = sor.u32 256, 112
        %1867 = vbcast.lane.b32.xlu0 %v1809, %s1866
        %v1868 = vpop.permute.xlu0 %1867
        %s1870 = sor.u32 256, 120
        %1871 = vbcast.lane.b32.xlu0 %v1809, %s1870
        %v1872 = vpop.permute.xlu0 %1871
        %v1873 = vlaneseq
        %v1874 = vshrl.u32 %v1873, 7
        %v1875 = vsub.s32 6, %v1874
        %v1876 = vrot.slane %v377, %v1875
        %1878 = vbcast.lane.b32.xlu0 %v1876, 256
        %v1879 = vpop.permute.xlu0 %1878
        %s1881 = sor.u32 256, 8
        %1882 = vbcast.lane.b32.xlu0 %v1876, %s1881
        %v1883 = vpop.permute.xlu0 %1882
        %s1885 = sor.u32 256, 16
        %1886 = vbcast.lane.b32.xlu0 %v1876, %s1885
        %v1887 = vpop.permute.xlu0 %1886
        %s1889 = sor.u32 256, 24
        %1890 = vbcast.lane.b32.xlu0 %v1876, %s1889
        %v1891 = vpop.permute.xlu0 %1890
        %s1893 = sor.u32 256, 32
        %1894 = vbcast.lane.b32.xlu0 %v1876, %s1893
        %v1895 = vpop.permute.xlu0 %1894
        %s1897 = sor.u32 256, 40
        %1898 = vbcast.lane.b32.xlu0 %v1876, %s1897
        %v1899 = vpop.permute.xlu0 %1898
        %s1901 = sor.u32 256, 48
        %1902 = vbcast.lane.b32.xlu0 %v1876, %s1901
        %v1903 = vpop.permute.xlu0 %1902
        %s1905 = sor.u32 256, 56
        %1906 = vbcast.lane.b32.xlu0 %v1876, %s1905
        %v1907 = vpop.permute.xlu0 %1906
        %s1909 = sor.u32 256, 64
        %1910 = vbcast.lane.b32.xlu0 %v1876, %s1909
        %v1911 = vpop.permute.xlu0 %1910
        %s1913 = sor.u32 256, 72
        %1914 = vbcast.lane.b32.xlu0 %v1876, %s1913
        %v1915 = vpop.permute.xlu0 %1914
        %s1917 = sor.u32 256, 80
        %1918 = vbcast.lane.b32.xlu0 %v1876, %s1917
        %v1919 = vpop.permute.xlu0 %1918
        %s1921 = sor.u32 256, 88
        %1922 = vbcast.lane.b32.xlu0 %v1876, %s1921
        %v1923 = vpop.permute.xlu0 %1922
        %s1925 = sor.u32 256, 96
        %1926 = vbcast.lane.b32.xlu0 %v1876, %s1925
        %v1927 = vpop.permute.xlu0 %1926
        %s1929 = sor.u32 256, 104
        %1930 = vbcast.lane.b32.xlu0 %v1876, %s1929
        %v1931 = vpop.permute.xlu0 %1930
        %s1933 = sor.u32 256, 112
        %1934 = vbcast.lane.b32.xlu0 %v1876, %s1933
        %v1935 = vpop.permute.xlu0 %1934
        %s1937 = sor.u32 256, 120
        %1938 = vbcast.lane.b32.xlu0 %v1876, %s1937
        %v1939 = vpop.permute.xlu0 %1938
        %v1940 = vlaneseq
        %v1941 = vshrl.u32 %v1940, 7
        %v1942 = vsub.s32 7, %v1941
        %v1943 = vrot.slane %v377, %v1942
        %1945 = vbcast.lane.b32.xlu0 %v1943, 256
        %v1946 = vpop.permute.xlu0 %1945
        %s1948 = sor.u32 256, 8
        %1949 = vbcast.lane.b32.xlu0 %v1943, %s1948
        %v1950 = vpop.permute.xlu0 %1949
        %s1952 = sor.u32 256, 16
        %1953 = vbcast.lane.b32.xlu0 %v1943, %s1952
        %v1954 = vpop.permute.xlu0 %1953
        %s1956 = sor.u32 256, 24
        %1957 = vbcast.lane.b32.xlu0 %v1943, %s1956
        %v1958 = vpop.permute.xlu0 %1957
        %s1960 = sor.u32 256, 32
        %1961 = vbcast.lane.b32.xlu0 %v1943, %s1960
        %v1962 = vpop.permute.xlu0 %1961
        %s1964 = sor.u32 256, 40
        %1965 = vbcast.lane.b32.xlu0 %v1943, %s1964
        %v1966 = vpop.permute.xlu0 %1965
        %s1968 = sor.u32 256, 48
        %1969 = vbcast.lane.b32.xlu0 %v1943, %s1968
        %v1970 = vpop.permute.xlu0 %1969
        %s1972 = sor.u32 256, 56
        %1973 = vbcast.lane.b32.xlu0 %v1943, %s1972
        %v1974 = vpop.permute.xlu0 %1973
        %s1976 = sor.u32 256, 64
        %1977 = vbcast.lane.b32.xlu0 %v1943, %s1976
        %v1978 = vpop.permute.xlu0 %1977
        %s1980 = sor.u32 256, 72
        %1981 = vbcast.lane.b32.xlu0 %v1943, %s1980
        %v1982 = vpop.permute.xlu0 %1981
        %s1984 = sor.u32 256, 80
        %1985 = vbcast.lane.b32.xlu0 %v1943, %s1984
        %v1986 = vpop.permute.xlu0 %1985
        %s1988 = sor.u32 256, 88
        %1989 = vbcast.lane.b32.xlu0 %v1943, %s1988
        %v1990 = vpop.permute.xlu0 %1989
        %s1992 = sor.u32 256, 96
        %1993 = vbcast.lane.b32.xlu0 %v1943, %s1992
        %v1994 = vpop.permute.xlu0 %1993
        %s1996 = sor.u32 256, 104
        %1997 = vbcast.lane.b32.xlu0 %v1943, %s1996
        %v1998 = vpop.permute.xlu0 %1997
        %s2000 = sor.u32 256, 112
        %2001 = vbcast.lane.b32.xlu0 %v1943, %s2000
        %v2002 = vpop.permute.xlu0 %2001
        %s2004 = sor.u32 256, 120
        %2005 = vbcast.lane.b32.xlu0 %v1943, %s2004
        %v2006 = vpop.permute.xlu0 %2005
        %v2007 = vlaneseq
        %v2008 = vshrl.u32 %v2007, 7
        %v2009 = vsub.s32 0, %v2008
        %v2010 = vrot.slane %v378, %v2009
        %2012 = vbcast.lane.b32.xlu0 %v2010, 256
        %v2013 = vpop.permute.xlu0 %2012
        %s2015 = sor.u32 256, 8
        %2016 = vbcast.lane.b32.xlu0 %v2010, %s2015
        %v2017 = vpop.permute.xlu0 %2016
        %s2019 = sor.u32 256, 16
        %2020 = vbcast.lane.b32.xlu0 %v2010, %s2019
        %v2021 = vpop.permute.xlu0 %2020
        %s2023 = sor.u32 256, 24
        %2024 = vbcast.lane.b32.xlu0 %v2010, %s2023
        %v2025 = vpop.permute.xlu0 %2024
        %s2027 = sor.u32 256, 32
        %2028 = vbcast.lane.b32.xlu0 %v2010, %s2027
        %v2029 = vpop.permute.xlu0 %2028
        %s2031 = sor.u32 256, 40
        %2032 = vbcast.lane.b32.xlu0 %v2010, %s2031
        %v2033 = vpop.permute.xlu0 %2032
        %s2035 = sor.u32 256, 48
        %2036 = vbcast.lane.b32.xlu0 %v2010, %s2035
        %v2037 = vpop.permute.xlu0 %2036
        %s2039 = sor.u32 256, 56
        %2040 = vbcast.lane.b32.xlu0 %v2010, %s2039
        %v2041 = vpop.permute.xlu0 %2040
        %s2043 = sor.u32 256, 64
        %2044 = vbcast.lane.b32.xlu0 %v2010, %s2043
        %v2045 = vpop.permute.xlu0 %2044
        %s2047 = sor.u32 256, 72
        %2048 = vbcast.lane.b32.xlu0 %v2010, %s2047
        %v2049 = vpop.permute.xlu0 %2048
        %s2051 = sor.u32 256, 80
        %2052 = vbcast.lane.b32.xlu0 %v2010, %s2051
        %v2053 = vpop.permute.xlu0 %2052
        %s2055 = sor.u32 256, 88
        %2056 = vbcast.lane.b32.xlu0 %v2010, %s2055
        %v2057 = vpop.permute.xlu0 %2056
        %s2059 = sor.u32 256, 96
        %2060 = vbcast.lane.b32.xlu0 %v2010, %s2059
        %v2061 = vpop.permute.xlu0 %2060
        %s2063 = sor.u32 256, 104
        %2064 = vbcast.lane.b32.xlu0 %v2010, %s2063
        %v2065 = vpop.permute.xlu0 %2064
        %s2067 = sor.u32 256, 112
        %2068 = vbcast.lane.b32.xlu0 %v2010, %s2067
        %v2069 = vpop.permute.xlu0 %2068
        %s2071 = sor.u32 256, 120
        %2072 = vbcast.lane.b32.xlu0 %v2010, %s2071
        %v2073 = vpop.permute.xlu0 %2072
        %v2074 = vlaneseq
        %v2075 = vshrl.u32 %v2074, 7
        %v2076 = vsub.s32 1, %v2075
        %v2077 = vrot.slane %v378, %v2076
        %2079 = vbcast.lane.b32.xlu0 %v2077, 256
        %v2080 = vpop.permute.xlu0 %2079
        %s2082 = sor.u32 256, 8
        %2083 = vbcast.lane.b32.xlu0 %v2077, %s2082
        %v2084 = vpop.permute.xlu0 %2083
        %s2086 = sor.u32 256, 16
        %2087 = vbcast.lane.b32.xlu0 %v2077, %s2086
        %v2088 = vpop.permute.xlu0 %2087
        %s2090 = sor.u32 256, 24
        %2091 = vbcast.lane.b32.xlu0 %v2077, %s2090
        %v2092 = vpop.permute.xlu0 %2091
        %s2094 = sor.u32 256, 32
        %2095 = vbcast.lane.b32.xlu0 %v2077, %s2094
        %v2096 = vpop.permute.xlu0 %2095
        %s2098 = sor.u32 256, 40
        %2099 = vbcast.lane.b32.xlu0 %v2077, %s2098
        %v2100 = vpop.permute.xlu0 %2099
        %s2102 = sor.u32 256, 48
        %2103 = vbcast.lane.b32.xlu0 %v2077, %s2102
        %v2104 = vpop.permute.xlu0 %2103
        %s2106 = sor.u32 256, 56
        %2107 = vbcast.lane.b32.xlu0 %v2077, %s2106
        %v2108 = vpop.permute.xlu0 %2107
        %s2110 = sor.u32 256, 64
        %2111 = vbcast.lane.b32.xlu0 %v2077, %s2110
        %v2112 = vpop.permute.xlu0 %2111
        %s2114 = sor.u32 256, 72
        %2115 = vbcast.lane.b32.xlu0 %v2077, %s2114
        %v2116 = vpop.permute.xlu0 %2115
        %s2118 = sor.u32 256, 80
        %2119 = vbcast.lane.b32.xlu0 %v2077, %s2118
        %v2120 = vpop.permute.xlu0 %2119
        %s2122 = sor.u32 256, 88
        %2123 = vbcast.lane.b32.xlu0 %v2077, %s2122
        %v2124 = vpop.permute.xlu0 %2123
        %s2126 = sor.u32 256, 96
        %2127 = vbcast.lane.b32.xlu0 %v2077, %s2126
        %v2128 = vpop.permute.xlu0 %2127
        %s2130 = sor.u32 256, 104
        %2131 = vbcast.lane.b32.xlu0 %v2077, %s2130
        %v2132 = vpop.permute.xlu0 %2131
        %s2134 = sor.u32 256, 112
        %2135 = vbcast.lane.b32.xlu0 %v2077, %s2134
        %v2136 = vpop.permute.xlu0 %2135
        %s2138 = sor.u32 256, 120
        %2139 = vbcast.lane.b32.xlu0 %v2077, %s2138
        %v2140 = vpop.permute.xlu0 %2139
        %v2141 = vlaneseq
        %v2142 = vshrl.u32 %v2141, 7
        %v2143 = vsub.s32 2, %v2142
        %v2144 = vrot.slane %v378, %v2143
        %2146 = vbcast.lane.b32.xlu0 %v2144, 256
        %v2147 = vpop.permute.xlu0 %2146
        %s2149 = sor.u32 256, 8
        %2150 = vbcast.lane.b32.xlu0 %v2144, %s2149
        %v2151 = vpop.permute.xlu0 %2150
        %s2153 = sor.u32 256, 16
        %2154 = vbcast.lane.b32.xlu0 %v2144, %s2153
        %v2155 = vpop.permute.xlu0 %2154
        %s2157 = sor.u32 256, 24
        %2158 = vbcast.lane.b32.xlu0 %v2144, %s2157
        %v2159 = vpop.permute.xlu0 %2158
        %s2161 = sor.u32 256, 32
        %2162 = vbcast.lane.b32.xlu0 %v2144, %s2161
        %v2163 = vpop.permute.xlu0 %2162
        %s2165 = sor.u32 256, 40
        %2166 = vbcast.lane.b32.xlu0 %v2144, %s2165
        %v2167 = vpop.permute.xlu0 %2166
        %s2169 = sor.u32 256, 48
        %2170 = vbcast.lane.b32.xlu0 %v2144, %s2169
        %v2171 = vpop.permute.xlu0 %2170
        %s2173 = sor.u32 256, 56
        %2174 = vbcast.lane.b32.xlu0 %v2144, %s2173
        %v2175 = vpop.permute.xlu0 %2174
        %s2177 = sor.u32 256, 64
        %2178 = vbcast.lane.b32.xlu0 %v2144, %s2177
        %v2179 = vpop.permute.xlu0 %2178
        %s2181 = sor.u32 256, 72
        %2182 = vbcast.lane.b32.xlu0 %v2144, %s2181
        %v2183 = vpop.permute.xlu0 %2182
        %s2185 = sor.u32 256, 80
        %2186 = vbcast.lane.b32.xlu0 %v2144, %s2185
        %v2187 = vpop.permute.xlu0 %2186
        %s2189 = sor.u32 256, 88
        %2190 = vbcast.lane.b32.xlu0 %v2144, %s2189
        %v2191 = vpop.permute.xlu0 %2190
        %s2193 = sor.u32 256, 96
        %2194 = vbcast.lane.b32.xlu0 %v2144, %s2193
        %v2195 = vpop.permute.xlu0 %2194
        %s2197 = sor.u32 256, 104
        %2198 = vbcast.lane.b32.xlu0 %v2144, %s2197
        %v2199 = vpop.permute.xlu0 %2198
        %s2201 = sor.u32 256, 112
        %2202 = vbcast.lane.b32.xlu0 %v2144, %s2201
        %v2203 = vpop.permute.xlu0 %2202
        %s2205 = sor.u32 256, 120
        %2206 = vbcast.lane.b32.xlu0 %v2144, %s2205
        %v2207 = vpop.permute.xlu0 %2206
        %v2208 = vlaneseq
        %v2209 = vshrl.u32 %v2208, 7
        %v2210 = vsub.s32 3, %v2209
        %v2211 = vrot.slane %v378, %v2210
        %2213 = vbcast.lane.b32.xlu0 %v2211, 256
        %v2214 = vpop.permute.xlu0 %2213
        %s2216 = sor.u32 256, 8
        %2217 = vbcast.lane.b32.xlu0 %v2211, %s2216
        %v2218 = vpop.permute.xlu0 %2217
        %s2220 = sor.u32 256, 16
        %2221 = vbcast.lane.b32.xlu0 %v2211, %s2220
        %v2222 = vpop.permute.xlu0 %2221
        %s2224 = sor.u32 256, 24
        %2225 = vbcast.lane.b32.xlu0 %v2211, %s2224
        %v2226 = vpop.permute.xlu0 %2225
        %s2228 = sor.u32 256, 32
        %2229 = vbcast.lane.b32.xlu0 %v2211, %s2228
        %v2230 = vpop.permute.xlu0 %2229
        %s2232 = sor.u32 256, 40
        %2233 = vbcast.lane.b32.xlu0 %v2211, %s2232
        %v2234 = vpop.permute.xlu0 %2233
        %s2236 = sor.u32 256, 48
        %2237 = vbcast.lane.b32.xlu0 %v2211, %s2236
        %v2238 = vpop.permute.xlu0 %2237
        %s2240 = sor.u32 256, 56
        %2241 = vbcast.lane.b32.xlu0 %v2211, %s2240
        %v2242 = vpop.permute.xlu0 %2241
        %s2244 = sor.u32 256, 64
        %2245 = vbcast.lane.b32.xlu0 %v2211, %s2244
        %v2246 = vpop.permute.xlu0 %2245
        %s2248 = sor.u32 256, 72
        %2249 = vbcast.lane.b32.xlu0 %v2211, %s2248
        %v2250 = vpop.permute.xlu0 %2249
        %s2252 = sor.u32 256, 80
        %2253 = vbcast.lane.b32.xlu0 %v2211, %s2252
        %v2254 = vpop.permute.xlu0 %2253
        %s2256 = sor.u32 256, 88
        %2257 = vbcast.lane.b32.xlu0 %v2211, %s2256
        %v2258 = vpop.permute.xlu0 %2257
        %s2260 = sor.u32 256, 96
        %2261 = vbcast.lane.b32.xlu0 %v2211, %s2260
        %v2262 = vpop.permute.xlu0 %2261
        %s2264 = sor.u32 256, 104
        %2265 = vbcast.lane.b32.xlu0 %v2211, %s2264
        %v2266 = vpop.permute.xlu0 %2265
        %s2268 = sor.u32 256, 112
        %2269 = vbcast.lane.b32.xlu0 %v2211, %s2268
        %v2270 = vpop.permute.xlu0 %2269
        %s2272 = sor.u32 256, 120
        %2273 = vbcast.lane.b32.xlu0 %v2211, %s2272
        %v2274 = vpop.permute.xlu0 %2273
        %v2275 = vlaneseq
        %v2276 = vshrl.u32 %v2275, 7
        %v2277 = vsub.s32 4, %v2276
        %v2278 = vrot.slane %v378, %v2277
        %2280 = vbcast.lane.b32.xlu0 %v2278, 256
        %v2281 = vpop.permute.xlu0 %2280
        %s2283 = sor.u32 256, 8
        %2284 = vbcast.lane.b32.xlu0 %v2278, %s2283
        %v2285 = vpop.permute.xlu0 %2284
        %s2287 = sor.u32 256, 16
        %2288 = vbcast.lane.b32.xlu0 %v2278, %s2287
        %v2289 = vpop.permute.xlu0 %2288
        %s2291 = sor.u32 256, 24
        %2292 = vbcast.lane.b32.xlu0 %v2278, %s2291
        %v2293 = vpop.permute.xlu0 %2292
        %s2295 = sor.u32 256, 32
        %2296 = vbcast.lane.b32.xlu0 %v2278, %s2295
        %v2297 = vpop.permute.xlu0 %2296
        %s2299 = sor.u32 256, 40
        %2300 = vbcast.lane.b32.xlu0 %v2278, %s2299
        %v2301 = vpop.permute.xlu0 %2300
        %s2303 = sor.u32 256, 48
        %2304 = vbcast.lane.b32.xlu0 %v2278, %s2303
        %v2305 = vpop.permute.xlu0 %2304
        %s2307 = sor.u32 256, 56
        %2308 = vbcast.lane.b32.xlu0 %v2278, %s2307
        %v2309 = vpop.permute.xlu0 %2308
        %s2311 = sor.u32 256, 64
        %2312 = vbcast.lane.b32.xlu0 %v2278, %s2311
        %v2313 = vpop.permute.xlu0 %2312
        %s2315 = sor.u32 256, 72
        %2316 = vbcast.lane.b32.xlu0 %v2278, %s2315
        %v2317 = vpop.permute.xlu0 %2316
        %s2319 = sor.u32 256, 80
        %2320 = vbcast.lane.b32.xlu0 %v2278, %s2319
        %v2321 = vpop.permute.xlu0 %2320
        %s2323 = sor.u32 256, 88
        %2324 = vbcast.lane.b32.xlu0 %v2278, %s2323
        %v2325 = vpop.permute.xlu0 %2324
        %s2327 = sor.u32 256, 96
        %2328 = vbcast.lane.b32.xlu0 %v2278, %s2327
        %v2329 = vpop.permute.xlu0 %2328
        %s2331 = sor.u32 256, 104
        %2332 = vbcast.lane.b32.xlu0 %v2278, %s2331
        %v2333 = vpop.permute.xlu0 %2332
        %s2335 = sor.u32 256, 112
        %2336 = vbcast.lane.b32.xlu0 %v2278, %s2335
        %v2337 = vpop.permute.xlu0 %2336
        %s2339 = sor.u32 256, 120
        %2340 = vbcast.lane.b32.xlu0 %v2278, %s2339
        %v2341 = vpop.permute.xlu0 %2340
        %v2342 = vlaneseq
        %v2343 = vshrl.u32 %v2342, 7
        %v2344 = vsub.s32 5, %v2343
        %v2345 = vrot.slane %v378, %v2344
        %2347 = vbcast.lane.b32.xlu0 %v2345, 256
        %v2348 = vpop.permute.xlu0 %2347
        %s2350 = sor.u32 256, 8
        %2351 = vbcast.lane.b32.xlu0 %v2345, %s2350
        %v2352 = vpop.permute.xlu0 %2351
        %s2354 = sor.u32 256, 16
        %2355 = vbcast.lane.b32.xlu0 %v2345, %s2354
        %v2356 = vpop.permute.xlu0 %2355
        %s2358 = sor.u32 256, 24
        %2359 = vbcast.lane.b32.xlu0 %v2345, %s2358
        %v2360 = vpop.permute.xlu0 %2359
        %s2362 = sor.u32 256, 32
        %2363 = vbcast.lane.b32.xlu0 %v2345, %s2362
        %v2364 = vpop.permute.xlu0 %2363
        %s2366 = sor.u32 256, 40
        %2367 = vbcast.lane.b32.xlu0 %v2345, %s2366
        %v2368 = vpop.permute.xlu0 %2367
        %s2370 = sor.u32 256, 48
        %2371 = vbcast.lane.b32.xlu0 %v2345, %s2370
        %v2372 = vpop.permute.xlu0 %2371
        %s2374 = sor.u32 256, 56
        %2375 = vbcast.lane.b32.xlu0 %v2345, %s2374
        %v2376 = vpop.permute.xlu0 %2375
        %s2378 = sor.u32 256, 64
        %2379 = vbcast.lane.b32.xlu0 %v2345, %s2378
        %v2380 = vpop.permute.xlu0 %2379
        %s2382 = sor.u32 256, 72
        %2383 = vbcast.lane.b32.xlu0 %v2345, %s2382
        %v2384 = vpop.permute.xlu0 %2383
        %s2386 = sor.u32 256, 80
        %2387 = vbcast.lane.b32.xlu0 %v2345, %s2386
        %v2388 = vpop.permute.xlu0 %2387
        %s2390 = sor.u32 256, 88
        %2391 = vbcast.lane.b32.xlu0 %v2345, %s2390
        %v2392 = vpop.permute.xlu0 %2391
        %s2394 = sor.u32 256, 96
        %2395 = vbcast.lane.b32.xlu0 %v2345, %s2394
        %v2396 = vpop.permute.xlu0 %2395
        %s2398 = sor.u32 256, 104
        %2399 = vbcast.lane.b32.xlu0 %v2345, %s2398
        %v2400 = vpop.permute.xlu0 %2399
        %s2402 = sor.u32 256, 112
        %2403 = vbcast.lane.b32.xlu0 %v2345, %s2402
        %v2404 = vpop.permute.xlu0 %2403
        %s2406 = sor.u32 256, 120
        %2407 = vbcast.lane.b32.xlu0 %v2345, %s2406
        %v2408 = vpop.permute.xlu0 %2407
        %v2409 = vlaneseq
        %v2410 = vshrl.u32 %v2409, 7
        %v2411 = vsub.s32 6, %v2410
        %v2412 = vrot.slane %v378, %v2411
        %2414 = vbcast.lane.b32.xlu0 %v2412, 256
        %v2415 = vpop.permute.xlu0 %2414
        %s2417 = sor.u32 256, 8
        %2418 = vbcast.lane.b32.xlu0 %v2412, %s2417
        %v2419 = vpop.permute.xlu0 %2418
        %s2421 = sor.u32 256, 16
        %2422 = vbcast.lane.b32.xlu0 %v2412, %s2421
        %v2423 = vpop.permute.xlu0 %2422
        %s2425 = sor.u32 256, 24
        %2426 = vbcast.lane.b32.xlu0 %v2412, %s2425
        %v2427 = vpop.permute.xlu0 %2426
        %s2429 = sor.u32 256, 32
        %2430 = vbcast.lane.b32.xlu0 %v2412, %s2429
        %v2431 = vpop.permute.xlu0 %2430
        %s2433 = sor.u32 256, 40
        %2434 = vbcast.lane.b32.xlu0 %v2412, %s2433
        %v2435 = vpop.permute.xlu0 %2434
        %s2437 = sor.u32 256, 48
        %2438 = vbcast.lane.b32.xlu0 %v2412, %s2437
        %v2439 = vpop.permute.xlu0 %2438
        %s2441 = sor.u32 256, 56
        %2442 = vbcast.lane.b32.xlu0 %v2412, %s2441
        %v2443 = vpop.permute.xlu0 %2442
        %s2445 = sor.u32 256, 64
        %2446 = vbcast.lane.b32.xlu0 %v2412, %s2445
        %v2447 = vpop.permute.xlu0 %2446
        %s2449 = sor.u32 256, 72
        %2450 = vbcast.lane.b32.xlu0 %v2412, %s2449
        %v2451 = vpop.permute.xlu0 %2450
        %s2453 = sor.u32 256, 80
        %2454 = vbcast.lane.b32.xlu0 %v2412, %s2453
        %v2455 = vpop.permute.xlu0 %2454
        %s2457 = sor.u32 256, 88
        %2458 = vbcast.lane.b32.xlu0 %v2412, %s2457
        %v2459 = vpop.permute.xlu0 %2458
        %s2461 = sor.u32 256, 96
        %2462 = vbcast.lane.b32.xlu0 %v2412, %s2461
        %v2463 = vpop.permute.xlu0 %2462
        %s2465 = sor.u32 256, 104
        %2466 = vbcast.lane.b32.xlu0 %v2412, %s2465
        %v2467 = vpop.permute.xlu0 %2466
        %s2469 = sor.u32 256, 112
        %2470 = vbcast.lane.b32.xlu0 %v2412, %s2469
        %v2471 = vpop.permute.xlu0 %2470
        %s2473 = sor.u32 256, 120
        %2474 = vbcast.lane.b32.xlu0 %v2412, %s2473
        %v2475 = vpop.permute.xlu0 %2474
        %v2476 = vlaneseq
        %v2477 = vshrl.u32 %v2476, 7
        %v2478 = vsub.s32 7, %v2477
        %v2479 = vrot.slane %v378, %v2478
        %2481 = vbcast.lane.b32.xlu0 %v2479, 256
        %v2482 = vpop.permute.xlu0 %2481
        %s2484 = sor.u32 256, 8
        %2485 = vbcast.lane.b32.xlu0 %v2479, %s2484
        %v2486 = vpop.permute.xlu0 %2485
        %s2488 = sor.u32 256, 16
        %2489 = vbcast.lane.b32.xlu0 %v2479, %s2488
        %v2490 = vpop.permute.xlu0 %2489
        %s2492 = sor.u32 256, 24
        %2493 = vbcast.lane.b32.xlu0 %v2479, %s2492
        %v2494 = vpop.permute.xlu0 %2493
        %s2496 = sor.u32 256, 32
        %2497 = vbcast.lane.b32.xlu0 %v2479, %s2496
        %v2498 = vpop.permute.xlu0 %2497
        %s2500 = sor.u32 256, 40
        %2501 = vbcast.lane.b32.xlu0 %v2479, %s2500
        %v2502 = vpop.permute.xlu0 %2501
        %s2504 = sor.u32 256, 48
        %2505 = vbcast.lane.b32.xlu0 %v2479, %s2504
        %v2506 = vpop.permute.xlu0 %2505
        %s2508 = sor.u32 256, 56
        %2509 = vbcast.lane.b32.xlu0 %v2479, %s2508
        %v2510 = vpop.permute.xlu0 %2509
        %s2512 = sor.u32 256, 64
        %2513 = vbcast.lane.b32.xlu0 %v2479, %s2512
        %v2514 = vpop.permute.xlu0 %2513
        %s2516 = sor.u32 256, 72
        %2517 = vbcast.lane.b32.xlu0 %v2479, %s2516
        %v2518 = vpop.permute.xlu0 %2517
        %s2520 = sor.u32 256, 80
        %2521 = vbcast.lane.b32.xlu0 %v2479, %s2520
        %v2522 = vpop.permute.xlu0 %2521
        %s2524 = sor.u32 256, 88
        %2525 = vbcast.lane.b32.xlu0 %v2479, %s2524
        %v2526 = vpop.permute.xlu0 %2525
        %s2528 = sor.u32 256, 96
        %2529 = vbcast.lane.b32.xlu0 %v2479, %s2528
        %v2530 = vpop.permute.xlu0 %2529
        %s2532 = sor.u32 256, 104
        %2533 = vbcast.lane.b32.xlu0 %v2479, %s2532
        %v2534 = vpop.permute.xlu0 %2533
        %s2536 = sor.u32 256, 112
        %2537 = vbcast.lane.b32.xlu0 %v2479, %s2536
        %v2538 = vpop.permute.xlu0 %2537
        %s2540 = sor.u32 256, 120
        %2541 = vbcast.lane.b32.xlu0 %v2479, %s2540
        %v2542 = vpop.permute.xlu0 %2541
        %v2543 = vlaneseq
        %v2544 = vshrl.u32 %v2543, 7
        %v2545 = vsub.s32 0, %v2544
        %v2546 = vrot.slane %v379, %v2545
        %2548 = vbcast.lane.b32.xlu0 %v2546, 256
        %v2549 = vpop.permute.xlu0 %2548
        %s2551 = sor.u32 256, 8
        %2552 = vbcast.lane.b32.xlu0 %v2546, %s2551
        %v2553 = vpop.permute.xlu0 %2552
        %s2555 = sor.u32 256, 16
        %2556 = vbcast.lane.b32.xlu0 %v2546, %s2555
        %v2557 = vpop.permute.xlu0 %2556
        %s2559 = sor.u32 256, 24
        %2560 = vbcast.lane.b32.xlu0 %v2546, %s2559
        %v2561 = vpop.permute.xlu0 %2560
        %s2563 = sor.u32 256, 32
        %2564 = vbcast.lane.b32.xlu0 %v2546, %s2563
        %v2565 = vpop.permute.xlu0 %2564
        %s2567 = sor.u32 256, 40
        %2568 = vbcast.lane.b32.xlu0 %v2546, %s2567
        %v2569 = vpop.permute.xlu0 %2568
        %s2571 = sor.u32 256, 48
        %2572 = vbcast.lane.b32.xlu0 %v2546, %s2571
        %v2573 = vpop.permute.xlu0 %2572
        %s2575 = sor.u32 256, 56
        %2576 = vbcast.lane.b32.xlu0 %v2546, %s2575
        %v2577 = vpop.permute.xlu0 %2576
        %s2579 = sor.u32 256, 64
        %2580 = vbcast.lane.b32.xlu0 %v2546, %s2579
        %v2581 = vpop.permute.xlu0 %2580
        %s2583 = sor.u32 256, 72
        %2584 = vbcast.lane.b32.xlu0 %v2546, %s2583
        %v2585 = vpop.permute.xlu0 %2584
        %s2587 = sor.u32 256, 80
        %2588 = vbcast.lane.b32.xlu0 %v2546, %s2587
        %v2589 = vpop.permute.xlu0 %2588
        %s2591 = sor.u32 256, 88
        %2592 = vbcast.lane.b32.xlu0 %v2546, %s2591
        %v2593 = vpop.permute.xlu0 %2592
        %s2595 = sor.u32 256, 96
        %2596 = vbcast.lane.b32.xlu0 %v2546, %s2595
        %v2597 = vpop.permute.xlu0 %2596
        %s2599 = sor.u32 256, 104
        %2600 = vbcast.lane.b32.xlu0 %v2546, %s2599
        %v2601 = vpop.permute.xlu0 %2600
        %s2603 = sor.u32 256, 112
        %2604 = vbcast.lane.b32.xlu0 %v2546, %s2603
        %v2605 = vpop.permute.xlu0 %2604
        %s2607 = sor.u32 256, 120
        %2608 = vbcast.lane.b32.xlu0 %v2546, %s2607
        %v2609 = vpop.permute.xlu0 %2608
        %v2610 = vlaneseq
        %v2611 = vshrl.u32 %v2610, 7
        %v2612 = vsub.s32 1, %v2611
        %v2613 = vrot.slane %v379, %v2612
        %2615 = vbcast.lane.b32.xlu0 %v2613, 256
        %v2616 = vpop.permute.xlu0 %2615
        %s2618 = sor.u32 256, 8
        %2619 = vbcast.lane.b32.xlu0 %v2613, %s2618
        %v2620 = vpop.permute.xlu0 %2619
        %s2622 = sor.u32 256, 16
        %2623 = vbcast.lane.b32.xlu0 %v2613, %s2622
        %v2624 = vpop.permute.xlu0 %2623
        %s2626 = sor.u32 256, 24
        %2627 = vbcast.lane.b32.xlu0 %v2613, %s2626
        %v2628 = vpop.permute.xlu0 %2627
        %s2630 = sor.u32 256, 32
        %2631 = vbcast.lane.b32.xlu0 %v2613, %s2630
        %v2632 = vpop.permute.xlu0 %2631
        %s2634 = sor.u32 256, 40
        %2635 = vbcast.lane.b32.xlu0 %v2613, %s2634
        %v2636 = vpop.permute.xlu0 %2635
        %s2638 = sor.u32 256, 48
        %2639 = vbcast.lane.b32.xlu0 %v2613, %s2638
        %v2640 = vpop.permute.xlu0 %2639
        %s2642 = sor.u32 256, 56
        %2643 = vbcast.lane.b32.xlu0 %v2613, %s2642
        %v2644 = vpop.permute.xlu0 %2643
        %s2646 = sor.u32 256, 64
        %2647 = vbcast.lane.b32.xlu0 %v2613, %s2646
        %v2648 = vpop.permute.xlu0 %2647
        %s2650 = sor.u32 256, 72
        %2651 = vbcast.lane.b32.xlu0 %v2613, %s2650
        %v2652 = vpop.permute.xlu0 %2651
        %s2654 = sor.u32 256, 80
        %2655 = vbcast.lane.b32.xlu0 %v2613, %s2654
        %v2656 = vpop.permute.xlu0 %2655
        %s2658 = sor.u32 256, 88
        %2659 = vbcast.lane.b32.xlu0 %v2613, %s2658
        %v2660 = vpop.permute.xlu0 %2659
        %s2662 = sor.u32 256, 96
        %2663 = vbcast.lane.b32.xlu0 %v2613, %s2662
        %v2664 = vpop.permute.xlu0 %2663
        %s2666 = sor.u32 256, 104
        %2667 = vbcast.lane.b32.xlu0 %v2613, %s2666
        %v2668 = vpop.permute.xlu0 %2667
        %s2670 = sor.u32 256, 112
        %2671 = vbcast.lane.b32.xlu0 %v2613, %s2670
        %v2672 = vpop.permute.xlu0 %2671
        %s2674 = sor.u32 256, 120
        %2675 = vbcast.lane.b32.xlu0 %v2613, %s2674
        %v2676 = vpop.permute.xlu0 %2675
        %v2677 = vlaneseq
        %v2678 = vshrl.u32 %v2677, 7
        %v2679 = vsub.s32 2, %v2678
        %v2680 = vrot.slane %v379, %v2679
        %2682 = vbcast.lane.b32.xlu0 %v2680, 256
        %v2683 = vpop.permute.xlu0 %2682
        %s2685 = sor.u32 256, 8
        %2686 = vbcast.lane.b32.xlu0 %v2680, %s2685
        %v2687 = vpop.permute.xlu0 %2686
        %s2689 = sor.u32 256, 16
        %2690 = vbcast.lane.b32.xlu0 %v2680, %s2689
        %v2691 = vpop.permute.xlu0 %2690
        %s2693 = sor.u32 256, 24
        %2694 = vbcast.lane.b32.xlu0 %v2680, %s2693
        %v2695 = vpop.permute.xlu0 %2694
        %s2697 = sor.u32 256, 32
        %2698 = vbcast.lane.b32.xlu0 %v2680, %s2697
        %v2699 = vpop.permute.xlu0 %2698
        %s2701 = sor.u32 256, 40
        %2702 = vbcast.lane.b32.xlu0 %v2680, %s2701
        %v2703 = vpop.permute.xlu0 %2702
        %s2705 = sor.u32 256, 48
        %2706 = vbcast.lane.b32.xlu0 %v2680, %s2705
        %v2707 = vpop.permute.xlu0 %2706
        %s2709 = sor.u32 256, 56
        %2710 = vbcast.lane.b32.xlu0 %v2680, %s2709
        %v2711 = vpop.permute.xlu0 %2710
        %s2713 = sor.u32 256, 64
        %2714 = vbcast.lane.b32.xlu0 %v2680, %s2713
        %v2715 = vpop.permute.xlu0 %2714
        %s2717 = sor.u32 256, 72
        %2718 = vbcast.lane.b32.xlu0 %v2680, %s2717
        %v2719 = vpop.permute.xlu0 %2718
        %s2721 = sor.u32 256, 80
        %2722 = vbcast.lane.b32.xlu0 %v2680, %s2721
        %v2723 = vpop.permute.xlu0 %2722
        %s2725 = sor.u32 256, 88
        %2726 = vbcast.lane.b32.xlu0 %v2680, %s2725
        %v2727 = vpop.permute.xlu0 %2726
        %s2729 = sor.u32 256, 96
        %2730 = vbcast.lane.b32.xlu0 %v2680, %s2729
        %v2731 = vpop.permute.xlu0 %2730
        %s2733 = sor.u32 256, 104
        %2734 = vbcast.lane.b32.xlu0 %v2680, %s2733
        %v2735 = vpop.permute.xlu0 %2734
        %s2737 = sor.u32 256, 112
        %2738 = vbcast.lane.b32.xlu0 %v2680, %s2737
        %v2739 = vpop.permute.xlu0 %2738
        %s2741 = sor.u32 256, 120
        %2742 = vbcast.lane.b32.xlu0 %v2680, %s2741
        %v2743 = vpop.permute.xlu0 %2742
        %v2744 = vlaneseq
        %v2745 = vshrl.u32 %v2744, 7
        %v2746 = vsub.s32 3, %v2745
        %v2747 = vrot.slane %v379, %v2746
        %2749 = vbcast.lane.b32.xlu0 %v2747, 256
        %v2750 = vpop.permute.xlu0 %2749
        %s2752 = sor.u32 256, 8
        %2753 = vbcast.lane.b32.xlu0 %v2747, %s2752
        %v2754 = vpop.permute.xlu0 %2753
        %s2756 = sor.u32 256, 16
        %2757 = vbcast.lane.b32.xlu0 %v2747, %s2756
        %v2758 = vpop.permute.xlu0 %2757
        %s2760 = sor.u32 256, 24
        %2761 = vbcast.lane.b32.xlu0 %v2747, %s2760
        %v2762 = vpop.permute.xlu0 %2761
        %s2764 = sor.u32 256, 32
        %2765 = vbcast.lane.b32.xlu0 %v2747, %s2764
        %v2766 = vpop.permute.xlu0 %2765
        %s2768 = sor.u32 256, 40
        %2769 = vbcast.lane.b32.xlu0 %v2747, %s2768
        %v2770 = vpop.permute.xlu0 %2769
        %s2772 = sor.u32 256, 48
        %2773 = vbcast.lane.b32.xlu0 %v2747, %s2772
        %v2774 = vpop.permute.xlu0 %2773
        %s2776 = sor.u32 256, 56
        %2777 = vbcast.lane.b32.xlu0 %v2747, %s2776
        %v2778 = vpop.permute.xlu0 %2777
        %s2780 = sor.u32 256, 64
        %2781 = vbcast.lane.b32.xlu0 %v2747, %s2780
        %v2782 = vpop.permute.xlu0 %2781
        %s2784 = sor.u32 256, 72
        %2785 = vbcast.lane.b32.xlu0 %v2747, %s2784
        %v2786 = vpop.permute.xlu0 %2785
        %s2788 = sor.u32 256, 80
        %2789 = vbcast.lane.b32.xlu0 %v2747, %s2788
        %v2790 = vpop.permute.xlu0 %2789
        %s2792 = sor.u32 256, 88
        %2793 = vbcast.lane.b32.xlu0 %v2747, %s2792
        %v2794 = vpop.permute.xlu0 %2793
        %s2796 = sor.u32 256, 96
        %2797 = vbcast.lane.b32.xlu0 %v2747, %s2796
        %v2798 = vpop.permute.xlu0 %2797
        %s2800 = sor.u32 256, 104
        %2801 = vbcast.lane.b32.xlu0 %v2747, %s2800
        %v2802 = vpop.permute.xlu0 %2801
        %s2804 = sor.u32 256, 112
        %2805 = vbcast.lane.b32.xlu0 %v2747, %s2804
        %v2806 = vpop.permute.xlu0 %2805
        %s2808 = sor.u32 256, 120
        %2809 = vbcast.lane.b32.xlu0 %v2747, %s2808
        %v2810 = vpop.permute.xlu0 %2809
        %v2811 = vlaneseq
        %v2812 = vshrl.u32 %v2811, 7
        %v2813 = vsub.s32 4, %v2812
        %v2814 = vrot.slane %v379, %v2813
        %2816 = vbcast.lane.b32.xlu0 %v2814, 256
        %v2817 = vpop.permute.xlu0 %2816
        %s2819 = sor.u32 256, 8
        %2820 = vbcast.lane.b32.xlu0 %v2814, %s2819
        %v2821 = vpop.permute.xlu0 %2820
        %s2823 = sor.u32 256, 16
        %2824 = vbcast.lane.b32.xlu0 %v2814, %s2823
        %v2825 = vpop.permute.xlu0 %2824
        %s2827 = sor.u32 256, 24
        %2828 = vbcast.lane.b32.xlu0 %v2814, %s2827
        %v2829 = vpop.permute.xlu0 %2828
        %s2831 = sor.u32 256, 32
        %2832 = vbcast.lane.b32.xlu0 %v2814, %s2831
        %v2833 = vpop.permute.xlu0 %2832
        %s2835 = sor.u32 256, 40
        %2836 = vbcast.lane.b32.xlu0 %v2814, %s2835
        %v2837 = vpop.permute.xlu0 %2836
        %s2839 = sor.u32 256, 48
        %2840 = vbcast.lane.b32.xlu0 %v2814, %s2839
        %v2841 = vpop.permute.xlu0 %2840
        %s2843 = sor.u32 256, 56
        %2844 = vbcast.lane.b32.xlu0 %v2814, %s2843
        %v2845 = vpop.permute.xlu0 %2844
        %s2847 = sor.u32 256, 64
        %2848 = vbcast.lane.b32.xlu0 %v2814, %s2847
        %v2849 = vpop.permute.xlu0 %2848
        %s2851 = sor.u32 256, 72
        %2852 = vbcast.lane.b32.xlu0 %v2814, %s2851
        %v2853 = vpop.permute.xlu0 %2852
        %s2855 = sor.u32 256, 80
        %2856 = vbcast.lane.b32.xlu0 %v2814, %s2855
        %v2857 = vpop.permute.xlu0 %2856
        %s2859 = sor.u32 256, 88
        %2860 = vbcast.lane.b32.xlu0 %v2814, %s2859
        %v2861 = vpop.permute.xlu0 %2860
        %s2863 = sor.u32 256, 96
        %2864 = vbcast.lane.b32.xlu0 %v2814, %s2863
        %v2865 = vpop.permute.xlu0 %2864
        %s2867 = sor.u32 256, 104
        %2868 = vbcast.lane.b32.xlu0 %v2814, %s2867
        %v2869 = vpop.permute.xlu0 %2868
        %s2871 = sor.u32 256, 112
        %2872 = vbcast.lane.b32.xlu0 %v2814, %s2871
        %v2873 = vpop.permute.xlu0 %2872
        %s2875 = sor.u32 256, 120
        %2876 = vbcast.lane.b32.xlu0 %v2814, %s2875
        %v2877 = vpop.permute.xlu0 %2876
        %v2878 = vlaneseq
        %v2879 = vshrl.u32 %v2878, 7
        %v2880 = vsub.s32 5, %v2879
        %v2881 = vrot.slane %v379, %v2880
        %2883 = vbcast.lane.b32.xlu0 %v2881, 256
        %v2884 = vpop.permute.xlu0 %2883
        %s2886 = sor.u32 256, 8
        %2887 = vbcast.lane.b32.xlu0 %v2881, %s2886
        %v2888 = vpop.permute.xlu0 %2887
        %s2890 = sor.u32 256, 16
        %2891 = vbcast.lane.b32.xlu0 %v2881, %s2890
        %v2892 = vpop.permute.xlu0 %2891
        %s2894 = sor.u32 256, 24
        %2895 = vbcast.lane.b32.xlu0 %v2881, %s2894
        %v2896 = vpop.permute.xlu0 %2895
        %s2898 = sor.u32 256, 32
        %2899 = vbcast.lane.b32.xlu0 %v2881, %s2898
        %v2900 = vpop.permute.xlu0 %2899
        %s2902 = sor.u32 256, 40
        %2903 = vbcast.lane.b32.xlu0 %v2881, %s2902
        %v2904 = vpop.permute.xlu0 %2903
        %s2906 = sor.u32 256, 48
        %2907 = vbcast.lane.b32.xlu0 %v2881, %s2906
        %v2908 = vpop.permute.xlu0 %2907
        %s2910 = sor.u32 256, 56
        %2911 = vbcast.lane.b32.xlu0 %v2881, %s2910
        %v2912 = vpop.permute.xlu0 %2911
        %s2914 = sor.u32 256, 64
        %2915 = vbcast.lane.b32.xlu0 %v2881, %s2914
        %v2916 = vpop.permute.xlu0 %2915
        %s2918 = sor.u32 256, 72
        %2919 = vbcast.lane.b32.xlu0 %v2881, %s2918
        %v2920 = vpop.permute.xlu0 %2919
        %s2922 = sor.u32 256, 80
        %2923 = vbcast.lane.b32.xlu0 %v2881, %s2922
        %v2924 = vpop.permute.xlu0 %2923
        %s2926 = sor.u32 256, 88
        %2927 = vbcast.lane.b32.xlu0 %v2881, %s2926
        %v2928 = vpop.permute.xlu0 %2927
        %s2930 = sor.u32 256, 96
        %2931 = vbcast.lane.b32.xlu0 %v2881, %s2930
        %v2932 = vpop.permute.xlu0 %2931
        %s2934 = sor.u32 256, 104
        %2935 = vbcast.lane.b32.xlu0 %v2881, %s2934
        %v2936 = vpop.permute.xlu0 %2935
        %s2938 = sor.u32 256, 112
        %2939 = vbcast.lane.b32.xlu0 %v2881, %s2938
        %v2940 = vpop.permute.xlu0 %2939
        %s2942 = sor.u32 256, 120
        %2943 = vbcast.lane.b32.xlu0 %v2881, %s2942
        %v2944 = vpop.permute.xlu0 %2943
        %v2945 = vlaneseq
        %v2946 = vshrl.u32 %v2945, 7
        %v2947 = vsub.s32 6, %v2946
        %v2948 = vrot.slane %v379, %v2947
        %2950 = vbcast.lane.b32.xlu0 %v2948, 256
        %v2951 = vpop.permute.xlu0 %2950
        %s2953 = sor.u32 256, 8
        %2954 = vbcast.lane.b32.xlu0 %v2948, %s2953
        %v2955 = vpop.permute.xlu0 %2954
        %s2957 = sor.u32 256, 16
        %2958 = vbcast.lane.b32.xlu0 %v2948, %s2957
        %v2959 = vpop.permute.xlu0 %2958
        %s2961 = sor.u32 256, 24
        %2962 = vbcast.lane.b32.xlu0 %v2948, %s2961
        %v2963 = vpop.permute.xlu0 %2962
        %s2965 = sor.u32 256, 32
        %2966 = vbcast.lane.b32.xlu0 %v2948, %s2965
        %v2967 = vpop.permute.xlu0 %2966
        %s2969 = sor.u32 256, 40
        %2970 = vbcast.lane.b32.xlu0 %v2948, %s2969
        %v2971 = vpop.permute.xlu0 %2970
        %s2973 = sor.u32 256, 48
        %2974 = vbcast.lane.b32.xlu0 %v2948, %s2973
        %v2975 = vpop.permute.xlu0 %2974
        %s2977 = sor.u32 256, 56
        %2978 = vbcast.lane.b32.xlu0 %v2948, %s2977
        %v2979 = vpop.permute.xlu0 %2978
        %s2981 = sor.u32 256, 64
        %2982 = vbcast.lane.b32.xlu0 %v2948, %s2981
        %v2983 = vpop.permute.xlu0 %2982
        %s2985 = sor.u32 256, 72
        %2986 = vbcast.lane.b32.xlu0 %v2948, %s2985
        %v2987 = vpop.permute.xlu0 %2986
        %s2989 = sor.u32 256, 80
        %2990 = vbcast.lane.b32.xlu0 %v2948, %s2989
        %v2991 = vpop.permute.xlu0 %2990
        %s2993 = sor.u32 256, 88
        %2994 = vbcast.lane.b32.xlu0 %v2948, %s2993
        %v2995 = vpop.permute.xlu0 %2994
        %s2997 = sor.u32 256, 96
        %2998 = vbcast.lane.b32.xlu0 %v2948, %s2997
        %v2999 = vpop.permute.xlu0 %2998
        %s3001 = sor.u32 256, 104
        %3002 = vbcast.lane.b32.xlu0 %v2948, %s3001
        %v3003 = vpop.permute.xlu0 %3002
        %s3005 = sor.u32 256, 112
        %3006 = vbcast.lane.b32.xlu0 %v2948, %s3005
        %v3007 = vpop.permute.xlu0 %3006
        %s3009 = sor.u32 256, 120
        %3010 = vbcast.lane.b32.xlu0 %v2948, %s3009
        %v3011 = vpop.permute.xlu0 %3010
        %v3012 = vlaneseq
        %v3013 = vshrl.u32 %v3012, 7
        %v3014 = vsub.s32 7, %v3013
        %v3015 = vrot.slane %v379, %v3014
        %3017 = vbcast.lane.b32.xlu0 %v3015, 256
        %v3018 = vpop.permute.xlu0 %3017
        %s3020 = sor.u32 256, 8
        %3021 = vbcast.lane.b32.xlu0 %v3015, %s3020
        %v3022 = vpop.permute.xlu0 %3021
        %s3024 = sor.u32 256, 16
        %3025 = vbcast.lane.b32.xlu0 %v3015, %s3024
        %v3026 = vpop.permute.xlu0 %3025
        %s3028 = sor.u32 256, 24
        %3029 = vbcast.lane.b32.xlu0 %v3015, %s3028
        %v3030 = vpop.permute.xlu0 %3029
        %s3032 = sor.u32 256, 32
        %3033 = vbcast.lane.b32.xlu0 %v3015, %s3032
        %v3034 = vpop.permute.xlu0 %3033
        %s3036 = sor.u32 256, 40
        %3037 = vbcast.lane.b32.xlu0 %v3015, %s3036
        %v3038 = vpop.permute.xlu0 %3037
        %s3040 = sor.u32 256, 48
        %3041 = vbcast.lane.b32.xlu0 %v3015, %s3040
        %v3042 = vpop.permute.xlu0 %3041
        %s3044 = sor.u32 256, 56
        %3045 = vbcast.lane.b32.xlu0 %v3015, %s3044
        %v3046 = vpop.permute.xlu0 %3045
        %s3048 = sor.u32 256, 64
        %3049 = vbcast.lane.b32.xlu0 %v3015, %s3048
        %v3050 = vpop.permute.xlu0 %3049
        %s3052 = sor.u32 256, 72
        %3053 = vbcast.lane.b32.xlu0 %v3015, %s3052
        %v3054 = vpop.permute.xlu0 %3053
        %s3056 = sor.u32 256, 80
        %3057 = vbcast.lane.b32.xlu0 %v3015, %s3056
        %v3058 = vpop.permute.xlu0 %3057
        %s3060 = sor.u32 256, 88
        %3061 = vbcast.lane.b32.xlu0 %v3015, %s3060
        %v3062 = vpop.permute.xlu0 %3061
        %s3064 = sor.u32 256, 96
        %3065 = vbcast.lane.b32.xlu0 %v3015, %s3064
        %v3066 = vpop.permute.xlu0 %3065
        %s3068 = sor.u32 256, 104
        %3069 = vbcast.lane.b32.xlu0 %v3015, %s3068
        %v3070 = vpop.permute.xlu0 %3069
        %s3072 = sor.u32 256, 112
        %3073 = vbcast.lane.b32.xlu0 %v3015, %s3072
        %v3074 = vpop.permute.xlu0 %3073
        %s3076 = sor.u32 256, 120
        %3077 = vbcast.lane.b32.xlu0 %v3015, %s3076
        %v3078 = vpop.permute.xlu0 %3077
        %v3079 = vlaneseq
        %v3080 = vshrl.u32 %v3079, 7
        %v3081 = vsub.s32 0, %v3080
        %v3082 = vrot.slane %v380, %v3081
        %3084 = vbcast.lane.b32.xlu0 %v3082, 256
        %v3085 = vpop.permute.xlu0 %3084
        %s3087 = sor.u32 256, 8
        %3088 = vbcast.lane.b32.xlu0 %v3082, %s3087
        %v3089 = vpop.permute.xlu0 %3088
        %s3091 = sor.u32 256, 16
        %3092 = vbcast.lane.b32.xlu0 %v3082, %s3091
        %v3093 = vpop.permute.xlu0 %3092
        %s3095 = sor.u32 256, 24
        %3096 = vbcast.lane.b32.xlu0 %v3082, %s3095
        %v3097 = vpop.permute.xlu0 %3096
        %s3099 = sor.u32 256, 32
        %3100 = vbcast.lane.b32.xlu0 %v3082, %s3099
        %v3101 = vpop.permute.xlu0 %3100
        %s3103 = sor.u32 256, 40
        %3104 = vbcast.lane.b32.xlu0 %v3082, %s3103
        %v3105 = vpop.permute.xlu0 %3104
        %s3107 = sor.u32 256, 48
        %3108 = vbcast.lane.b32.xlu0 %v3082, %s3107
        %v3109 = vpop.permute.xlu0 %3108
        %s3111 = sor.u32 256, 56
        %3112 = vbcast.lane.b32.xlu0 %v3082, %s3111
        %v3113 = vpop.permute.xlu0 %3112
        %s3115 = sor.u32 256, 64
        %3116 = vbcast.lane.b32.xlu0 %v3082, %s3115
        %v3117 = vpop.permute.xlu0 %3116
        %s3119 = sor.u32 256, 72
        %3120 = vbcast.lane.b32.xlu0 %v3082, %s3119
        %v3121 = vpop.permute.xlu0 %3120
        %s3123 = sor.u32 256, 80
        %3124 = vbcast.lane.b32.xlu0 %v3082, %s3123
        %v3125 = vpop.permute.xlu0 %3124
        %s3127 = sor.u32 256, 88
        %3128 = vbcast.lane.b32.xlu0 %v3082, %s3127
        %v3129 = vpop.permute.xlu0 %3128
        %s3131 = sor.u32 256, 96
        %3132 = vbcast.lane.b32.xlu0 %v3082, %s3131
        %v3133 = vpop.permute.xlu0 %3132
        %s3135 = sor.u32 256, 104
        %3136 = vbcast.lane.b32.xlu0 %v3082, %s3135
        %v3137 = vpop.permute.xlu0 %3136
        %s3139 = sor.u32 256, 112
        %3140 = vbcast.lane.b32.xlu0 %v3082, %s3139
        %v3141 = vpop.permute.xlu0 %3140
        %s3143 = sor.u32 256, 120
        %3144 = vbcast.lane.b32.xlu0 %v3082, %s3143
        %v3145 = vpop.permute.xlu0 %3144
        %v3146 = vlaneseq
        %v3147 = vshrl.u32 %v3146, 7
        %v3148 = vsub.s32 1, %v3147
        %v3149 = vrot.slane %v380, %v3148
        %3151 = vbcast.lane.b32.xlu0 %v3149, 256
        %v3152 = vpop.permute.xlu0 %3151
        %s3154 = sor.u32 256, 8
        %3155 = vbcast.lane.b32.xlu0 %v3149, %s3154
        %v3156 = vpop.permute.xlu0 %3155
        %s3158 = sor.u32 256, 16
        %3159 = vbcast.lane.b32.xlu0 %v3149, %s3158
        %v3160 = vpop.permute.xlu0 %3159
        %s3162 = sor.u32 256, 24
        %3163 = vbcast.lane.b32.xlu0 %v3149, %s3162
        %v3164 = vpop.permute.xlu0 %3163
        %s3166 = sor.u32 256, 32
        %3167 = vbcast.lane.b32.xlu0 %v3149, %s3166
        %v3168 = vpop.permute.xlu0 %3167
        %s3170 = sor.u32 256, 40
        %3171 = vbcast.lane.b32.xlu0 %v3149, %s3170
        %v3172 = vpop.permute.xlu0 %3171
        %s3174 = sor.u32 256, 48
        %3175 = vbcast.lane.b32.xlu0 %v3149, %s3174
        %v3176 = vpop.permute.xlu0 %3175
        %s3178 = sor.u32 256, 56
        %3179 = vbcast.lane.b32.xlu0 %v3149, %s3178
        %v3180 = vpop.permute.xlu0 %3179
        %s3182 = sor.u32 256, 64
        %3183 = vbcast.lane.b32.xlu0 %v3149, %s3182
        %v3184 = vpop.permute.xlu0 %3183
        %s3186 = sor.u32 256, 72
        %3187 = vbcast.lane.b32.xlu0 %v3149, %s3186
        %v3188 = vpop.permute.xlu0 %3187
        %s3190 = sor.u32 256, 80
        %3191 = vbcast.lane.b32.xlu0 %v3149, %s3190
        %v3192 = vpop.permute.xlu0 %3191
        %s3194 = sor.u32 256, 88
        %3195 = vbcast.lane.b32.xlu0 %v3149, %s3194
        %v3196 = vpop.permute.xlu0 %3195
        %s3198 = sor.u32 256, 96
        %3199 = vbcast.lane.b32.xlu0 %v3149, %s3198
        %v3200 = vpop.permute.xlu0 %3199
        %s3202 = sor.u32 256, 104
        %3203 = vbcast.lane.b32.xlu0 %v3149, %s3202
        %v3204 = vpop.permute.xlu0 %3203
        %s3206 = sor.u32 256, 112
        %3207 = vbcast.lane.b32.xlu0 %v3149, %s3206
        %v3208 = vpop.permute.xlu0 %3207
        %s3210 = sor.u32 256, 120
        %3211 = vbcast.lane.b32.xlu0 %v3149, %s3210
        %v3212 = vpop.permute.xlu0 %3211
        %v3213 = vlaneseq
        %v3214 = vshrl.u32 %v3213, 7
        %v3215 = vsub.s32 2, %v3214
        %v3216 = vrot.slane %v380, %v3215
        %3218 = vbcast.lane.b32.xlu0 %v3216, 256
        %v3219 = vpop.permute.xlu0 %3218
        %s3221 = sor.u32 256, 8
        %3222 = vbcast.lane.b32.xlu0 %v3216, %s3221
        %v3223 = vpop.permute.xlu0 %3222
        %s3225 = sor.u32 256, 16
        %3226 = vbcast.lane.b32.xlu0 %v3216, %s3225
        %v3227 = vpop.permute.xlu0 %3226
        %s3229 = sor.u32 256, 24
        %3230 = vbcast.lane.b32.xlu0 %v3216, %s3229
        %v3231 = vpop.permute.xlu0 %3230
        %s3233 = sor.u32 256, 32
        %3234 = vbcast.lane.b32.xlu0 %v3216, %s3233
        %v3235 = vpop.permute.xlu0 %3234
        %s3237 = sor.u32 256, 40
        %3238 = vbcast.lane.b32.xlu0 %v3216, %s3237
        %v3239 = vpop.permute.xlu0 %3238
        %s3241 = sor.u32 256, 48
        %3242 = vbcast.lane.b32.xlu0 %v3216, %s3241
        %v3243 = vpop.permute.xlu0 %3242
        %s3245 = sor.u32 256, 56
        %3246 = vbcast.lane.b32.xlu0 %v3216, %s3245
        %v3247 = vpop.permute.xlu0 %3246
        %s3249 = sor.u32 256, 64
        %3250 = vbcast.lane.b32.xlu0 %v3216, %s3249
        %v3251 = vpop.permute.xlu0 %3250
        %s3253 = sor.u32 256, 72
        %3254 = vbcast.lane.b32.xlu0 %v3216, %s3253
        %v3255 = vpop.permute.xlu0 %3254
        %s3257 = sor.u32 256, 80
        %3258 = vbcast.lane.b32.xlu0 %v3216, %s3257
        %v3259 = vpop.permute.xlu0 %3258
        %s3261 = sor.u32 256, 88
        %3262 = vbcast.lane.b32.xlu0 %v3216, %s3261
        %v3263 = vpop.permute.xlu0 %3262
        %s3265 = sor.u32 256, 96
        %3266 = vbcast.lane.b32.xlu0 %v3216, %s3265
        %v3267 = vpop.permute.xlu0 %3266
        %s3269 = sor.u32 256, 104
        %3270 = vbcast.lane.b32.xlu0 %v3216, %s3269
        %v3271 = vpop.permute.xlu0 %3270
        %s3273 = sor.u32 256, 112
        %3274 = vbcast.lane.b32.xlu0 %v3216, %s3273
        %v3275 = vpop.permute.xlu0 %3274
        %s3277 = sor.u32 256, 120
        %3278 = vbcast.lane.b32.xlu0 %v3216, %s3277
        %v3279 = vpop.permute.xlu0 %3278
        %v3280 = vlaneseq
        %v3281 = vshrl.u32 %v3280, 7
        %v3282 = vsub.s32 3, %v3281
        %v3283 = vrot.slane %v380, %v3282
        %3285 = vbcast.lane.b32.xlu0 %v3283, 256
        %v3286 = vpop.permute.xlu0 %3285
        %s3288 = sor.u32 256, 8
        %3289 = vbcast.lane.b32.xlu0 %v3283, %s3288
        %v3290 = vpop.permute.xlu0 %3289
        %s3292 = sor.u32 256, 16
        %3293 = vbcast.lane.b32.xlu0 %v3283, %s3292
        %v3294 = vpop.permute.xlu0 %3293
        %s3296 = sor.u32 256, 24
        %3297 = vbcast.lane.b32.xlu0 %v3283, %s3296
        %v3298 = vpop.permute.xlu0 %3297
        %s3300 = sor.u32 256, 32
        %3301 = vbcast.lane.b32.xlu0 %v3283, %s3300
        %v3302 = vpop.permute.xlu0 %3301
        %s3304 = sor.u32 256, 40
        %3305 = vbcast.lane.b32.xlu0 %v3283, %s3304
        %v3306 = vpop.permute.xlu0 %3305
        %s3308 = sor.u32 256, 48
        %3309 = vbcast.lane.b32.xlu0 %v3283, %s3308
        %v3310 = vpop.permute.xlu0 %3309
        %s3312 = sor.u32 256, 56
        %3313 = vbcast.lane.b32.xlu0 %v3283, %s3312
        %v3314 = vpop.permute.xlu0 %3313
        %s3316 = sor.u32 256, 64
        %3317 = vbcast.lane.b32.xlu0 %v3283, %s3316
        %v3318 = vpop.permute.xlu0 %3317
        %s3320 = sor.u32 256, 72
        %3321 = vbcast.lane.b32.xlu0 %v3283, %s3320
        %v3322 = vpop.permute.xlu0 %3321
        %s3324 = sor.u32 256, 80
        %3325 = vbcast.lane.b32.xlu0 %v3283, %s3324
        %v3326 = vpop.permute.xlu0 %3325
        %s3328 = sor.u32 256, 88
        %3329 = vbcast.lane.b32.xlu0 %v3283, %s3328
        %v3330 = vpop.permute.xlu0 %3329
        %s3332 = sor.u32 256, 96
        %3333 = vbcast.lane.b32.xlu0 %v3283, %s3332
        %v3334 = vpop.permute.xlu0 %3333
        %s3336 = sor.u32 256, 104
        %3337 = vbcast.lane.b32.xlu0 %v3283, %s3336
        %v3338 = vpop.permute.xlu0 %3337
        %s3340 = sor.u32 256, 112
        %3341 = vbcast.lane.b32.xlu0 %v3283, %s3340
        %v3342 = vpop.permute.xlu0 %3341
        %s3344 = sor.u32 256, 120
        %3345 = vbcast.lane.b32.xlu0 %v3283, %s3344
        %v3346 = vpop.permute.xlu0 %3345
        %v3347 = vlaneseq
        %v3348 = vshrl.u32 %v3347, 7
        %v3349 = vsub.s32 4, %v3348
        %v3350 = vrot.slane %v380, %v3349
        %3352 = vbcast.lane.b32.xlu0 %v3350, 256
        %v3353 = vpop.permute.xlu0 %3352
        %s3355 = sor.u32 256, 8
        %3356 = vbcast.lane.b32.xlu0 %v3350, %s3355
        %v3357 = vpop.permute.xlu0 %3356
        %s3359 = sor.u32 256, 16
        %3360 = vbcast.lane.b32.xlu0 %v3350, %s3359
        %v3361 = vpop.permute.xlu0 %3360
        %s3363 = sor.u32 256, 24
        %3364 = vbcast.lane.b32.xlu0 %v3350, %s3363
        %v3365 = vpop.permute.xlu0 %3364
        %s3367 = sor.u32 256, 32
        %3368 = vbcast.lane.b32.xlu0 %v3350, %s3367
        %v3369 = vpop.permute.xlu0 %3368
        %s3371 = sor.u32 256, 40
        %3372 = vbcast.lane.b32.xlu0 %v3350, %s3371
        %v3373 = vpop.permute.xlu0 %3372
        %s3375 = sor.u32 256, 48
        %3376 = vbcast.lane.b32.xlu0 %v3350, %s3375
        %v3377 = vpop.permute.xlu0 %3376
        %s3379 = sor.u32 256, 56
        %3380 = vbcast.lane.b32.xlu0 %v3350, %s3379
        %v3381 = vpop.permute.xlu0 %3380
        %s3383 = sor.u32 256, 64
        %3384 = vbcast.lane.b32.xlu0 %v3350, %s3383
        %v3385 = vpop.permute.xlu0 %3384
        %s3387 = sor.u32 256, 72
        %3388 = vbcast.lane.b32.xlu0 %v3350, %s3387
        %v3389 = vpop.permute.xlu0 %3388
        %s3391 = sor.u32 256, 80
        %3392 = vbcast.lane.b32.xlu0 %v3350, %s3391
        %v3393 = vpop.permute.xlu0 %3392
        %s3395 = sor.u32 256, 88
        %3396 = vbcast.lane.b32.xlu0 %v3350, %s3395
        %v3397 = vpop.permute.xlu0 %3396
        %s3399 = sor.u32 256, 96
        %3400 = vbcast.lane.b32.xlu0 %v3350, %s3399
        %v3401 = vpop.permute.xlu0 %3400
        %s3403 = sor.u32 256, 104
        %3404 = vbcast.lane.b32.xlu0 %v3350, %s3403
        %v3405 = vpop.permute.xlu0 %3404
        %s3407 = sor.u32 256, 112
        %3408 = vbcast.lane.b32.xlu0 %v3350, %s3407
        %v3409 = vpop.permute.xlu0 %3408
        %s3411 = sor.u32 256, 120
        %3412 = vbcast.lane.b32.xlu0 %v3350, %s3411
        %v3413 = vpop.permute.xlu0 %3412
        %v3414 = vlaneseq
        %v3415 = vshrl.u32 %v3414, 7
        %v3416 = vsub.s32 5, %v3415
        %v3417 = vrot.slane %v380, %v3416
        %3419 = vbcast.lane.b32.xlu0 %v3417, 256
        %v3420 = vpop.permute.xlu0 %3419
        %s3422 = sor.u32 256, 8
        %3423 = vbcast.lane.b32.xlu0 %v3417, %s3422
        %v3424 = vpop.permute.xlu0 %3423
        %s3426 = sor.u32 256, 16
        %3427 = vbcast.lane.b32.xlu0 %v3417, %s3426
        %v3428 = vpop.permute.xlu0 %3427
        %s3430 = sor.u32 256, 24
        %3431 = vbcast.lane.b32.xlu0 %v3417, %s3430
        %v3432 = vpop.permute.xlu0 %3431
        %s3434 = sor.u32 256, 32
        %3435 = vbcast.lane.b32.xlu0 %v3417, %s3434
        %v3436 = vpop.permute.xlu0 %3435
        %s3438 = sor.u32 256, 40
        %3439 = vbcast.lane.b32.xlu0 %v3417, %s3438
        %v3440 = vpop.permute.xlu0 %3439
        %s3442 = sor.u32 256, 48
        %3443 = vbcast.lane.b32.xlu0 %v3417, %s3442
        %v3444 = vpop.permute.xlu0 %3443
        %s3446 = sor.u32 256, 56
        %3447 = vbcast.lane.b32.xlu0 %v3417, %s3446
        %v3448 = vpop.permute.xlu0 %3447
        %s3450 = sor.u32 256, 64
        %3451 = vbcast.lane.b32.xlu0 %v3417, %s3450
        %v3452 = vpop.permute.xlu0 %3451
        %s3454 = sor.u32 256, 72
        %3455 = vbcast.lane.b32.xlu0 %v3417, %s3454
        %v3456 = vpop.permute.xlu0 %3455
        %s3458 = sor.u32 256, 80
        %3459 = vbcast.lane.b32.xlu0 %v3417, %s3458
        %v3460 = vpop.permute.xlu0 %3459
        %s3462 = sor.u32 256, 88
        %3463 = vbcast.lane.b32.xlu0 %v3417, %s3462
        %v3464 = vpop.permute.xlu0 %3463
        %s3466 = sor.u32 256, 96
        %3467 = vbcast.lane.b32.xlu0 %v3417, %s3466
        %v3468 = vpop.permute.xlu0 %3467
        %s3470 = sor.u32 256, 104
        %3471 = vbcast.lane.b32.xlu0 %v3417, %s3470
        %v3472 = vpop.permute.xlu0 %3471
        %s3474 = sor.u32 256, 112
        %3475 = vbcast.lane.b32.xlu0 %v3417, %s3474
        %v3476 = vpop.permute.xlu0 %3475
        %s3478 = sor.u32 256, 120
        %3479 = vbcast.lane.b32.xlu0 %v3417, %s3478
        %v3480 = vpop.permute.xlu0 %3479
        %v3481 = vlaneseq
        %v3482 = vshrl.u32 %v3481, 7
        %v3483 = vsub.s32 6, %v3482
        %v3484 = vrot.slane %v380, %v3483
        %3486 = vbcast.lane.b32.xlu0 %v3484, 256
        %v3487 = vpop.permute.xlu0 %3486
        %s3489 = sor.u32 256, 8
        %3490 = vbcast.lane.b32.xlu0 %v3484, %s3489
        %v3491 = vpop.permute.xlu0 %3490
        %s3493 = sor.u32 256, 16
        %3494 = vbcast.lane.b32.xlu0 %v3484, %s3493
        %v3495 = vpop.permute.xlu0 %3494
        %s3497 = sor.u32 256, 24
        %3498 = vbcast.lane.b32.xlu0 %v3484, %s3497
        %v3499 = vpop.permute.xlu0 %3498
        %s3501 = sor.u32 256, 32
        %3502 = vbcast.lane.b32.xlu0 %v3484, %s3501
        %v3503 = vpop.permute.xlu0 %3502
        %s3505 = sor.u32 256, 40
        %3506 = vbcast.lane.b32.xlu0 %v3484, %s3505
        %v3507 = vpop.permute.xlu0 %3506
        %s3509 = sor.u32 256, 48
        %3510 = vbcast.lane.b32.xlu0 %v3484, %s3509
        %v3511 = vpop.permute.xlu0 %3510
        %s3513 = sor.u32 256, 56
        %3514 = vbcast.lane.b32.xlu0 %v3484, %s3513
        %v3515 = vpop.permute.xlu0 %3514
        %s3517 = sor.u32 256, 64
        %3518 = vbcast.lane.b32.xlu0 %v3484, %s3517
        %v3519 = vpop.permute.xlu0 %3518
        %s3521 = sor.u32 256, 72
        %3522 = vbcast.lane.b32.xlu0 %v3484, %s3521
        %v3523 = vpop.permute.xlu0 %3522
        %s3525 = sor.u32 256, 80
        %3526 = vbcast.lane.b32.xlu0 %v3484, %s3525
        %v3527 = vpop.permute.xlu0 %3526
        %s3529 = sor.u32 256, 88
        %3530 = vbcast.lane.b32.xlu0 %v3484, %s3529
        %v3531 = vpop.permute.xlu0 %3530
        %s3533 = sor.u32 256, 96
        %3534 = vbcast.lane.b32.xlu0 %v3484, %s3533
        %v3535 = vpop.permute.xlu0 %3534
        %s3537 = sor.u32 256, 104
        %3538 = vbcast.lane.b32.xlu0 %v3484, %s3537
        %v3539 = vpop.permute.xlu0 %3538
        %s3541 = sor.u32 256, 112
        %3542 = vbcast.lane.b32.xlu0 %v3484, %s3541
        %v3543 = vpop.permute.xlu0 %3542
        %s3545 = sor.u32 256, 120
        %3546 = vbcast.lane.b32.xlu0 %v3484, %s3545
        %v3547 = vpop.permute.xlu0 %3546
        %v3548 = vlaneseq
        %v3549 = vshrl.u32 %v3548, 7
        %v3550 = vsub.s32 7, %v3549
        %v3551 = vrot.slane %v380, %v3550
        %3553 = vbcast.lane.b32.xlu0 %v3551, 256
        %v3554 = vpop.permute.xlu0 %3553
        %s3556 = sor.u32 256, 8
        %3557 = vbcast.lane.b32.xlu0 %v3551, %s3556
        %v3558 = vpop.permute.xlu0 %3557
        %s3560 = sor.u32 256, 16
        %3561 = vbcast.lane.b32.xlu0 %v3551, %s3560
        %v3562 = vpop.permute.xlu0 %3561
        %s3564 = sor.u32 256, 24
        %3565 = vbcast.lane.b32.xlu0 %v3551, %s3564
        %v3566 = vpop.permute.xlu0 %3565
        %s3568 = sor.u32 256, 32
        %3569 = vbcast.lane.b32.xlu0 %v3551, %s3568
        %v3570 = vpop.permute.xlu0 %3569
        %s3572 = sor.u32 256, 40
        %3573 = vbcast.lane.b32.xlu0 %v3551, %s3572
        %v3574 = vpop.permute.xlu0 %3573
        %s3576 = sor.u32 256, 48
        %3577 = vbcast.lane.b32.xlu0 %v3551, %s3576
        %v3578 = vpop.permute.xlu0 %3577
        %s3580 = sor.u32 256, 56
        %3581 = vbcast.lane.b32.xlu0 %v3551, %s3580
        %v3582 = vpop.permute.xlu0 %3581
        %s3584 = sor.u32 256, 64
        %3585 = vbcast.lane.b32.xlu0 %v3551, %s3584
        %v3586 = vpop.permute.xlu0 %3585
        %s3588 = sor.u32 256, 72
        %3589 = vbcast.lane.b32.xlu0 %v3551, %s3588
        %v3590 = vpop.permute.xlu0 %3589
        %s3592 = sor.u32 256, 80
        %3593 = vbcast.lane.b32.xlu0 %v3551, %s3592
        %v3594 = vpop.permute.xlu0 %3593
        %s3596 = sor.u32 256, 88
        %3597 = vbcast.lane.b32.xlu0 %v3551, %s3596
        %v3598 = vpop.permute.xlu0 %3597
        %s3600 = sor.u32 256, 96
        %3601 = vbcast.lane.b32.xlu0 %v3551, %s3600
        %v3602 = vpop.permute.xlu0 %3601
        %s3604 = sor.u32 256, 104
        %3605 = vbcast.lane.b32.xlu0 %v3551, %s3604
        %v3606 = vpop.permute.xlu0 %3605
        %s3608 = sor.u32 256, 112
        %3609 = vbcast.lane.b32.xlu0 %v3551, %s3608
        %v3610 = vpop.permute.xlu0 %3609
        %s3612 = sor.u32 256, 120
        %3613 = vbcast.lane.b32.xlu0 %v3551, %s3612
        %v3614 = vpop.permute.xlu0 %3613
        %v3615 = vlaneseq
        %v3616 = vshrl.u32 %v3615, 7
        %v3617 = vsub.s32 0, %v3616
        %v3618 = vrot.slane %v381, %v3617
        %3620 = vbcast.lane.b32.xlu0 %v3618, 256
        %v3621 = vpop.permute.xlu0 %3620
        %s3623 = sor.u32 256, 8
        %3624 = vbcast.lane.b32.xlu0 %v3618, %s3623
        %v3625 = vpop.permute.xlu0 %3624
        %s3627 = sor.u32 256, 16
        %3628 = vbcast.lane.b32.xlu0 %v3618, %s3627
        %v3629 = vpop.permute.xlu0 %3628
        %s3631 = sor.u32 256, 24
        %3632 = vbcast.lane.b32.xlu0 %v3618, %s3631
        %v3633 = vpop.permute.xlu0 %3632
        %s3635 = sor.u32 256, 32
        %3636 = vbcast.lane.b32.xlu0 %v3618, %s3635
        %v3637 = vpop.permute.xlu0 %3636
        %s3639 = sor.u32 256, 40
        %3640 = vbcast.lane.b32.xlu0 %v3618, %s3639
        %v3641 = vpop.permute.xlu0 %3640
        %s3643 = sor.u32 256, 48
        %3644 = vbcast.lane.b32.xlu0 %v3618, %s3643
        %v3645 = vpop.permute.xlu0 %3644
        %s3647 = sor.u32 256, 56
        %3648 = vbcast.lane.b32.xlu0 %v3618, %s3647
        %v3649 = vpop.permute.xlu0 %3648
        %s3651 = sor.u32 256, 64
        %3652 = vbcast.lane.b32.xlu0 %v3618, %s3651
        %v3653 = vpop.permute.xlu0 %3652
        %s3655 = sor.u32 256, 72
        %3656 = vbcast.lane.b32.xlu0 %v3618, %s3655
        %v3657 = vpop.permute.xlu0 %3656
        %s3659 = sor.u32 256, 80
        %3660 = vbcast.lane.b32.xlu0 %v3618, %s3659
        %v3661 = vpop.permute.xlu0 %3660
        %s3663 = sor.u32 256, 88
        %3664 = vbcast.lane.b32.xlu0 %v3618, %s3663
        %v3665 = vpop.permute.xlu0 %3664
        %s3667 = sor.u32 256, 96
        %3668 = vbcast.lane.b32.xlu0 %v3618, %s3667
        %v3669 = vpop.permute.xlu0 %3668
        %s3671 = sor.u32 256, 104
        %3672 = vbcast.lane.b32.xlu0 %v3618, %s3671
        %v3673 = vpop.permute.xlu0 %3672
        %s3675 = sor.u32 256, 112
        %3676 = vbcast.lane.b32.xlu0 %v3618, %s3675
        %v3677 = vpop.permute.xlu0 %3676
        %s3679 = sor.u32 256, 120
        %3680 = vbcast.lane.b32.xlu0 %v3618, %s3679
        %v3681 = vpop.permute.xlu0 %3680
        %v3682 = vlaneseq
        %v3683 = vshrl.u32 %v3682, 7
        %v3684 = vsub.s32 1, %v3683
        %v3685 = vrot.slane %v381, %v3684
        %3687 = vbcast.lane.b32.xlu0 %v3685, 256
        %v3688 = vpop.permute.xlu0 %3687
        %s3690 = sor.u32 256, 8
        %3691 = vbcast.lane.b32.xlu0 %v3685, %s3690
        %v3692 = vpop.permute.xlu0 %3691
        %s3694 = sor.u32 256, 16
        %3695 = vbcast.lane.b32.xlu0 %v3685, %s3694
        %v3696 = vpop.permute.xlu0 %3695
        %s3698 = sor.u32 256, 24
        %3699 = vbcast.lane.b32.xlu0 %v3685, %s3698
        %v3700 = vpop.permute.xlu0 %3699
        %s3702 = sor.u32 256, 32
        %3703 = vbcast.lane.b32.xlu0 %v3685, %s3702
        %v3704 = vpop.permute.xlu0 %3703
        %s3706 = sor.u32 256, 40
        %3707 = vbcast.lane.b32.xlu0 %v3685, %s3706
        %v3708 = vpop.permute.xlu0 %3707
        %s3710 = sor.u32 256, 48
        %3711 = vbcast.lane.b32.xlu0 %v3685, %s3710
        %v3712 = vpop.permute.xlu0 %3711
        %s3714 = sor.u32 256, 56
        %3715 = vbcast.lane.b32.xlu0 %v3685, %s3714
        %v3716 = vpop.permute.xlu0 %3715
        %s3718 = sor.u32 256, 64
        %3719 = vbcast.lane.b32.xlu0 %v3685, %s3718
        %v3720 = vpop.permute.xlu0 %3719
        %s3722 = sor.u32 256, 72
        %3723 = vbcast.lane.b32.xlu0 %v3685, %s3722
        %v3724 = vpop.permute.xlu0 %3723
        %s3726 = sor.u32 256, 80
        %3727 = vbcast.lane.b32.xlu0 %v3685, %s3726
        %v3728 = vpop.permute.xlu0 %3727
        %s3730 = sor.u32 256, 88
        %3731 = vbcast.lane.b32.xlu0 %v3685, %s3730
        %v3732 = vpop.permute.xlu0 %3731
        %s3734 = sor.u32 256, 96
        %3735 = vbcast.lane.b32.xlu0 %v3685, %s3734
        %v3736 = vpop.permute.xlu0 %3735
        %s3738 = sor.u32 256, 104
        %3739 = vbcast.lane.b32.xlu0 %v3685, %s3738
        %v3740 = vpop.permute.xlu0 %3739
        %s3742 = sor.u32 256, 112
        %3743 = vbcast.lane.b32.xlu0 %v3685, %s3742
        %v3744 = vpop.permute.xlu0 %3743
        %s3746 = sor.u32 256, 120
        %3747 = vbcast.lane.b32.xlu0 %v3685, %s3746
        %v3748 = vpop.permute.xlu0 %3747
        %v3749 = vlaneseq
        %v3750 = vshrl.u32 %v3749, 7
        %v3751 = vsub.s32 2, %v3750
        %v3752 = vrot.slane %v381, %v3751
        %3754 = vbcast.lane.b32.xlu0 %v3752, 256
        %v3755 = vpop.permute.xlu0 %3754
        %s3757 = sor.u32 256, 8
        %3758 = vbcast.lane.b32.xlu0 %v3752, %s3757
        %v3759 = vpop.permute.xlu0 %3758
        %s3761 = sor.u32 256, 16
        %3762 = vbcast.lane.b32.xlu0 %v3752, %s3761
        %v3763 = vpop.permute.xlu0 %3762
        %s3765 = sor.u32 256, 24
        %3766 = vbcast.lane.b32.xlu0 %v3752, %s3765
        %v3767 = vpop.permute.xlu0 %3766
        %s3769 = sor.u32 256, 32
        %3770 = vbcast.lane.b32.xlu0 %v3752, %s3769
        %v3771 = vpop.permute.xlu0 %3770
        %s3773 = sor.u32 256, 40
        %3774 = vbcast.lane.b32.xlu0 %v3752, %s3773
        %v3775 = vpop.permute.xlu0 %3774
        %s3777 = sor.u32 256, 48
        %3778 = vbcast.lane.b32.xlu0 %v3752, %s3777
        %v3779 = vpop.permute.xlu0 %3778
        %s3781 = sor.u32 256, 56
        %3782 = vbcast.lane.b32.xlu0 %v3752, %s3781
        %v3783 = vpop.permute.xlu0 %3782
        %s3785 = sor.u32 256, 64
        %3786 = vbcast.lane.b32.xlu0 %v3752, %s3785
        %v3787 = vpop.permute.xlu0 %3786
        %s3789 = sor.u32 256, 72
        %3790 = vbcast.lane.b32.xlu0 %v3752, %s3789
        %v3791 = vpop.permute.xlu0 %3790
        %s3793 = sor.u32 256, 80
        %3794 = vbcast.lane.b32.xlu0 %v3752, %s3793
        %v3795 = vpop.permute.xlu0 %3794
        %s3797 = sor.u32 256, 88
        %3798 = vbcast.lane.b32.xlu0 %v3752, %s3797
        %v3799 = vpop.permute.xlu0 %3798
        %s3801 = sor.u32 256, 96
        %3802 = vbcast.lane.b32.xlu0 %v3752, %s3801
        %v3803 = vpop.permute.xlu0 %3802
        %s3805 = sor.u32 256, 104
        %3806 = vbcast.lane.b32.xlu0 %v3752, %s3805
        %v3807 = vpop.permute.xlu0 %3806
        %s3809 = sor.u32 256, 112
        %3810 = vbcast.lane.b32.xlu0 %v3752, %s3809
        %v3811 = vpop.permute.xlu0 %3810
        %s3813 = sor.u32 256, 120
        %3814 = vbcast.lane.b32.xlu0 %v3752, %s3813
        %v3815 = vpop.permute.xlu0 %3814
        %v3816 = vlaneseq
        %v3817 = vshrl.u32 %v3816, 7
        %v3818 = vsub.s32 3, %v3817
        %v3819 = vrot.slane %v381, %v3818
        %3821 = vbcast.lane.b32.xlu0 %v3819, 256
        %v3822 = vpop.permute.xlu0 %3821
        %s3824 = sor.u32 256, 8
        %3825 = vbcast.lane.b32.xlu0 %v3819, %s3824
        %v3826 = vpop.permute.xlu0 %3825
        %s3828 = sor.u32 256, 16
        %3829 = vbcast.lane.b32.xlu0 %v3819, %s3828
        %v3830 = vpop.permute.xlu0 %3829
        %s3832 = sor.u32 256, 24
        %3833 = vbcast.lane.b32.xlu0 %v3819, %s3832
        %v3834 = vpop.permute.xlu0 %3833
        %s3836 = sor.u32 256, 32
        %3837 = vbcast.lane.b32.xlu0 %v3819, %s3836
        %v3838 = vpop.permute.xlu0 %3837
        %s3840 = sor.u32 256, 40
        %3841 = vbcast.lane.b32.xlu0 %v3819, %s3840
        %v3842 = vpop.permute.xlu0 %3841
        %s3844 = sor.u32 256, 48
        %3845 = vbcast.lane.b32.xlu0 %v3819, %s3844
        %v3846 = vpop.permute.xlu0 %3845
        %s3848 = sor.u32 256, 56
        %3849 = vbcast.lane.b32.xlu0 %v3819, %s3848
        %v3850 = vpop.permute.xlu0 %3849
        %s3852 = sor.u32 256, 64
        %3853 = vbcast.lane.b32.xlu0 %v3819, %s3852
        %v3854 = vpop.permute.xlu0 %3853
        %s3856 = sor.u32 256, 72
        %3857 = vbcast.lane.b32.xlu0 %v3819, %s3856
        %v3858 = vpop.permute.xlu0 %3857
        %s3860 = sor.u32 256, 80
        %3861 = vbcast.lane.b32.xlu0 %v3819, %s3860
        %v3862 = vpop.permute.xlu0 %3861
        %s3864 = sor.u32 256, 88
        %3865 = vbcast.lane.b32.xlu0 %v3819, %s3864
        %v3866 = vpop.permute.xlu0 %3865
        %s3868 = sor.u32 256, 96
        %3869 = vbcast.lane.b32.xlu0 %v3819, %s3868
        %v3870 = vpop.permute.xlu0 %3869
        %s3872 = sor.u32 256, 104
        %3873 = vbcast.lane.b32.xlu0 %v3819, %s3872
        %v3874 = vpop.permute.xlu0 %3873
        %s3876 = sor.u32 256, 112
        %3877 = vbcast.lane.b32.xlu0 %v3819, %s3876
        %v3878 = vpop.permute.xlu0 %3877
        %s3880 = sor.u32 256, 120
        %3881 = vbcast.lane.b32.xlu0 %v3819, %s3880
        %v3882 = vpop.permute.xlu0 %3881
        %v3883 = vlaneseq
        %v3884 = vshrl.u32 %v3883, 7
        %v3885 = vsub.s32 4, %v3884
        %v3886 = vrot.slane %v381, %v3885
        %3888 = vbcast.lane.b32.xlu0 %v3886, 256
        %v3889 = vpop.permute.xlu0 %3888
        %s3891 = sor.u32 256, 8
        %3892 = vbcast.lane.b32.xlu0 %v3886, %s3891
        %v3893 = vpop.permute.xlu0 %3892
        %s3895 = sor.u32 256, 16
        %3896 = vbcast.lane.b32.xlu0 %v3886, %s3895
        %v3897 = vpop.permute.xlu0 %3896
        %s3899 = sor.u32 256, 24
        %3900 = vbcast.lane.b32.xlu0 %v3886, %s3899
        %v3901 = vpop.permute.xlu0 %3900
        %s3903 = sor.u32 256, 32
        %3904 = vbcast.lane.b32.xlu0 %v3886, %s3903
        %v3905 = vpop.permute.xlu0 %3904
        %s3907 = sor.u32 256, 40
        %3908 = vbcast.lane.b32.xlu0 %v3886, %s3907
        %v3909 = vpop.permute.xlu0 %3908
        %s3911 = sor.u32 256, 48
        %3912 = vbcast.lane.b32.xlu0 %v3886, %s3911
        %v3913 = vpop.permute.xlu0 %3912
        %s3915 = sor.u32 256, 56
        %3916 = vbcast.lane.b32.xlu0 %v3886, %s3915
        %v3917 = vpop.permute.xlu0 %3916
        %s3919 = sor.u32 256, 64
        %3920 = vbcast.lane.b32.xlu0 %v3886, %s3919
        %v3921 = vpop.permute.xlu0 %3920
        %s3923 = sor.u32 256, 72
        %3924 = vbcast.lane.b32.xlu0 %v3886, %s3923
        %v3925 = vpop.permute.xlu0 %3924
        %s3927 = sor.u32 256, 80
        %3928 = vbcast.lane.b32.xlu0 %v3886, %s3927
        %v3929 = vpop.permute.xlu0 %3928
        %s3931 = sor.u32 256, 88
        %3932 = vbcast.lane.b32.xlu0 %v3886, %s3931
        %v3933 = vpop.permute.xlu0 %3932
        %s3935 = sor.u32 256, 96
        %3936 = vbcast.lane.b32.xlu0 %v3886, %s3935
        %v3937 = vpop.permute.xlu0 %3936
        %s3939 = sor.u32 256, 104
        %3940 = vbcast.lane.b32.xlu0 %v3886, %s3939
        %v3941 = vpop.permute.xlu0 %3940
        %s3943 = sor.u32 256, 112
        %3944 = vbcast.lane.b32.xlu0 %v3886, %s3943
        %v3945 = vpop.permute.xlu0 %3944
        %s3947 = sor.u32 256, 120
        %3948 = vbcast.lane.b32.xlu0 %v3886, %s3947
        %v3949 = vpop.permute.xlu0 %3948
        %v3950 = vlaneseq
        %v3951 = vshrl.u32 %v3950, 7
        %v3952 = vsub.s32 5, %v3951
        %v3953 = vrot.slane %v381, %v3952
        %3955 = vbcast.lane.b32.xlu0 %v3953, 256
        %v3956 = vpop.permute.xlu0 %3955
        %s3958 = sor.u32 256, 8
        %3959 = vbcast.lane.b32.xlu0 %v3953, %s3958
        %v3960 = vpop.permute.xlu0 %3959
        %s3962 = sor.u32 256, 16
        %3963 = vbcast.lane.b32.xlu0 %v3953, %s3962
        %v3964 = vpop.permute.xlu0 %3963
        %s3966 = sor.u32 256, 24
        %3967 = vbcast.lane.b32.xlu0 %v3953, %s3966
        %v3968 = vpop.permute.xlu0 %3967
        %s3970 = sor.u32 256, 32
        %3971 = vbcast.lane.b32.xlu0 %v3953, %s3970
        %v3972 = vpop.permute.xlu0 %3971
        %s3974 = sor.u32 256, 40
        %3975 = vbcast.lane.b32.xlu0 %v3953, %s3974
        %v3976 = vpop.permute.xlu0 %3975
        %s3978 = sor.u32 256, 48
        %3979 = vbcast.lane.b32.xlu0 %v3953, %s3978
        %v3980 = vpop.permute.xlu0 %3979
        %s3982 = sor.u32 256, 56
        %3983 = vbcast.lane.b32.xlu0 %v3953, %s3982
        %v3984 = vpop.permute.xlu0 %3983
        %s3986 = sor.u32 256, 64
        %3987 = vbcast.lane.b32.xlu0 %v3953, %s3986
        %v3988 = vpop.permute.xlu0 %3987
        %s3990 = sor.u32 256, 72
        %3991 = vbcast.lane.b32.xlu0 %v3953, %s3990
        %v3992 = vpop.permute.xlu0 %3991
        %s3994 = sor.u32 256, 80
        %3995 = vbcast.lane.b32.xlu0 %v3953, %s3994
        %v3996 = vpop.permute.xlu0 %3995
        %s3998 = sor.u32 256, 88
        %3999 = vbcast.lane.b32.xlu0 %v3953, %s3998
        %v4000 = vpop.permute.xlu0 %3999
        %s4002 = sor.u32 256, 96
        %4003 = vbcast.lane.b32.xlu0 %v3953, %s4002
        %v4004 = vpop.permute.xlu0 %4003
        %s4006 = sor.u32 256, 104
        %4007 = vbcast.lane.b32.xlu0 %v3953, %s4006
        %v4008 = vpop.permute.xlu0 %4007
        %s4010 = sor.u32 256, 112
        %4011 = vbcast.lane.b32.xlu0 %v3953, %s4010
        %v4012 = vpop.permute.xlu0 %4011
        %s4014 = sor.u32 256, 120
        %4015 = vbcast.lane.b32.xlu0 %v3953, %s4014
        %v4016 = vpop.permute.xlu0 %4015
        %v4017 = vlaneseq
        %v4018 = vshrl.u32 %v4017, 7
        %v4019 = vsub.s32 6, %v4018
        %v4020 = vrot.slane %v381, %v4019
        %4022 = vbcast.lane.b32.xlu0 %v4020, 256
        %v4023 = vpop.permute.xlu0 %4022
        %s4025 = sor.u32 256, 8
        %4026 = vbcast.lane.b32.xlu0 %v4020, %s4025
        %v4027 = vpop.permute.xlu0 %4026
        %s4029 = sor.u32 256, 16
        %4030 = vbcast.lane.b32.xlu0 %v4020, %s4029
        %v4031 = vpop.permute.xlu0 %4030
        %s4033 = sor.u32 256, 24
        %4034 = vbcast.lane.b32.xlu0 %v4020, %s4033
        %v4035 = vpop.permute.xlu0 %4034
        %s4037 = sor.u32 256, 32
        %4038 = vbcast.lane.b32.xlu0 %v4020, %s4037
        %v4039 = vpop.permute.xlu0 %4038
        %s4041 = sor.u32 256, 40
        %4042 = vbcast.lane.b32.xlu0 %v4020, %s4041
        %v4043 = vpop.permute.xlu0 %4042
        %s4045 = sor.u32 256, 48
        %4046 = vbcast.lane.b32.xlu0 %v4020, %s4045
        %v4047 = vpop.permute.xlu0 %4046
        %s4049 = sor.u32 256, 56
        %4050 = vbcast.lane.b32.xlu0 %v4020, %s4049
        %v4051 = vpop.permute.xlu0 %4050
        %s4053 = sor.u32 256, 64
        %4054 = vbcast.lane.b32.xlu0 %v4020, %s4053
        %v4055 = vpop.permute.xlu0 %4054
        %s4057 = sor.u32 256, 72
        %4058 = vbcast.lane.b32.xlu0 %v4020, %s4057
        %v4059 = vpop.permute.xlu0 %4058
        %s4061 = sor.u32 256, 80
        %4062 = vbcast.lane.b32.xlu0 %v4020, %s4061
        %v4063 = vpop.permute.xlu0 %4062
        %s4065 = sor.u32 256, 88
        %4066 = vbcast.lane.b32.xlu0 %v4020, %s4065
        %v4067 = vpop.permute.xlu0 %4066
        %s4069 = sor.u32 256, 96
        %4070 = vbcast.lane.b32.xlu0 %v4020, %s4069
        %v4071 = vpop.permute.xlu0 %4070
        %s4073 = sor.u32 256, 104
        %4074 = vbcast.lane.b32.xlu0 %v4020, %s4073
        %v4075 = vpop.permute.xlu0 %4074
        %s4077 = sor.u32 256, 112
        %4078 = vbcast.lane.b32.xlu0 %v4020, %s4077
        %v4079 = vpop.permute.xlu0 %4078
        %s4081 = sor.u32 256, 120
        %4082 = vbcast.lane.b32.xlu0 %v4020, %s4081
        %v4083 = vpop.permute.xlu0 %4082
        %v4084 = vlaneseq
        %v4085 = vshrl.u32 %v4084, 7
        %v4086 = vsub.s32 7, %v4085
        %v4087 = vrot.slane %v381, %v4086
        %4089 = vbcast.lane.b32.xlu0 %v4087, 256
        %v4090 = vpop.permute.xlu0 %4089
        %s4092 = sor.u32 256, 8
        %4093 = vbcast.lane.b32.xlu0 %v4087, %s4092
        %v4094 = vpop.permute.xlu0 %4093
        %s4096 = sor.u32 256, 16
        %4097 = vbcast.lane.b32.xlu0 %v4087, %s4096
        %v4098 = vpop.permute.xlu0 %4097
        %s4100 = sor.u32 256, 24
        %4101 = vbcast.lane.b32.xlu0 %v4087, %s4100
        %v4102 = vpop.permute.xlu0 %4101
        %s4104 = sor.u32 256, 32
        %4105 = vbcast.lane.b32.xlu0 %v4087, %s4104
        %v4106 = vpop.permute.xlu0 %4105
        %s4108 = sor.u32 256, 40
        %4109 = vbcast.lane.b32.xlu0 %v4087, %s4108
        %v4110 = vpop.permute.xlu0 %4109
        %s4112 = sor.u32 256, 48
        %4113 = vbcast.lane.b32.xlu0 %v4087, %s4112
        %v4114 = vpop.permute.xlu0 %4113
        %s4116 = sor.u32 256, 56
        %4117 = vbcast.lane.b32.xlu0 %v4087, %s4116
        %v4118 = vpop.permute.xlu0 %4117
        %s4120 = sor.u32 256, 64
        %4121 = vbcast.lane.b32.xlu0 %v4087, %s4120
        %v4122 = vpop.permute.xlu0 %4121
        %s4124 = sor.u32 256, 72
        %4125 = vbcast.lane.b32.xlu0 %v4087, %s4124
        %v4126 = vpop.permute.xlu0 %4125
        %s4128 = sor.u32 256, 80
        %4129 = vbcast.lane.b32.xlu0 %v4087, %s4128
        %v4130 = vpop.permute.xlu0 %4129
        %s4132 = sor.u32 256, 88
        %4133 = vbcast.lane.b32.xlu0 %v4087, %s4132
        %v4134 = vpop.permute.xlu0 %4133
        %s4136 = sor.u32 256, 96
        %4137 = vbcast.lane.b32.xlu0 %v4087, %s4136
        %v4138 = vpop.permute.xlu0 %4137
        %s4140 = sor.u32 256, 104
        %4141 = vbcast.lane.b32.xlu0 %v4087, %s4140
        %v4142 = vpop.permute.xlu0 %4141
        %s4144 = sor.u32 256, 112
        %4145 = vbcast.lane.b32.xlu0 %v4087, %s4144
        %v4146 = vpop.permute.xlu0 %4145
        %s4148 = sor.u32 256, 120
        %4149 = vbcast.lane.b32.xlu0 %v4087, %s4148
        %v4150 = vpop.permute.xlu0 %4149
        %v4151 = vlaneseq
        %v4152 = vshrl.u32 %v4151, 7
        %v4153 = vsub.s32 0, %v4152
        %v4154 = vrot.slane %v382, %v4153
        %4156 = vbcast.lane.b32.xlu0 %v4154, 256
        %v4157 = vpop.permute.xlu0 %4156
        %s4159 = sor.u32 256, 8
        %4160 = vbcast.lane.b32.xlu0 %v4154, %s4159
        %v4161 = vpop.permute.xlu0 %4160
        %s4163 = sor.u32 256, 16
        %4164 = vbcast.lane.b32.xlu0 %v4154, %s4163
        %v4165 = vpop.permute.xlu0 %4164
        %s4167 = sor.u32 256, 24
        %4168 = vbcast.lane.b32.xlu0 %v4154, %s4167
        %v4169 = vpop.permute.xlu0 %4168
        %s4171 = sor.u32 256, 32
        %4172 = vbcast.lane.b32.xlu0 %v4154, %s4171
        %v4173 = vpop.permute.xlu0 %4172
        %s4175 = sor.u32 256, 40
        %4176 = vbcast.lane.b32.xlu0 %v4154, %s4175
        %v4177 = vpop.permute.xlu0 %4176
        %s4179 = sor.u32 256, 48
        %4180 = vbcast.lane.b32.xlu0 %v4154, %s4179
        %v4181 = vpop.permute.xlu0 %4180
        %s4183 = sor.u32 256, 56
        %4184 = vbcast.lane.b32.xlu0 %v4154, %s4183
        %v4185 = vpop.permute.xlu0 %4184
        %s4187 = sor.u32 256, 64
        %4188 = vbcast.lane.b32.xlu0 %v4154, %s4187
        %v4189 = vpop.permute.xlu0 %4188
        %s4191 = sor.u32 256, 72
        %4192 = vbcast.lane.b32.xlu0 %v4154, %s4191
        %v4193 = vpop.permute.xlu0 %4192
        %s4195 = sor.u32 256, 80
        %4196 = vbcast.lane.b32.xlu0 %v4154, %s4195
        %v4197 = vpop.permute.xlu0 %4196
        %s4199 = sor.u32 256, 88
        %4200 = vbcast.lane.b32.xlu0 %v4154, %s4199
        %v4201 = vpop.permute.xlu0 %4200
        %s4203 = sor.u32 256, 96
        %4204 = vbcast.lane.b32.xlu0 %v4154, %s4203
        %v4205 = vpop.permute.xlu0 %4204
        %s4207 = sor.u32 256, 104
        %4208 = vbcast.lane.b32.xlu0 %v4154, %s4207
        %v4209 = vpop.permute.xlu0 %4208
        %s4211 = sor.u32 256, 112
        %4212 = vbcast.lane.b32.xlu0 %v4154, %s4211
        %v4213 = vpop.permute.xlu0 %4212
        %s4215 = sor.u32 256, 120
        %4216 = vbcast.lane.b32.xlu0 %v4154, %s4215
        %v4217 = vpop.permute.xlu0 %4216
        %v4218 = vlaneseq
        %v4219 = vshrl.u32 %v4218, 7
        %v4220 = vsub.s32 1, %v4219
        %v4221 = vrot.slane %v382, %v4220
        %4223 = vbcast.lane.b32.xlu0 %v4221, 256
        %v4224 = vpop.permute.xlu0 %4223
        %s4226 = sor.u32 256, 8
        %4227 = vbcast.lane.b32.xlu0 %v4221, %s4226
        %v4228 = vpop.permute.xlu0 %4227
        %s4230 = sor.u32 256, 16
        %4231 = vbcast.lane.b32.xlu0 %v4221, %s4230
        %v4232 = vpop.permute.xlu0 %4231
        %s4234 = sor.u32 256, 24
        %4235 = vbcast.lane.b32.xlu0 %v4221, %s4234
        %v4236 = vpop.permute.xlu0 %4235
        %s4238 = sor.u32 256, 32
        %4239 = vbcast.lane.b32.xlu0 %v4221, %s4238
        %v4240 = vpop.permute.xlu0 %4239
        %s4242 = sor.u32 256, 40
        %4243 = vbcast.lane.b32.xlu0 %v4221, %s4242
        %v4244 = vpop.permute.xlu0 %4243
        %s4246 = sor.u32 256, 48
        %4247 = vbcast.lane.b32.xlu0 %v4221, %s4246
        %v4248 = vpop.permute.xlu0 %4247
        %s4250 = sor.u32 256, 56
        %4251 = vbcast.lane.b32.xlu0 %v4221, %s4250
        %v4252 = vpop.permute.xlu0 %4251
        %s4254 = sor.u32 256, 64
        %4255 = vbcast.lane.b32.xlu0 %v4221, %s4254
        %v4256 = vpop.permute.xlu0 %4255
        %s4258 = sor.u32 256, 72
        %4259 = vbcast.lane.b32.xlu0 %v4221, %s4258
        %v4260 = vpop.permute.xlu0 %4259
        %s4262 = sor.u32 256, 80
        %4263 = vbcast.lane.b32.xlu0 %v4221, %s4262
        %v4264 = vpop.permute.xlu0 %4263
        %s4266 = sor.u32 256, 88
        %4267 = vbcast.lane.b32.xlu0 %v4221, %s4266
        %v4268 = vpop.permute.xlu0 %4267
        %s4270 = sor.u32 256, 96
        %4271 = vbcast.lane.b32.xlu0 %v4221, %s4270
        %v4272 = vpop.permute.xlu0 %4271
        %s4274 = sor.u32 256, 104
        %4275 = vbcast.lane.b32.xlu0 %v4221, %s4274
        %v4276 = vpop.permute.xlu0 %4275
        %s4278 = sor.u32 256, 112
        %4279 = vbcast.lane.b32.xlu0 %v4221, %s4278
        %v4280 = vpop.permute.xlu0 %4279
        %s4282 = sor.u32 256, 120
        %4283 = vbcast.lane.b32.xlu0 %v4221, %s4282
        %v4284 = vpop.permute.xlu0 %4283
        %v4285 = vlaneseq
        %v4286 = vshrl.u32 %v4285, 7
        %v4287 = vsub.s32 2, %v4286
        %v4288 = vrot.slane %v382, %v4287
        %4290 = vbcast.lane.b32.xlu0 %v4288, 256
        %v4291 = vpop.permute.xlu0 %4290
        %s4293 = sor.u32 256, 8
        %4294 = vbcast.lane.b32.xlu0 %v4288, %s4293
        %v4295 = vpop.permute.xlu0 %4294
        %s4297 = sor.u32 256, 16
        %4298 = vbcast.lane.b32.xlu0 %v4288, %s4297
        %v4299 = vpop.permute.xlu0 %4298
        %s4301 = sor.u32 256, 24
        %4302 = vbcast.lane.b32.xlu0 %v4288, %s4301
        %v4303 = vpop.permute.xlu0 %4302
        %s4305 = sor.u32 256, 32
        %4306 = vbcast.lane.b32.xlu0 %v4288, %s4305
        %v4307 = vpop.permute.xlu0 %4306
        %s4309 = sor.u32 256, 40
        %4310 = vbcast.lane.b32.xlu0 %v4288, %s4309
        %v4311 = vpop.permute.xlu0 %4310
        %s4313 = sor.u32 256, 48
        %4314 = vbcast.lane.b32.xlu0 %v4288, %s4313
        %v4315 = vpop.permute.xlu0 %4314
        %s4317 = sor.u32 256, 56
        %4318 = vbcast.lane.b32.xlu0 %v4288, %s4317
        %v4319 = vpop.permute.xlu0 %4318
        %s4321 = sor.u32 256, 64
        %4322 = vbcast.lane.b32.xlu0 %v4288, %s4321
        %v4323 = vpop.permute.xlu0 %4322
        %s4325 = sor.u32 256, 72
        %4326 = vbcast.lane.b32.xlu0 %v4288, %s4325
        %v4327 = vpop.permute.xlu0 %4326
        %s4329 = sor.u32 256, 80
        %4330 = vbcast.lane.b32.xlu0 %v4288, %s4329
        %v4331 = vpop.permute.xlu0 %4330
        %s4333 = sor.u32 256, 88
        %4334 = vbcast.lane.b32.xlu0 %v4288, %s4333
        %v4335 = vpop.permute.xlu0 %4334
        %s4337 = sor.u32 256, 96
        %4338 = vbcast.lane.b32.xlu0 %v4288, %s4337
        %v4339 = vpop.permute.xlu0 %4338
        %s4341 = sor.u32 256, 104
        %4342 = vbcast.lane.b32.xlu0 %v4288, %s4341
        %v4343 = vpop.permute.xlu0 %4342
        %s4345 = sor.u32 256, 112
        %4346 = vbcast.lane.b32.xlu0 %v4288, %s4345
        %v4347 = vpop.permute.xlu0 %4346
        %s4349 = sor.u32 256, 120
        %4350 = vbcast.lane.b32.xlu0 %v4288, %s4349
        %v4351 = vpop.permute.xlu0 %4350
        %v4352 = vlaneseq
        %v4353 = vshrl.u32 %v4352, 7
        %v4354 = vsub.s32 3, %v4353
        %v4355 = vrot.slane %v382, %v4354
        %4357 = vbcast.lane.b32.xlu0 %v4355, 256
        %v4358 = vpop.permute.xlu0 %4357
        %s4360 = sor.u32 256, 8
        %4361 = vbcast.lane.b32.xlu0 %v4355, %s4360
        %v4362 = vpop.permute.xlu0 %4361
        %s4364 = sor.u32 256, 16
        %4365 = vbcast.lane.b32.xlu0 %v4355, %s4364
        %v4366 = vpop.permute.xlu0 %4365
        %s4368 = sor.u32 256, 24
        %4369 = vbcast.lane.b32.xlu0 %v4355, %s4368
        %v4370 = vpop.permute.xlu0 %4369
        %s4372 = sor.u32 256, 32
        %4373 = vbcast.lane.b32.xlu0 %v4355, %s4372
        %v4374 = vpop.permute.xlu0 %4373
        %s4376 = sor.u32 256, 40
        %4377 = vbcast.lane.b32.xlu0 %v4355, %s4376
        %v4378 = vpop.permute.xlu0 %4377
        %s4380 = sor.u32 256, 48
        %4381 = vbcast.lane.b32.xlu0 %v4355, %s4380
        %v4382 = vpop.permute.xlu0 %4381
        %s4384 = sor.u32 256, 56
        %4385 = vbcast.lane.b32.xlu0 %v4355, %s4384
        %v4386 = vpop.permute.xlu0 %4385
        %s4388 = sor.u32 256, 64
        %4389 = vbcast.lane.b32.xlu0 %v4355, %s4388
        %v4390 = vpop.permute.xlu0 %4389
        %s4392 = sor.u32 256, 72
        %4393 = vbcast.lane.b32.xlu0 %v4355, %s4392
        %v4394 = vpop.permute.xlu0 %4393
        %s4396 = sor.u32 256, 80
        %4397 = vbcast.lane.b32.xlu0 %v4355, %s4396
        %v4398 = vpop.permute.xlu0 %4397
        %s4400 = sor.u32 256, 88
        %4401 = vbcast.lane.b32.xlu0 %v4355, %s4400
        %v4402 = vpop.permute.xlu0 %4401
        %s4404 = sor.u32 256, 96
        %4405 = vbcast.lane.b32.xlu0 %v4355, %s4404
        %v4406 = vpop.permute.xlu0 %4405
        %s4408 = sor.u32 256, 104
        %4409 = vbcast.lane.b32.xlu0 %v4355, %s4408
        %v4410 = vpop.permute.xlu0 %4409
        %s4412 = sor.u32 256, 112
        %4413 = vbcast.lane.b32.xlu0 %v4355, %s4412
        %v4414 = vpop.permute.xlu0 %4413
        %s4416 = sor.u32 256, 120
        %4417 = vbcast.lane.b32.xlu0 %v4355, %s4416
        %v4418 = vpop.permute.xlu0 %4417
        %v4419 = vlaneseq
        %v4420 = vshrl.u32 %v4419, 7
        %v4421 = vsub.s32 4, %v4420
        %v4422 = vrot.slane %v382, %v4421
        %4424 = vbcast.lane.b32.xlu0 %v4422, 256
        %v4425 = vpop.permute.xlu0 %4424
        %s4427 = sor.u32 256, 8
        %4428 = vbcast.lane.b32.xlu0 %v4422, %s4427
        %v4429 = vpop.permute.xlu0 %4428
        %s4431 = sor.u32 256, 16
        %4432 = vbcast.lane.b32.xlu0 %v4422, %s4431
        %v4433 = vpop.permute.xlu0 %4432
        %s4435 = sor.u32 256, 24
        %4436 = vbcast.lane.b32.xlu0 %v4422, %s4435
        %v4437 = vpop.permute.xlu0 %4436
        %s4439 = sor.u32 256, 32
        %4440 = vbcast.lane.b32.xlu0 %v4422, %s4439
        %v4441 = vpop.permute.xlu0 %4440
        %s4443 = sor.u32 256, 40
        %4444 = vbcast.lane.b32.xlu0 %v4422, %s4443
        %v4445 = vpop.permute.xlu0 %4444
        %s4447 = sor.u32 256, 48
        %4448 = vbcast.lane.b32.xlu0 %v4422, %s4447
        %v4449 = vpop.permute.xlu0 %4448
        %s4451 = sor.u32 256, 56
        %4452 = vbcast.lane.b32.xlu0 %v4422, %s4451
        %v4453 = vpop.permute.xlu0 %4452
        %s4455 = sor.u32 256, 64
        %4456 = vbcast.lane.b32.xlu0 %v4422, %s4455
        %v4457 = vpop.permute.xlu0 %4456
        %s4459 = sor.u32 256, 72
        %4460 = vbcast.lane.b32.xlu0 %v4422, %s4459
        %v4461 = vpop.permute.xlu0 %4460
        %s4463 = sor.u32 256, 80
        %4464 = vbcast.lane.b32.xlu0 %v4422, %s4463
        %v4465 = vpop.permute.xlu0 %4464
        %s4467 = sor.u32 256, 88
        %4468 = vbcast.lane.b32.xlu0 %v4422, %s4467
        %v4469 = vpop.permute.xlu0 %4468
        %s4471 = sor.u32 256, 96
        %4472 = vbcast.lane.b32.xlu0 %v4422, %s4471
        %v4473 = vpop.permute.xlu0 %4472
        %s4475 = sor.u32 256, 104
        %4476 = vbcast.lane.b32.xlu0 %v4422, %s4475
        %v4477 = vpop.permute.xlu0 %4476
        %s4479 = sor.u32 256, 112
        %4480 = vbcast.lane.b32.xlu0 %v4422, %s4479
        %v4481 = vpop.permute.xlu0 %4480
        %s4483 = sor.u32 256, 120
        %4484 = vbcast.lane.b32.xlu0 %v4422, %s4483
        %v4485 = vpop.permute.xlu0 %4484
        %v4486 = vlaneseq
        %v4487 = vshrl.u32 %v4486, 7
        %v4488 = vsub.s32 5, %v4487
        %v4489 = vrot.slane %v382, %v4488
        %4491 = vbcast.lane.b32.xlu0 %v4489, 256
        %v4492 = vpop.permute.xlu0 %4491
        %s4494 = sor.u32 256, 8
        %4495 = vbcast.lane.b32.xlu0 %v4489, %s4494
        %v4496 = vpop.permute.xlu0 %4495
        %s4498 = sor.u32 256, 16
        %4499 = vbcast.lane.b32.xlu0 %v4489, %s4498
        %v4500 = vpop.permute.xlu0 %4499
        %s4502 = sor.u32 256, 24
        %4503 = vbcast.lane.b32.xlu0 %v4489, %s4502
        %v4504 = vpop.permute.xlu0 %4503
        %s4506 = sor.u32 256, 32
        %4507 = vbcast.lane.b32.xlu0 %v4489, %s4506
        %v4508 = vpop.permute.xlu0 %4507
        %s4510 = sor.u32 256, 40
        %4511 = vbcast.lane.b32.xlu0 %v4489, %s4510
        %v4512 = vpop.permute.xlu0 %4511
        %s4514 = sor.u32 256, 48
        %4515 = vbcast.lane.b32.xlu0 %v4489, %s4514
        %v4516 = vpop.permute.xlu0 %4515
        %s4518 = sor.u32 256, 56
        %4519 = vbcast.lane.b32.xlu0 %v4489, %s4518
        %v4520 = vpop.permute.xlu0 %4519
        %s4522 = sor.u32 256, 64
        %4523 = vbcast.lane.b32.xlu0 %v4489, %s4522
        %v4524 = vpop.permute.xlu0 %4523
        %s4526 = sor.u32 256, 72
        %4527 = vbcast.lane.b32.xlu0 %v4489, %s4526
        %v4528 = vpop.permute.xlu0 %4527
        %s4530 = sor.u32 256, 80
        %4531 = vbcast.lane.b32.xlu0 %v4489, %s4530
        %v4532 = vpop.permute.xlu0 %4531
        %s4534 = sor.u32 256, 88
        %4535 = vbcast.lane.b32.xlu0 %v4489, %s4534
        %v4536 = vpop.permute.xlu0 %4535
        %s4538 = sor.u32 256, 96
        %4539 = vbcast.lane.b32.xlu0 %v4489, %s4538
        %v4540 = vpop.permute.xlu0 %4539
        %s4542 = sor.u32 256, 104
        %4543 = vbcast.lane.b32.xlu0 %v4489, %s4542
        %v4544 = vpop.permute.xlu0 %4543
        %s4546 = sor.u32 256, 112
        %4547 = vbcast.lane.b32.xlu0 %v4489, %s4546
        %v4548 = vpop.permute.xlu0 %4547
        %s4550 = sor.u32 256, 120
        %4551 = vbcast.lane.b32.xlu0 %v4489, %s4550
        %v4552 = vpop.permute.xlu0 %4551
        %v4553 = vlaneseq
        %v4554 = vshrl.u32 %v4553, 7
        %v4555 = vsub.s32 6, %v4554
        %v4556 = vrot.slane %v382, %v4555
        %4558 = vbcast.lane.b32.xlu0 %v4556, 256
        %v4559 = vpop.permute.xlu0 %4558
        %s4561 = sor.u32 256, 8
        %4562 = vbcast.lane.b32.xlu0 %v4556, %s4561
        %v4563 = vpop.permute.xlu0 %4562
        %s4565 = sor.u32 256, 16
        %4566 = vbcast.lane.b32.xlu0 %v4556, %s4565
        %v4567 = vpop.permute.xlu0 %4566
        %s4569 = sor.u32 256, 24
        %4570 = vbcast.lane.b32.xlu0 %v4556, %s4569
        %v4571 = vpop.permute.xlu0 %4570
        %s4573 = sor.u32 256, 32
        %4574 = vbcast.lane.b32.xlu0 %v4556, %s4573
        %v4575 = vpop.permute.xlu0 %4574
        %s4577 = sor.u32 256, 40
        %4578 = vbcast.lane.b32.xlu0 %v4556, %s4577
        %v4579 = vpop.permute.xlu0 %4578
        %s4581 = sor.u32 256, 48
        %4582 = vbcast.lane.b32.xlu0 %v4556, %s4581
        %v4583 = vpop.permute.xlu0 %4582
        %s4585 = sor.u32 256, 56
        %4586 = vbcast.lane.b32.xlu0 %v4556, %s4585
        %v4587 = vpop.permute.xlu0 %4586
        %s4589 = sor.u32 256, 64
        %4590 = vbcast.lane.b32.xlu0 %v4556, %s4589
        %v4591 = vpop.permute.xlu0 %4590
        %s4593 = sor.u32 256, 72
        %4594 = vbcast.lane.b32.xlu0 %v4556, %s4593
        %v4595 = vpop.permute.xlu0 %4594
        %s4597 = sor.u32 256, 80
        %4598 = vbcast.lane.b32.xlu0 %v4556, %s4597
        %v4599 = vpop.permute.xlu0 %4598
        %s4601 = sor.u32 256, 88
        %4602 = vbcast.lane.b32.xlu0 %v4556, %s4601
        %v4603 = vpop.permute.xlu0 %4602
        %s4605 = sor.u32 256, 96
        %4606 = vbcast.lane.b32.xlu0 %v4556, %s4605
        %v4607 = vpop.permute.xlu0 %4606
        %s4609 = sor.u32 256, 104
        %4610 = vbcast.lane.b32.xlu0 %v4556, %s4609
        %v4611 = vpop.permute.xlu0 %4610
        %s4613 = sor.u32 256, 112
        %4614 = vbcast.lane.b32.xlu0 %v4556, %s4613
        %v4615 = vpop.permute.xlu0 %4614
        %s4617 = sor.u32 256, 120
        %4618 = vbcast.lane.b32.xlu0 %v4556, %s4617
        %v4619 = vpop.permute.xlu0 %4618
        %v4620 = vlaneseq
        %v4621 = vshrl.u32 %v4620, 7
        %v4622 = vsub.s32 7, %v4621
        %v4623 = vrot.slane %v382, %v4622
        %4625 = vbcast.lane.b32.xlu0 %v4623, 256
        %v4626 = vpop.permute.xlu0 %4625
        %s4628 = sor.u32 256, 8
        %4629 = vbcast.lane.b32.xlu0 %v4623, %s4628
        %v4630 = vpop.permute.xlu0 %4629
        %s4632 = sor.u32 256, 16
        %4633 = vbcast.lane.b32.xlu0 %v4623, %s4632
        %v4634 = vpop.permute.xlu0 %4633
        %s4636 = sor.u32 256, 24
        %4637 = vbcast.lane.b32.xlu0 %v4623, %s4636
        %v4638 = vpop.permute.xlu0 %4637
        %s4640 = sor.u32 256, 32
        %4641 = vbcast.lane.b32.xlu0 %v4623, %s4640
        %v4642 = vpop.permute.xlu0 %4641
        %s4644 = sor.u32 256, 40
        %4645 = vbcast.lane.b32.xlu0 %v4623, %s4644
        %v4646 = vpop.permute.xlu0 %4645
        %s4648 = sor.u32 256, 48
        %4649 = vbcast.lane.b32.xlu0 %v4623, %s4648
        %v4650 = vpop.permute.xlu0 %4649
        %s4652 = sor.u32 256, 56
        %4653 = vbcast.lane.b32.xlu0 %v4623, %s4652
        %v4654 = vpop.permute.xlu0 %4653
        %s4656 = sor.u32 256, 64
        %4657 = vbcast.lane.b32.xlu0 %v4623, %s4656
        %v4658 = vpop.permute.xlu0 %4657
        %s4660 = sor.u32 256, 72
        %4661 = vbcast.lane.b32.xlu0 %v4623, %s4660
        %v4662 = vpop.permute.xlu0 %4661
        %s4664 = sor.u32 256, 80
        %4665 = vbcast.lane.b32.xlu0 %v4623, %s4664
        %v4666 = vpop.permute.xlu0 %4665
        %s4668 = sor.u32 256, 88
        %4669 = vbcast.lane.b32.xlu0 %v4623, %s4668
        %v4670 = vpop.permute.xlu0 %4669
        %s4672 = sor.u32 256, 96
        %4673 = vbcast.lane.b32.xlu0 %v4623, %s4672
        %v4674 = vpop.permute.xlu0 %4673
        %s4676 = sor.u32 256, 104
        %4677 = vbcast.lane.b32.xlu0 %v4623, %s4676
        %v4678 = vpop.permute.xlu0 %4677
        %s4680 = sor.u32 256, 112
        %4681 = vbcast.lane.b32.xlu0 %v4623, %s4680
        %v4682 = vpop.permute.xlu0 %4681
        %s4684 = sor.u32 256, 120
        %4685 = vbcast.lane.b32.xlu0 %v4623, %s4684
        %v4686 = vpop.permute.xlu0 %4685
        %v4687 = vmul.f32 %v405, %v383
        %v4688 = vmul.f32 %v409, %v384
        %v4689 = vmul.f32 %v413, %v385
        %v4690 = vmul.f32 %v417, %v386
        %v4691 = vmul.f32 %v421, %v387
        %v4692 = vmul.f32 %v425, %v388
        %v4693 = vmul.f32 %v429, %v389
        %v4694 = vmul.f32 %v433, %v390
        %v4695 = vmul.f32 %v437, %v391
        %v4696 = vmul.f32 %v441, %v392
        %v4697 = vmul.f32 %v445, %v393
        %v4698 = vmul.f32 %v449, %v394
        %v4699 = vmul.f32 %v453, %v395
        %v4700 = vmul.f32 %v457, %v396
        %v4701 = vmul.f32 %v461, %v397
        %v4702 = vmul.f32 %v465, %v398
        %v4703 = vmul.f32 %v472, %v383
        %v4704 = vmul.f32 %v476, %v384
        %v4705 = vmul.f32 %v480, %v385
        %v4706 = vmul.f32 %v484, %v386
        %v4707 = vmul.f32 %v488, %v387
        %v4708 = vmul.f32 %v492, %v388
        %v4709 = vmul.f32 %v496, %v389
        %v4710 = vmul.f32 %v500, %v390
        %v4711 = vmul.f32 %v504, %v391
        %v4712 = vmul.f32 %v508, %v392
        %v4713 = vmul.f32 %v512, %v393
        %v4714 = vmul.f32 %v516, %v394
        %v4715 = vmul.f32 %v520, %v395
        %v4716 = vmul.f32 %v524, %v396
        %v4717 = vmul.f32 %v528, %v397
        %v4718 = vmul.f32 %v532, %v398
        %v4719 = vmul.f32 %v539, %v383
        %v4720 = vmul.f32 %v543, %v384
        %v4721 = vmul.f32 %v547, %v385
        %v4722 = vmul.f32 %v551, %v386
        %v4723 = vmul.f32 %v555, %v387
        %v4724 = vmul.f32 %v559, %v388
        %v4725 = vmul.f32 %v563, %v389
        %v4726 = vmul.f32 %v567, %v390
        %v4727 = vmul.f32 %v571, %v391
        %v4728 = vmul.f32 %v575, %v392
        %v4729 = vmul.f32 %v579, %v393
        %v4730 = vmul.f32 %v583, %v394
        %v4731 = vmul.f32 %v587, %v395
        %v4732 = vmul.f32 %v591, %v396
        %v4733 = vmul.f32 %v595, %v397
        %v4734 = vmul.f32 %v599, %v398
        %v4735 = vmul.f32 %v606, %v383
        %v4736 = vmul.f32 %v610, %v384
        %v4737 = vmul.f32 %v614, %v385
        %v4738 = vmul.f32 %v618, %v386
        %v4739 = vmul.f32 %v622, %v387
        %v4740 = vmul.f32 %v626, %v388
        %v4741 = vmul.f32 %v630, %v389
        %v4742 = vmul.f32 %v634, %v390
        %v4743 = vmul.f32 %v638, %v391
        %v4744 = vmul.f32 %v642, %v392
        %v4745 = vmul.f32 %v646, %v393
        %v4746 = vmul.f32 %v650, %v394
        %v4747 = vmul.f32 %v654, %v395
        %v4748 = vmul.f32 %v658, %v396
        %v4749 = vmul.f32 %v662, %v397
        %v4750 = vmul.f32 %v666, %v398
        %v4751 = vmul.f32 %v673, %v383
        %v4752 = vmul.f32 %v677, %v384
        %v4753 = vmul.f32 %v681, %v385
        %v4754 = vmul.f32 %v685, %v386
        %v4755 = vmul.f32 %v689, %v387
        %v4756 = vmul.f32 %v693, %v388
        %v4757 = vmul.f32 %v697, %v389
        %v4758 = vmul.f32 %v701, %v390
        %v4759 = vmul.f32 %v705, %v391
        %v4760 = vmul.f32 %v709, %v392
        %v4761 = vmul.f32 %v713, %v393
        %v4762 = vmul.f32 %v717, %v394
        %v4763 = vmul.f32 %v721, %v395
        %v4764 = vmul.f32 %v725, %v396
        %v4765 = vmul.f32 %v729, %v397
        %v4766 = vmul.f32 %v733, %v398
        %v4767 = vmul.f32 %v740, %v383
        %v4768 = vmul.f32 %v744, %v384
        %v4769 = vmul.f32 %v748, %v385
        %v4770 = vmul.f32 %v752, %v386
        %v4771 = vmul.f32 %v756, %v387
        %v4772 = vmul.f32 %v760, %v388
        %v4773 = vmul.f32 %v764, %v389
        %v4774 = vmul.f32 %v768, %v390
        %v4775 = vmul.f32 %v772, %v391
        %v4776 = vmul.f32 %v776, %v392
        %v4777 = vmul.f32 %v780, %v393
        %v4778 = vmul.f32 %v784, %v394
        %v4779 = vmul.f32 %v788, %v395
        %v4780 = vmul.f32 %v792, %v396
        %v4781 = vmul.f32 %v796, %v397
        %v4782 = vmul.f32 %v800, %v398
        %v4783 = vmul.f32 %v807, %v383
        %v4784 = vmul.f32 %v811, %v384
        %v4785 = vmul.f32 %v815, %v385
        %v4786 = vmul.f32 %v819, %v386
        %v4787 = vmul.f32 %v823, %v387
        %v4788 = vmul.f32 %v827, %v388
        %v4789 = vmul.f32 %v831, %v389
        %v4790 = vmul.f32 %v835, %v390
        %v4791 = vmul.f32 %v839, %v391
        %v4792 = vmul.f32 %v843, %v392
        %v4793 = vmul.f32 %v847, %v393
        %v4794 = vmul.f32 %v851, %v394
        %v4795 = vmul.f32 %v855, %v395
        %v4796 = vmul.f32 %v859, %v396
        %v4797 = vmul.f32 %v863, %v397
        %v4798 = vmul.f32 %v867, %v398
        %v4799 = vmul.f32 %v874, %v383
        %v4800 = vmul.f32 %v878, %v384
        %v4801 = vmul.f32 %v882, %v385
        %v4802 = vmul.f32 %v886, %v386
        %v4803 = vmul.f32 %v890, %v387
        %v4804 = vmul.f32 %v894, %v388
        %v4805 = vmul.f32 %v898, %v389
        %v4806 = vmul.f32 %v902, %v390
        %v4807 = vmul.f32 %v906, %v391
        %v4808 = vmul.f32 %v910, %v392
        %v4809 = vmul.f32 %v914, %v393
        %v4810 = vmul.f32 %v918, %v394
        %v4811 = vmul.f32 %v922, %v395
        %v4812 = vmul.f32 %v926, %v396
        %v4813 = vmul.f32 %v930, %v397
        %v4814 = vmul.f32 %v934, %v398
        %v4815 = vmul.f32 %v941, %v383
        %v4816 = vmul.f32 %v945, %v384
        %v4817 = vmul.f32 %v949, %v385
        %v4818 = vmul.f32 %v953, %v386
        %v4819 = vmul.f32 %v957, %v387
        %v4820 = vmul.f32 %v961, %v388
        %v4821 = vmul.f32 %v965, %v389
        %v4822 = vmul.f32 %v969, %v390
        %v4823 = vmul.f32 %v973, %v391
        %v4824 = vmul.f32 %v977, %v392
        %v4825 = vmul.f32 %v981, %v393
        %v4826 = vmul.f32 %v985, %v394
        %v4827 = vmul.f32 %v989, %v395
        %v4828 = vmul.f32 %v993, %v396
        %v4829 = vmul.f32 %v997, %v397
        %v4830 = vmul.f32 %v1001, %v398
        %v4831 = vmul.f32 %v1008, %v383
        %v4832 = vmul.f32 %v1012, %v384
        %v4833 = vmul.f32 %v1016, %v385
        %v4834 = vmul.f32 %v1020, %v386
        %v4835 = vmul.f32 %v1024, %v387
        %v4836 = vmul.f32 %v1028, %v388
        %v4837 = vmul.f32 %v1032, %v389
        %v4838 = vmul.f32 %v1036, %v390
        %v4839 = vmul.f32 %v1040, %v391
        %v4840 = vmul.f32 %v1044, %v392
        %v4841 = vmul.f32 %v1048, %v393
        %v4842 = vmul.f32 %v1052, %v394
        %v4843 = vmul.f32 %v1056, %v395
        %v4844 = vmul.f32 %v1060, %v396
        %v4845 = vmul.f32 %v1064, %v397
        %v4846 = vmul.f32 %v1068, %v398
        %v4847 = vmul.f32 %v1075, %v383
        %v4848 = vmul.f32 %v1079, %v384
        %v4849 = vmul.f32 %v1083, %v385
        %v4850 = vmul.f32 %v1087, %v386
        %v4851 = vmul.f32 %v1091, %v387
        %v4852 = vmul.f32 %v1095, %v388
        %v4853 = vmul.f32 %v1099, %v389
        %v4854 = vmul.f32 %v1103, %v390
        %v4855 = vmul.f32 %v1107, %v391
        %v4856 = vmul.f32 %v1111, %v392
        %v4857 = vmul.f32 %v1115, %v393
        %v4858 = vmul.f32 %v1119, %v394
        %v4859 = vmul.f32 %v1123, %v395
        %v4860 = vmul.f32 %v1127, %v396
        %v4861 = vmul.f32 %v1131, %v397
        %v4862 = vmul.f32 %v1135, %v398
        %v4863 = vmul.f32 %v1142, %v383
        %v4864 = vmul.f32 %v1146, %v384
        %v4865 = vmul.f32 %v1150, %v385
        %v4866 = vmul.f32 %v1154, %v386
        %v4867 = vmul.f32 %v1158, %v387
        %v4868 = vmul.f32 %v1162, %v388
        %v4869 = vmul.f32 %v1166, %v389
        %v4870 = vmul.f32 %v1170, %v390
        %v4871 = vmul.f32 %v1174, %v391
        %v4872 = vmul.f32 %v1178, %v392
        %v4873 = vmul.f32 %v1182, %v393
        %v4874 = vmul.f32 %v1186, %v394
        %v4875 = vmul.f32 %v1190, %v395
        %v4876 = vmul.f32 %v1194, %v396
        %v4877 = vmul.f32 %v1198, %v397
        %v4878 = vmul.f32 %v1202, %v398
        %v4879 = vmul.f32 %v1209, %v383
        %v4880 = vmul.f32 %v1213, %v384
        %v4881 = vmul.f32 %v1217, %v385
        %v4882 = vmul.f32 %v1221, %v386
        %v4883 = vmul.f32 %v1225, %v387
        %v4884 = vmul.f32 %v1229, %v388
        %v4885 = vmul.f32 %v1233, %v389
        %v4886 = vmul.f32 %v1237, %v390
        %v4887 = vmul.f32 %v1241, %v391
        %v4888 = vmul.f32 %v1245, %v392
        %v4889 = vmul.f32 %v1249, %v393
        %v4890 = vmul.f32 %v1253, %v394
        %v4891 = vmul.f32 %v1257, %v395
        %v4892 = vmul.f32 %v1261, %v396
        %v4893 = vmul.f32 %v1265, %v397
        %v4894 = vmul.f32 %v1269, %v398
        %v4895 = vmul.f32 %v1276, %v383
        %v4896 = vmul.f32 %v1280, %v384
        %v4897 = vmul.f32 %v1284, %v385
        %v4898 = vmul.f32 %v1288, %v386
        %v4899 = vmul.f32 %v1292, %v387
        %v4900 = vmul.f32 %v1296, %v388
        %v4901 = vmul.f32 %v1300, %v389
        %v4902 = vmul.f32 %v1304, %v390
        %v4903 = vmul.f32 %v1308, %v391
        %v4904 = vmul.f32 %v1312, %v392
        %v4905 = vmul.f32 %v1316, %v393
        %v4906 = vmul.f32 %v1320, %v394
        %v4907 = vmul.f32 %v1324, %v395
        %v4908 = vmul.f32 %v1328, %v396
        %v4909 = vmul.f32 %v1332, %v397
        %v4910 = vmul.f32 %v1336, %v398
        %v4911 = vmul.f32 %v1343, %v383
        %v4912 = vmul.f32 %v1347, %v384
        %v4913 = vmul.f32 %v1351, %v385
        %v4914 = vmul.f32 %v1355, %v386
        %v4915 = vmul.f32 %v1359, %v387
        %v4916 = vmul.f32 %v1363, %v388
        %v4917 = vmul.f32 %v1367, %v389
        %v4918 = vmul.f32 %v1371, %v390
        %v4919 = vmul.f32 %v1375, %v391
        %v4920 = vmul.f32 %v1379, %v392
        %v4921 = vmul.f32 %v1383, %v393
        %v4922 = vmul.f32 %v1387, %v394
        %v4923 = vmul.f32 %v1391, %v395
        %v4924 = vmul.f32 %v1395, %v396
        %v4925 = vmul.f32 %v1399, %v397
        %v4926 = vmul.f32 %v1403, %v398
        %v4927 = vmul.f32 %v1410, %v383
        %v4928 = vmul.f32 %v1414, %v384
        %v4929 = vmul.f32 %v1418, %v385
        %v4930 = vmul.f32 %v1422, %v386
        %v4931 = vmul.f32 %v1426, %v387
        %v4932 = vmul.f32 %v1430, %v388
        %v4933 = vmul.f32 %v1434, %v389
        %v4934 = vmul.f32 %v1438, %v390
        %v4935 = vmul.f32 %v1442, %v391
        %v4936 = vmul.f32 %v1446, %v392
        %v4937 = vmul.f32 %v1450, %v393
        %v4938 = vmul.f32 %v1454, %v394
        %v4939 = vmul.f32 %v1458, %v395
        %v4940 = vmul.f32 %v1462, %v396
        %v4941 = vmul.f32 %v1466, %v397
        %v4942 = vmul.f32 %v1470, %v398
        %v4943 = vmul.f32 %v1477, %v383
        %v4944 = vmul.f32 %v1481, %v384
        %v4945 = vmul.f32 %v1485, %v385
        %v4946 = vmul.f32 %v1489, %v386
        %v4947 = vmul.f32 %v1493, %v387
        %v4948 = vmul.f32 %v1497, %v388
        %v4949 = vmul.f32 %v1501, %v389
        %v4950 = vmul.f32 %v1505, %v390
        %v4951 = vmul.f32 %v1509, %v391
        %v4952 = vmul.f32 %v1513, %v392
        %v4953 = vmul.f32 %v1517, %v393
        %v4954 = vmul.f32 %v1521, %v394
        %v4955 = vmul.f32 %v1525, %v395
        %v4956 = vmul.f32 %v1529, %v396
        %v4957 = vmul.f32 %v1533, %v397
        %v4958 = vmul.f32 %v1537, %v398
        %v4959 = vmul.f32 %v1544, %v383
        %v4960 = vmul.f32 %v1548, %v384
        %v4961 = vmul.f32 %v1552, %v385
        %v4962 = vmul.f32 %v1556, %v386
        %v4963 = vmul.f32 %v1560, %v387
        %v4964 = vmul.f32 %v1564, %v388
        %v4965 = vmul.f32 %v1568, %v389
        %v4966 = vmul.f32 %v1572, %v390
        %v4967 = vmul.f32 %v1576, %v391
        %v4968 = vmul.f32 %v1580, %v392
        %v4969 = vmul.f32 %v1584, %v393
        %v4970 = vmul.f32 %v1588, %v394
        %v4971 = vmul.f32 %v1592, %v395
        %v4972 = vmul.f32 %v1596, %v396
        %v4973 = vmul.f32 %v1600, %v397
        %v4974 = vmul.f32 %v1604, %v398
        %v4975 = vmul.f32 %v1611, %v383
        %v4976 = vmul.f32 %v1615, %v384
        %v4977 = vmul.f32 %v1619, %v385
        %v4978 = vmul.f32 %v1623, %v386
        %v4979 = vmul.f32 %v1627, %v387
        %v4980 = vmul.f32 %v1631, %v388
        %v4981 = vmul.f32 %v1635, %v389
        %v4982 = vmul.f32 %v1639, %v390
        %v4983 = vmul.f32 %v1643, %v391
        %v4984 = vmul.f32 %v1647, %v392
        %v4985 = vmul.f32 %v1651, %v393
        %v4986 = vmul.f32 %v1655, %v394
        %v4987 = vmul.f32 %v1659, %v395
        %v4988 = vmul.f32 %v1663, %v396
        %v4989 = vmul.f32 %v1667, %v397
        %v4990 = vmul.f32 %v1671, %v398
        %v4991 = vmul.f32 %v1678, %v383
        %v4992 = vmul.f32 %v1682, %v384
        %v4993 = vmul.f32 %v1686, %v385
        %v4994 = vmul.f32 %v1690, %v386
        %v4995 = vmul.f32 %v1694, %v387
        %v4996 = vmul.f32 %v1698, %v388
        %v4997 = vmul.f32 %v1702, %v389
        %v4998 = vmul.f32 %v1706, %v390
        %v4999 = vmul.f32 %v1710, %v391
        %v5000 = vmul.f32 %v1714, %v392
        %v5001 = vmul.f32 %v1718, %v393
        %v5002 = vmul.f32 %v1722, %v394
        %v5003 = vmul.f32 %v1726, %v395
        %v5004 = vmul.f32 %v1730, %v396
        %v5005 = vmul.f32 %v1734, %v397
        %v5006 = vmul.f32 %v1738, %v398
        %v5007 = vmul.f32 %v1745, %v383
        %v5008 = vmul.f32 %v1749, %v384
        %v5009 = vmul.f32 %v1753, %v385
        %v5010 = vmul.f32 %v1757, %v386
        %v5011 = vmul.f32 %v1761, %v387
        %v5012 = vmul.f32 %v1765, %v388
        %v5013 = vmul.f32 %v1769, %v389
        %v5014 = vmul.f32 %v1773, %v390
        %v5015 = vmul.f32 %v1777, %v391
        %v5016 = vmul.f32 %v1781, %v392
        %v5017 = vmul.f32 %v1785, %v393
        %v5018 = vmul.f32 %v1789, %v394
        %v5019 = vmul.f32 %v1793, %v395
        %v5020 = vmul.f32 %v1797, %v396
        %v5021 = vmul.f32 %v1801, %v397
        %v5022 = vmul.f32 %v1805, %v398
        %v5023 = vmul.f32 %v1812, %v383
        %v5024 = vmul.f32 %v1816, %v384
        %v5025 = vmul.f32 %v1820, %v385
        %v5026 = vmul.f32 %v1824, %v386
        %v5027 = vmul.f32 %v1828, %v387
        %v5028 = vmul.f32 %v1832, %v388
        %v5029 = vmul.f32 %v1836, %v389
        %v5030 = vmul.f32 %v1840, %v390
        %v5031 = vmul.f32 %v1844, %v391
        %v5032 = vmul.f32 %v1848, %v392
        %v5033 = vmul.f32 %v1852, %v393
        %v5034 = vmul.f32 %v1856, %v394
        %v5035 = vmul.f32 %v1860, %v395
        %v5036 = vmul.f32 %v1864, %v396
        %v5037 = vmul.f32 %v1868, %v397
        %v5038 = vmul.f32 %v1872, %v398
        %v5039 = vmul.f32 %v1879, %v383
        %v5040 = vmul.f32 %v1883, %v384
        %v5041 = vmul.f32 %v1887, %v385
        %v5042 = vmul.f32 %v1891, %v386
        %v5043 = vmul.f32 %v1895, %v387
        %v5044 = vmul.f32 %v1899, %v388
        %v5045 = vmul.f32 %v1903, %v389
        %v5046 = vmul.f32 %v1907, %v390
        %v5047 = vmul.f32 %v1911, %v391
        %v5048 = vmul.f32 %v1915, %v392
        %v5049 = vmul.f32 %v1919, %v393
        %v5050 = vmul.f32 %v1923, %v394
        %v5051 = vmul.f32 %v1927, %v395
        %v5052 = vmul.f32 %v1931, %v396
        %v5053 = vmul.f32 %v1935, %v397
        %v5054 = vmul.f32 %v1939, %v398
        %v5055 = vmul.f32 %v1946, %v383
        %v5056 = vmul.f32 %v1950, %v384
        %v5057 = vmul.f32 %v1954, %v385
        %v5058 = vmul.f32 %v1958, %v386
        %v5059 = vmul.f32 %v1962, %v387
        %v5060 = vmul.f32 %v1966, %v388
        %v5061 = vmul.f32 %v1970, %v389
        %v5062 = vmul.f32 %v1974, %v390
        %v5063 = vmul.f32 %v1978, %v391
        %v5064 = vmul.f32 %v1982, %v392
        %v5065 = vmul.f32 %v1986, %v393
        %v5066 = vmul.f32 %v1990, %v394
        %v5067 = vmul.f32 %v1994, %v395
        %v5068 = vmul.f32 %v1998, %v396
        %v5069 = vmul.f32 %v2002, %v397
        %v5070 = vmul.f32 %v2006, %v398
        %v5071 = vmul.f32 %v2013, %v383
        %v5072 = vmul.f32 %v2017, %v384
        %v5073 = vmul.f32 %v2021, %v385
        %v5074 = vmul.f32 %v2025, %v386
        %v5075 = vmul.f32 %v2029, %v387
        %v5076 = vmul.f32 %v2033, %v388
        %v5077 = vmul.f32 %v2037, %v389
        %v5078 = vmul.f32 %v2041, %v390
        %v5079 = vmul.f32 %v2045, %v391
        %v5080 = vmul.f32 %v2049, %v392
        %v5081 = vmul.f32 %v2053, %v393
        %v5082 = vmul.f32 %v2057, %v394
        %v5083 = vmul.f32 %v2061, %v395
        %v5084 = vmul.f32 %v2065, %v396
        %v5085 = vmul.f32 %v2069, %v397
        %v5086 = vmul.f32 %v2073, %v398
        %v5087 = vmul.f32 %v2080, %v383
        %v5088 = vmul.f32 %v2084, %v384
        %v5089 = vmul.f32 %v2088, %v385
        %v5090 = vmul.f32 %v2092, %v386
        %v5091 = vmul.f32 %v2096, %v387
        %v5092 = vmul.f32 %v2100, %v388
        %v5093 = vmul.f32 %v2104, %v389
        %v5094 = vmul.f32 %v2108, %v390
        %v5095 = vmul.f32 %v2112, %v391
        %v5096 = vmul.f32 %v2116, %v392
        %v5097 = vmul.f32 %v2120, %v393
        %v5098 = vmul.f32 %v2124, %v394
        %v5099 = vmul.f32 %v2128, %v395
        %v5100 = vmul.f32 %v2132, %v396
        %v5101 = vmul.f32 %v2136, %v397
        %v5102 = vmul.f32 %v2140, %v398
        %v5103 = vmul.f32 %v2147, %v383
        %v5104 = vmul.f32 %v2151, %v384
        %v5105 = vmul.f32 %v2155, %v385
        %v5106 = vmul.f32 %v2159, %v386
        %v5107 = vmul.f32 %v2163, %v387
        %v5108 = vmul.f32 %v2167, %v388
        %v5109 = vmul.f32 %v2171, %v389
        %v5110 = vmul.f32 %v2175, %v390
        %v5111 = vmul.f32 %v2179, %v391
        %v5112 = vmul.f32 %v2183, %v392
        %v5113 = vmul.f32 %v2187, %v393
        %v5114 = vmul.f32 %v2191, %v394
        %v5115 = vmul.f32 %v2195, %v395
        %v5116 = vmul.f32 %v2199, %v396
        %v5117 = vmul.f32 %v2203, %v397
        %v5118 = vmul.f32 %v2207, %v398
        %v5119 = vmul.f32 %v2214, %v383
        %v5120 = vmul.f32 %v2218, %v384
        %v5121 = vmul.f32 %v2222, %v385
        %v5122 = vmul.f32 %v2226, %v386
        %v5123 = vmul.f32 %v2230, %v387
        %v5124 = vmul.f32 %v2234, %v388
        %v5125 = vmul.f32 %v2238, %v389
        %v5126 = vmul.f32 %v2242, %v390
        %v5127 = vmul.f32 %v2246, %v391
        %v5128 = vmul.f32 %v2250, %v392
        %v5129 = vmul.f32 %v2254, %v393
        %v5130 = vmul.f32 %v2258, %v394
        %v5131 = vmul.f32 %v2262, %v395
        %v5132 = vmul.f32 %v2266, %v396
        %v5133 = vmul.f32 %v2270, %v397
        %v5134 = vmul.f32 %v2274, %v398
        %v5135 = vmul.f32 %v2281, %v383
        %v5136 = vmul.f32 %v2285, %v384
        %v5137 = vmul.f32 %v2289, %v385
        %v5138 = vmul.f32 %v2293, %v386
        %v5139 = vmul.f32 %v2297, %v387
        %v5140 = vmul.f32 %v2301, %v388
        %v5141 = vmul.f32 %v2305, %v389
        %v5142 = vmul.f32 %v2309, %v390
        %v5143 = vmul.f32 %v2313, %v391
        %v5144 = vmul.f32 %v2317, %v392
        %v5145 = vmul.f32 %v2321, %v393
        %v5146 = vmul.f32 %v2325, %v394
        %v5147 = vmul.f32 %v2329, %v395
        %v5148 = vmul.f32 %v2333, %v396
        %v5149 = vmul.f32 %v2337, %v397
        %v5150 = vmul.f32 %v2341, %v398
        %v5151 = vmul.f32 %v2348, %v383
        %v5152 = vmul.f32 %v2352, %v384
        %v5153 = vmul.f32 %v2356, %v385
        %v5154 = vmul.f32 %v2360, %v386
        %v5155 = vmul.f32 %v2364, %v387
        %v5156 = vmul.f32 %v2368, %v388
        %v5157 = vmul.f32 %v2372, %v389
        %v5158 = vmul.f32 %v2376, %v390
        %v5159 = vmul.f32 %v2380, %v391
        %v5160 = vmul.f32 %v2384, %v392
        %v5161 = vmul.f32 %v2388, %v393
        %v5162 = vmul.f32 %v2392, %v394
        %v5163 = vmul.f32 %v2396, %v395
        %v5164 = vmul.f32 %v2400, %v396
        %v5165 = vmul.f32 %v2404, %v397
        %v5166 = vmul.f32 %v2408, %v398
        %v5167 = vmul.f32 %v2415, %v383
        %v5168 = vmul.f32 %v2419, %v384
        %v5169 = vmul.f32 %v2423, %v385
        %v5170 = vmul.f32 %v2427, %v386
        %v5171 = vmul.f32 %v2431, %v387
        %v5172 = vmul.f32 %v2435, %v388
        %v5173 = vmul.f32 %v2439, %v389
        %v5174 = vmul.f32 %v2443, %v390
        %v5175 = vmul.f32 %v2447, %v391
        %v5176 = vmul.f32 %v2451, %v392
        %v5177 = vmul.f32 %v2455, %v393
        %v5178 = vmul.f32 %v2459, %v394
        %v5179 = vmul.f32 %v2463, %v395
        %v5180 = vmul.f32 %v2467, %v396
        %v5181 = vmul.f32 %v2471, %v397
        %v5182 = vmul.f32 %v2475, %v398
        %v5183 = vmul.f32 %v2482, %v383
        %v5184 = vmul.f32 %v2486, %v384
        %v5185 = vmul.f32 %v2490, %v385
        %v5186 = vmul.f32 %v2494, %v386
        %v5187 = vmul.f32 %v2498, %v387
        %v5188 = vmul.f32 %v2502, %v388
        %v5189 = vmul.f32 %v2506, %v389
        %v5190 = vmul.f32 %v2510, %v390
        %v5191 = vmul.f32 %v2514, %v391
        %v5192 = vmul.f32 %v2518, %v392
        %v5193 = vmul.f32 %v2522, %v393
        %v5194 = vmul.f32 %v2526, %v394
        %v5195 = vmul.f32 %v2530, %v395
        %v5196 = vmul.f32 %v2534, %v396
        %v5197 = vmul.f32 %v2538, %v397
        %v5198 = vmul.f32 %v2542, %v398
        %v5199 = vmul.f32 %v2549, %v383
        %v5200 = vmul.f32 %v2553, %v384
        %v5201 = vmul.f32 %v2557, %v385
        %v5202 = vmul.f32 %v2561, %v386
        %v5203 = vmul.f32 %v2565, %v387
        %v5204 = vmul.f32 %v2569, %v388
        %v5205 = vmul.f32 %v2573, %v389
        %v5206 = vmul.f32 %v2577, %v390
        %v5207 = vmul.f32 %v2581, %v391
        %v5208 = vmul.f32 %v2585, %v392
        %v5209 = vmul.f32 %v2589, %v393
        %v5210 = vmul.f32 %v2593, %v394
        %v5211 = vmul.f32 %v2597, %v395
        %v5212 = vmul.f32 %v2601, %v396
        %v5213 = vmul.f32 %v2605, %v397
        %v5214 = vmul.f32 %v2609, %v398
        %v5215 = vmul.f32 %v2616, %v383
        %v5216 = vmul.f32 %v2620, %v384
        %v5217 = vmul.f32 %v2624, %v385
        %v5218 = vmul.f32 %v2628, %v386
        %v5219 = vmul.f32 %v2632, %v387
        %v5220 = vmul.f32 %v2636, %v388
        %v5221 = vmul.f32 %v2640, %v389
        %v5222 = vmul.f32 %v2644, %v390
        %v5223 = vmul.f32 %v2648, %v391
        %v5224 = vmul.f32 %v2652, %v392
        %v5225 = vmul.f32 %v2656, %v393
        %v5226 = vmul.f32 %v2660, %v394
        %v5227 = vmul.f32 %v2664, %v395
        %v5228 = vmul.f32 %v2668, %v396
        %v5229 = vmul.f32 %v2672, %v397
        %v5230 = vmul.f32 %v2676, %v398
        %v5231 = vmul.f32 %v2683, %v383
        %v5232 = vmul.f32 %v2687, %v384
        %v5233 = vmul.f32 %v2691, %v385
        %v5234 = vmul.f32 %v2695, %v386
        %v5235 = vmul.f32 %v2699, %v387
        %v5236 = vmul.f32 %v2703, %v388
        %v5237 = vmul.f32 %v2707, %v389
        %v5238 = vmul.f32 %v2711, %v390
        %v5239 = vmul.f32 %v2715, %v391
        %v5240 = vmul.f32 %v2719, %v392
        %v5241 = vmul.f32 %v2723, %v393
        %v5242 = vmul.f32 %v2727, %v394
        %v5243 = vmul.f32 %v2731, %v395
        %v5244 = vmul.f32 %v2735, %v396
        %v5245 = vmul.f32 %v2739, %v397
        %v5246 = vmul.f32 %v2743, %v398
        %v5247 = vmul.f32 %v2750, %v383
        %v5248 = vmul.f32 %v2754, %v384
        %v5249 = vmul.f32 %v2758, %v385
        %v5250 = vmul.f32 %v2762, %v386
        %v5251 = vmul.f32 %v2766, %v387
        %v5252 = vmul.f32 %v2770, %v388
        %v5253 = vmul.f32 %v2774, %v389
        %v5254 = vmul.f32 %v2778, %v390
        %v5255 = vmul.f32 %v2782, %v391
        %v5256 = vmul.f32 %v2786, %v392
        %v5257 = vmul.f32 %v2790, %v393
        %v5258 = vmul.f32 %v2794, %v394
        %v5259 = vmul.f32 %v2798, %v395
        %v5260 = vmul.f32 %v2802, %v396
        %v5261 = vmul.f32 %v2806, %v397
        %v5262 = vmul.f32 %v2810, %v398
        %v5263 = vmul.f32 %v2817, %v383
        %v5264 = vmul.f32 %v2821, %v384
        %v5265 = vmul.f32 %v2825, %v385
        %v5266 = vmul.f32 %v2829, %v386
        %v5267 = vmul.f32 %v2833, %v387
        %v5268 = vmul.f32 %v2837, %v388
        %v5269 = vmul.f32 %v2841, %v389
        %v5270 = vmul.f32 %v2845, %v390
        %v5271 = vmul.f32 %v2849, %v391
        %v5272 = vmul.f32 %v2853, %v392
        %v5273 = vmul.f32 %v2857, %v393
        %v5274 = vmul.f32 %v2861, %v394
        %v5275 = vmul.f32 %v2865, %v395
        %v5276 = vmul.f32 %v2869, %v396
        %v5277 = vmul.f32 %v2873, %v397
        %v5278 = vmul.f32 %v2877, %v398
        %v5279 = vmul.f32 %v2884, %v383
        %v5280 = vmul.f32 %v2888, %v384
        %v5281 = vmul.f32 %v2892, %v385
        %v5282 = vmul.f32 %v2896, %v386
        %v5283 = vmul.f32 %v2900, %v387
        %v5284 = vmul.f32 %v2904, %v388
        %v5285 = vmul.f32 %v2908, %v389
        %v5286 = vmul.f32 %v2912, %v390
        %v5287 = vmul.f32 %v2916, %v391
        %v5288 = vmul.f32 %v2920, %v392
        %v5289 = vmul.f32 %v2924, %v393
        %v5290 = vmul.f32 %v2928, %v394
        %v5291 = vmul.f32 %v2932, %v395
        %v5292 = vmul.f32 %v2936, %v396
        %v5293 = vmul.f32 %v2940, %v397
        %v5294 = vmul.f32 %v2944, %v398
        %v5295 = vmul.f32 %v2951, %v383
        %v5296 = vmul.f32 %v2955, %v384
        %v5297 = vmul.f32 %v2959, %v385
        %v5298 = vmul.f32 %v2963, %v386
        %v5299 = vmul.f32 %v2967, %v387
        %v5300 = vmul.f32 %v2971, %v388
        %v5301 = vmul.f32 %v2975, %v389
        %v5302 = vmul.f32 %v2979, %v390
        %v5303 = vmul.f32 %v2983, %v391
        %v5304 = vmul.f32 %v2987, %v392
        %v5305 = vmul.f32 %v2991, %v393
        %v5306 = vmul.f32 %v2995, %v394
        %v5307 = vmul.f32 %v2999, %v395
        %v5308 = vmul.f32 %v3003, %v396
        %v5309 = vmul.f32 %v3007, %v397
        %v5310 = vmul.f32 %v3011, %v398
        %v5311 = vmul.f32 %v3018, %v383
        %v5312 = vmul.f32 %v3022, %v384
        %v5313 = vmul.f32 %v3026, %v385
        %v5314 = vmul.f32 %v3030, %v386
        %v5315 = vmul.f32 %v3034, %v387
        %v5316 = vmul.f32 %v3038, %v388
        %v5317 = vmul.f32 %v3042, %v389
        %v5318 = vmul.f32 %v3046, %v390
        %v5319 = vmul.f32 %v3050, %v391
        %v5320 = vmul.f32 %v3054, %v392
        %v5321 = vmul.f32 %v3058, %v393
        %v5322 = vmul.f32 %v3062, %v394
        %v5323 = vmul.f32 %v3066, %v395
        %v5324 = vmul.f32 %v3070, %v396
        %v5325 = vmul.f32 %v3074, %v397
        %v5326 = vmul.f32 %v3078, %v398
        %v5327 = vmul.f32 %v3085, %v383
        %v5328 = vmul.f32 %v3089, %v384
        %v5329 = vmul.f32 %v3093, %v385
        %v5330 = vmul.f32 %v3097, %v386
        %v5331 = vmul.f32 %v3101, %v387
        %v5332 = vmul.f32 %v3105, %v388
        %v5333 = vmul.f32 %v3109, %v389
        %v5334 = vmul.f32 %v3113, %v390
        %v5335 = vmul.f32 %v3117, %v391
        %v5336 = vmul.f32 %v3121, %v392
        %v5337 = vmul.f32 %v3125, %v393
        %v5338 = vmul.f32 %v3129, %v394
        %v5339 = vmul.f32 %v3133, %v395
        %v5340 = vmul.f32 %v3137, %v396
        %v5341 = vmul.f32 %v3141, %v397
        %v5342 = vmul.f32 %v3145, %v398
        %v5343 = vmul.f32 %v3152, %v383
        %v5344 = vmul.f32 %v3156, %v384
        %v5345 = vmul.f32 %v3160, %v385
        %v5346 = vmul.f32 %v3164, %v386
        %v5347 = vmul.f32 %v3168, %v387
        %v5348 = vmul.f32 %v3172, %v388
        %v5349 = vmul.f32 %v3176, %v389
        %v5350 = vmul.f32 %v3180, %v390
        %v5351 = vmul.f32 %v3184, %v391
        %v5352 = vmul.f32 %v3188, %v392
        %v5353 = vmul.f32 %v3192, %v393
        %v5354 = vmul.f32 %v3196, %v394
        %v5355 = vmul.f32 %v3200, %v395
        %v5356 = vmul.f32 %v3204, %v396
        %v5357 = vmul.f32 %v3208, %v397
        %v5358 = vmul.f32 %v3212, %v398
        %v5359 = vmul.f32 %v3219, %v383
        %v5360 = vmul.f32 %v3223, %v384
        %v5361 = vmul.f32 %v3227, %v385
        %v5362 = vmul.f32 %v3231, %v386
        %v5363 = vmul.f32 %v3235, %v387
        %v5364 = vmul.f32 %v3239, %v388
        %v5365 = vmul.f32 %v3243, %v389
        %v5366 = vmul.f32 %v3247, %v390
        %v5367 = vmul.f32 %v3251, %v391
        %v5368 = vmul.f32 %v3255, %v392
        %v5369 = vmul.f32 %v3259, %v393
        %v5370 = vmul.f32 %v3263, %v394
        %v5371 = vmul.f32 %v3267, %v395
        %v5372 = vmul.f32 %v3271, %v396
        %v5373 = vmul.f32 %v3275, %v397
        %v5374 = vmul.f32 %v3279, %v398
        %v5375 = vmul.f32 %v3286, %v383
        %v5376 = vmul.f32 %v3290, %v384
        %v5377 = vmul.f32 %v3294, %v385
        %v5378 = vmul.f32 %v3298, %v386
        %v5379 = vmul.f32 %v3302, %v387
        %v5380 = vmul.f32 %v3306, %v388
        %v5381 = vmul.f32 %v3310, %v389
        %v5382 = vmul.f32 %v3314, %v390
        %v5383 = vmul.f32 %v3318, %v391
        %v5384 = vmul.f32 %v3322, %v392
        %v5385 = vmul.f32 %v3326, %v393
        %v5386 = vmul.f32 %v3330, %v394
        %v5387 = vmul.f32 %v3334, %v395
        %v5388 = vmul.f32 %v3338, %v396
        %v5389 = vmul.f32 %v3342, %v397
        %v5390 = vmul.f32 %v3346, %v398
        %v5391 = vmul.f32 %v3353, %v383
        %v5392 = vmul.f32 %v3357, %v384
        %v5393 = vmul.f32 %v3361, %v385
        %v5394 = vmul.f32 %v3365, %v386
        %v5395 = vmul.f32 %v3369, %v387
        %v5396 = vmul.f32 %v3373, %v388
        %v5397 = vmul.f32 %v3377, %v389
        %v5398 = vmul.f32 %v3381, %v390
        %v5399 = vmul.f32 %v3385, %v391
        %v5400 = vmul.f32 %v3389, %v392
        %v5401 = vmul.f32 %v3393, %v393
        %v5402 = vmul.f32 %v3397, %v394
        %v5403 = vmul.f32 %v3401, %v395
        %v5404 = vmul.f32 %v3405, %v396
        %v5405 = vmul.f32 %v3409, %v397
        %v5406 = vmul.f32 %v3413, %v398
        %v5407 = vmul.f32 %v3420, %v383
        %v5408 = vmul.f32 %v3424, %v384
        %v5409 = vmul.f32 %v3428, %v385
        %v5410 = vmul.f32 %v3432, %v386
        %v5411 = vmul.f32 %v3436, %v387
        %v5412 = vmul.f32 %v3440, %v388
        %v5413 = vmul.f32 %v3444, %v389
        %v5414 = vmul.f32 %v3448, %v390
        %v5415 = vmul.f32 %v3452, %v391
        %v5416 = vmul.f32 %v3456, %v392
        %v5417 = vmul.f32 %v3460, %v393
        %v5418 = vmul.f32 %v3464, %v394
        %v5419 = vmul.f32 %v3468, %v395
        %v5420 = vmul.f32 %v3472, %v396
        %v5421 = vmul.f32 %v3476, %v397
        %v5422 = vmul.f32 %v3480, %v398
        %v5423 = vmul.f32 %v3487, %v383
        %v5424 = vmul.f32 %v3491, %v384
        %v5425 = vmul.f32 %v3495, %v385
        %v5426 = vmul.f32 %v3499, %v386
        %v5427 = vmul.f32 %v3503, %v387
        %v5428 = vmul.f32 %v3507, %v388
        %v5429 = vmul.f32 %v3511, %v389
        %v5430 = vmul.f32 %v3515, %v390
        %v5431 = vmul.f32 %v3519, %v391
        %v5432 = vmul.f32 %v3523, %v392
        %v5433 = vmul.f32 %v3527, %v393
        %v5434 = vmul.f32 %v3531, %v394
        %v5435 = vmul.f32 %v3535, %v395
        %v5436 = vmul.f32 %v3539, %v396
        %v5437 = vmul.f32 %v3543, %v397
        %v5438 = vmul.f32 %v3547, %v398
        %v5439 = vmul.f32 %v3554, %v383
        %v5440 = vmul.f32 %v3558, %v384
        %v5441 = vmul.f32 %v3562, %v385
        %v5442 = vmul.f32 %v3566, %v386
        %v5443 = vmul.f32 %v3570, %v387
        %v5444 = vmul.f32 %v3574, %v388
        %v5445 = vmul.f32 %v3578, %v389
        %v5446 = vmul.f32 %v3582, %v390
        %v5447 = vmul.f32 %v3586, %v391
        %v5448 = vmul.f32 %v3590, %v392
        %v5449 = vmul.f32 %v3594, %v393
        %v5450 = vmul.f32 %v3598, %v394
        %v5451 = vmul.f32 %v3602, %v395
        %v5452 = vmul.f32 %v3606, %v396
        %v5453 = vmul.f32 %v3610, %v397
        %v5454 = vmul.f32 %v3614, %v398
        %v5455 = vmul.f32 %v3621, %v383
        %v5456 = vmul.f32 %v3625, %v384
        %v5457 = vmul.f32 %v3629, %v385
        %v5458 = vmul.f32 %v3633, %v386
        %v5459 = vmul.f32 %v3637, %v387
        %v5460 = vmul.f32 %v3641, %v388
        %v5461 = vmul.f32 %v3645, %v389
        %v5462 = vmul.f32 %v3649, %v390
        %v5463 = vmul.f32 %v3653, %v391
        %v5464 = vmul.f32 %v3657, %v392
        %v5465 = vmul.f32 %v3661, %v393
        %v5466 = vmul.f32 %v3665, %v394
        %v5467 = vmul.f32 %v3669, %v395
        %v5468 = vmul.f32 %v3673, %v396
        %v5469 = vmul.f32 %v3677, %v397
        %v5470 = vmul.f32 %v3681, %v398
        %v5471 = vmul.f32 %v3688, %v383
        %v5472 = vmul.f32 %v3692, %v384
        %v5473 = vmul.f32 %v3696, %v385
        %v5474 = vmul.f32 %v3700, %v386
        %v5475 = vmul.f32 %v3704, %v387
        %v5476 = vmul.f32 %v3708, %v388
        %v5477 = vmul.f32 %v3712, %v389
        %v5478 = vmul.f32 %v3716, %v390
        %v5479 = vmul.f32 %v3720, %v391
        %v5480 = vmul.f32 %v3724, %v392
        %v5481 = vmul.f32 %v3728, %v393
        %v5482 = vmul.f32 %v3732, %v394
        %v5483 = vmul.f32 %v3736, %v395
        %v5484 = vmul.f32 %v3740, %v396
        %v5485 = vmul.f32 %v3744, %v397
        %v5486 = vmul.f32 %v3748, %v398
        %v5487 = vmul.f32 %v3755, %v383
        %v5488 = vmul.f32 %v3759, %v384
        %v5489 = vmul.f32 %v3763, %v385
        %v5490 = vmul.f32 %v3767, %v386
        %v5491 = vmul.f32 %v3771, %v387
        %v5492 = vmul.f32 %v3775, %v388
        %v5493 = vmul.f32 %v3779, %v389
        %v5494 = vmul.f32 %v3783, %v390
        %v5495 = vmul.f32 %v3787, %v391
        %v5496 = vmul.f32 %v3791, %v392
        %v5497 = vmul.f32 %v3795, %v393
        %v5498 = vmul.f32 %v3799, %v394
        %v5499 = vmul.f32 %v3803, %v395
        %v5500 = vmul.f32 %v3807, %v396
        %v5501 = vmul.f32 %v3811, %v397
        %v5502 = vmul.f32 %v3815, %v398
        %v5503 = vmul.f32 %v3822, %v383
        %v5504 = vmul.f32 %v3826, %v384
        %v5505 = vmul.f32 %v3830, %v385
        %v5506 = vmul.f32 %v3834, %v386
        %v5507 = vmul.f32 %v3838, %v387
        %v5508 = vmul.f32 %v3842, %v388
        %v5509 = vmul.f32 %v3846, %v389
        %v5510 = vmul.f32 %v3850, %v390
        %v5511 = vmul.f32 %v3854, %v391
        %v5512 = vmul.f32 %v3858, %v392
        %v5513 = vmul.f32 %v3862, %v393
        %v5514 = vmul.f32 %v3866, %v394
        %v5515 = vmul.f32 %v3870, %v395
        %v5516 = vmul.f32 %v3874, %v396
        %v5517 = vmul.f32 %v3878, %v397
        %v5518 = vmul.f32 %v3882, %v398
        %v5519 = vmul.f32 %v3889, %v383
        %v5520 = vmul.f32 %v3893, %v384
        %v5521 = vmul.f32 %v3897, %v385
        %v5522 = vmul.f32 %v3901, %v386
        %v5523 = vmul.f32 %v3905, %v387
        %v5524 = vmul.f32 %v3909, %v388
        %v5525 = vmul.f32 %v3913, %v389
        %v5526 = vmul.f32 %v3917, %v390
        %v5527 = vmul.f32 %v3921, %v391
        %v5528 = vmul.f32 %v3925, %v392
        %v5529 = vmul.f32 %v3929, %v393
        %v5530 = vmul.f32 %v3933, %v394
        %v5531 = vmul.f32 %v3937, %v395
        %v5532 = vmul.f32 %v3941, %v396
        %v5533 = vmul.f32 %v3945, %v397
        %v5534 = vmul.f32 %v3949, %v398
        %v5535 = vmul.f32 %v3956, %v383
        %v5536 = vmul.f32 %v3960, %v384
        %v5537 = vmul.f32 %v3964, %v385
        %v5538 = vmul.f32 %v3968, %v386
        %v5539 = vmul.f32 %v3972, %v387
        %v5540 = vmul.f32 %v3976, %v388
        %v5541 = vmul.f32 %v3980, %v389
        %v5542 = vmul.f32 %v3984, %v390
        %v5543 = vmul.f32 %v3988, %v391
        %v5544 = vmul.f32 %v3992, %v392
        %v5545 = vmul.f32 %v3996, %v393
        %v5546 = vmul.f32 %v4000, %v394
        %v5547 = vmul.f32 %v4004, %v395
        %v5548 = vmul.f32 %v4008, %v396
        %v5549 = vmul.f32 %v4012, %v397
        %v5550 = vmul.f32 %v4016, %v398
        %v5551 = vmul.f32 %v4023, %v383
        %v5552 = vmul.f32 %v4027, %v384
        %v5553 = vmul.f32 %v4031, %v385
        %v5554 = vmul.f32 %v4035, %v386
        %v5555 = vmul.f32 %v4039, %v387
        %v5556 = vmul.f32 %v4043, %v388
        %v5557 = vmul.f32 %v4047, %v389
        %v5558 = vmul.f32 %v4051, %v390
        %v5559 = vmul.f32 %v4055, %v391
        %v5560 = vmul.f32 %v4059, %v392
        %v5561 = vmul.f32 %v4063, %v393
        %v5562 = vmul.f32 %v4067, %v394
        %v5563 = vmul.f32 %v4071, %v395
        %v5564 = vmul.f32 %v4075, %v396
        %v5565 = vmul.f32 %v4079, %v397
        %v5566 = vmul.f32 %v4083, %v398
        %v5567 = vmul.f32 %v4090, %v383
        %v5568 = vmul.f32 %v4094, %v384
        %v5569 = vmul.f32 %v4098, %v385
        %v5570 = vmul.f32 %v4102, %v386
        %v5571 = vmul.f32 %v4106, %v387
        %v5572 = vmul.f32 %v4110, %v388
        %v5573 = vmul.f32 %v4114, %v389
        %v5574 = vmul.f32 %v4118, %v390
        %v5575 = vmul.f32 %v4122, %v391
        %v5576 = vmul.f32 %v4126, %v392
        %v5577 = vmul.f32 %v4130, %v393
        %v5578 = vmul.f32 %v4134, %v394
        %v5579 = vmul.f32 %v4138, %v395
        %v5580 = vmul.f32 %v4142, %v396
        %v5581 = vmul.f32 %v4146, %v397
        %v5582 = vmul.f32 %v4150, %v398
        %v5583 = vmul.f32 %v4157, %v383
        %v5584 = vmul.f32 %v4161, %v384
        %v5585 = vmul.f32 %v4165, %v385
        %v5586 = vmul.f32 %v4169, %v386
        %v5587 = vmul.f32 %v4173, %v387
        %v5588 = vmul.f32 %v4177, %v388
        %v5589 = vmul.f32 %v4181, %v389
        %v5590 = vmul.f32 %v4185, %v390
        %v5591 = vmul.f32 %v4189, %v391
        %v5592 = vmul.f32 %v4193, %v392
        %v5593 = vmul.f32 %v4197, %v393
        %v5594 = vmul.f32 %v4201, %v394
        %v5595 = vmul.f32 %v4205, %v395
        %v5596 = vmul.f32 %v4209, %v396
        %v5597 = vmul.f32 %v4213, %v397
        %v5598 = vmul.f32 %v4217, %v398
        %v5599 = vmul.f32 %v4224, %v383
        %v5600 = vmul.f32 %v4228, %v384
        %v5601 = vmul.f32 %v4232, %v385
        %v5602 = vmul.f32 %v4236, %v386
        %v5603 = vmul.f32 %v4240, %v387
        %v5604 = vmul.f32 %v4244, %v388
        %v5605 = vmul.f32 %v4248, %v389
        %v5606 = vmul.f32 %v4252, %v390
        %v5607 = vmul.f32 %v4256, %v391
        %v5608 = vmul.f32 %v4260, %v392
        %v5609 = vmul.f32 %v4264, %v393
        %v5610 = vmul.f32 %v4268, %v394
        %v5611 = vmul.f32 %v4272, %v395
        %v5612 = vmul.f32 %v4276, %v396
        %v5613 = vmul.f32 %v4280, %v397
        %v5614 = vmul.f32 %v4284, %v398
        %v5615 = vmul.f32 %v4291, %v383
        %v5616 = vmul.f32 %v4295, %v384
        %v5617 = vmul.f32 %v4299, %v385
        %v5618 = vmul.f32 %v4303, %v386
        %v5619 = vmul.f32 %v4307, %v387
        %v5620 = vmul.f32 %v4311, %v388
        %v5621 = vmul.f32 %v4315, %v389
        %v5622 = vmul.f32 %v4319, %v390
        %v5623 = vmul.f32 %v4323, %v391
        %v5624 = vmul.f32 %v4327, %v392
        %v5625 = vmul.f32 %v4331, %v393
        %v5626 = vmul.f32 %v4335, %v394
        %v5627 = vmul.f32 %v4339, %v395
        %v5628 = vmul.f32 %v4343, %v396
        %v5629 = vmul.f32 %v4347, %v397
        %v5630 = vmul.f32 %v4351, %v398
        %v5631 = vmul.f32 %v4358, %v383
        %v5632 = vmul.f32 %v4362, %v384
        %v5633 = vmul.f32 %v4366, %v385
        %v5634 = vmul.f32 %v4370, %v386
        %v5635 = vmul.f32 %v4374, %v387
        %v5636 = vmul.f32 %v4378, %v388
        %v5637 = vmul.f32 %v4382, %v389
        %v5638 = vmul.f32 %v4386, %v390
        %v5639 = vmul.f32 %v4390, %v391
        %v5640 = vmul.f32 %v4394, %v392
        %v5641 = vmul.f32 %v4398, %v393
        %v5642 = vmul.f32 %v4402, %v394
        %v5643 = vmul.f32 %v4406, %v395
        %v5644 = vmul.f32 %v4410, %v396
        %v5645 = vmul.f32 %v4414, %v397
        %v5646 = vmul.f32 %v4418, %v398
        %v5647 = vmul.f32 %v4425, %v383
        %v5648 = vmul.f32 %v4429, %v384
        %v5649 = vmul.f32 %v4433, %v385
        %v5650 = vmul.f32 %v4437, %v386
        %v5651 = vmul.f32 %v4441, %v387
        %v5652 = vmul.f32 %v4445, %v388
        %v5653 = vmul.f32 %v4449, %v389
        %v5654 = vmul.f32 %v4453, %v390
        %v5655 = vmul.f32 %v4457, %v391
        %v5656 = vmul.f32 %v4461, %v392
        %v5657 = vmul.f32 %v4465, %v393
        %v5658 = vmul.f32 %v4469, %v394
        %v5659 = vmul.f32 %v4473, %v395
        %v5660 = vmul.f32 %v4477, %v396
        %v5661 = vmul.f32 %v4481, %v397
        %v5662 = vmul.f32 %v4485, %v398
        %v5663 = vmul.f32 %v4492, %v383
        %v5664 = vmul.f32 %v4496, %v384
        %v5665 = vmul.f32 %v4500, %v385
        %v5666 = vmul.f32 %v4504, %v386
        %v5667 = vmul.f32 %v4508, %v387
        %v5668 = vmul.f32 %v4512, %v388
        %v5669 = vmul.f32 %v4516, %v389
        %v5670 = vmul.f32 %v4520, %v390
        %v5671 = vmul.f32 %v4524, %v391
        %v5672 = vmul.f32 %v4528, %v392
        %v5673 = vmul.f32 %v4532, %v393
        %v5674 = vmul.f32 %v4536, %v394
        %v5675 = vmul.f32 %v4540, %v395
        %v5676 = vmul.f32 %v4544, %v396
        %v5677 = vmul.f32 %v4548, %v397
        %v5678 = vmul.f32 %v4552, %v398
        %v5679 = vmul.f32 %v4559, %v383
        %v5680 = vmul.f32 %v4563, %v384
        %v5681 = vmul.f32 %v4567, %v385
        %v5682 = vmul.f32 %v4571, %v386
        %v5683 = vmul.f32 %v4575, %v387
        %v5684 = vmul.f32 %v4579, %v388
        %v5685 = vmul.f32 %v4583, %v389
        %v5686 = vmul.f32 %v4587, %v390
        %v5687 = vmul.f32 %v4591, %v391
        %v5688 = vmul.f32 %v4595, %v392
        %v5689 = vmul.f32 %v4599, %v393
        %v5690 = vmul.f32 %v4603, %v394
        %v5691 = vmul.f32 %v4607, %v395
        %v5692 = vmul.f32 %v4611, %v396
        %v5693 = vmul.f32 %v4615, %v397
        %v5694 = vmul.f32 %v4619, %v398
        %v5695 = vmul.f32 %v4626, %v383
        %v5696 = vmul.f32 %v4630, %v384
        %v5697 = vmul.f32 %v4634, %v385
        %v5698 = vmul.f32 %v4638, %v386
        %v5699 = vmul.f32 %v4642, %v387
        %v5700 = vmul.f32 %v4646, %v388
        %v5701 = vmul.f32 %v4650, %v389
        %v5702 = vmul.f32 %v4654, %v390
        %v5703 = vmul.f32 %v4658, %v391
        %v5704 = vmul.f32 %v4662, %v392
        %v5705 = vmul.f32 %v4666, %v393
        %v5706 = vmul.f32 %v4670, %v394
        %v5707 = vmul.f32 %v4674, %v395
        %v5708 = vmul.f32 %v4678, %v396
        %v5709 = vmul.f32 %v4682, %v397
        %v5710 = vmul.f32 %v4686, %v398
        %v5711 = vld [vmem:[#allocation2] sm:$0xff]
        %v5712 = vld [vmem:[#allocation2 + $0x8] sm:$0xff]
        %v5713 = vld [vmem:[#allocation2 + $0x10] sm:$0xff]
        %v5714 = vld [vmem:[#allocation2 + $0x18] sm:$0xff]
        %v5715 = vld [vmem:[#allocation2 + $0x20] sm:$0xff]
        %v5716 = vld [vmem:[#allocation2 + $0x28] sm:$0xff]
        %v5717 = vld [vmem:[#allocation2 + $0x30] sm:$0xff]
        %v5718 = vld [vmem:[#allocation2 + $0x38] sm:$0xff]
        %v5719 = vmax.f32 %v4687, %v4688
        %v5720 = vmax.f32 %v5719, %v4689
        %v5721 = vmax.f32 %v5720, %v4690
        %v5722 = vmax.f32 %v5721, %v4691
        %v5723 = vmax.f32 %v5722, %v4692
        %v5724 = vmax.f32 %v5723, %v4693
        %v5725 = vmax.f32 %v5724, %v4694
        %v5726 = vmax.f32 %v5725, %v4695
        %v5727 = vmax.f32 %v5726, %v4696
        %v5728 = vmax.f32 %v5727, %v4697
        %v5729 = vmax.f32 %v5728, %v4698
        %v5730 = vmax.f32 %v5729, %v4699
        %v5731 = vmax.f32 %v5730, %v4700
        %v5732 = vmax.f32 %v5731, %v4701
        %v5733 = vmax.f32 %v5732, %v4702
        %v5734 = vrot.slane %v5733, 4
        %v5735 = vmax.f32 %v5733, %v5734
        %v5736 = vrot.slane %v5735, 2
        %v5737 = vmax.f32 %v5735, %v5736
        %v5738 = vrot.slane %v5737, 1
        %v5739 = vmax.f32 %v5737, %v5738
        %v5740 = vmax.f32 %v4703, %v4704
        %v5741 = vmax.f32 %v5740, %v4705
        %v5742 = vmax.f32 %v5741, %v4706
        %v5743 = vmax.f32 %v5742, %v4707
        %v5744 = vmax.f32 %v5743, %v4708
        %v5745 = vmax.f32 %v5744, %v4709
        %v5746 = vmax.f32 %v5745, %v4710
        %v5747 = vmax.f32 %v5746, %v4711
        %v5748 = vmax.f32 %v5747, %v4712
        %v5749 = vmax.f32 %v5748, %v4713
        %v5750 = vmax.f32 %v5749, %v4714
        %v5751 = vmax.f32 %v5750, %v4715
        %v5752 = vmax.f32 %v5751, %v4716
        %v5753 = vmax.f32 %v5752, %v4717
        %v5754 = vmax.f32 %v5753, %v4718
        %v5755 = vrot.slane %v5754, 4
        %v5756 = vmax.f32 %v5754, %v5755
        %v5757 = vrot.slane %v5756, 2
        %v5758 = vmax.f32 %v5756, %v5757
        %v5759 = vrot.slane %v5758, 1
        %v5760 = vmax.f32 %v5758, %v5759
        %v5761 = vmax.f32 %v4719, %v4720
        %v5762 = vmax.f32 %v5761, %v4721
        %v5763 = vmax.f32 %v5762, %v4722
        %v5764 = vmax.f32 %v5763, %v4723
        %v5765 = vmax.f32 %v5764, %v4724
        %v5766 = vmax.f32 %v5765, %v4725
        %v5767 = vmax.f32 %v5766, %v4726
        %v5768 = vmax.f32 %v5767, %v4727
        %v5769 = vmax.f32 %v5768, %v4728
        %v5770 = vmax.f32 %v5769, %v4729
        %v5771 = vmax.f32 %v5770, %v4730
        %v5772 = vmax.f32 %v5771, %v4731
        %v5773 = vmax.f32 %v5772, %v4732
        %v5774 = vmax.f32 %v5773, %v4733
        %v5775 = vmax.f32 %v5774, %v4734
        %v5776 = vrot.slane %v5775, 4
        %v5777 = vmax.f32 %v5775, %v5776
        %v5778 = vrot.slane %v5777, 2
        %v5779 = vmax.f32 %v5777, %v5778
        %v5780 = vrot.slane %v5779, 1
        %v5781 = vmax.f32 %v5779, %v5780
        %v5782 = vmax.f32 %v4735, %v4736
        %v5783 = vmax.f32 %v5782, %v4737
        %v5784 = vmax.f32 %v5783, %v4738
        %v5785 = vmax.f32 %v5784, %v4739
        %v5786 = vmax.f32 %v5785, %v4740
        %v5787 = vmax.f32 %v5786, %v4741
        %v5788 = vmax.f32 %v5787, %v4742
        %v5789 = vmax.f32 %v5788, %v4743
        %v5790 = vmax.f32 %v5789, %v4744
        %v5791 = vmax.f32 %v5790, %v4745
        %v5792 = vmax.f32 %v5791, %v4746
        %v5793 = vmax.f32 %v5792, %v4747
        %v5794 = vmax.f32 %v5793, %v4748
        %v5795 = vmax.f32 %v5794, %v4749
        %v5796 = vmax.f32 %v5795, %v4750
        %v5797 = vrot.slane %v5796, 4
        %v5798 = vmax.f32 %v5796, %v5797
        %v5799 = vrot.slane %v5798, 2
        %v5800 = vmax.f32 %v5798, %v5799
        %v5801 = vrot.slane %v5800, 1
        %v5802 = vmax.f32 %v5800, %v5801
        %v5803 = vmax.f32 %v4751, %v4752
        %v5804 = vmax.f32 %v5803, %v4753
        %v5805 = vmax.f32 %v5804, %v4754
        %v5806 = vmax.f32 %v5805, %v4755
        %v5807 = vmax.f32 %v5806, %v4756
        %v5808 = vmax.f32 %v5807, %v4757
        %v5809 = vmax.f32 %v5808, %v4758
        %v5810 = vmax.f32 %v5809, %v4759
        %v5811 = vmax.f32 %v5810, %v4760
        %v5812 = vmax.f32 %v5811, %v4761
        %v5813 = vmax.f32 %v5812, %v4762
        %v5814 = vmax.f32 %v5813, %v4763
        %v5815 = vmax.f32 %v5814, %v4764
        %v5816 = vmax.f32 %v5815, %v4765
        %v5817 = vmax.f32 %v5816, %v4766
        %v5818 = vrot.slane %v5817, 4
        %v5819 = vmax.f32 %v5817, %v5818
        %v5820 = vrot.slane %v5819, 2
        %v5821 = vmax.f32 %v5819, %v5820
        %v5822 = vrot.slane %v5821, 1
        %v5823 = vmax.f32 %v5821, %v5822
        %v5824 = vmax.f32 %v4767, %v4768
        %v5825 = vmax.f32 %v5824, %v4769
        %v5826 = vmax.f32 %v5825, %v4770
        %v5827 = vmax.f32 %v5826, %v4771
        %v5828 = vmax.f32 %v5827, %v4772
        %v5829 = vmax.f32 %v5828, %v4773
        %v5830 = vmax.f32 %v5829, %v4774
        %v5831 = vmax.f32 %v5830, %v4775
        %v5832 = vmax.f32 %v5831, %v4776
        %v5833 = vmax.f32 %v5832, %v4777
        %v5834 = vmax.f32 %v5833, %v4778
        %v5835 = vmax.f32 %v5834, %v4779
        %v5836 = vmax.f32 %v5835, %v4780
        %v5837 = vmax.f32 %v5836, %v4781
        %v5838 = vmax.f32 %v5837, %v4782
        %v5839 = vrot.slane %v5838, 4
        %v5840 = vmax.f32 %v5838, %v5839
        %v5841 = vrot.slane %v5840, 2
        %v5842 = vmax.f32 %v5840, %v5841
        %v5843 = vrot.slane %v5842, 1
        %v5844 = vmax.f32 %v5842, %v5843
        %v5845 = vmax.f32 %v4783, %v4784
        %v5846 = vmax.f32 %v5845, %v4785
        %v5847 = vmax.f32 %v5846, %v4786
        %v5848 = vmax.f32 %v5847, %v4787
        %v5849 = vmax.f32 %v5848, %v4788
        %v5850 = vmax.f32 %v5849, %v4789
        %v5851 = vmax.f32 %v5850, %v4790
        %v5852 = vmax.f32 %v5851, %v4791
        %v5853 = vmax.f32 %v5852, %v4792
        %v5854 = vmax.f32 %v5853, %v4793
        %v5855 = vmax.f32 %v5854, %v4794
        %v5856 = vmax.f32 %v5855, %v4795
        %v5857 = vmax.f32 %v5856, %v4796
        %v5858 = vmax.f32 %v5857, %v4797
        %v5859 = vmax.f32 %v5858, %v4798
        %v5860 = vrot.slane %v5859, 4
        %v5861 = vmax.f32 %v5859, %v5860
        %v5862 = vrot.slane %v5861, 2
        %v5863 = vmax.f32 %v5861, %v5862
        %v5864 = vrot.slane %v5863, 1
        %v5865 = vmax.f32 %v5863, %v5864
        %v5866 = vmax.f32 %v4799, %v4800
        %v5867 = vmax.f32 %v5866, %v4801
        %v5868 = vmax.f32 %v5867, %v4802
        %v5869 = vmax.f32 %v5868, %v4803
        %v5870 = vmax.f32 %v5869, %v4804
        %v5871 = vmax.f32 %v5870, %v4805
        %v5872 = vmax.f32 %v5871, %v4806
        %v5873 = vmax.f32 %v5872, %v4807
        %v5874 = vmax.f32 %v5873, %v4808
        %v5875 = vmax.f32 %v5874, %v4809
        %v5876 = vmax.f32 %v5875, %v4810
        %v5877 = vmax.f32 %v5876, %v4811
        %v5878 = vmax.f32 %v5877, %v4812
        %v5879 = vmax.f32 %v5878, %v4813
        %v5880 = vmax.f32 %v5879, %v4814
        %v5881 = vrot.slane %v5880, 4
        %v5882 = vmax.f32 %v5880, %v5881
        %v5883 = vrot.slane %v5882, 2
        %v5884 = vmax.f32 %v5882, %v5883
        %v5885 = vrot.slane %v5884, 1
        %v5886 = vmax.f32 %v5884, %v5885
        %v5887 = vmax.f32 %v4815, %v4816
        %v5888 = vmax.f32 %v5887, %v4817
        %v5889 = vmax.f32 %v5888, %v4818
        %v5890 = vmax.f32 %v5889, %v4819
        %v5891 = vmax.f32 %v5890, %v4820
        %v5892 = vmax.f32 %v5891, %v4821
        %v5893 = vmax.f32 %v5892, %v4822
        %v5894 = vmax.f32 %v5893, %v4823
        %v5895 = vmax.f32 %v5894, %v4824
        %v5896 = vmax.f32 %v5895, %v4825
        %v5897 = vmax.f32 %v5896, %v4826
        %v5898 = vmax.f32 %v5897, %v4827
        %v5899 = vmax.f32 %v5898, %v4828
        %v5900 = vmax.f32 %v5899, %v4829
        %v5901 = vmax.f32 %v5900, %v4830
        %v5902 = vrot.slane %v5901, 4
        %v5903 = vmax.f32 %v5901, %v5902
        %v5904 = vrot.slane %v5903, 2
        %v5905 = vmax.f32 %v5903, %v5904
        %v5906 = vrot.slane %v5905, 1
        %v5907 = vmax.f32 %v5905, %v5906
        %v5908 = vmax.f32 %v4831, %v4832
        %v5909 = vmax.f32 %v5908, %v4833
        %v5910 = vmax.f32 %v5909, %v4834
        %v5911 = vmax.f32 %v5910, %v4835
        %v5912 = vmax.f32 %v5911, %v4836
        %v5913 = vmax.f32 %v5912, %v4837
        %v5914 = vmax.f32 %v5913, %v4838
        %v5915 = vmax.f32 %v5914, %v4839
        %v5916 = vmax.f32 %v5915, %v4840
        %v5917 = vmax.f32 %v5916, %v4841
        %v5918 = vmax.f32 %v5917, %v4842
        %v5919 = vmax.f32 %v5918, %v4843
        %v5920 = vmax.f32 %v5919, %v4844
        %v5921 = vmax.f32 %v5920, %v4845
        %v5922 = vmax.f32 %v5921, %v4846
        %v5923 = vrot.slane %v5922, 4
        %v5924 = vmax.f32 %v5922, %v5923
        %v5925 = vrot.slane %v5924, 2
        %v5926 = vmax.f32 %v5924, %v5925
        %v5927 = vrot.slane %v5926, 1
        %v5928 = vmax.f32 %v5926, %v5927
        %v5929 = vmax.f32 %v4847, %v4848
        %v5930 = vmax.f32 %v5929, %v4849
        %v5931 = vmax.f32 %v5930, %v4850
        %v5932 = vmax.f32 %v5931, %v4851
        %v5933 = vmax.f32 %v5932, %v4852
        %v5934 = vmax.f32 %v5933, %v4853
        %v5935 = vmax.f32 %v5934, %v4854
        %v5936 = vmax.f32 %v5935, %v4855
        %v5937 = vmax.f32 %v5936, %v4856
        %v5938 = vmax.f32 %v5937, %v4857
        %v5939 = vmax.f32 %v5938, %v4858
        %v5940 = vmax.f32 %v5939, %v4859
        %v5941 = vmax.f32 %v5940, %v4860
        %v5942 = vmax.f32 %v5941, %v4861
        %v5943 = vmax.f32 %v5942, %v4862
        %v5944 = vrot.slane %v5943, 4
        %v5945 = vmax.f32 %v5943, %v5944
        %v5946 = vrot.slane %v5945, 2
        %v5947 = vmax.f32 %v5945, %v5946
        %v5948 = vrot.slane %v5947, 1
        %v5949 = vmax.f32 %v5947, %v5948
        %v5950 = vmax.f32 %v4863, %v4864
        %v5951 = vmax.f32 %v5950, %v4865
        %v5952 = vmax.f32 %v5951, %v4866
        %v5953 = vmax.f32 %v5952, %v4867
        %v5954 = vmax.f32 %v5953, %v4868
        %v5955 = vmax.f32 %v5954, %v4869
        %v5956 = vmax.f32 %v5955, %v4870
        %v5957 = vmax.f32 %v5956, %v4871
        %v5958 = vmax.f32 %v5957, %v4872
        %v5959 = vmax.f32 %v5958, %v4873
        %v5960 = vmax.f32 %v5959, %v4874
        %v5961 = vmax.f32 %v5960, %v4875
        %v5962 = vmax.f32 %v5961, %v4876
        %v5963 = vmax.f32 %v5962, %v4877
        %v5964 = vmax.f32 %v5963, %v4878
        %v5965 = vrot.slane %v5964, 4
        %v5966 = vmax.f32 %v5964, %v5965
        %v5967 = vrot.slane %v5966, 2
        %v5968 = vmax.f32 %v5966, %v5967
        %v5969 = vrot.slane %v5968, 1
        %v5970 = vmax.f32 %v5968, %v5969
        %v5971 = vmax.f32 %v4879, %v4880
        %v5972 = vmax.f32 %v5971, %v4881
        %v5973 = vmax.f32 %v5972, %v4882
        %v5974 = vmax.f32 %v5973, %v4883
        %v5975 = vmax.f32 %v5974, %v4884
        %v5976 = vmax.f32 %v5975, %v4885
        %v5977 = vmax.f32 %v5976, %v4886
        %v5978 = vmax.f32 %v5977, %v4887
        %v5979 = vmax.f32 %v5978, %v4888
        %v5980 = vmax.f32 %v5979, %v4889
        %v5981 = vmax.f32 %v5980, %v4890
        %v5982 = vmax.f32 %v5981, %v4891
        %v5983 = vmax.f32 %v5982, %v4892
        %v5984 = vmax.f32 %v5983, %v4893
        %v5985 = vmax.f32 %v5984, %v4894
        %v5986 = vrot.slane %v5985, 4
        %v5987 = vmax.f32 %v5985, %v5986
        %v5988 = vrot.slane %v5987, 2
        %v5989 = vmax.f32 %v5987, %v5988
        %v5990 = vrot.slane %v5989, 1
        %v5991 = vmax.f32 %v5989, %v5990
        %v5992 = vmax.f32 %v4895, %v4896
        %v5993 = vmax.f32 %v5992, %v4897
        %v5994 = vmax.f32 %v5993, %v4898
        %v5995 = vmax.f32 %v5994, %v4899
        %v5996 = vmax.f32 %v5995, %v4900
        %v5997 = vmax.f32 %v5996, %v4901
        %v5998 = vmax.f32 %v5997, %v4902
        %v5999 = vmax.f32 %v5998, %v4903
        %v6000 = vmax.f32 %v5999, %v4904
        %v6001 = vmax.f32 %v6000, %v4905
        %v6002 = vmax.f32 %v6001, %v4906
        %v6003 = vmax.f32 %v6002, %v4907
        %v6004 = vmax.f32 %v6003, %v4908
        %v6005 = vmax.f32 %v6004, %v4909
        %v6006 = vmax.f32 %v6005, %v4910
        %v6007 = vrot.slane %v6006, 4
        %v6008 = vmax.f32 %v6006, %v6007
        %v6009 = vrot.slane %v6008, 2
        %v6010 = vmax.f32 %v6008, %v6009
        %v6011 = vrot.slane %v6010, 1
        %v6012 = vmax.f32 %v6010, %v6011
        %v6013 = vmax.f32 %v4911, %v4912
        %v6014 = vmax.f32 %v6013, %v4913
        %v6015 = vmax.f32 %v6014, %v4914
        %v6016 = vmax.f32 %v6015, %v4915
        %v6017 = vmax.f32 %v6016, %v4916
        %v6018 = vmax.f32 %v6017, %v4917
        %v6019 = vmax.f32 %v6018, %v4918
        %v6020 = vmax.f32 %v6019, %v4919
        %v6021 = vmax.f32 %v6020, %v4920
        %v6022 = vmax.f32 %v6021, %v4921
        %v6023 = vmax.f32 %v6022, %v4922
        %v6024 = vmax.f32 %v6023, %v4923
        %v6025 = vmax.f32 %v6024, %v4924
        %v6026 = vmax.f32 %v6025, %v4925
        %v6027 = vmax.f32 %v6026, %v4926
        %v6028 = vrot.slane %v6027, 4
        %v6029 = vmax.f32 %v6027, %v6028
        %v6030 = vrot.slane %v6029, 2
        %v6031 = vmax.f32 %v6029, %v6030
        %v6032 = vrot.slane %v6031, 1
        %v6033 = vmax.f32 %v6031, %v6032
        %v6034 = vmax.f32 %v4927, %v4928
        %v6035 = vmax.f32 %v6034, %v4929
        %v6036 = vmax.f32 %v6035, %v4930
        %v6037 = vmax.f32 %v6036, %v4931
        %v6038 = vmax.f32 %v6037, %v4932
        %v6039 = vmax.f32 %v6038, %v4933
        %v6040 = vmax.f32 %v6039, %v4934
        %v6041 = vmax.f32 %v6040, %v4935
        %v6042 = vmax.f32 %v6041, %v4936
        %v6043 = vmax.f32 %v6042, %v4937
        %v6044 = vmax.f32 %v6043, %v4938
        %v6045 = vmax.f32 %v6044, %v4939
        %v6046 = vmax.f32 %v6045, %v4940
        %v6047 = vmax.f32 %v6046, %v4941
        %v6048 = vmax.f32 %v6047, %v4942
        %v6049 = vrot.slane %v6048, 4
        %v6050 = vmax.f32 %v6048, %v6049
        %v6051 = vrot.slane %v6050, 2
        %v6052 = vmax.f32 %v6050, %v6051
        %v6053 = vrot.slane %v6052, 1
        %v6054 = vmax.f32 %v6052, %v6053
        %v6055 = vmax.f32 %v4943, %v4944
        %v6056 = vmax.f32 %v6055, %v4945
        %v6057 = vmax.f32 %v6056, %v4946
        %v6058 = vmax.f32 %v6057, %v4947
        %v6059 = vmax.f32 %v6058, %v4948
        %v6060 = vmax.f32 %v6059, %v4949
        %v6061 = vmax.f32 %v6060, %v4950
        %v6062 = vmax.f32 %v6061, %v4951
        %v6063 = vmax.f32 %v6062, %v4952
        %v6064 = vmax.f32 %v6063, %v4953
        %v6065 = vmax.f32 %v6064, %v4954
        %v6066 = vmax.f32 %v6065, %v4955
        %v6067 = vmax.f32 %v6066, %v4956
        %v6068 = vmax.f32 %v6067, %v4957
        %v6069 = vmax.f32 %v6068, %v4958
        %v6070 = vrot.slane %v6069, 4
        %v6071 = vmax.f32 %v6069, %v6070
        %v6072 = vrot.slane %v6071, 2
        %v6073 = vmax.f32 %v6071, %v6072
        %v6074 = vrot.slane %v6073, 1
        %v6075 = vmax.f32 %v6073, %v6074
        %v6076 = vmax.f32 %v4959, %v4960
        %v6077 = vmax.f32 %v6076, %v4961
        %v6078 = vmax.f32 %v6077, %v4962
        %v6079 = vmax.f32 %v6078, %v4963
        %v6080 = vmax.f32 %v6079, %v4964
        %v6081 = vmax.f32 %v6080, %v4965
        %v6082 = vmax.f32 %v6081, %v4966
        %v6083 = vmax.f32 %v6082, %v4967
        %v6084 = vmax.f32 %v6083, %v4968
        %v6085 = vmax.f32 %v6084, %v4969
        %v6086 = vmax.f32 %v6085, %v4970
        %v6087 = vmax.f32 %v6086, %v4971
        %v6088 = vmax.f32 %v6087, %v4972
        %v6089 = vmax.f32 %v6088, %v4973
        %v6090 = vmax.f32 %v6089, %v4974
        %v6091 = vrot.slane %v6090, 4
        %v6092 = vmax.f32 %v6090, %v6091
        %v6093 = vrot.slane %v6092, 2
        %v6094 = vmax.f32 %v6092, %v6093
        %v6095 = vrot.slane %v6094, 1
        %v6096 = vmax.f32 %v6094, %v6095
        %v6097 = vmax.f32 %v4975, %v4976
        %v6098 = vmax.f32 %v6097, %v4977
        %v6099 = vmax.f32 %v6098, %v4978
        %v6100 = vmax.f32 %v6099, %v4979
        %v6101 = vmax.f32 %v6100, %v4980
        %v6102 = vmax.f32 %v6101, %v4981
        %v6103 = vmax.f32 %v6102, %v4982
        %v6104 = vmax.f32 %v6103, %v4983
        %v6105 = vmax.f32 %v6104, %v4984
        %v6106 = vmax.f32 %v6105, %v4985
        %v6107 = vmax.f32 %v6106, %v4986
        %v6108 = vmax.f32 %v6107, %v4987
        %v6109 = vmax.f32 %v6108, %v4988
        %v6110 = vmax.f32 %v6109, %v4989
        %v6111 = vmax.f32 %v6110, %v4990
        %v6112 = vrot.slane %v6111, 4
        %v6113 = vmax.f32 %v6111, %v6112
        %v6114 = vrot.slane %v6113, 2
        %v6115 = vmax.f32 %v6113, %v6114
        %v6116 = vrot.slane %v6115, 1
        %v6117 = vmax.f32 %v6115, %v6116
        %v6118 = vmax.f32 %v4991, %v4992
        %v6119 = vmax.f32 %v6118, %v4993
        %v6120 = vmax.f32 %v6119, %v4994
        %v6121 = vmax.f32 %v6120, %v4995
        %v6122 = vmax.f32 %v6121, %v4996
        %v6123 = vmax.f32 %v6122, %v4997
        %v6124 = vmax.f32 %v6123, %v4998
        %v6125 = vmax.f32 %v6124, %v4999
        %v6126 = vmax.f32 %v6125, %v5000
        %v6127 = vmax.f32 %v6126, %v5001
        %v6128 = vmax.f32 %v6127, %v5002
        %v6129 = vmax.f32 %v6128, %v5003
        %v6130 = vmax.f32 %v6129, %v5004
        %v6131 = vmax.f32 %v6130, %v5005
        %v6132 = vmax.f32 %v6131, %v5006
        %v6133 = vrot.slane %v6132, 4
        %v6134 = vmax.f32 %v6132, %v6133
        %v6135 = vrot.slane %v6134, 2
        %v6136 = vmax.f32 %v6134, %v6135
        %v6137 = vrot.slane %v6136, 1
        %v6138 = vmax.f32 %v6136, %v6137
        %v6139 = vmax.f32 %v5007, %v5008
        %v6140 = vmax.f32 %v6139, %v5009
        %v6141 = vmax.f32 %v6140, %v5010
        %v6142 = vmax.f32 %v6141, %v5011
        %v6143 = vmax.f32 %v6142, %v5012
        %v6144 = vmax.f32 %v6143, %v5013
        %v6145 = vmax.f32 %v6144, %v5014
        %v6146 = vmax.f32 %v6145, %v5015
        %v6147 = vmax.f32 %v6146, %v5016
        %v6148 = vmax.f32 %v6147, %v5017
        %v6149 = vmax.f32 %v6148, %v5018
        %v6150 = vmax.f32 %v6149, %v5019
        %v6151 = vmax.f32 %v6150, %v5020
        %v6152 = vmax.f32 %v6151, %v5021
        %v6153 = vmax.f32 %v6152, %v5022
        %v6154 = vrot.slane %v6153, 4
        %v6155 = vmax.f32 %v6153, %v6154
        %v6156 = vrot.slane %v6155, 2
        %v6157 = vmax.f32 %v6155, %v6156
        %v6158 = vrot.slane %v6157, 1
        %v6159 = vmax.f32 %v6157, %v6158
        %v6160 = vmax.f32 %v5023, %v5024
        %v6161 = vmax.f32 %v6160, %v5025
        %v6162 = vmax.f32 %v6161, %v5026
        %v6163 = vmax.f32 %v6162, %v5027
        %v6164 = vmax.f32 %v6163, %v5028
        %v6165 = vmax.f32 %v6164, %v5029
        %v6166 = vmax.f32 %v6165, %v5030
        %v6167 = vmax.f32 %v6166, %v5031
        %v6168 = vmax.f32 %v6167, %v5032
        %v6169 = vmax.f32 %v6168, %v5033
        %v6170 = vmax.f32 %v6169, %v5034
        %v6171 = vmax.f32 %v6170, %v5035
        %v6172 = vmax.f32 %v6171, %v5036
        %v6173 = vmax.f32 %v6172, %v5037
        %v6174 = vmax.f32 %v6173, %v5038
        %v6175 = vrot.slane %v6174, 4
        %v6176 = vmax.f32 %v6174, %v6175
        %v6177 = vrot.slane %v6176, 2
        %v6178 = vmax.f32 %v6176, %v6177
        %v6179 = vrot.slane %v6178, 1
        %v6180 = vmax.f32 %v6178, %v6179
        %v6181 = vmax.f32 %v5039, %v5040
        %v6182 = vmax.f32 %v6181, %v5041
        %v6183 = vmax.f32 %v6182, %v5042
        %v6184 = vmax.f32 %v6183, %v5043
        %v6185 = vmax.f32 %v6184, %v5044
        %v6186 = vmax.f32 %v6185, %v5045
        %v6187 = vmax.f32 %v6186, %v5046
        %v6188 = vmax.f32 %v6187, %v5047
        %v6189 = vmax.f32 %v6188, %v5048
        %v6190 = vmax.f32 %v6189, %v5049
        %v6191 = vmax.f32 %v6190, %v5050
        %v6192 = vmax.f32 %v6191, %v5051
        %v6193 = vmax.f32 %v6192, %v5052
        %v6194 = vmax.f32 %v6193, %v5053
        %v6195 = vmax.f32 %v6194, %v5054
        %v6196 = vrot.slane %v6195, 4
        %v6197 = vmax.f32 %v6195, %v6196
        %v6198 = vrot.slane %v6197, 2
        %v6199 = vmax.f32 %v6197, %v6198
        %v6200 = vrot.slane %v6199, 1
        %v6201 = vmax.f32 %v6199, %v6200
        %v6202 = vmax.f32 %v5055, %v5056
        %v6203 = vmax.f32 %v6202, %v5057
        %v6204 = vmax.f32 %v6203, %v5058
        %v6205 = vmax.f32 %v6204, %v5059
        %v6206 = vmax.f32 %v6205, %v5060
        %v6207 = vmax.f32 %v6206, %v5061
        %v6208 = vmax.f32 %v6207, %v5062
        %v6209 = vmax.f32 %v6208, %v5063
        %v6210 = vmax.f32 %v6209, %v5064
        %v6211 = vmax.f32 %v6210, %v5065
        %v6212 = vmax.f32 %v6211, %v5066
        %v6213 = vmax.f32 %v6212, %v5067
        %v6214 = vmax.f32 %v6213, %v5068
        %v6215 = vmax.f32 %v6214, %v5069
        %v6216 = vmax.f32 %v6215, %v5070
        %v6217 = vrot.slane %v6216, 4
        %v6218 = vmax.f32 %v6216, %v6217
        %v6219 = vrot.slane %v6218, 2
        %v6220 = vmax.f32 %v6218, %v6219
        %v6221 = vrot.slane %v6220, 1
        %v6222 = vmax.f32 %v6220, %v6221
        %v6223 = vmax.f32 %v5071, %v5072
        %v6224 = vmax.f32 %v6223, %v5073
        %v6225 = vmax.f32 %v6224, %v5074
        %v6226 = vmax.f32 %v6225, %v5075
        %v6227 = vmax.f32 %v6226, %v5076
        %v6228 = vmax.f32 %v6227, %v5077
        %v6229 = vmax.f32 %v6228, %v5078
        %v6230 = vmax.f32 %v6229, %v5079
        %v6231 = vmax.f32 %v6230, %v5080
        %v6232 = vmax.f32 %v6231, %v5081
        %v6233 = vmax.f32 %v6232, %v5082
        %v6234 = vmax.f32 %v6233, %v5083
        %v6235 = vmax.f32 %v6234, %v5084
        %v6236 = vmax.f32 %v6235, %v5085
        %v6237 = vmax.f32 %v6236, %v5086
        %v6238 = vrot.slane %v6237, 4
        %v6239 = vmax.f32 %v6237, %v6238
        %v6240 = vrot.slane %v6239, 2
        %v6241 = vmax.f32 %v6239, %v6240
        %v6242 = vrot.slane %v6241, 1
        %v6243 = vmax.f32 %v6241, %v6242
        %v6244 = vmax.f32 %v5087, %v5088
        %v6245 = vmax.f32 %v6244, %v5089
        %v6246 = vmax.f32 %v6245, %v5090
        %v6247 = vmax.f32 %v6246, %v5091
        %v6248 = vmax.f32 %v6247, %v5092
        %v6249 = vmax.f32 %v6248, %v5093
        %v6250 = vmax.f32 %v6249, %v5094
        %v6251 = vmax.f32 %v6250, %v5095
        %v6252 = vmax.f32 %v6251, %v5096
        %v6253 = vmax.f32 %v6252, %v5097
        %v6254 = vmax.f32 %v6253, %v5098
        %v6255 = vmax.f32 %v6254, %v5099
        %v6256 = vmax.f32 %v6255, %v5100
        %v6257 = vmax.f32 %v6256, %v5101
        %v6258 = vmax.f32 %v6257, %v5102
        %v6259 = vrot.slane %v6258, 4
        %v6260 = vmax.f32 %v6258, %v6259
        %v6261 = vrot.slane %v6260, 2
        %v6262 = vmax.f32 %v6260, %v6261
        %v6263 = vrot.slane %v6262, 1
        %v6264 = vmax.f32 %v6262, %v6263
        %v6265 = vmax.f32 %v5103, %v5104
        %v6266 = vmax.f32 %v6265, %v5105
        %v6267 = vmax.f32 %v6266, %v5106
        %v6268 = vmax.f32 %v6267, %v5107
        %v6269 = vmax.f32 %v6268, %v5108
        %v6270 = vmax.f32 %v6269, %v5109
        %v6271 = vmax.f32 %v6270, %v5110
        %v6272 = vmax.f32 %v6271, %v5111
        %v6273 = vmax.f32 %v6272, %v5112
        %v6274 = vmax.f32 %v6273, %v5113
        %v6275 = vmax.f32 %v6274, %v5114
        %v6276 = vmax.f32 %v6275, %v5115
        %v6277 = vmax.f32 %v6276, %v5116
        %v6278 = vmax.f32 %v6277, %v5117
        %v6279 = vmax.f32 %v6278, %v5118
        %v6280 = vrot.slane %v6279, 4
        %v6281 = vmax.f32 %v6279, %v6280
        %v6282 = vrot.slane %v6281, 2
        %v6283 = vmax.f32 %v6281, %v6282
        %v6284 = vrot.slane %v6283, 1
        %v6285 = vmax.f32 %v6283, %v6284
        %v6286 = vmax.f32 %v5119, %v5120
        %v6287 = vmax.f32 %v6286, %v5121
        %v6288 = vmax.f32 %v6287, %v5122
        %v6289 = vmax.f32 %v6288, %v5123
        %v6290 = vmax.f32 %v6289, %v5124
        %v6291 = vmax.f32 %v6290, %v5125
        %v6292 = vmax.f32 %v6291, %v5126
        %v6293 = vmax.f32 %v6292, %v5127
        %v6294 = vmax.f32 %v6293, %v5128
        %v6295 = vmax.f32 %v6294, %v5129
        %v6296 = vmax.f32 %v6295, %v5130
        %v6297 = vmax.f32 %v6296, %v5131
        %v6298 = vmax.f32 %v6297, %v5132
        %v6299 = vmax.f32 %v6298, %v5133
        %v6300 = vmax.f32 %v6299, %v5134
        %v6301 = vrot.slane %v6300, 4
        %v6302 = vmax.f32 %v6300, %v6301
        %v6303 = vrot.slane %v6302, 2
        %v6304 = vmax.f32 %v6302, %v6303
        %v6305 = vrot.slane %v6304, 1
        %v6306 = vmax.f32 %v6304, %v6305
        %v6307 = vmax.f32 %v5135, %v5136
        %v6308 = vmax.f32 %v6307, %v5137
        %v6309 = vmax.f32 %v6308, %v5138
        %v6310 = vmax.f32 %v6309, %v5139
        %v6311 = vmax.f32 %v6310, %v5140
        %v6312 = vmax.f32 %v6311, %v5141
        %v6313 = vmax.f32 %v6312, %v5142
        %v6314 = vmax.f32 %v6313, %v5143
        %v6315 = vmax.f32 %v6314, %v5144
        %v6316 = vmax.f32 %v6315, %v5145
        %v6317 = vmax.f32 %v6316, %v5146
        %v6318 = vmax.f32 %v6317, %v5147
        %v6319 = vmax.f32 %v6318, %v5148
        %v6320 = vmax.f32 %v6319, %v5149
        %v6321 = vmax.f32 %v6320, %v5150
        %v6322 = vrot.slane %v6321, 4
        %v6323 = vmax.f32 %v6321, %v6322
        %v6324 = vrot.slane %v6323, 2
        %v6325 = vmax.f32 %v6323, %v6324
        %v6326 = vrot.slane %v6325, 1
        %v6327 = vmax.f32 %v6325, %v6326
        %v6328 = vmax.f32 %v5151, %v5152
        %v6329 = vmax.f32 %v6328, %v5153
        %v6330 = vmax.f32 %v6329, %v5154
        %v6331 = vmax.f32 %v6330, %v5155
        %v6332 = vmax.f32 %v6331, %v5156
        %v6333 = vmax.f32 %v6332, %v5157
        %v6334 = vmax.f32 %v6333, %v5158
        %v6335 = vmax.f32 %v6334, %v5159
        %v6336 = vmax.f32 %v6335, %v5160
        %v6337 = vmax.f32 %v6336, %v5161
        %v6338 = vmax.f32 %v6337, %v5162
        %v6339 = vmax.f32 %v6338, %v5163
        %v6340 = vmax.f32 %v6339, %v5164
        %v6341 = vmax.f32 %v6340, %v5165
        %v6342 = vmax.f32 %v6341, %v5166
        %v6343 = vrot.slane %v6342, 4
        %v6344 = vmax.f32 %v6342, %v6343
        %v6345 = vrot.slane %v6344, 2
        %v6346 = vmax.f32 %v6344, %v6345
        %v6347 = vrot.slane %v6346, 1
        %v6348 = vmax.f32 %v6346, %v6347
        %v6349 = vmax.f32 %v5167, %v5168
        %v6350 = vmax.f32 %v6349, %v5169
        %v6351 = vmax.f32 %v6350, %v5170
        %v6352 = vmax.f32 %v6351, %v5171
        %v6353 = vmax.f32 %v6352, %v5172
        %v6354 = vmax.f32 %v6353, %v5173
        %v6355 = vmax.f32 %v6354, %v5174
        %v6356 = vmax.f32 %v6355, %v5175
        %v6357 = vmax.f32 %v6356, %v5176
        %v6358 = vmax.f32 %v6357, %v5177
        %v6359 = vmax.f32 %v6358, %v5178
        %v6360 = vmax.f32 %v6359, %v5179
        %v6361 = vmax.f32 %v6360, %v5180
        %v6362 = vmax.f32 %v6361, %v5181
        %v6363 = vmax.f32 %v6362, %v5182
        %v6364 = vrot.slane %v6363, 4
        %v6365 = vmax.f32 %v6363, %v6364
        %v6366 = vrot.slane %v6365, 2
        %v6367 = vmax.f32 %v6365, %v6366
        %v6368 = vrot.slane %v6367, 1
        %v6369 = vmax.f32 %v6367, %v6368
        %v6370 = vmax.f32 %v5183, %v5184
        %v6371 = vmax.f32 %v6370, %v5185
        %v6372 = vmax.f32 %v6371, %v5186
        %v6373 = vmax.f32 %v6372, %v5187
        %v6374 = vmax.f32 %v6373, %v5188
        %v6375 = vmax.f32 %v6374, %v5189
        %v6376 = vmax.f32 %v6375, %v5190
        %v6377 = vmax.f32 %v6376, %v5191
        %v6378 = vmax.f32 %v6377, %v5192
        %v6379 = vmax.f32 %v6378, %v5193
        %v6380 = vmax.f32 %v6379, %v5194
        %v6381 = vmax.f32 %v6380, %v5195
        %v6382 = vmax.f32 %v6381, %v5196
        %v6383 = vmax.f32 %v6382, %v5197
        %v6384 = vmax.f32 %v6383, %v5198
        %v6385 = vrot.slane %v6384, 4
        %v6386 = vmax.f32 %v6384, %v6385
        %v6387 = vrot.slane %v6386, 2
        %v6388 = vmax.f32 %v6386, %v6387
        %v6389 = vrot.slane %v6388, 1
        %v6390 = vmax.f32 %v6388, %v6389
        %v6391 = vmax.f32 %v5199, %v5200
        %v6392 = vmax.f32 %v6391, %v5201
        %v6393 = vmax.f32 %v6392, %v5202
        %v6394 = vmax.f32 %v6393, %v5203
        %v6395 = vmax.f32 %v6394, %v5204
        %v6396 = vmax.f32 %v6395, %v5205
        %v6397 = vmax.f32 %v6396, %v5206
        %v6398 = vmax.f32 %v6397, %v5207
        %v6399 = vmax.f32 %v6398, %v5208
        %v6400 = vmax.f32 %v6399, %v5209
        %v6401 = vmax.f32 %v6400, %v5210
        %v6402 = vmax.f32 %v6401, %v5211
        %v6403 = vmax.f32 %v6402, %v5212
        %v6404 = vmax.f32 %v6403, %v5213
        %v6405 = vmax.f32 %v6404, %v5214
        %v6406 = vrot.slane %v6405, 4
        %v6407 = vmax.f32 %v6405, %v6406
        %v6408 = vrot.slane %v6407, 2
        %v6409 = vmax.f32 %v6407, %v6408
        %v6410 = vrot.slane %v6409, 1
        %v6411 = vmax.f32 %v6409, %v6410
        %v6412 = vmax.f32 %v5215, %v5216
        %v6413 = vmax.f32 %v6412, %v5217
        %v6414 = vmax.f32 %v6413, %v5218
        %v6415 = vmax.f32 %v6414, %v5219
        %v6416 = vmax.f32 %v6415, %v5220
        %v6417 = vmax.f32 %v6416, %v5221
        %v6418 = vmax.f32 %v6417, %v5222
        %v6419 = vmax.f32 %v6418, %v5223
        %v6420 = vmax.f32 %v6419, %v5224
        %v6421 = vmax.f32 %v6420, %v5225
        %v6422 = vmax.f32 %v6421, %v5226
        %v6423 = vmax.f32 %v6422, %v5227
        %v6424 = vmax.f32 %v6423, %v5228
        %v6425 = vmax.f32 %v6424, %v5229
        %v6426 = vmax.f32 %v6425, %v5230
        %v6427 = vrot.slane %v6426, 4
        %v6428 = vmax.f32 %v6426, %v6427
        %v6429 = vrot.slane %v6428, 2
        %v6430 = vmax.f32 %v6428, %v6429
        %v6431 = vrot.slane %v6430, 1
        %v6432 = vmax.f32 %v6430, %v6431
        %v6433 = vmax.f32 %v5231, %v5232
        %v6434 = vmax.f32 %v6433, %v5233
        %v6435 = vmax.f32 %v6434, %v5234
        %v6436 = vmax.f32 %v6435, %v5235
        %v6437 = vmax.f32 %v6436, %v5236
        %v6438 = vmax.f32 %v6437, %v5237
        %v6439 = vmax.f32 %v6438, %v5238
        %v6440 = vmax.f32 %v6439, %v5239
        %v6441 = vmax.f32 %v6440, %v5240
        %v6442 = vmax.f32 %v6441, %v5241
        %v6443 = vmax.f32 %v6442, %v5242
        %v6444 = vmax.f32 %v6443, %v5243
        %v6445 = vmax.f32 %v6444, %v5244
        %v6446 = vmax.f32 %v6445, %v5245
        %v6447 = vmax.f32 %v6446, %v5246
        %v6448 = vrot.slane %v6447, 4
        %v6449 = vmax.f32 %v6447, %v6448
        %v6450 = vrot.slane %v6449, 2
        %v6451 = vmax.f32 %v6449, %v6450
        %v6452 = vrot.slane %v6451, 1
        %v6453 = vmax.f32 %v6451, %v6452
        %v6454 = vmax.f32 %v5247, %v5248
        %v6455 = vmax.f32 %v6454, %v5249
        %v6456 = vmax.f32 %v6455, %v5250
        %v6457 = vmax.f32 %v6456, %v5251
        %v6458 = vmax.f32 %v6457, %v5252
        %v6459 = vmax.f32 %v6458, %v5253
        %v6460 = vmax.f32 %v6459, %v5254
        %v6461 = vmax.f32 %v6460, %v5255
        %v6462 = vmax.f32 %v6461, %v5256
        %v6463 = vmax.f32 %v6462, %v5257
        %v6464 = vmax.f32 %v6463, %v5258
        %v6465 = vmax.f32 %v6464, %v5259
        %v6466 = vmax.f32 %v6465, %v5260
        %v6467 = vmax.f32 %v6466, %v5261
        %v6468 = vmax.f32 %v6467, %v5262
        %v6469 = vrot.slane %v6468, 4
        %v6470 = vmax.f32 %v6468, %v6469
        %v6471 = vrot.slane %v6470, 2
        %v6472 = vmax.f32 %v6470, %v6471
        %v6473 = vrot.slane %v6472, 1
        %v6474 = vmax.f32 %v6472, %v6473
        %v6475 = vmax.f32 %v5263, %v5264
        %v6476 = vmax.f32 %v6475, %v5265
        %v6477 = vmax.f32 %v6476, %v5266
        %v6478 = vmax.f32 %v6477, %v5267
        %v6479 = vmax.f32 %v6478, %v5268
        %v6480 = vmax.f32 %v6479, %v5269
        %v6481 = vmax.f32 %v6480, %v5270
        %v6482 = vmax.f32 %v6481, %v5271
        %v6483 = vmax.f32 %v6482, %v5272
        %v6484 = vmax.f32 %v6483, %v5273
        %v6485 = vmax.f32 %v6484, %v5274
        %v6486 = vmax.f32 %v6485, %v5275
        %v6487 = vmax.f32 %v6486, %v5276
        %v6488 = vmax.f32 %v6487, %v5277
        %v6489 = vmax.f32 %v6488, %v5278
        %v6490 = vrot.slane %v6489, 4
        %v6491 = vmax.f32 %v6489, %v6490
        %v6492 = vrot.slane %v6491, 2
        %v6493 = vmax.f32 %v6491, %v6492
        %v6494 = vrot.slane %v6493, 1
        %v6495 = vmax.f32 %v6493, %v6494
        %v6496 = vmax.f32 %v5279, %v5280
        %v6497 = vmax.f32 %v6496, %v5281
        %v6498 = vmax.f32 %v6497, %v5282
        %v6499 = vmax.f32 %v6498, %v5283
        %v6500 = vmax.f32 %v6499, %v5284
        %v6501 = vmax.f32 %v6500, %v5285
        %v6502 = vmax.f32 %v6501, %v5286
        %v6503 = vmax.f32 %v6502, %v5287
        %v6504 = vmax.f32 %v6503, %v5288
        %v6505 = vmax.f32 %v6504, %v5289
        %v6506 = vmax.f32 %v6505, %v5290
        %v6507 = vmax.f32 %v6506, %v5291
        %v6508 = vmax.f32 %v6507, %v5292
        %v6509 = vmax.f32 %v6508, %v5293
        %v6510 = vmax.f32 %v6509, %v5294
        %v6511 = vrot.slane %v6510, 4
        %v6512 = vmax.f32 %v6510, %v6511
        %v6513 = vrot.slane %v6512, 2
        %v6514 = vmax.f32 %v6512, %v6513
        %v6515 = vrot.slane %v6514, 1
        %v6516 = vmax.f32 %v6514, %v6515
        %v6517 = vmax.f32 %v5295, %v5296
        %v6518 = vmax.f32 %v6517, %v5297
        %v6519 = vmax.f32 %v6518, %v5298
        %v6520 = vmax.f32 %v6519, %v5299
        %v6521 = vmax.f32 %v6520, %v5300
        %v6522 = vmax.f32 %v6521, %v5301
        %v6523 = vmax.f32 %v6522, %v5302
        %v6524 = vmax.f32 %v6523, %v5303
        %v6525 = vmax.f32 %v6524, %v5304
        %v6526 = vmax.f32 %v6525, %v5305
        %v6527 = vmax.f32 %v6526, %v5306
        %v6528 = vmax.f32 %v6527, %v5307
        %v6529 = vmax.f32 %v6528, %v5308
        %v6530 = vmax.f32 %v6529, %v5309
        %v6531 = vmax.f32 %v6530, %v5310
        %v6532 = vrot.slane %v6531, 4
        %v6533 = vmax.f32 %v6531, %v6532
        %v6534 = vrot.slane %v6533, 2
        %v6535 = vmax.f32 %v6533, %v6534
        %v6536 = vrot.slane %v6535, 1
        %v6537 = vmax.f32 %v6535, %v6536
        %v6538 = vmax.f32 %v5311, %v5312
        %v6539 = vmax.f32 %v6538, %v5313
        %v6540 = vmax.f32 %v6539, %v5314
        %v6541 = vmax.f32 %v6540, %v5315
        %v6542 = vmax.f32 %v6541, %v5316
        %v6543 = vmax.f32 %v6542, %v5317
        %v6544 = vmax.f32 %v6543, %v5318
        %v6545 = vmax.f32 %v6544, %v5319
        %v6546 = vmax.f32 %v6545, %v5320
        %v6547 = vmax.f32 %v6546, %v5321
        %v6548 = vmax.f32 %v6547, %v5322
        %v6549 = vmax.f32 %v6548, %v5323
        %v6550 = vmax.f32 %v6549, %v5324
        %v6551 = vmax.f32 %v6550, %v5325
        %v6552 = vmax.f32 %v6551, %v5326
        %v6553 = vrot.slane %v6552, 4
        %v6554 = vmax.f32 %v6552, %v6553
        %v6555 = vrot.slane %v6554, 2
        %v6556 = vmax.f32 %v6554, %v6555
        %v6557 = vrot.slane %v6556, 1
        %v6558 = vmax.f32 %v6556, %v6557
        %v6559 = vmax.f32 %v5327, %v5328
        %v6560 = vmax.f32 %v6559, %v5329
        %v6561 = vmax.f32 %v6560, %v5330
        %v6562 = vmax.f32 %v6561, %v5331
        %v6563 = vmax.f32 %v6562, %v5332
        %v6564 = vmax.f32 %v6563, %v5333
        %v6565 = vmax.f32 %v6564, %v5334
        %v6566 = vmax.f32 %v6565, %v5335
        %v6567 = vmax.f32 %v6566, %v5336
        %v6568 = vmax.f32 %v6567, %v5337
        %v6569 = vmax.f32 %v6568, %v5338
        %v6570 = vmax.f32 %v6569, %v5339
        %v6571 = vmax.f32 %v6570, %v5340
        %v6572 = vmax.f32 %v6571, %v5341
        %v6573 = vmax.f32 %v6572, %v5342
        %v6574 = vrot.slane %v6573, 4
        %v6575 = vmax.f32 %v6573, %v6574
        %v6576 = vrot.slane %v6575, 2
        %v6577 = vmax.f32 %v6575, %v6576
        %v6578 = vrot.slane %v6577, 1
        %v6579 = vmax.f32 %v6577, %v6578
        %v6580 = vmax.f32 %v5343, %v5344
        %v6581 = vmax.f32 %v6580, %v5345
        %v6582 = vmax.f32 %v6581, %v5346
        %v6583 = vmax.f32 %v6582, %v5347
        %v6584 = vmax.f32 %v6583, %v5348
        %v6585 = vmax.f32 %v6584, %v5349
        %v6586 = vmax.f32 %v6585, %v5350
        %v6587 = vmax.f32 %v6586, %v5351
        %v6588 = vmax.f32 %v6587, %v5352
        %v6589 = vmax.f32 %v6588, %v5353
        %v6590 = vmax.f32 %v6589, %v5354
        %v6591 = vmax.f32 %v6590, %v5355
        %v6592 = vmax.f32 %v6591, %v5356
        %v6593 = vmax.f32 %v6592, %v5357
        %v6594 = vmax.f32 %v6593, %v5358
        %v6595 = vrot.slane %v6594, 4
        %v6596 = vmax.f32 %v6594, %v6595
        %v6597 = vrot.slane %v6596, 2
        %v6598 = vmax.f32 %v6596, %v6597
        %v6599 = vrot.slane %v6598, 1
        %v6600 = vmax.f32 %v6598, %v6599
        %v6601 = vmax.f32 %v5359, %v5360
        %v6602 = vmax.f32 %v6601, %v5361
        %v6603 = vmax.f32 %v6602, %v5362
        %v6604 = vmax.f32 %v6603, %v5363
        %v6605 = vmax.f32 %v6604, %v5364
        %v6606 = vmax.f32 %v6605, %v5365
        %v6607 = vmax.f32 %v6606, %v5366
        %v6608 = vmax.f32 %v6607, %v5367
        %v6609 = vmax.f32 %v6608, %v5368
        %v6610 = vmax.f32 %v6609, %v5369
        %v6611 = vmax.f32 %v6610, %v5370
        %v6612 = vmax.f32 %v6611, %v5371
        %v6613 = vmax.f32 %v6612, %v5372
        %v6614 = vmax.f32 %v6613, %v5373
        %v6615 = vmax.f32 %v6614, %v5374
        %v6616 = vrot.slane %v6615, 4
        %v6617 = vmax.f32 %v6615, %v6616
        %v6618 = vrot.slane %v6617, 2
        %v6619 = vmax.f32 %v6617, %v6618
        %v6620 = vrot.slane %v6619, 1
        %v6621 = vmax.f32 %v6619, %v6620
        %v6622 = vmax.f32 %v5375, %v5376
        %v6623 = vmax.f32 %v6622, %v5377
        %v6624 = vmax.f32 %v6623, %v5378
        %v6625 = vmax.f32 %v6624, %v5379
        %v6626 = vmax.f32 %v6625, %v5380
        %v6627 = vmax.f32 %v6626, %v5381
        %v6628 = vmax.f32 %v6627, %v5382
        %v6629 = vmax.f32 %v6628, %v5383
        %v6630 = vmax.f32 %v6629, %v5384
        %v6631 = vmax.f32 %v6630, %v5385
        %v6632 = vmax.f32 %v6631, %v5386
        %v6633 = vmax.f32 %v6632, %v5387
        %v6634 = vmax.f32 %v6633, %v5388
        %v6635 = vmax.f32 %v6634, %v5389
        %v6636 = vmax.f32 %v6635, %v5390
        %v6637 = vrot.slane %v6636, 4
        %v6638 = vmax.f32 %v6636, %v6637
        %v6639 = vrot.slane %v6638, 2
        %v6640 = vmax.f32 %v6638, %v6639
        %v6641 = vrot.slane %v6640, 1
        %v6642 = vmax.f32 %v6640, %v6641
        %v6643 = vmax.f32 %v5391, %v5392
        %v6644 = vmax.f32 %v6643, %v5393
        %v6645 = vmax.f32 %v6644, %v5394
        %v6646 = vmax.f32 %v6645, %v5395
        %v6647 = vmax.f32 %v6646, %v5396
        %v6648 = vmax.f32 %v6647, %v5397
        %v6649 = vmax.f32 %v6648, %v5398
        %v6650 = vmax.f32 %v6649, %v5399
        %v6651 = vmax.f32 %v6650, %v5400
        %v6652 = vmax.f32 %v6651, %v5401
        %v6653 = vmax.f32 %v6652, %v5402
        %v6654 = vmax.f32 %v6653, %v5403
        %v6655 = vmax.f32 %v6654, %v5404
        %v6656 = vmax.f32 %v6655, %v5405
        %v6657 = vmax.f32 %v6656, %v5406
        %v6658 = vrot.slane %v6657, 4
        %v6659 = vmax.f32 %v6657, %v6658
        %v6660 = vrot.slane %v6659, 2
        %v6661 = vmax.f32 %v6659, %v6660
        %v6662 = vrot.slane %v6661, 1
        %v6663 = vmax.f32 %v6661, %v6662
        %v6664 = vmax.f32 %v5407, %v5408
        %v6665 = vmax.f32 %v6664, %v5409
        %v6666 = vmax.f32 %v6665, %v5410
        %v6667 = vmax.f32 %v6666, %v5411
        %v6668 = vmax.f32 %v6667, %v5412
        %v6669 = vmax.f32 %v6668, %v5413
        %v6670 = vmax.f32 %v6669, %v5414
        %v6671 = vmax.f32 %v6670, %v5415
        %v6672 = vmax.f32 %v6671, %v5416
        %v6673 = vmax.f32 %v6672, %v5417
        %v6674 = vmax.f32 %v6673, %v5418
        %v6675 = vmax.f32 %v6674, %v5419
        %v6676 = vmax.f32 %v6675, %v5420
        %v6677 = vmax.f32 %v6676, %v5421
        %v6678 = vmax.f32 %v6677, %v5422
        %v6679 = vrot.slane %v6678, 4
        %v6680 = vmax.f32 %v6678, %v6679
        %v6681 = vrot.slane %v6680, 2
        %v6682 = vmax.f32 %v6680, %v6681
        %v6683 = vrot.slane %v6682, 1
        %v6684 = vmax.f32 %v6682, %v6683
        %v6685 = vmax.f32 %v5423, %v5424
        %v6686 = vmax.f32 %v6685, %v5425
        %v6687 = vmax.f32 %v6686, %v5426
        %v6688 = vmax.f32 %v6687, %v5427
        %v6689 = vmax.f32 %v6688, %v5428
        %v6690 = vmax.f32 %v6689, %v5429
        %v6691 = vmax.f32 %v6690, %v5430
        %v6692 = vmax.f32 %v6691, %v5431
        %v6693 = vmax.f32 %v6692, %v5432
        %v6694 = vmax.f32 %v6693, %v5433
        %v6695 = vmax.f32 %v6694, %v5434
        %v6696 = vmax.f32 %v6695, %v5435
        %v6697 = vmax.f32 %v6696, %v5436
        %v6698 = vmax.f32 %v6697, %v5437
        %v6699 = vmax.f32 %v6698, %v5438
        %v6700 = vrot.slane %v6699, 4
        %v6701 = vmax.f32 %v6699, %v6700
        %v6702 = vrot.slane %v6701, 2
        %v6703 = vmax.f32 %v6701, %v6702
        %v6704 = vrot.slane %v6703, 1
        %v6705 = vmax.f32 %v6703, %v6704
        %v6706 = vmax.f32 %v5439, %v5440
        %v6707 = vmax.f32 %v6706, %v5441
        %v6708 = vmax.f32 %v6707, %v5442
        %v6709 = vmax.f32 %v6708, %v5443
        %v6710 = vmax.f32 %v6709, %v5444
        %v6711 = vmax.f32 %v6710, %v5445
        %v6712 = vmax.f32 %v6711, %v5446
        %v6713 = vmax.f32 %v6712, %v5447
        %v6714 = vmax.f32 %v6713, %v5448
        %v6715 = vmax.f32 %v6714, %v5449
        %v6716 = vmax.f32 %v6715, %v5450
        %v6717 = vmax.f32 %v6716, %v5451
        %v6718 = vmax.f32 %v6717, %v5452
        %v6719 = vmax.f32 %v6718, %v5453
        %v6720 = vmax.f32 %v6719, %v5454
        %v6721 = vrot.slane %v6720, 4
        %v6722 = vmax.f32 %v6720, %v6721
        %v6723 = vrot.slane %v6722, 2
        %v6724 = vmax.f32 %v6722, %v6723
        %v6725 = vrot.slane %v6724, 1
        %v6726 = vmax.f32 %v6724, %v6725
        %v6727 = vmax.f32 %v5455, %v5456
        %v6728 = vmax.f32 %v6727, %v5457
        %v6729 = vmax.f32 %v6728, %v5458
        %v6730 = vmax.f32 %v6729, %v5459
        %v6731 = vmax.f32 %v6730, %v5460
        %v6732 = vmax.f32 %v6731, %v5461
        %v6733 = vmax.f32 %v6732, %v5462
        %v6734 = vmax.f32 %v6733, %v5463
        %v6735 = vmax.f32 %v6734, %v5464
        %v6736 = vmax.f32 %v6735, %v5465
        %v6737 = vmax.f32 %v6736, %v5466
        %v6738 = vmax.f32 %v6737, %v5467
        %v6739 = vmax.f32 %v6738, %v5468
        %v6740 = vmax.f32 %v6739, %v5469
        %v6741 = vmax.f32 %v6740, %v5470
        %v6742 = vrot.slane %v6741, 4
        %v6743 = vmax.f32 %v6741, %v6742
        %v6744 = vrot.slane %v6743, 2
        %v6745 = vmax.f32 %v6743, %v6744
        %v6746 = vrot.slane %v6745, 1
        %v6747 = vmax.f32 %v6745, %v6746
        %v6748 = vmax.f32 %v5471, %v5472
        %v6749 = vmax.f32 %v6748, %v5473
        %v6750 = vmax.f32 %v6749, %v5474
        %v6751 = vmax.f32 %v6750, %v5475
        %v6752 = vmax.f32 %v6751, %v5476
        %v6753 = vmax.f32 %v6752, %v5477
        %v6754 = vmax.f32 %v6753, %v5478
        %v6755 = vmax.f32 %v6754, %v5479
        %v6756 = vmax.f32 %v6755, %v5480
        %v6757 = vmax.f32 %v6756, %v5481
        %v6758 = vmax.f32 %v6757, %v5482
        %v6759 = vmax.f32 %v6758, %v5483
        %v6760 = vmax.f32 %v6759, %v5484
        %v6761 = vmax.f32 %v6760, %v5485
        %v6762 = vmax.f32 %v6761, %v5486
        %v6763 = vrot.slane %v6762, 4
        %v6764 = vmax.f32 %v6762, %v6763
        %v6765 = vrot.slane %v6764, 2
        %v6766 = vmax.f32 %v6764, %v6765
        %v6767 = vrot.slane %v6766, 1
        %v6768 = vmax.f32 %v6766, %v6767
        %v6769 = vmax.f32 %v5487, %v5488
        %v6770 = vmax.f32 %v6769, %v5489
        %v6771 = vmax.f32 %v6770, %v5490
        %v6772 = vmax.f32 %v6771, %v5491
        %v6773 = vmax.f32 %v6772, %v5492
        %v6774 = vmax.f32 %v6773, %v5493
        %v6775 = vmax.f32 %v6774, %v5494
        %v6776 = vmax.f32 %v6775, %v5495
        %v6777 = vmax.f32 %v6776, %v5496
        %v6778 = vmax.f32 %v6777, %v5497
        %v6779 = vmax.f32 %v6778, %v5498
        %v6780 = vmax.f32 %v6779, %v5499
        %v6781 = vmax.f32 %v6780, %v5500
        %v6782 = vmax.f32 %v6781, %v5501
        %v6783 = vmax.f32 %v6782, %v5502
        %v6784 = vrot.slane %v6783, 4
        %v6785 = vmax.f32 %v6783, %v6784
        %v6786 = vrot.slane %v6785, 2
        %v6787 = vmax.f32 %v6785, %v6786
        %v6788 = vrot.slane %v6787, 1
        %v6789 = vmax.f32 %v6787, %v6788
        %v6790 = vmax.f32 %v5503, %v5504
        %v6791 = vmax.f32 %v6790, %v5505
        %v6792 = vmax.f32 %v6791, %v5506
        %v6793 = vmax.f32 %v6792, %v5507
        %v6794 = vmax.f32 %v6793, %v5508
        %v6795 = vmax.f32 %v6794, %v5509
        %v6796 = vmax.f32 %v6795, %v5510
        %v6797 = vmax.f32 %v6796, %v5511
        %v6798 = vmax.f32 %v6797, %v5512
        %v6799 = vmax.f32 %v6798, %v5513
        %v6800 = vmax.f32 %v6799, %v5514
        %v6801 = vmax.f32 %v6800, %v5515
        %v6802 = vmax.f32 %v6801, %v5516
        %v6803 = vmax.f32 %v6802, %v5517
        %v6804 = vmax.f32 %v6803, %v5518
        %v6805 = vrot.slane %v6804, 4
        %v6806 = vmax.f32 %v6804, %v6805
        %v6807 = vrot.slane %v6806, 2
        %v6808 = vmax.f32 %v6806, %v6807
        %v6809 = vrot.slane %v6808, 1
        %v6810 = vmax.f32 %v6808, %v6809
        %v6811 = vmax.f32 %v5519, %v5520
        %v6812 = vmax.f32 %v6811, %v5521
        %v6813 = vmax.f32 %v6812, %v5522
        %v6814 = vmax.f32 %v6813, %v5523
        %v6815 = vmax.f32 %v6814, %v5524
        %v6816 = vmax.f32 %v6815, %v5525
        %v6817 = vmax.f32 %v6816, %v5526
        %v6818 = vmax.f32 %v6817, %v5527
        %v6819 = vmax.f32 %v6818, %v5528
        %v6820 = vmax.f32 %v6819, %v5529
        %v6821 = vmax.f32 %v6820, %v5530
        %v6822 = vmax.f32 %v6821, %v5531
        %v6823 = vmax.f32 %v6822, %v5532
        %v6824 = vmax.f32 %v6823, %v5533
        %v6825 = vmax.f32 %v6824, %v5534
        %v6826 = vrot.slane %v6825, 4
        %v6827 = vmax.f32 %v6825, %v6826
        %v6828 = vrot.slane %v6827, 2
        %v6829 = vmax.f32 %v6827, %v6828
        %v6830 = vrot.slane %v6829, 1
        %v6831 = vmax.f32 %v6829, %v6830
        %v6832 = vmax.f32 %v5535, %v5536
        %v6833 = vmax.f32 %v6832, %v5537
        %v6834 = vmax.f32 %v6833, %v5538
        %v6835 = vmax.f32 %v6834, %v5539
        %v6836 = vmax.f32 %v6835, %v5540
        %v6837 = vmax.f32 %v6836, %v5541
        %v6838 = vmax.f32 %v6837, %v5542
        %v6839 = vmax.f32 %v6838, %v5543
        %v6840 = vmax.f32 %v6839, %v5544
        %v6841 = vmax.f32 %v6840, %v5545
        %v6842 = vmax.f32 %v6841, %v5546
        %v6843 = vmax.f32 %v6842, %v5547
        %v6844 = vmax.f32 %v6843, %v5548
        %v6845 = vmax.f32 %v6844, %v5549
        %v6846 = vmax.f32 %v6845, %v5550
        %v6847 = vrot.slane %v6846, 4
        %v6848 = vmax.f32 %v6846, %v6847
        %v6849 = vrot.slane %v6848, 2
        %v6850 = vmax.f32 %v6848, %v6849
        %v6851 = vrot.slane %v6850, 1
        %v6852 = vmax.f32 %v6850, %v6851
        %v6853 = vmax.f32 %v5551, %v5552
        %v6854 = vmax.f32 %v6853, %v5553
        %v6855 = vmax.f32 %v6854, %v5554
        %v6856 = vmax.f32 %v6855, %v5555
        %v6857 = vmax.f32 %v6856, %v5556
        %v6858 = vmax.f32 %v6857, %v5557
        %v6859 = vmax.f32 %v6858, %v5558
        %v6860 = vmax.f32 %v6859, %v5559
        %v6861 = vmax.f32 %v6860, %v5560
        %v6862 = vmax.f32 %v6861, %v5561
        %v6863 = vmax.f32 %v6862, %v5562
        %v6864 = vmax.f32 %v6863, %v5563
        %v6865 = vmax.f32 %v6864, %v5564
        %v6866 = vmax.f32 %v6865, %v5565
        %v6867 = vmax.f32 %v6866, %v5566
        %v6868 = vrot.slane %v6867, 4
        %v6869 = vmax.f32 %v6867, %v6868
        %v6870 = vrot.slane %v6869, 2
        %v6871 = vmax.f32 %v6869, %v6870
        %v6872 = vrot.slane %v6871, 1
        %v6873 = vmax.f32 %v6871, %v6872
        %v6874 = vmax.f32 %v5567, %v5568
        %v6875 = vmax.f32 %v6874, %v5569
        %v6876 = vmax.f32 %v6875, %v5570
        %v6877 = vmax.f32 %v6876, %v5571
        %v6878 = vmax.f32 %v6877, %v5572
        %v6879 = vmax.f32 %v6878, %v5573
        %v6880 = vmax.f32 %v6879, %v5574
        %v6881 = vmax.f32 %v6880, %v5575
        %v6882 = vmax.f32 %v6881, %v5576
        %v6883 = vmax.f32 %v6882, %v5577
        %v6884 = vmax.f32 %v6883, %v5578
        %v6885 = vmax.f32 %v6884, %v5579
        %v6886 = vmax.f32 %v6885, %v5580
        %v6887 = vmax.f32 %v6886, %v5581
        %v6888 = vmax.f32 %v6887, %v5582
        %v6889 = vrot.slane %v6888, 4
        %v6890 = vmax.f32 %v6888, %v6889
        %v6891 = vrot.slane %v6890, 2
        %v6892 = vmax.f32 %v6890, %v6891
        %v6893 = vrot.slane %v6892, 1
        %v6894 = vmax.f32 %v6892, %v6893
        %v6895 = vmax.f32 %v5583, %v5584
        %v6896 = vmax.f32 %v6895, %v5585
        %v6897 = vmax.f32 %v6896, %v5586
        %v6898 = vmax.f32 %v6897, %v5587
        %v6899 = vmax.f32 %v6898, %v5588
        %v6900 = vmax.f32 %v6899, %v5589
        %v6901 = vmax.f32 %v6900, %v5590
        %v6902 = vmax.f32 %v6901, %v5591
        %v6903 = vmax.f32 %v6902, %v5592
        %v6904 = vmax.f32 %v6903, %v5593
        %v6905 = vmax.f32 %v6904, %v5594
        %v6906 = vmax.f32 %v6905, %v5595
        %v6907 = vmax.f32 %v6906, %v5596
        %v6908 = vmax.f32 %v6907, %v5597
        %v6909 = vmax.f32 %v6908, %v5598
        %v6910 = vrot.slane %v6909, 4
        %v6911 = vmax.f32 %v6909, %v6910
        %v6912 = vrot.slane %v6911, 2
        %v6913 = vmax.f32 %v6911, %v6912
        %v6914 = vrot.slane %v6913, 1
        %v6915 = vmax.f32 %v6913, %v6914
        %v6916 = vmax.f32 %v5599, %v5600
        %v6917 = vmax.f32 %v6916, %v5601
        %v6918 = vmax.f32 %v6917, %v5602
        %v6919 = vmax.f32 %v6918, %v5603
        %v6920 = vmax.f32 %v6919, %v5604
        %v6921 = vmax.f32 %v6920, %v5605
        %v6922 = vmax.f32 %v6921, %v5606
        %v6923 = vmax.f32 %v6922, %v5607
        %v6924 = vmax.f32 %v6923, %v5608
        %v6925 = vmax.f32 %v6924, %v5609
        %v6926 = vmax.f32 %v6925, %v5610
        %v6927 = vmax.f32 %v6926, %v5611
        %v6928 = vmax.f32 %v6927, %v5612
        %v6929 = vmax.f32 %v6928, %v5613
        %v6930 = vmax.f32 %v6929, %v5614
        %v6931 = vrot.slane %v6930, 4
        %v6932 = vmax.f32 %v6930, %v6931
        %v6933 = vrot.slane %v6932, 2
        %v6934 = vmax.f32 %v6932, %v6933
        %v6935 = vrot.slane %v6934, 1
        %v6936 = vmax.f32 %v6934, %v6935
        %v6937 = vmax.f32 %v5615, %v5616
        %v6938 = vmax.f32 %v6937, %v5617
        %v6939 = vmax.f32 %v6938, %v5618
        %v6940 = vmax.f32 %v6939, %v5619
        %v6941 = vmax.f32 %v6940, %v5620
        %v6942 = vmax.f32 %v6941, %v5621
        %v6943 = vmax.f32 %v6942, %v5622
        %v6944 = vmax.f32 %v6943, %v5623
        %v6945 = vmax.f32 %v6944, %v5624
        %v6946 = vmax.f32 %v6945, %v5625
        %v6947 = vmax.f32 %v6946, %v5626
        %v6948 = vmax.f32 %v6947, %v5627
        %v6949 = vmax.f32 %v6948, %v5628
        %v6950 = vmax.f32 %v6949, %v5629
        %v6951 = vmax.f32 %v6950, %v5630
        %v6952 = vrot.slane %v6951, 4
        %v6953 = vmax.f32 %v6951, %v6952
        %v6954 = vrot.slane %v6953, 2
        %v6955 = vmax.f32 %v6953, %v6954
        %v6956 = vrot.slane %v6955, 1
        %v6957 = vmax.f32 %v6955, %v6956
        %v6958 = vmax.f32 %v5631, %v5632
        %v6959 = vmax.f32 %v6958, %v5633
        %v6960 = vmax.f32 %v6959, %v5634
        %v6961 = vmax.f32 %v6960, %v5635
        %v6962 = vmax.f32 %v6961, %v5636
        %v6963 = vmax.f32 %v6962, %v5637
        %v6964 = vmax.f32 %v6963, %v5638
        %v6965 = vmax.f32 %v6964, %v5639
        %v6966 = vmax.f32 %v6965, %v5640
        %v6967 = vmax.f32 %v6966, %v5641
        %v6968 = vmax.f32 %v6967, %v5642
        %v6969 = vmax.f32 %v6968, %v5643
        %v6970 = vmax.f32 %v6969, %v5644
        %v6971 = vmax.f32 %v6970, %v5645
        %v6972 = vmax.f32 %v6971, %v5646
        %v6973 = vrot.slane %v6972, 4
        %v6974 = vmax.f32 %v6972, %v6973
        %v6975 = vrot.slane %v6974, 2
        %v6976 = vmax.f32 %v6974, %v6975
        %v6977 = vrot.slane %v6976, 1
        %v6978 = vmax.f32 %v6976, %v6977
        %v6979 = vmax.f32 %v5647, %v5648
        %v6980 = vmax.f32 %v6979, %v5649
        %v6981 = vmax.f32 %v6980, %v5650
        %v6982 = vmax.f32 %v6981, %v5651
        %v6983 = vmax.f32 %v6982, %v5652
        %v6984 = vmax.f32 %v6983, %v5653
        %v6985 = vmax.f32 %v6984, %v5654
        %v6986 = vmax.f32 %v6985, %v5655
        %v6987 = vmax.f32 %v6986, %v5656
        %v6988 = vmax.f32 %v6987, %v5657
        %v6989 = vmax.f32 %v6988, %v5658
        %v6990 = vmax.f32 %v6989, %v5659
        %v6991 = vmax.f32 %v6990, %v5660
        %v6992 = vmax.f32 %v6991, %v5661
        %v6993 = vmax.f32 %v6992, %v5662
        %v6994 = vrot.slane %v6993, 4
        %v6995 = vmax.f32 %v6993, %v6994
        %v6996 = vrot.slane %v6995, 2
        %v6997 = vmax.f32 %v6995, %v6996
        %v6998 = vrot.slane %v6997, 1
        %v6999 = vmax.f32 %v6997, %v6998
        %v7000 = vmax.f32 %v5663, %v5664
        %v7001 = vmax.f32 %v7000, %v5665
        %v7002 = vmax.f32 %v7001, %v5666
        %v7003 = vmax.f32 %v7002, %v5667
        %v7004 = vmax.f32 %v7003, %v5668
        %v7005 = vmax.f32 %v7004, %v5669
        %v7006 = vmax.f32 %v7005, %v5670
        %v7007 = vmax.f32 %v7006, %v5671
        %v7008 = vmax.f32 %v7007, %v5672
        %v7009 = vmax.f32 %v7008, %v5673
        %v7010 = vmax.f32 %v7009, %v5674
        %v7011 = vmax.f32 %v7010, %v5675
        %v7012 = vmax.f32 %v7011, %v5676
        %v7013 = vmax.f32 %v7012, %v5677
        %v7014 = vmax.f32 %v7013, %v5678
        %v7015 = vrot.slane %v7014, 4
        %v7016 = vmax.f32 %v7014, %v7015
        %v7017 = vrot.slane %v7016, 2
        %v7018 = vmax.f32 %v7016, %v7017
        %v7019 = vrot.slane %v7018, 1
        %v7020 = vmax.f32 %v7018, %v7019
        %v7021 = vmax.f32 %v5679, %v5680
        %v7022 = vmax.f32 %v7021, %v5681
        %v7023 = vmax.f32 %v7022, %v5682
        %v7024 = vmax.f32 %v7023, %v5683
        %v7025 = vmax.f32 %v7024, %v5684
        %v7026 = vmax.f32 %v7025, %v5685
        %v7027 = vmax.f32 %v7026, %v5686
        %v7028 = vmax.f32 %v7027, %v5687
        %v7029 = vmax.f32 %v7028, %v5688
        %v7030 = vmax.f32 %v7029, %v5689
        %v7031 = vmax.f32 %v7030, %v5690
        %v7032 = vmax.f32 %v7031, %v5691
        %v7033 = vmax.f32 %v7032, %v5692
        %v7034 = vmax.f32 %v7033, %v5693
        %v7035 = vmax.f32 %v7034, %v5694
        %v7036 = vrot.slane %v7035, 4
        %v7037 = vmax.f32 %v7035, %v7036
        %v7038 = vrot.slane %v7037, 2
        %v7039 = vmax.f32 %v7037, %v7038
        %v7040 = vrot.slane %v7039, 1
        %v7041 = vmax.f32 %v7039, %v7040
        %v7042 = vmax.f32 %v5695, %v5696
        %v7043 = vmax.f32 %v7042, %v5697
        %v7044 = vmax.f32 %v7043, %v5698
        %v7045 = vmax.f32 %v7044, %v5699
        %v7046 = vmax.f32 %v7045, %v5700
        %v7047 = vmax.f32 %v7046, %v5701
        %v7048 = vmax.f32 %v7047, %v5702
        %v7049 = vmax.f32 %v7048, %v5703
        %v7050 = vmax.f32 %v7049, %v5704
        %v7051 = vmax.f32 %v7050, %v5705
        %v7052 = vmax.f32 %v7051, %v5706
        %v7053 = vmax.f32 %v7052, %v5707
        %v7054 = vmax.f32 %v7053, %v5708
        %v7055 = vmax.f32 %v7054, %v5709
        %v7056 = vmax.f32 %v7055, %v5710
        %v7057 = vrot.slane %v7056, 4
        %v7058 = vmax.f32 %v7056, %v7057
        %v7059 = vrot.slane %v7058, 2
        %v7060 = vmax.f32 %v7058, %v7059
        %v7061 = vrot.slane %v7060, 1
        %v7062 = vmax.f32 %v7060, %v7061
        %vm7127 = vcmask 1041409
        %v7128 = vsel %vm7127, %v5760, %v5739
        %vm7129 = vcmask 1042434
        %v7130 = vsel %vm7129, %v5781, %v7128
        %vm7131 = vcmask 1043459
        %v7132 = vsel %vm7131, %v5802, %v7130
        %vm7133 = vcmask 1044484
        %v7134 = vsel %vm7133, %v5823, %v7132
        %vm7135 = vcmask 1045509
        %v7136 = vsel %vm7135, %v5844, %v7134
        %vm7137 = vcmask 1046534
        %v7138 = vsel %vm7137, %v5865, %v7136
        %vm7139 = vcmask 1047559
        %v7140 = vsel %vm7139, %v5886, %v7138
        %v7141 = vsel %vm7127, %v5928, %v5907
        %v7142 = vsel %vm7129, %v5949, %v7141
        %v7143 = vsel %vm7131, %v5970, %v7142
        %v7144 = vsel %vm7133, %v5991, %v7143
        %v7145 = vsel %vm7135, %v6012, %v7144
        %v7146 = vsel %vm7137, %v6033, %v7145
        %v7147 = vsel %vm7139, %v6054, %v7146
        %v7148 = vsel %vm7127, %v6096, %v6075
        %v7149 = vsel %vm7129, %v6117, %v7148
        %v7150 = vsel %vm7131, %v6138, %v7149
        %v7151 = vsel %vm7133, %v6159, %v7150
        %v7152 = vsel %vm7135, %v6180, %v7151
        %v7153 = vsel %vm7137, %v6201, %v7152
        %v7154 = vsel %vm7139, %v6222, %v7153
        %v7155 = vsel %vm7127, %v6264, %v6243
        %v7156 = vsel %vm7129, %v6285, %v7155
        %v7157 = vsel %vm7131, %v6306, %v7156
        %v7158 = vsel %vm7133, %v6327, %v7157
        %v7159 = vsel %vm7135, %v6348, %v7158
        %v7160 = vsel %vm7137, %v6369, %v7159
        %v7161 = vsel %vm7139, %v6390, %v7160
        %v7162 = vsel %vm7127, %v6432, %v6411
        %v7163 = vsel %vm7129, %v6453, %v7162
        %v7164 = vsel %vm7131, %v6474, %v7163
        %v7165 = vsel %vm7133, %v6495, %v7164
        %v7166 = vsel %vm7135, %v6516, %v7165
        %v7167 = vsel %vm7137, %v6537, %v7166
        %v7168 = vsel %vm7139, %v6558, %v7167
        %v7169 = vsel %vm7127, %v6600, %v6579
        %v7170 = vsel %vm7129, %v6621, %v7169
        %v7171 = vsel %vm7131, %v6642, %v7170
        %v7172 = vsel %vm7133, %v6663, %v7171
        %v7173 = vsel %vm7135, %v6684, %v7172
        %v7174 = vsel %vm7137, %v6705, %v7173
        %v7175 = vsel %vm7139, %v6726, %v7174
        %v7176 = vsel %vm7127, %v6768, %v6747
        %v7177 = vsel %vm7129, %v6789, %v7176
        %v7178 = vsel %vm7131, %v6810, %v7177
        %v7179 = vsel %vm7133, %v6831, %v7178
        %v7180 = vsel %vm7135, %v6852, %v7179
        %v7181 = vsel %vm7137, %v6873, %v7180
        %v7182 = vsel %vm7139, %v6894, %v7181
        %v7183 = vsel %vm7127, %v6936, %v6915
        %v7184 = vsel %vm7129, %v6957, %v7183
        %v7185 = vsel %vm7131, %v6978, %v7184
        %v7186 = vsel %vm7133, %v6999, %v7185
        %v7187 = vsel %vm7135, %v7020, %v7186
        %v7188 = vsel %vm7137, %v7041, %v7187
        %v7189 = vsel %vm7139, %v7062, %v7188
        %v7198 = vmax.f32 %v5711, %v7140
        %v7199 = vmax.f32 %v5712, %v7147
        %v7200 = vmax.f32 %v5713, %v7154
        %v7201 = vmax.f32 %v5714, %v7161
        %v7202 = vmax.f32 %v5715, %v7168
        %v7203 = vmax.f32 %v5716, %v7175
        %v7204 = vmax.f32 %v5717, %v7182
        %v7205 = vmax.f32 %v5718, %v7189
        %7206 = vst [vmem:[#allocation2] sm:$0xff] %v7198
        %7207 = vst [vmem:[#allocation2 + $0x8] sm:$0xff] %v7199
        %7208 = vst [vmem:[#allocation2 + $0x10] sm:$0xff] %v7200
        %7209 = vst [vmem:[#allocation2 + $0x18] sm:$0xff] %v7201
        %7210 = vst [vmem:[#allocation2 + $0x20] sm:$0xff] %v7202
        %7211 = vst [vmem:[#allocation2 + $0x28] sm:$0xff] %v7203
        %7212 = vst [vmem:[#allocation2 + $0x30] sm:$0xff] %v7204
        %7213 = vst [vmem:[#allocation2 + $0x38] sm:$0xff] %v7205
        %p7214 = scmp.eq.s32.totalorder %s22, 1
        // Predicated region
        $region87: #{sage_forward.5} parent=77 // pred_check
          %p7215 = pneg %p7214
        $region88: #{sage_forward.5} parent=77 // pred_check_branch
          %7217 = sbr.rel (%p7215) target = $region90
        $region89: #{sage_forward.5} parent=77 // pred_region
          %v7218 = vld [vmem:[%s345] sm:$0xff]
          %v7219 = vld [vmem:[%s345 + $0x8] sm:$0xff]
          %v7220 = vld [vmem:[%s345 + $0x10] sm:$0xff]
          %v7221 = vld [vmem:[%s345 + $0x18] sm:$0xff]
          %v7222 = vld [vmem:[%s345 + $0x20] sm:$0xff]
          %v7223 = vld [vmem:[%s345 + $0x28] sm:$0xff]
          %v7224 = vld [vmem:[%s345 + $0x30] sm:$0xff]
          %v7225 = vld [vmem:[%s345 + $0x38] sm:$0xff]
          %v7226 = vld [vmem:[%s3] sm:$0xff]
          %v7227 = vld [vmem:[%s3 + $0x8] sm:$0xff]
          %v7228 = vld [vmem:[%s3 + $0x10] sm:$0xff]
          %v7229 = vld [vmem:[%s3 + $0x18] sm:$0xff]
          %v7230 = vld [vmem:[%s3 + $0x20] sm:$0xff]
          %v7231 = vld [vmem:[%s3 + $0x28] sm:$0xff]
          %v7232 = vld [vmem:[%s3 + $0x30] sm:$0xff]
          %v7233 = vld [vmem:[%s3 + $0x38] sm:$0xff]
          %v7234 = vld [vmem:[%s3 + $0x40] sm:$0xff]
          %v7235 = vld [vmem:[%s3 + $0x48] sm:$0xff]
          %v7236 = vld [vmem:[%s3 + $0x50] sm:$0xff]
          %v7237 = vld [vmem:[%s3 + $0x58] sm:$0xff]
          %v7238 = vld [vmem:[%s3 + $0x60] sm:$0xff]
          %v7239 = vld [vmem:[%s3 + $0x68] sm:$0xff]
          %v7240 = vld [vmem:[%s3 + $0x70] sm:$0xff]
          %v7241 = vld [vmem:[%s3 + $0x78] sm:$0xff]
          %v7242 = vld [vmem:[#allocation2] sm:$0xff]
          %v7243 = vld [vmem:[#allocation2 + $0x8] sm:$0xff]
          %v7244 = vld [vmem:[#allocation2 + $0x10] sm:$0xff]
          %v7245 = vld [vmem:[#allocation2 + $0x18] sm:$0xff]
          %v7246 = vld [vmem:[#allocation2 + $0x20] sm:$0xff]
          %v7247 = vld [vmem:[#allocation2 + $0x28] sm:$0xff]
          %v7248 = vld [vmem:[#allocation2 + $0x30] sm:$0xff]
          %v7249 = vld [vmem:[#allocation2 + $0x38] sm:$0xff]
          %v7250 = vld [vmem:[%s4] sm:$0xff]
          %v7251 = vld [vmem:[%s4 + $0x8] sm:$0xff]
          %v7252 = vld [vmem:[%s4 + $0x10] sm:$0xff]
          %v7253 = vld [vmem:[%s4 + $0x18] sm:$0xff]
          %v7254 = vld [vmem:[%s4 + $0x20] sm:$0xff]
          %v7255 = vld [vmem:[%s4 + $0x28] sm:$0xff]
          %v7256 = vld [vmem:[%s4 + $0x30] sm:$0xff]
          %v7257 = vld [vmem:[%s4 + $0x38] sm:$0xff]
          %v7258 = vld [vmem:[%s4 + $0x40] sm:$0xff]
          %v7259 = vld [vmem:[%s4 + $0x48] sm:$0xff]
          %v7260 = vld [vmem:[%s4 + $0x50] sm:$0xff]
          %v7261 = vld [vmem:[%s4 + $0x58] sm:$0xff]
          %v7262 = vld [vmem:[%s4 + $0x60] sm:$0xff]
          %v7263 = vld [vmem:[%s4 + $0x68] sm:$0xff]
          %v7264 = vld [vmem:[%s4 + $0x70] sm:$0xff]
          %v7265 = vld [vmem:[%s4 + $0x78] sm:$0xff]
          %7266 = vmatprep.subr.mxu0 0.0
          %7267 = vmatpush1.msra.mxu0 %v7250
          %7268 = vmatprep.subr.mxu0 0.0
          %7269 = vmatpush1.msra.mxu0 %v7251
          %7270 = vmatprep.subr.mxu0 0.0
          %7271 = vmatpush1.msra.mxu0 %v7252
          %7272 = vmatprep.subr.mxu0 0.0
          %7273 = vmatpush1.msra.mxu0 %v7253
          %7274 = vmatprep.subr.mxu0 0.0
          %7275 = vmatpush1.msra.mxu0 %v7254
          %7276 = vmatprep.subr.mxu0 0.0
          %7277 = vmatpush1.msra.mxu0 %v7255
          %7278 = vmatprep.subr.mxu0 0.0
          %7279 = vmatpush1.msra.mxu0 %v7256
          %7280 = vmatprep.subr.mxu0 0.0
          %7281 = vmatpush1.msra.mxu0 %v7257
          %7282 = vmatprep.subr.mxu0 0.0
          %7283 = vmatpush1.msra.mxu0 %v7258
          %7284 = vmatprep.subr.mxu0 0.0
          %7285 = vmatpush1.msra.mxu0 %v7259
          %7286 = vmatprep.subr.mxu0 0.0
          %7287 = vmatpush1.msra.mxu0 %v7260
          %7288 = vmatprep.subr.mxu0 0.0
          %7289 = vmatpush1.msra.mxu0 %v7261
          %7290 = vmatprep.subr.mxu0 0.0
          %7291 = vmatpush1.msra.mxu0 %v7262
          %7292 = vmatprep.subr.mxu0 0.0
          %7293 = vmatpush1.msra.mxu0 %v7263
          %7294 = vmatprep.subr.mxu0 0.0
          %7295 = vmatpush1.msra.mxu0 %v7264
          %7296 = vmatprep.subr.mxu0 0.0
          %7297 = vmatpush1.msra.mxu0 %v7265
          %7298 = vmatprep.subr.mxu0 0.0
          %7299 = vmatpush1.msra.mxu0 0.0
          %7300 = vmatprep.subr.mxu0 0.0
          %7301 = vmatpush1.msra.mxu0 0.0
          %7302 = vmatprep.subr.mxu0 0.0
          %7303 = vmatpush1.msra.mxu0 0.0
          %7304 = vmatprep.subr.mxu0 0.0
          %7305 = vmatpush1.msra.mxu0 0.0
          %7306 = vmatprep.subr.mxu0 0.0
          %7307 = vmatpush1.msra.mxu0 0.0
          %7308 = vmatprep.subr.mxu0 0.0
          %7309 = vmatpush1.msra.mxu0 0.0
          %7310 = vmatprep.subr.mxu0 0.0
          %7311 = vmatpush1.msra.mxu0 0.0
          %7312 = vmatprep.subr.mxu0 0.0
          %7313 = vmatpush1.msra.mxu0 0.0
          %7314 = vmatprep.subr.mxu0 0.0
          %7315 = vmatpush1.msra.mxu0 0.0
          %7316 = vmatprep.subr.mxu0 0.0
          %7317 = vmatpush1.msra.mxu0 0.0
          %7318 = vmatprep.subr.mxu0 0.0
          %7319 = vmatpush1.msra.mxu0 0.0
          %7320 = vmatprep.subr.mxu0 0.0
          %7321 = vmatpush1.msra.mxu0 0.0
          %7322 = vmatprep.subr.mxu0 0.0
          %7323 = vmatpush1.msra.mxu0 0.0
          %7324 = vmatprep.subr.mxu0 0.0
          %7325 = vmatpush1.msra.mxu0 0.0
          %7326 = vmatprep.subr.mxu0 0.0
          %7327 = vmatpush1.msra.mxu0 0.0
          %7328 = vmatprep.subr.mxu0 0.0
          %7329 = vmatpush1.msra.mxu0 0.0
          %7330 = vmatprep.mubr.f32.mxu0 0.0
          %7331 = vmatmul.mubr.f32.gmra.mrb[0].mxu0 %v7242
          %v7332 = vpop.f32.mrb[0].mxu0
          %v7333 = vadd.f32 0.0, %v7332
          %v7334 = vpop.f32.mrb[0].mxu0
          %7335 = vmatprep.mubr.f32.mxu0 0.0
          %7336 = vmatmul.mubr.f32.gmra.mrb[0].mxu0 %v7243
          %v7337 = vpop.f32.mrb[0].mxu0
          %v7338 = vadd.f32 0.0, %v7337
          %v7339 = vpop.f32.mrb[0].mxu0
          %7340 = vmatprep.mubr.f32.mxu0 0.0
          %7341 = vmatmul.mubr.f32.gmra.mrb[0].mxu0 %v7244
          %v7342 = vpop.f32.mrb[0].mxu0
          %v7343 = vadd.f32 0.0, %v7342
          %v7344 = vpop.f32.mrb[0].mxu0
          %7345 = vmatprep.mubr.f32.mxu0 0.0
          %7346 = vmatmul.mubr.f32.gmra.mrb[0].mxu0 %v7245
          %v7347 = vpop.f32.mrb[0].mxu0
          %v7348 = vadd.f32 0.0, %v7347
          %v7349 = vpop.f32.mrb[0].mxu0
          %7350 = vmatprep.mubr.f32.mxu0 0.0
          %7351 = vmatmul.mubr.f32.gmra.mrb[0].mxu0 %v7246
          %v7352 = vpop.f32.mrb[0].mxu0
          %v7353 = vadd.f32 0.0, %v7352
          %v7354 = vpop.f32.mrb[0].mxu0
          %7355 = vmatprep.mubr.f32.mxu0 0.0
          %7356 = vmatmul.mubr.f32.gmra.mrb[0].mxu0 %v7247
          %v7357 = vpop.f32.mrb[0].mxu0
          %v7358 = vadd.f32 0.0, %v7357
          %v7359 = vpop.f32.mrb[0].mxu0
          %7360 = vmatprep.mubr.f32.mxu0 0.0
          %7361 = vmatmul.mubr.f32.gmra.mrb[0].mxu0 %v7248
          %v7362 = vpop.f32.mrb[0].mxu0
          %v7363 = vadd.f32 0.0, %v7362
          %v7364 = vpop.f32.mrb[0].mxu0
          %7365 = vmatprep.mubr.f32.mxu0 0.0
          %7366 = vmatmul.mubr.f32.gmra.mrb[0].mxu0 %v7249
          %v7367 = vpop.f32.mrb[0].mxu0
          %v7368 = vadd.f32 0.0, %v7367
          %v7369 = vpop.f32.mrb[0].mxu0
          %7370 = vdwg.mxu0
          %7371 = vmatprep.subr.mxu0 0.0
          %7372 = vmatpush1.msra.mxu0 %v7226
          %7373 = vmatprep.subr.mxu0 0.0
          %7374 = vmatpush1.msra.mxu0 %v7227
          %7375 = vmatprep.subr.mxu0 0.0
          %7376 = vmatpush1.msra.mxu0 %v7228
          %7377 = vmatprep.subr.mxu0 0.0
          %7378 = vmatpush1.msra.mxu0 %v7229
          %7379 = vmatprep.subr.mxu0 0.0
          %7380 = vmatpush1.msra.mxu0 %v7230
          %7381 = vmatprep.subr.mxu0 0.0
          %7382 = vmatpush1.msra.mxu0 %v7231
          %7383 = vmatprep.subr.mxu0 0.0
          %7384 = vmatpush1.msra.mxu0 %v7232
          %7385 = vmatprep.subr.mxu0 0.0
          %7386 = vmatpush1.msra.mxu0 %v7233
          %7387 = vmatprep.subr.mxu0 0.0
          %7388 = vmatpush1.msra.mxu0 %v7234
          %7389 = vmatprep.subr.mxu0 0.0
          %7390 = vmatpush1.msra.mxu0 %v7235
          %7391 = vmatprep.subr.mxu0 0.0
          %7392 = vmatpush1.msra.mxu0 %v7236
          %7393 = vmatprep.subr.mxu0 0.0
          %7394 = vmatpush1.msra.mxu0 %v7237
          %7395 = vmatprep.subr.mxu0 0.0
          %7396 = vmatpush1.msra.mxu0 %v7238
          %7397 = vmatprep.subr.mxu0 0.0
          %7398 = vmatpush1.msra.mxu0 %v7239
          %7399 = vmatprep.subr.mxu0 0.0
          %7400 = vmatpush1.msra.mxu0 %v7240
          %7401 = vmatprep.subr.mxu0 0.0
          %7402 = vmatpush1.msra.mxu0 %v7241
          %7403 = vmatprep.subr.mxu0 0.0
          %7404 = vmatpush1.msra.mxu0 0.0
          %7405 = vmatprep.subr.mxu0 0.0
          %7406 = vmatpush1.msra.mxu0 0.0
          %7407 = vmatprep.subr.mxu0 0.0
          %7408 = vmatpush1.msra.mxu0 0.0
          %7409 = vmatprep.subr.mxu0 0.0
          %7410 = vmatpush1.msra.mxu0 0.0
          %7411 = vmatprep.subr.mxu0 0.0
          %7412 = vmatpush1.msra.mxu0 0.0
          %7413 = vmatprep.subr.mxu0 0.0
          %7414 = vmatpush1.msra.mxu0 0.0
          %7415 = vmatprep.subr.mxu0 0.0
          %7416 = vmatpush1.msra.mxu0 0.0
          %7417 = vmatprep.subr.mxu0 0.0
          %7418 = vmatpush1.msra.mxu0 0.0
          %7419 = vmatprep.subr.mxu0 0.0
          %7420 = vmatpush1.msra.mxu0 0.0
          %7421 = vmatprep.subr.mxu0 0.0
          %7422 = vmatpush1.msra.mxu0 0.0
          %7423 = vmatprep.subr.mxu0 0.0
          %7424 = vmatpush1.msra.mxu0 0.0
          %7425 = vmatprep.subr.mxu0 0.0
          %7426 = vmatpush1.msra.mxu0 0.0
          %7427 = vmatprep.subr.mxu0 0.0
          %7428 = vmatpush1.msra.mxu0 0.0
          %7429 = vmatprep.subr.mxu0 0.0
          %7430 = vmatpush1.msra.mxu0 0.0
          %7431 = vmatprep.subr.mxu0 0.0
          %7432 = vmatpush1.msra.mxu0 0.0
          %7433 = vmatprep.subr.mxu0 0.0
          %7434 = vmatpush1.msra.mxu0 0.0
          %7435 = vmatprep.mubr.f32.mxu0 0.0
          %7436 = vmatmul.mubr.f32.gmra.mrb[0].mxu0 %v7218
          %v7437 = vpop.f32.mrb[0].mxu0
          %v7438 = vadd.f32 %v7333, %v7437
          %v7439 = vpop.f32.mrb[0].mxu0
          %7440 = vmatprep.mubr.f32.mxu0 0.0
          %7441 = vmatmul.mubr.f32.gmra.mrb[0].mxu0 %v7219
          %v7442 = vpop.f32.mrb[0].mxu0
          %v7443 = vadd.f32 %v7338, %v7442
          %v7444 = vpop.f32.mrb[0].mxu0
          %7445 = vmatprep.mubr.f32.mxu0 0.0
          %7446 = vmatmul.mubr.f32.gmra.mrb[0].mxu0 %v7220
          %v7447 = vpop.f32.mrb[0].mxu0
          %v7448 = vadd.f32 %v7343, %v7447
          %v7449 = vpop.f32.mrb[0].mxu0
          %7450 = vmatprep.mubr.f32.mxu0 0.0
          %7451 = vmatmul.mubr.f32.gmra.mrb[0].mxu0 %v7221
          %v7452 = vpop.f32.mrb[0].mxu0
          %v7453 = vadd.f32 %v7348, %v7452
          %v7454 = vpop.f32.mrb[0].mxu0
          %7455 = vmatprep.mubr.f32.mxu0 0.0
          %7456 = vmatmul.mubr.f32.gmra.mrb[0].mxu0 %v7222
          %v7457 = vpop.f32.mrb[0].mxu0
          %v7458 = vadd.f32 %v7353, %v7457
          %v7459 = vpop.f32.mrb[0].mxu0
          %7460 = vmatprep.mubr.f32.mxu0 0.0
          %7461 = vmatmul.mubr.f32.gmra.mrb[0].mxu0 %v7223
          %v7462 = vpop.f32.mrb[0].mxu0
          %v7463 = vadd.f32 %v7358, %v7462
          %v7464 = vpop.f32.mrb[0].mxu0
          %7465 = vmatprep.mubr.f32.mxu0 0.0
          %7466 = vmatmul.mubr.f32.gmra.mrb[0].mxu0 %v7224
          %v7467 = vpop.f32.mrb[0].mxu0
          %v7468 = vadd.f32 %v7363, %v7467
          %v7469 = vpop.f32.mrb[0].mxu0
          %7470 = vmatprep.mubr.f32.mxu0 0.0
          %7471 = vmatmul.mubr.f32.gmra.mrb[0].mxu0 %v7225
          %v7472 = vpop.f32.mrb[0].mxu0
          %v7473 = vadd.f32 %v7368, %v7472
          %v7474 = vpop.f32.mrb[0].mxu0
          %7475 = vdwg.mxu0
          %v7476 = vld [vmem:[%s5] sm:$0x1]
          %v7478 = vlaneseq
          %v7479 = vshrl.u32 %v7478, 7
          %v7480 = vsub.s32 0, %v7479
          %v7481 = vrot.slane %v7476, %v7480
          %v7483 = vadd.f32 %v7438, %v7481
          %v7484 = vadd.f32 %v7443, %v7481
          %v7485 = vadd.f32 %v7448, %v7481
          %v7486 = vadd.f32 %v7453, %v7481
          %v7487 = vadd.f32 %v7458, %v7481
          %v7488 = vadd.f32 %v7463, %v7481
          %v7489 = vadd.f32 %v7468, %v7481
          %v7490 = vadd.f32 %v7473, %v7481
          %v7491 = vmul.f32 %v7483, %v7483
          %v7492 = vmul.f32 %v7484, %v7484
          %v7493 = vmul.f32 %v7485, %v7485
          %v7494 = vmul.f32 %v7486, %v7486
          %v7495 = vmul.f32 %v7487, %v7487
          %v7496 = vmul.f32 %v7488, %v7488
          %v7497 = vmul.f32 %v7489, %v7489
          %v7498 = vmul.f32 %v7490, %v7490
          %7499 = vadd.xlane.f32.xlu0 %v7491
          %v7500 = vpop.xlane.xlu0 %7499
          %7501 = vadd.xlane.f32.xlu0 %v7492
          %v7502 = vpop.xlane.xlu0 %7501
          %7503 = vadd.xlane.f32.xlu0 %v7493
          %v7504 = vpop.xlane.xlu0 %7503
          %7505 = vadd.xlane.f32.xlu0 %v7494
          %v7506 = vpop.xlane.xlu0 %7505
          %7507 = vadd.xlane.f32.xlu0 %v7495
          %v7508 = vpop.xlane.xlu0 %7507
          %7509 = vadd.xlane.f32.xlu0 %v7496
          %v7510 = vpop.xlane.xlu0 %7509
          %7511 = vadd.xlane.f32.xlu0 %v7497
          %v7512 = vpop.xlane.xlu0 %7511
          %7513 = vadd.xlane.f32.xlu0 %v7498
          %v7514 = vpop.xlane.xlu0 %7513
          %v7515 = vmax.f32 %v7500, 1e-24
          %v7516 = vmax.f32 %v7502, 1e-24
          %v7517 = vmax.f32 %v7504, 1e-24
          %v7518 = vmax.f32 %v7506, 1e-24
          %v7519 = vmax.f32 %v7508, 1e-24
          %v7520 = vmax.f32 %v7510, 1e-24
          %v7521 = vmax.f32 %v7512, 1e-24
          %v7522 = vmax.f32 %v7514, 1e-24
          %v7523 = vrsqrt.pop %v7515
          %v7524 = vrsqrt.pop %v7516
          %v7525 = vrsqrt.pop %v7517
          %v7526 = vrsqrt.pop %v7518
          %v7527 = vrsqrt.pop %v7519
          %v7528 = vrsqrt.pop %v7520
          %v7529 = vrsqrt.pop %v7521
          %v7530 = vrsqrt.pop %v7522
          %v7531 = vmul.f32 %v7483, %v7523
          %v7532 = vmul.f32 %v7484, %v7524
          %v7533 = vmul.f32 %v7485, %v7525
          %v7534 = vmul.f32 %v7486, %v7526
          %v7535 = vmul.f32 %v7487, %v7527
          %v7536 = vmul.f32 %v7488, %v7528
          %v7537 = vmul.f32 %v7489, %v7529
          %v7538 = vmul.f32 %v7490, %v7530
          %v7539 = vmax.f32 %v7531, 0.0
          %v7540 = vmax.f32 %v7532, 0.0
          %v7541 = vmax.f32 %v7533, 0.0
          %v7542 = vmax.f32 %v7534, 0.0
          %v7543 = vmax.f32 %v7535, 0.0
          %v7544 = vmax.f32 %v7536, 0.0
          %v7545 = vmax.f32 %v7537, 0.0
          %v7546 = vmax.f32 %v7538, 0.0
          %7547 = vst [vmem:[%s351] sm:$0xff] %v7539
          %7548 = vst [vmem:[%s351 + $0x8] sm:$0xff] %v7540
          %7549 = vst [vmem:[%s351 + $0x10] sm:$0xff] %v7541
          %7550 = vst [vmem:[%s351 + $0x18] sm:$0xff] %v7542
          %7551 = vst [vmem:[%s351 + $0x20] sm:$0xff] %v7543
          %7552 = vst [vmem:[%s351 + $0x28] sm:$0xff] %v7544
          %7553 = vst [vmem:[%s351 + $0x30] sm:$0xff] %v7545
          %7554 = vst [vmem:[%s351 + $0x38] sm:$0xff] %v7546
        $region90: #{sage_forward.5} parent=77 // pred_fallthru
          _
        %s7555 = smul.u32 8, %s21
        %p7556 = scmp.lt.s32.totalorder %s7555, 31
        %s7557 = scalar_select %p7556, %s7555, 31
        %s7558 = smul.addr %s7557, 8
        %s7559 = scalar_lea.vmem %s6, %s7558
        // Predicated region
        $region91: #{sage_forward.5} parent=77 // pred_check
          %p7560 = pneg %p190
        $region92: #{sage_forward.5} parent=77 // pred_check_branch
          %7562 = sbr.rel (%p7560) target = $region94
        $region93: #{sage_forward.5} parent=77 // pred_region
          %s7563 = smul.u32 8, %s21
        $region94: #{sage_forward.5} parent=77 // pred_fallthru
          _
      $region78: #{sage_forward.5} parent=5 // pred_fallthru
        _
      %p7564 = scmp.le.s32.totalorder 2, %s12
      // Predicated region
      $region95: #{sage_forward.5} parent=5 // pred_check
        %p7565 = pneg %p7564
      $region96: #{sage_forward.5} parent=5 // pred_check_branch
        %7567 = sbr.rel (%p7565) target = $region98
      $region97: #{sage_forward.5} parent=5 // pred_region
        %s7568 = ssub.s32 %s12, 2
        // Predicated region
        $region99: #{sage_forward.5} parent=97 // pred_check
          %p7569 = pneg %p196
        $region100: #{sage_forward.5} parent=97 // pred_check_branch
          %7571 = sbr.rel (%p7569) target = $region102
        $region101: #{sage_forward.5} parent=97 // pred_region
          %s7572 = smul.u32 8, %s23
          %p7573 = scmp.lt.s32.totalorder %s7572, 31
          %s7574 = scalar_select %p7573, %s7572, 31
          %s7575 = smul.addr %s7574, 8
          %s7576 = scalar_lea.vmem %s6, %s7575
        $region102: #{sage_forward.5} parent=97 // pred_fallthru
          _
      $region98: #{sage_forward.5} parent=5 // pred_fallthru
        _
    $region6: #{sage_forward.5} parent=1 // loop_footer
      %s16 = sadd.s32 1, %s12
    $region7: #{sage_forward.5} parent=1 // loop_footer_branch
      %11 = sbr.rel target = $region3
    $region8: #{sage_forward.5} parent=1 // loop_exit
      _

</llo_original>
